<compile_context>
chip_gen: v5e
topology: v5e:2x2
jax: 0.10.0
libtpu: 0.0.40
codegen_flags: <defaults>
</compile_context>

<pallas_src>
import math
from functools import partial

import jax
import jax.numpy as jnp
from jax import lax
from jax.experimental import pallas as pl
from jax.experimental.pallas import tpu as pltpu

# ---------------------------------------------------------------------------
# Static network geometry (pinned by fc = Linear(64*7*7, out) => 84x84 input).
# ---------------------------------------------------------------------------
H_IN = 84
C1, C2, C3 = 32, 64, 64            # conv output channels
K1, S1 = 8, 4
K2, S2 = 4, 2
K3, S3 = 3, 1
OH1 = (H_IN - K1) // S1 + 1        # 20
OH2 = (OH1 - K2) // S2 + 1         # 9
OH3 = (OH2 - K3) // S3 + 1         # 7
G1 = OH1 // 2                      # 10 : conv1 output grid after 2x2 space-to-depth
PITCH = G1                         # spatial row pitch of the flat buffers
R2 = (OH2 - 1) * PITCH + OH2       # 89 : positions carried for conv2 output
R3 = (OH3 - 1) * PITCH + OH3       # 67 : positions carried for conv3 output
NF = OH3 * OH3 * C3                # 3136 flattened fc features


# ---------------------------------------------------------------------------
# The fused kernel: conv1 + conv2 + conv3 + fc for one tile of B_TILE samples.
# ---------------------------------------------------------------------------
def _fused_cnn_kernel(patch_ref, w1_ref, b1_ref, w2_ref, b2_ref,
                      w3_ref, b3_ref, wfc_ref, bfc_ref, out_ref):
    f32, bf16 = jnp.float32, jnp.bfloat16
    bt = out_ref.shape[1]                        # samples per tile (static)
    o_dim = out_ref.shape[2]

    # conv1: ONE lane-dense bf16 GEMM over the whole tile (M = 100*bt).
    # Row (p*10+q)*bt + s holds the 2x2 group of conv1 outputs of sample s at
    # spatial group (p, q); channel layout (r*2+rc)*32 + c.
    y1 = jnp.dot(patch_ref[0], w1_ref[...], preferred_element_type=f32)
    y1 = jnp.maximum(y1 + b1_ref[...], 0.0).astype(bf16)          # (100*bt, 128)

    # conv2 == 2x2 stride-1 conv over the pitch-10 grouped grid.  K-fused:
    # the 4 shifted row windows (128-lane aligned) are lane-concatenated and
    # contracted in ONE K=512 GEMM (no per-offset accumulation adds).
    r2 = R2 * bt
    x2 = jnp.concatenate(
        [y1[(a * PITCH + b) * bt:(a * PITCH + b) * bt + r2, :]
         for a in range(2) for b in range(2)], axis=1)            # (89*bt, 512)
    y2 = jnp.dot(x2, w2_ref[...], preferred_element_type=f32)
    y2 = jnp.maximum(y2 + b2_ref[...], 0.0).astype(bf16)          # (89*bt, 64)

    # conv3 == 3x3 stride-1 conv, same pitch-10 trick, K-fused (K=576).
    r3 = R3 * bt
    x3 = jnp.concatenate(
        [y2[(i * PITCH + j) * bt:(i * PITCH + j) * bt + r3, :]
         for i in range(3) for j in range(3)], axis=1)            # (67*bt, 576)
    y3 = jnp.dot(x3, w3_ref[...], preferred_element_type=f32)
    y3 = jnp.maximum(y3 + b3_ref[...], 0.0).astype(bf16)          # (67*bt, 64)

    # fc: 49 accumulated (bt, 64) x (64, O) GEMMs; each valid spatial position
    # is a contiguous bt-row block of y3 (no 49-way lane concat / single-
    # sublane relocations).  Weight rows already match PyTorch's NCHW flatten.
    acc = jnp.zeros((bt, o_dim), f32)
    for p in range(OH3):
        for q in range(OH3):
            pos = p * PITCH + q
            blk = y3[pos * bt:(pos + 1) * bt, :]                  # (bt, 64)
            acc = acc + jnp.dot(blk, wfc_ref[p * OH3 + q],
                                preferred_element_type=f32)
    out_ref[0] = (acc + bfc_ref[...]).astype(out_ref.dtype)


# ---------------------------------------------------------------------------
# Wrapper-side layout glue (one fused XLA relayout pass, emits bf16).
# ---------------------------------------------------------------------------
def _conv1_wide_patches(x_nchw, bt):
    """(B, Cin, 84, 84) -> (B//bt, 100*bt, 4*8*8*Cin) bf16 wide im2col rows.

    Tile row (p*10+q)*bt + sample concatenates (in (r, s) order) the four
    8x8xCin patches feeding conv1 outputs (2p+r, 2q+s) of that sample; within
    each patch the K layout is (kh, kw, cin).
    """
    B, Cin, _, _ = x_nchw.shape
    T = B // bt
    x = jnp.transpose(x_nchw, (0, 2, 3, 1))                       # NHWC
    span = S1 * (OH1 - 1) + 1
    cols = [x[:, i:i + span:S1, j:j + span:S1, :]
            for i in range(K1) for j in range(K1)]
    p = jnp.stack(cols, axis=3)                                   # (B,20,20,64,Cin)
    p = p.reshape(T, bt, OH1, OH1, K1 * K1 * Cin)                 # (kh,kw,cin) flat
    p = p.reshape(T, bt, G1, 2, G1, 2, K1 * K1 * Cin)
    p = jnp.transpose(p, (0, 2, 4, 1, 3, 5, 6))                   # (T,p,q,bt,r,s,K)
    return p.reshape(T, G1 * G1 * bt, 4 * K1 * K1 * Cin).astype(jnp.bfloat16)


@partial(jax.jit, static_argnums=(2,))
def _forward(x_nchw, prep, bt):
    B = x_nchw.shape[0]
    T = B // bt
    O = prep["wfc"].shape[2]
    patches = _conv1_wide_patches(x_nchw, bt)                     # (T, 100*bt, PK)
    PK = patches.shape[2]

    out = pl.pallas_call(
        _fused_cnn_kernel,
        out_shape=jax.ShapeDtypeStruct((T, bt, O), jnp.float32),
        grid_spec=pltpu.PrefetchScalarGridSpec(
            num_scalar_prefetch=0,
            grid=(T,),
            in_specs=[
                pl.BlockSpec((1, G1 * G1 * bt, PK), lambda t: (t, 0, 0)),  # patches
                pl.BlockSpec((PK, 4 * C1), lambda t: (0, 0)),              # w1 block-diag
                pl.BlockSpec((1, 4 * C1), lambda t: (0, 0)),               # b1
                pl.BlockSpec((4 * 4 * C1, C2), lambda t: (0, 0)),          # w2 (K-fused)
                pl.BlockSpec((1, C2), lambda t: (0, 0)),                   # b2
                pl.BlockSpec((K3 * K3 * C2, C3), lambda t: (0, 0)),        # w3 (K-fused)
                pl.BlockSpec((1, C3), lambda t: (0, 0)),                   # b3
                pl.BlockSpec((OH3 * OH3, C3, O), lambda t: (0, 0, 0)),     # fc weight
                pl.BlockSpec((1, O), lambda t: (0, 0)),                    # fc bias
            ],
            out_specs=pl.BlockSpec((1, bt, O), lambda t: (t, 0, 0)),
        ),
        compiler_params=pltpu.CompilerParams(
            dimension_semantics=("parallel",),
            vmem_limit_bytes=32 * 1024 * 1024),
    )(patches, prep["w1"], prep["b1"], prep["w2"], prep["b2"],
      prep["w3"], prep["b3"], prep["wfc"], prep["bfc"])
    return out.reshape(B, O)


def cnn_feature_extractor(x_nchw, prep, b_tile_target=8):
    """Forward pass matching CNNFeatureExtractor.forward; x is NCHW float32."""
    bt = math.gcd(x_nchw.shape[0], b_tile_target)   # divisor of B, <= target
    return _forward(x_nchw, prep, bt)


# ---------------------------------------------------------------------------
# Parameters: PyTorch-like init + ONE-TIME weight re-layout (bf16) for kernel.
# ---------------------------------------------------------------------------
def init_params(key, input_channels, output_dim):
    def uni(k, shape, fan_in):
        bound = 1.0 / (fan_in ** 0.5)
        return jax.random.uniform(k, shape, jnp.float32, -bound, bound)

    ks = jax.random.split(key, 8)
    p = {}
    p["conv1_w"] = uni(ks[0], (C1, input_channels, K1, K1), input_channels * K1 * K1)
    p["conv1_b"] = uni(ks[1], (C1,), input_channels * K1 * K1)
    p["conv2_w"] = uni(ks[2], (C2, C1, K2, K2), C1 * K2 * K2)
    p["conv2_b"] = uni(ks[3], (C2,), C1 * K2 * K2)
    p["conv3_w"] = uni(ks[4], (C3, C2, K3, K3), C2 * K3 * K3)
    p["conv3_b"] = uni(ks[5], (C3,), C2 * K3 * K3)
    p["fc_w"] = uni(ks[6], (output_dim, NF), NF)                   # PyTorch (out, in)
    p["fc_b"] = uni(ks[7], (output_dim,), NF)
    return p


def prepare_params(p):
    """Init-time weight re-layout + bf16 cast (no per-step transposes)."""
    Cin = p["conv1_w"].shape[1]
    O = p["fc_w"].shape[0]
    K = K1 * K1 * Cin
    bf16 = jnp.bfloat16

    # conv1: (kh, kw, cin) x cout GEMM weight, replicated block-diagonally so
    # the GEMM directly emits the 2x2 space-to-depth channel layout (128 lanes).
    w1m = jnp.transpose(p["conv1_w"], (2, 3, 1, 0)).reshape(K, C1)
    w1 = jnp.kron(jnp.eye(4, dtype=jnp.float32), w1m).astype(bf16)   # (4K, 128)
    b1 = jnp.tile(p["conv1_b"], 4).reshape(1, 4 * C1)                # f32

    # conv2: kernel offsets ki=2a+r, kj=2b+s.  One (128, 64) block per offset
    # (a, b) (rows ordered (r, s, cin) to match y1's channel layout), stacked
    # along K into a single (512, 64) weight for the K-fused GEMM.
    w2 = p["conv2_w"].reshape(C2, C1, 2, 2, 2, 2)                    # (co,ci,a,r,b,s)
    w2 = jnp.transpose(w2, (2, 4, 3, 5, 1, 0)).reshape(4 * 4 * C1, C2).astype(bf16)
    b2 = p["conv2_b"].reshape(1, C2)

    # conv3: one (64, 64) block per kernel offset (i, j), stacked along K into
    # a single (576, 64) weight for the K-fused GEMM.
    w3 = jnp.transpose(p["conv3_w"], (2, 3, 1, 0)).reshape(K3 * K3 * C2, C3)
    w3 = w3.astype(bf16)
    b3 = p["conv3_b"].reshape(1, C3)

    # fc: PyTorch flattens NCHW (col index c*49 + h*7 + w); the kernel
    # accumulates one (64, O) GEMM per spatial position m = h*7 + w.
    wfc = p["fc_w"].reshape(O, C3, OH3 * OH3)                        # (o, c, m)
    wfc = jnp.transpose(wfc, (2, 1, 0)).astype(bf16)                 # (49, 64, O)
    bfc = p["fc_b"].reshape(1, O)

    return {"w1": w1, "b1": b1, "w2": w2, "b2": b2,
            "w3": w3, "b3": b3, "wfc": wfc, "bfc": bfc}


# ---------------------------------------------------------------------------
# Pure-JAX reference (XLA convs, f32) with identical semantics, for validation.
# ---------------------------------------------------------------------------
def _reference_forward(x_nchw, p):
    x = jnp.transpose(x_nchw, (0, 2, 3, 1))

    def conv(x, w, b, s):
        y = lax.conv_general_dilated(
            x, jnp.transpose(w, (2, 3, 1, 0)), (s, s), "VALID",
            dimension_numbers=("NHWC", "HWIO", "NHWC"))
        return jax.nn.relu(y + b)

    x = conv(x, p["conv1_w"], p["conv1_b"], S1)
    x = conv(x, p["conv2_w"], p["conv2_b"], S2)
    x = conv(x, p["conv3_w"], p["conv3_b"], S3)
    x = jnp.transpose(x, (0, 3, 1, 2)).reshape(x.shape[0], -1)       # PyTorch flatten
    return x @ p["fc_w"].T + p["fc_b"]


if __name__ == "__main__":
    key = jax.random.PRNGKey(0)
    k_x, k_p = jax.random.split(key)

    input_channels = 4
    output_dim = 32
    batch = 16        # -> 2 grid steps of 8 samples each (keeps both v7x TCs busy)

    x = jax.random.normal(k_x, (batch, input_channels, H_IN, H_IN), jnp.float32)
    params = init_params(k_p, input_channels, output_dim)
    prep = prepare_params(params)            # one-time weight re-layout (bf16)

    out = jax.block_until_ready(cnn_feature_extractor(x, prep))

    assert out.shape == (batch, output_dim), out.shape
    assert out.dtype == jnp.float32
    assert bool(jnp.all(jnp.isfinite(out)))

    ref = _reference_forward(x, params)
    err = float(jnp.max(jnp.abs(out - ref)))
    tol = 5e-2 * (1.0 + float(jnp.max(jnp.abs(ref))))   # bf16 operands, f32 accum
    assert err < tol, f"mismatch vs reference: max abs err = {err}"
    print("KERNEL_OK")
</pallas_src>

<mosaic_0001>
module attributes {stable_mosaic.version = 11 : i64} {
  func.func @_fused_cnn_kernel(%arg0: i32, %arg1: memref<1x800x1024xbf16, #tpu.memory_space<vmem>>, %arg2: memref<1024x128xbf16, #tpu.memory_space<vmem>>, %arg3: memref<1x128xf32, #tpu.memory_space<vmem>>, %arg4: memref<512x64xbf16, #tpu.memory_space<vmem>>, %arg5: memref<1x64xf32, #tpu.memory_space<vmem>>, %arg6: memref<576x64xbf16, #tpu.memory_space<vmem>>, %arg7: memref<1x64xf32, #tpu.memory_space<vmem>>, %arg8: memref<49x64x32xbf16, #tpu.memory_space<vmem>>, %arg9: memref<1x32xf32, #tpu.memory_space<vmem>>, %arg10: memref<1x8x32xf32, #tpu.memory_space<vmem>>) attributes {dimension_semantics = [#tpu.dimension_semantics<parallel>], iteration_bounds = array<i64: 2>, scalar_prefetch = 0 : i64, scratch_operands = 0 : i64, tpu.core_type = #tpu.core_type<tc>, window_params = [{transform_indices = @transform_0, window_bounds = array<i64: 1, 800, 1024>}, {pipeline_mode = #tpu.pipeline_mode<synchronous>, transform_indices = @transform_1, window_bounds = array<i64: 1024, 128>}, {pipeline_mode = #tpu.pipeline_mode<synchronous>, transform_indices = @transform_2, window_bounds = array<i64: 1, 128>}, {pipeline_mode = #tpu.pipeline_mode<synchronous>, transform_indices = @transform_3, window_bounds = array<i64: 512, 64>}, {pipeline_mode = #tpu.pipeline_mode<synchronous>, transform_indices = @transform_4, window_bounds = array<i64: 1, 64>}, {pipeline_mode = #tpu.pipeline_mode<synchronous>, transform_indices = @transform_5, window_bounds = array<i64: 576, 64>}, {pipeline_mode = #tpu.pipeline_mode<synchronous>, transform_indices = @transform_6, window_bounds = array<i64: 1, 64>}, {pipeline_mode = #tpu.pipeline_mode<synchronous>, transform_indices = @transform_7, window_bounds = array<i64: 49, 64, 32>}, {pipeline_mode = #tpu.pipeline_mode<synchronous>, transform_indices = @transform_8, window_bounds = array<i64: 1, 32>}, {transform_indices = @transform_9, window_bounds = array<i64: 1, 8, 32>}]} {
    %c0 = arith.constant 0 : index
    %c0_0 = arith.constant 0 : index
    %c0_1 = arith.constant 0 : index
    %0 = vector.load %arg1[%c0, %c0_0, %c0_1] : memref<1x800x1024xbf16, #tpu.memory_space<vmem>>, vector<1x800x1024xbf16>
    %1 = vector.shape_cast %0 : vector<1x800x1024xbf16> to vector<800x1024xbf16>
    %c0_2 = arith.constant 0 : index
    %c0_3 = arith.constant 0 : index
    %2 = vector.load %arg2[%c0_2, %c0_3] : memref<1024x128xbf16, #tpu.memory_space<vmem>>, vector<1024x128xbf16>
    %cst = arith.constant dense<0.000000e+00> : vector<800x128xf32>
    %3 = tpu.matmul %1, %2, %cst {dimension_numbers = #tpu.dot_dimension_numbers<[1], [0], [0], [1], [0, 0, 1, 1], [], []>} : vector<800x1024xbf16>, vector<1024x128xbf16>, vector<800x128xf32> -> vector<800x128xf32>
    %c0_4 = arith.constant 0 : index
    %c0_5 = arith.constant 0 : index
    %4 = vector.load %arg3[%c0_4, %c0_5] : memref<1x128xf32, #tpu.memory_space<vmem>>, vector<1x128xf32>
    %5 = vector.broadcast %4 : vector<1x128xf32> to vector<800x128xf32>
    %6 = arith.addf %3, %5 : vector<800x128xf32>
    %cst_6 = arith.constant 0.000000e+00 : f32
    %7 = vector.broadcast %cst_6 : f32 to vector<800x128xf32>
    %8 = arith.maximumf %6, %7 : vector<800x128xf32>
    %9 = arith.truncf %8 : vector<800x128xf32> to vector<800x128xbf16>
    %10 = vector.extract_strided_slice %9 {offsets = [0, 0], sizes = [712, 128], strides = [1, 1]} : vector<800x128xbf16> to vector<712x128xbf16>
    %11 = vector.extract_strided_slice %9 {offsets = [8, 0], sizes = [712, 128], strides = [1, 1]} : vector<800x128xbf16> to vector<712x128xbf16>
    %12 = vector.extract_strided_slice %9 {offsets = [80, 0], sizes = [712, 128], strides = [1, 1]} : vector<800x128xbf16> to vector<712x128xbf16>
    %13 = vector.extract_strided_slice %9 {offsets = [88, 0], sizes = [712, 128], strides = [1, 1]} : vector<800x128xbf16> to vector<712x128xbf16>
    %14 = tpu.concatenate %10, %11, %12, %13 in 1 : vector<712x128xbf16>, vector<712x128xbf16>, vector<712x128xbf16>, vector<712x128xbf16> -> vector<712x512xbf16>
    %c0_7 = arith.constant 0 : index
    %c0_8 = arith.constant 0 : index
    %15 = vector.load %arg4[%c0_7, %c0_8] : memref<512x64xbf16, #tpu.memory_space<vmem>>, vector<512x64xbf16>
    %cst_9 = arith.constant dense<0.000000e+00> : vector<712x64xf32>
    %16 = tpu.matmul %14, %15, %cst_9 {dimension_numbers = #tpu.dot_dimension_numbers<[1], [0], [0], [1], [0, 0, 1, 1], [], []>} : vector<712x512xbf16>, vector<512x64xbf16>, vector<712x64xf32> -> vector<712x64xf32>
    %c0_10 = arith.constant 0 : index
    %c0_11 = arith.constant 0 : index
    %17 = vector.load %arg5[%c0_10, %c0_11] : memref<1x64xf32, #tpu.memory_space<vmem>>, vector<1x64xf32>
    %18 = vector.broadcast %17 : vector<1x64xf32> to vector<712x64xf32>
    %19 = arith.addf %16, %18 : vector<712x64xf32>
    %cst_12 = arith.constant 0.000000e+00 : f32
    %20 = vector.broadcast %cst_12 : f32 to vector<712x64xf32>
    %21 = arith.maximumf %19, %20 : vector<712x64xf32>
    %22 = arith.truncf %21 : vector<712x64xf32> to vector<712x64xbf16>
    %23 = vector.extract_strided_slice %22 {offsets = [0, 0], sizes = [536, 64], strides = [1, 1]} : vector<712x64xbf16> to vector<536x64xbf16>
    %24 = vector.extract_strided_slice %22 {offsets = [8, 0], sizes = [536, 64], strides = [1, 1]} : vector<712x64xbf16> to vector<536x64xbf16>
    %25 = vector.extract_strided_slice %22 {offsets = [16, 0], sizes = [536, 64], strides = [1, 1]} : vector<712x64xbf16> to vector<536x64xbf16>
    %26 = vector.extract_strided_slice %22 {offsets = [80, 0], sizes = [536, 64], strides = [1, 1]} : vector<712x64xbf16> to vector<536x64xbf16>
    %27 = vector.extract_strided_slice %22 {offsets = [88, 0], sizes = [536, 64], strides = [1, 1]} : vector<712x64xbf16> to vector<536x64xbf16>
    %28 = vector.extract_strided_slice %22 {offsets = [96, 0], sizes = [536, 64], strides = [1, 1]} : vector<712x64xbf16> to vector<536x64xbf16>
    %29 = vector.extract_strided_slice %22 {offsets = [160, 0], sizes = [536, 64], strides = [1, 1]} : vector<712x64xbf16> to vector<536x64xbf16>
    %30 = vector.extract_strided_slice %22 {offsets = [168, 0], sizes = [536, 64], strides = [1, 1]} : vector<712x64xbf16> to vector<536x64xbf16>
    %31 = vector.extract_strided_slice %22 {offsets = [176, 0], sizes = [536, 64], strides = [1, 1]} : vector<712x64xbf16> to vector<536x64xbf16>
    %32 = tpu.concatenate %23, %24, %25, %26, %27, %28, %29, %30, %31 in 1 : vector<536x64xbf16>, vector<536x64xbf16>, vector<536x64xbf16>, vector<536x64xbf16>, vector<536x64xbf16>, vector<536x64xbf16>, vector<536x64xbf16>, vector<536x64xbf16>, vector<536x64xbf16> -> vector<536x576xbf16>
    %c0_13 = arith.constant 0 : index
    %c0_14 = arith.constant 0 : index
    %33 = vector.load %arg6[%c0_13, %c0_14] : memref<576x64xbf16, #tpu.memory_space<vmem>>, vector<576x64xbf16>
    %cst_15 = arith.constant dense<0.000000e+00> : vector<536x64xf32>
    %34 = tpu.matmul %32, %33, %cst_15 {dimension_numbers = #tpu.dot_dimension_numbers<[1], [0], [0], [1], [0, 0, 1, 1], [], []>} : vector<536x576xbf16>, vector<576x64xbf16>, vector<536x64xf32> -> vector<536x64xf32>
    %c0_16 = arith.constant 0 : index
    %c0_17 = arith.constant 0 : index
    %35 = vector.load %arg7[%c0_16, %c0_17] : memref<1x64xf32, #tpu.memory_space<vmem>>, vector<1x64xf32>
    %36 = vector.broadcast %35 : vector<1x64xf32> to vector<536x64xf32>
    %37 = arith.addf %34, %36 : vector<536x64xf32>
    %cst_18 = arith.constant 0.000000e+00 : f32
    %38 = vector.broadcast %cst_18 : f32 to vector<536x64xf32>
    %39 = arith.maximumf %37, %38 : vector<536x64xf32>
    %40 = arith.truncf %39 : vector<536x64xf32> to vector<536x64xbf16>
    %cst_19 = arith.constant 0.000000e+00 : f32
    %41 = vector.broadcast %cst_19 : f32 to vector<8x32xf32>
    %42 = vector.extract_strided_slice %40 {offsets = [0, 0], sizes = [8, 64], strides = [1, 1]} : vector<536x64xbf16> to vector<8x64xbf16>
    %c0_20 = arith.constant 0 : index
    %c0_21 = arith.constant 0 : index
    %c0_22 = arith.constant 0 : index
    %43 = vector.load %arg8[%c0_20, %c0_21, %c0_22] : memref<49x64x32xbf16, #tpu.memory_space<vmem>>, vector<1x64x32xbf16>
    %44 = vector.shape_cast %43 : vector<1x64x32xbf16> to vector<64x32xbf16>
    %cst_23 = arith.constant dense<0.000000e+00> : vector<8x32xf32>
    %45 = tpu.matmul %42, %44, %cst_23 {dimension_numbers = #tpu.dot_dimension_numbers<[1], [0], [0], [1], [0, 0, 1, 1], [], []>} : vector<8x64xbf16>, vector<64x32xbf16>, vector<8x32xf32> -> vector<8x32xf32>
    %46 = arith.addf %41, %45 : vector<8x32xf32>
    %47 = vector.extract_strided_slice %40 {offsets = [8, 0], sizes = [8, 64], strides = [1, 1]} : vector<536x64xbf16> to vector<8x64xbf16>
    %c1 = arith.constant 1 : index
    %c0_24 = arith.constant 0 : index
    %c0_25 = arith.constant 0 : index
    %48 = vector.load %arg8[%c1, %c0_24, %c0_25] : memref<49x64x32xbf16, #tpu.memory_space<vmem>>, vector<1x64x32xbf16>
    %49 = vector.shape_cast %48 : vector<1x64x32xbf16> to vector<64x32xbf16>
    %cst_26 = arith.constant dense<0.000000e+00> : vector<8x32xf32>
    %50 = tpu.matmul %47, %49, %cst_26 {dimension_numbers = #tpu.dot_dimension_numbers<[1], [0], [0], [1], [0, 0, 1, 1], [], []>} : vector<8x64xbf16>, vector<64x32xbf16>, vector<8x32xf32> -> vector<8x32xf32>
    %51 = arith.addf %46, %50 : vector<8x32xf32>
    %52 = vector.extract_strided_slice %40 {offsets = [16, 0], sizes = [8, 64], strides = [1, 1]} : vector<536x64xbf16> to vector<8x64xbf16>
    %c2 = arith.constant 2 : index
    %c0_27 = arith.constant 0 : index
    %c0_28 = arith.constant 0 : index
    %53 = vector.load %arg8[%c2, %c0_27, %c0_28] : memref<49x64x32xbf16, #tpu.memory_space<vmem>>, vector<1x64x32xbf16>
    %54 = vector.shape_cast %53 : vector<1x64x32xbf16> to vector<64x32xbf16>
    %cst_29 = arith.constant dense<0.000000e+00> : vector<8x32xf32>
    %55 = tpu.matmul %52, %54, %cst_29 {dimension_numbers = #tpu.dot_dimension_numbers<[1], [0], [0], [1], [0, 0, 1, 1], [], []>} : vector<8x64xbf16>, vector<64x32xbf16>, vector<8x32xf32> -> vector<8x32xf32>
    %56 = arith.addf %51, %55 : vector<8x32xf32>
    %57 = vector.extract_strided_slice %40 {offsets = [24, 0], sizes = [8, 64], strides = [1, 1]} : vector<536x64xbf16> to vector<8x64xbf16>
    %c3 = arith.constant 3 : index
    %c0_30 = arith.constant 0 : index
    %c0_31 = arith.constant 0 : index
    %58 = vector.load %arg8[%c3, %c0_30, %c0_31] : memref<49x64x32xbf16, #tpu.memory_space<vmem>>, vector<1x64x32xbf16>
    %59 = vector.shape_cast %58 : vector<1x64x32xbf16> to vector<64x32xbf16>
    %cst_32 = arith.constant dense<0.000000e+00> : vector<8x32xf32>
    %60 = tpu.matmul %57, %59, %cst_32 {dimension_numbers = #tpu.dot_dimension_numbers<[1], [0], [0], [1], [0, 0, 1, 1], [], []>} : vector<8x64xbf16>, vector<64x32xbf16>, vector<8x32xf32> -> vector<8x32xf32>
    %61 = arith.addf %56, %60 : vector<8x32xf32>
    %62 = vector.extract_strided_slice %40 {offsets = [32, 0], sizes = [8, 64], strides = [1, 1]} : vector<536x64xbf16> to vector<8x64xbf16>
    %c4 = arith.constant 4 : index
    %c0_33 = arith.constant 0 : index
    %c0_34 = arith.constant 0 : index
    %63 = vector.load %arg8[%c4, %c0_33, %c0_34] : memref<49x64x32xbf16, #tpu.memory_space<vmem>>, vector<1x64x32xbf16>
    %64 = vector.shape_cast %63 : vector<1x64x32xbf16> to vector<64x32xbf16>
    %cst_35 = arith.constant dense<0.000000e+00> : vector<8x32xf32>
    %65 = tpu.matmul %62, %64, %cst_35 {dimension_numbers = #tpu.dot_dimension_numbers<[1], [0], [0], [1], [0, 0, 1, 1], [], []>} : vector<8x64xbf16>, vector<64x32xbf16>, vector<8x32xf32> -> vector<8x32xf32>
    %66 = arith.addf %61, %65 : vector<8x32xf32>
    %67 = vector.extract_strided_slice %40 {offsets = [40, 0], sizes = [8, 64], strides = [1, 1]} : vector<536x64xbf16> to vector<8x64xbf16>
    %c5 = arith.constant 5 : index
    %c0_36 = arith.constant 0 : index
    %c0_37 = arith.constant 0 : index
    %68 = vector.load %arg8[%c5, %c0_36, %c0_37] : memref<49x64x32xbf16, #tpu.memory_space<vmem>>, vector<1x64x32xbf16>
    %69 = vector.shape_cast %68 : vector<1x64x32xbf16> to vector<64x32xbf16>
    %cst_38 = arith.constant dense<0.000000e+00> : vector<8x32xf32>
    %70 = tpu.matmul %67, %69, %cst_38 {dimension_numbers = #tpu.dot_dimension_numbers<[1], [0], [0], [1], [0, 0, 1, 1], [], []>} : vector<8x64xbf16>, vector<64x32xbf16>, vector<8x32xf32> -> vector<8x32xf32>
    %71 = arith.addf %66, %70 : vector<8x32xf32>
    %72 = vector.extract_strided_slice %40 {offsets = [48, 0], sizes = [8, 64], strides = [1, 1]} : vector<536x64xbf16> to vector<8x64xbf16>
    %c6 = arith.constant 6 : index
    %c0_39 = arith.constant 0 : index
    %c0_40 = arith.constant 0 : index
    %73 = vector.load %arg8[%c6, %c0_39, %c0_40] : memref<49x64x32xbf16, #tpu.memory_space<vmem>>, vector<1x64x32xbf16>
    %74 = vector.shape_cast %73 : vector<1x64x32xbf16> to vector<64x32xbf16>
    %cst_41 = arith.constant dense<0.000000e+00> : vector<8x32xf32>
    %75 = tpu.matmul %72, %74, %cst_41 {dimension_numbers = #tpu.dot_dimension_numbers<[1], [0], [0], [1], [0, 0, 1, 1], [], []>} : vector<8x64xbf16>, vector<64x32xbf16>, vector<8x32xf32> -> vector<8x32xf32>
    %76 = arith.addf %71, %75 : vector<8x32xf32>
    %77 = vector.extract_strided_slice %40 {offsets = [80, 0], sizes = [8, 64], strides = [1, 1]} : vector<536x64xbf16> to vector<8x64xbf16>
    %c7 = arith.constant 7 : index
    %c0_42 = arith.constant 0 : index
    %c0_43 = arith.constant 0 : index
    %78 = vector.load %arg8[%c7, %c0_42, %c0_43] : memref<49x64x32xbf16, #tpu.memory_space<vmem>>, vector<1x64x32xbf16>
    %79 = vector.shape_cast %78 : vector<1x64x32xbf16> to vector<64x32xbf16>
    %cst_44 = arith.constant dense<0.000000e+00> : vector<8x32xf32>
    %80 = tpu.matmul %77, %79, %cst_44 {dimension_numbers = #tpu.dot_dimension_numbers<[1], [0], [0], [1], [0, 0, 1, 1], [], []>} : vector<8x64xbf16>, vector<64x32xbf16>, vector<8x32xf32> -> vector<8x32xf32>
    %81 = arith.addf %76, %80 : vector<8x32xf32>
    %82 = vector.extract_strided_slice %40 {offsets = [88, 0], sizes = [8, 64], strides = [1, 1]} : vector<536x64xbf16> to vector<8x64xbf16>
    %c8 = arith.constant 8 : index
    %c0_45 = arith.constant 0 : index
    %c0_46 = arith.constant 0 : index
    %83 = vector.load %arg8[%c8, %c0_45, %c0_46] : memref<49x64x32xbf16, #tpu.memory_space<vmem>>, vector<1x64x32xbf16>
    %84 = vector.shape_cast %83 : vector<1x64x32xbf16> to vector<64x32xbf16>
    %cst_47 = arith.constant dense<0.000000e+00> : vector<8x32xf32>
    %85 = tpu.matmul %82, %84, %cst_47 {dimension_numbers = #tpu.dot_dimension_numbers<[1], [0], [0], [1], [0, 0, 1, 1], [], []>} : vector<8x64xbf16>, vector<64x32xbf16>, vector<8x32xf32> -> vector<8x32xf32>
    %86 = arith.addf %81, %85 : vector<8x32xf32>
    %87 = vector.extract_strided_slice %40 {offsets = [96, 0], sizes = [8, 64], strides = [1, 1]} : vector<536x64xbf16> to vector<8x64xbf16>
    %c9 = arith.constant 9 : index
    %c0_48 = arith.constant 0 : index
    %c0_49 = arith.constant 0 : index
    %88 = vector.load %arg8[%c9, %c0_48, %c0_49] : memref<49x64x32xbf16, #tpu.memory_space<vmem>>, vector<1x64x32xbf16>
    %89 = vector.shape_cast %88 : vector<1x64x32xbf16> to vector<64x32xbf16>
    %cst_50 = arith.constant dense<0.000000e+00> : vector<8x32xf32>
    %90 = tpu.matmul %87, %89, %cst_50 {dimension_numbers = #tpu.dot_dimension_numbers<[1], [0], [0], [1], [0, 0, 1, 1], [], []>} : vector<8x64xbf16>, vector<64x32xbf16>, vector<8x32xf32> -> vector<8x32xf32>
    %91 = arith.addf %86, %90 : vector<8x32xf32>
    %92 = vector.extract_strided_slice %40 {offsets = [104, 0], sizes = [8, 64], strides = [1, 1]} : vector<536x64xbf16> to vector<8x64xbf16>
    %c10 = arith.constant 10 : index
    %c0_51 = arith.constant 0 : index
    %c0_52 = arith.constant 0 : index
    %93 = vector.load %arg8[%c10, %c0_51, %c0_52] : memref<49x64x32xbf16, #tpu.memory_space<vmem>>, vector<1x64x32xbf16>
    %94 = vector.shape_cast %93 : vector<1x64x32xbf16> to vector<64x32xbf16>
    %cst_53 = arith.constant dense<0.000000e+00> : vector<8x32xf32>
    %95 = tpu.matmul %92, %94, %cst_53 {dimension_numbers = #tpu.dot_dimension_numbers<[1], [0], [0], [1], [0, 0, 1, 1], [], []>} : vector<8x64xbf16>, vector<64x32xbf16>, vector<8x32xf32> -> vector<8x32xf32>
    %96 = arith.addf %91, %95 : vector<8x32xf32>
    %97 = vector.extract_strided_slice %40 {offsets = [112, 0], sizes = [8, 64], strides = [1, 1]} : vector<536x64xbf16> to vector<8x64xbf16>
    %c11 = arith.constant 11 : index
    %c0_54 = arith.constant 0 : index
    %c0_55 = arith.constant 0 : index
    %98 = vector.load %arg8[%c11, %c0_54, %c0_55] : memref<49x64x32xbf16, #tpu.memory_space<vmem>>, vector<1x64x32xbf16>
    %99 = vector.shape_cast %98 : vector<1x64x32xbf16> to vector<64x32xbf16>
    %cst_56 = arith.constant dense<0.000000e+00> : vector<8x32xf32>
    %100 = tpu.matmul %97, %99, %cst_56 {dimension_numbers = #tpu.dot_dimension_numbers<[1], [0], [0], [1], [0, 0, 1, 1], [], []>} : vector<8x64xbf16>, vector<64x32xbf16>, vector<8x32xf32> -> vector<8x32xf32>
    %101 = arith.addf %96, %100 : vector<8x32xf32>
    %102 = vector.extract_strided_slice %40 {offsets = [120, 0], sizes = [8, 64], strides = [1, 1]} : vector<536x64xbf16> to vector<8x64xbf16>
    %c12 = arith.constant 12 : index
    %c0_57 = arith.constant 0 : index
    %c0_58 = arith.constant 0 : index
    %103 = vector.load %arg8[%c12, %c0_57, %c0_58] : memref<49x64x32xbf16, #tpu.memory_space<vmem>>, vector<1x64x32xbf16>
    %104 = vector.shape_cast %103 : vector<1x64x32xbf16> to vector<64x32xbf16>
    %cst_59 = arith.constant dense<0.000000e+00> : vector<8x32xf32>
    %105 = tpu.matmul %102, %104, %cst_59 {dimension_numbers = #tpu.dot_dimension_numbers<[1], [0], [0], [1], [0, 0, 1, 1], [], []>} : vector<8x64xbf16>, vector<64x32xbf16>, vector<8x32xf32> -> vector<8x32xf32>
    %106 = arith.addf %101, %105 : vector<8x32xf32>
    %107 = vector.extract_strided_slice %40 {offsets = [128, 0], sizes = [8, 64], strides = [1, 1]} : vector<536x64xbf16> to vector<8x64xbf16>
    %c13 = arith.constant 13 : index
    %c0_60 = arith.constant 0 : index
    %c0_61 = arith.constant 0 : index
    %108 = vector.load %arg8[%c13, %c0_60, %c0_61] : memref<49x64x32xbf16, #tpu.memory_space<vmem>>, vector<1x64x32xbf16>
    %109 = vector.shape_cast %108 : vector<1x64x32xbf16> to vector<64x32xbf16>
    %cst_62 = arith.constant dense<0.000000e+00> : vector<8x32xf32>
    %110 = tpu.matmul %107, %109, %cst_62 {dimension_numbers = #tpu.dot_dimension_numbers<[1], [0], [0], [1], [0, 0, 1, 1], [], []>} : vector<8x64xbf16>, vector<64x32xbf16>, vector<8x32xf32> -> vector<8x32xf32>
    %111 = arith.addf %106, %110 : vector<8x32xf32>
    %112 = vector.extract_strided_slice %40 {offsets = [160, 0], sizes = [8, 64], strides = [1, 1]} : vector<536x64xbf16> to vector<8x64xbf16>
    %c14 = arith.constant 14 : index
    %c0_63 = arith.constant 0 : index
    %c0_64 = arith.constant 0 : index
    %113 = vector.load %arg8[%c14, %c0_63, %c0_64] : memref<49x64x32xbf16, #tpu.memory_space<vmem>>, vector<1x64x32xbf16>
    %114 = vector.shape_cast %113 : vector<1x64x32xbf16> to vector<64x32xbf16>
    %cst_65 = arith.constant dense<0.000000e+00> : vector<8x32xf32>
    %115 = tpu.matmul %112, %114, %cst_65 {dimension_numbers = #tpu.dot_dimension_numbers<[1], [0], [0], [1], [0, 0, 1, 1], [], []>} : vector<8x64xbf16>, vector<64x32xbf16>, vector<8x32xf32> -> vector<8x32xf32>
    %116 = arith.addf %111, %115 : vector<8x32xf32>
    %117 = vector.extract_strided_slice %40 {offsets = [168, 0], sizes = [8, 64], strides = [1, 1]} : vector<536x64xbf16> to vector<8x64xbf16>
    %c15 = arith.constant 15 : index
    %c0_66 = arith.constant 0 : index
    %c0_67 = arith.constant 0 : index
    %118 = vector.load %arg8[%c15, %c0_66, %c0_67] : memref<49x64x32xbf16, #tpu.memory_space<vmem>>, vector<1x64x32xbf16>
    %119 = vector.shape_cast %118 : vector<1x64x32xbf16> to vector<64x32xbf16>
    %cst_68 = arith.constant dense<0.000000e+00> : vector<8x32xf32>
    %120 = tpu.matmul %117, %119, %cst_68 {dimension_numbers = #tpu.dot_dimension_numbers<[1], [0], [0], [1], [0, 0, 1, 1], [], []>} : vector<8x64xbf16>, vector<64x32xbf16>, vector<8x32xf32> -> vector<8x32xf32>
    %121 = arith.addf %116, %120 : vector<8x32xf32>
    %122 = vector.extract_strided_slice %40 {offsets = [176, 0], sizes = [8, 64], strides = [1, 1]} : vector<536x64xbf16> to vector<8x64xbf16>
    %c16 = arith.constant 16 : index
    %c0_69 = arith.constant 0 : index
    %c0_70 = arith.constant 0 : index
    %123 = vector.load %arg8[%c16, %c0_69, %c0_70] : memref<49x64x32xbf16, #tpu.memory_space<vmem>>, vector<1x64x32xbf16>
    %124 = vector.shape_cast %123 : vector<1x64x32xbf16> to vector<64x32xbf16>
    %cst_71 = arith.constant dense<0.000000e+00> : vector<8x32xf32>
    %125 = tpu.matmul %122, %124, %cst_71 {dimension_numbers = #tpu.dot_dimension_numbers<[1], [0], [0], [1], [0, 0, 1, 1], [], []>} : vector<8x64xbf16>, vector<64x32xbf16>, vector<8x32xf32> -> vector<8x32xf32>
    %126 = arith.addf %121, %125 : vector<8x32xf32>
    %127 = vector.extract_strided_slice %40 {offsets = [184, 0], sizes = [8, 64], strides = [1, 1]} : vector<536x64xbf16> to vector<8x64xbf16>
    %c17 = arith.constant 17 : index
    %c0_72 = arith.constant 0 : index
    %c0_73 = arith.constant 0 : index
    %128 = vector.load %arg8[%c17, %c0_72, %c0_73] : memref<49x64x32xbf16, #tpu.memory_space<vmem>>, vector<1x64x32xbf16>
    %129 = vector.shape_cast %128 : vector<1x64x32xbf16> to vector<64x32xbf16>
    %cst_74 = arith.constant dense<0.000000e+00> : vector<8x32xf32>
    %130 = tpu.matmul %127, %129, %cst_74 {dimension_numbers = #tpu.dot_dimension_numbers<[1], [0], [0], [1], [0, 0, 1, 1], [], []>} : vector<8x64xbf16>, vector<64x32xbf16>, vector<8x32xf32> -> vector<8x32xf32>
    %131 = arith.addf %126, %130 : vector<8x32xf32>
    %132 = vector.extract_strided_slice %40 {offsets = [192, 0], sizes = [8, 64], strides = [1, 1]} : vector<536x64xbf16> to vector<8x64xbf16>
    %c18 = arith.constant 18 : index
    %c0_75 = arith.constant 0 : index
    %c0_76 = arith.constant 0 : index
    %133 = vector.load %arg8[%c18, %c0_75, %c0_76] : memref<49x64x32xbf16, #tpu.memory_space<vmem>>, vector<1x64x32xbf16>
    %134 = vector.shape_cast %133 : vector<1x64x32xbf16> to vector<64x32xbf16>
    %cst_77 = arith.constant dense<0.000000e+00> : vector<8x32xf32>
    %135 = tpu.matmul %132, %134, %cst_77 {dimension_numbers = #tpu.dot_dimension_numbers<[1], [0], [0], [1], [0, 0, 1, 1], [], []>} : vector<8x64xbf16>, vector<64x32xbf16>, vector<8x32xf32> -> vector<8x32xf32>
    %136 = arith.addf %131, %135 : vector<8x32xf32>
    %137 = vector.extract_strided_slice %40 {offsets = [200, 0], sizes = [8, 64], strides = [1, 1]} : vector<536x64xbf16> to vector<8x64xbf16>
    %c19 = arith.constant 19 : index
    %c0_78 = arith.constant 0 : index
    %c0_79 = arith.constant 0 : index
    %138 = vector.load %arg8[%c19, %c0_78, %c0_79] : memref<49x64x32xbf16, #tpu.memory_space<vmem>>, vector<1x64x32xbf16>
    %139 = vector.shape_cast %138 : vector<1x64x32xbf16> to vector<64x32xbf16>
    %cst_80 = arith.constant dense<0.000000e+00> : vector<8x32xf32>
    %140 = tpu.matmul %137, %139, %cst_80 {dimension_numbers = #tpu.dot_dimension_numbers<[1], [0], [0], [1], [0, 0, 1, 1], [], []>} : vector<8x64xbf16>, vector<64x32xbf16>, vector<8x32xf32> -> vector<8x32xf32>
    %141 = arith.addf %136, %140 : vector<8x32xf32>
    %142 = vector.extract_strided_slice %40 {offsets = [208, 0], sizes = [8, 64], strides = [1, 1]} : vector<536x64xbf16> to vector<8x64xbf16>
    %c20 = arith.constant 20 : index
    %c0_81 = arith.constant 0 : index
    %c0_82 = arith.constant 0 : index
    %143 = vector.load %arg8[%c20, %c0_81, %c0_82] : memref<49x64x32xbf16, #tpu.memory_space<vmem>>, vector<1x64x32xbf16>
    %144 = vector.shape_cast %143 : vector<1x64x32xbf16> to vector<64x32xbf16>
    %cst_83 = arith.constant dense<0.000000e+00> : vector<8x32xf32>
    %145 = tpu.matmul %142, %144, %cst_83 {dimension_numbers = #tpu.dot_dimension_numbers<[1], [0], [0], [1], [0, 0, 1, 1], [], []>} : vector<8x64xbf16>, vector<64x32xbf16>, vector<8x32xf32> -> vector<8x32xf32>
    %146 = arith.addf %141, %145 : vector<8x32xf32>
    %147 = vector.extract_strided_slice %40 {offsets = [240, 0], sizes = [8, 64], strides = [1, 1]} : vector<536x64xbf16> to vector<8x64xbf16>
    %c21 = arith.constant 21 : index
    %c0_84 = arith.constant 0 : index
    %c0_85 = arith.constant 0 : index
    %148 = vector.load %arg8[%c21, %c0_84, %c0_85] : memref<49x64x32xbf16, #tpu.memory_space<vmem>>, vector<1x64x32xbf16>
    %149 = vector.shape_cast %148 : vector<1x64x32xbf16> to vector<64x32xbf16>
    %cst_86 = arith.constant dense<0.000000e+00> : vector<8x32xf32>
    %150 = tpu.matmul %147, %149, %cst_86 {dimension_numbers = #tpu.dot_dimension_numbers<[1], [0], [0], [1], [0, 0, 1, 1], [], []>} : vector<8x64xbf16>, vector<64x32xbf16>, vector<8x32xf32> -> vector<8x32xf32>
    %151 = arith.addf %146, %150 : vector<8x32xf32>
    %152 = vector.extract_strided_slice %40 {offsets = [248, 0], sizes = [8, 64], strides = [1, 1]} : vector<536x64xbf16> to vector<8x64xbf16>
    %c22 = arith.constant 22 : index
    %c0_87 = arith.constant 0 : index
    %c0_88 = arith.constant 0 : index
    %153 = vector.load %arg8[%c22, %c0_87, %c0_88] : memref<49x64x32xbf16, #tpu.memory_space<vmem>>, vector<1x64x32xbf16>
    %154 = vector.shape_cast %153 : vector<1x64x32xbf16> to vector<64x32xbf16>
    %cst_89 = arith.constant dense<0.000000e+00> : vector<8x32xf32>
    %155 = tpu.matmul %152, %154, %cst_89 {dimension_numbers = #tpu.dot_dimension_numbers<[1], [0], [0], [1], [0, 0, 1, 1], [], []>} : vector<8x64xbf16>, vector<64x32xbf16>, vector<8x32xf32> -> vector<8x32xf32>
    %156 = arith.addf %151, %155 : vector<8x32xf32>
    %157 = vector.extract_strided_slice %40 {offsets = [256, 0], sizes = [8, 64], strides = [1, 1]} : vector<536x64xbf16> to vector<8x64xbf16>
    %c23 = arith.constant 23 : index
    %c0_90 = arith.constant 0 : index
    %c0_91 = arith.constant 0 : index
    %158 = vector.load %arg8[%c23, %c0_90, %c0_91] : memref<49x64x32xbf16, #tpu.memory_space<vmem>>, vector<1x64x32xbf16>
    %159 = vector.shape_cast %158 : vector<1x64x32xbf16> to vector<64x32xbf16>
    %cst_92 = arith.constant dense<0.000000e+00> : vector<8x32xf32>
    %160 = tpu.matmul %157, %159, %cst_92 {dimension_numbers = #tpu.dot_dimension_numbers<[1], [0], [0], [1], [0, 0, 1, 1], [], []>} : vector<8x64xbf16>, vector<64x32xbf16>, vector<8x32xf32> -> vector<8x32xf32>
    %161 = arith.addf %156, %160 : vector<8x32xf32>
    %162 = vector.extract_strided_slice %40 {offsets = [264, 0], sizes = [8, 64], strides = [1, 1]} : vector<536x64xbf16> to vector<8x64xbf16>
    %c24 = arith.constant 24 : index
    %c0_93 = arith.constant 0 : index
    %c0_94 = arith.constant 0 : index
    %163 = vector.load %arg8[%c24, %c0_93, %c0_94] : memref<49x64x32xbf16, #tpu.memory_space<vmem>>, vector<1x64x32xbf16>
    %164 = vector.shape_cast %163 : vector<1x64x32xbf16> to vector<64x32xbf16>
    %cst_95 = arith.constant dense<0.000000e+00> : vector<8x32xf32>
    %165 = tpu.matmul %162, %164, %cst_95 {dimension_numbers = #tpu.dot_dimension_numbers<[1], [0], [0], [1], [0, 0, 1, 1], [], []>} : vector<8x64xbf16>, vector<64x32xbf16>, vector<8x32xf32> -> vector<8x32xf32>
    %166 = arith.addf %161, %165 : vector<8x32xf32>
    %167 = vector.extract_strided_slice %40 {offsets = [272, 0], sizes = [8, 64], strides = [1, 1]} : vector<536x64xbf16> to vector<8x64xbf16>
    %c25 = arith.constant 25 : index
    %c0_96 = arith.constant 0 : index
    %c0_97 = arith.constant 0 : index
    %168 = vector.load %arg8[%c25, %c0_96, %c0_97] : memref<49x64x32xbf16, #tpu.memory_space<vmem>>, vector<1x64x32xbf16>
    %169 = vector.shape_cast %168 : vector<1x64x32xbf16> to vector<64x32xbf16>
    %cst_98 = arith.constant dense<0.000000e+00> : vector<8x32xf32>
    %170 = tpu.matmul %167, %169, %cst_98 {dimension_numbers = #tpu.dot_dimension_numbers<[1], [0], [0], [1], [0, 0, 1, 1], [], []>} : vector<8x64xbf16>, vector<64x32xbf16>, vector<8x32xf32> -> vector<8x32xf32>
    %171 = arith.addf %166, %170 : vector<8x32xf32>
    %172 = vector.extract_strided_slice %40 {offsets = [280, 0], sizes = [8, 64], strides = [1, 1]} : vector<536x64xbf16> to vector<8x64xbf16>
    %c26 = arith.constant 26 : index
    %c0_99 = arith.constant 0 : index
    %c0_100 = arith.constant 0 : index
    %173 = vector.load %arg8[%c26, %c0_99, %c0_100] : memref<49x64x32xbf16, #tpu.memory_space<vmem>>, vector<1x64x32xbf16>
    %174 = vector.shape_cast %173 : vector<1x64x32xbf16> to vector<64x32xbf16>
    %cst_101 = arith.constant dense<0.000000e+00> : vector<8x32xf32>
    %175 = tpu.matmul %172, %174, %cst_101 {dimension_numbers = #tpu.dot_dimension_numbers<[1], [0], [0], [1], [0, 0, 1, 1], [], []>} : vector<8x64xbf16>, vector<64x32xbf16>, vector<8x32xf32> -> vector<8x32xf32>
    %176 = arith.addf %171, %175 : vector<8x32xf32>
    %177 = vector.extract_strided_slice %40 {offsets = [288, 0], sizes = [8, 64], strides = [1, 1]} : vector<536x64xbf16> to vector<8x64xbf16>
    %c27 = arith.constant 27 : index
    %c0_102 = arith.constant 0 : index
    %c0_103 = arith.constant 0 : index
    %178 = vector.load %arg8[%c27, %c0_102, %c0_103] : memref<49x64x32xbf16, #tpu.memory_space<vmem>>, vector<1x64x32xbf16>
    %179 = vector.shape_cast %178 : vector<1x64x32xbf16> to vector<64x32xbf16>
    %cst_104 = arith.constant dense<0.000000e+00> : vector<8x32xf32>
    %180 = tpu.matmul %177, %179, %cst_104 {dimension_numbers = #tpu.dot_dimension_numbers<[1], [0], [0], [1], [0, 0, 1, 1], [], []>} : vector<8x64xbf16>, vector<64x32xbf16>, vector<8x32xf32> -> vector<8x32xf32>
    %181 = arith.addf %176, %180 : vector<8x32xf32>
    %182 = vector.extract_strided_slice %40 {offsets = [320, 0], sizes = [8, 64], strides = [1, 1]} : vector<536x64xbf16> to vector<8x64xbf16>
    %c28 = arith.constant 28 : index
    %c0_105 = arith.constant 0 : index
    %c0_106 = arith.constant 0 : index
    %183 = vector.load %arg8[%c28, %c0_105, %c0_106] : memref<49x64x32xbf16, #tpu.memory_space<vmem>>, vector<1x64x32xbf16>
    %184 = vector.shape_cast %183 : vector<1x64x32xbf16> to vector<64x32xbf16>
    %cst_107 = arith.constant dense<0.000000e+00> : vector<8x32xf32>
    %185 = tpu.matmul %182, %184, %cst_107 {dimension_numbers = #tpu.dot_dimension_numbers<[1], [0], [0], [1], [0, 0, 1, 1], [], []>} : vector<8x64xbf16>, vector<64x32xbf16>, vector<8x32xf32> -> vector<8x32xf32>
    %186 = arith.addf %181, %185 : vector<8x32xf32>
    %187 = vector.extract_strided_slice %40 {offsets = [328, 0], sizes = [8, 64], strides = [1, 1]} : vector<536x64xbf16> to vector<8x64xbf16>
    %c29 = arith.constant 29 : index
    %c0_108 = arith.constant 0 : index
    %c0_109 = arith.constant 0 : index
    %188 = vector.load %arg8[%c29, %c0_108, %c0_109] : memref<49x64x32xbf16, #tpu.memory_space<vmem>>, vector<1x64x32xbf16>
    %189 = vector.shape_cast %188 : vector<1x64x32xbf16> to vector<64x32xbf16>
    %cst_110 = arith.constant dense<0.000000e+00> : vector<8x32xf32>
    %190 = tpu.matmul %187, %189, %cst_110 {dimension_numbers = #tpu.dot_dimension_numbers<[1], [0], [0], [1], [0, 0, 1, 1], [], []>} : vector<8x64xbf16>, vector<64x32xbf16>, vector<8x32xf32> -> vector<8x32xf32>
    %191 = arith.addf %186, %190 : vector<8x32xf32>
    %192 = vector.extract_strided_slice %40 {offsets = [336, 0], sizes = [8, 64], strides = [1, 1]} : vector<536x64xbf16> to vector<8x64xbf16>
    %c30 = arith.constant 30 : index
    %c0_111 = arith.constant 0 : index
    %c0_112 = arith.constant 0 : index
    %193 = vector.load %arg8[%c30, %c0_111, %c0_112] : memref<49x64x32xbf16, #tpu.memory_space<vmem>>, vector<1x64x32xbf16>
    %194 = vector.shape_cast %193 : vector<1x64x32xbf16> to vector<64x32xbf16>
    %cst_113 = arith.constant dense<0.000000e+00> : vector<8x32xf32>
    %195 = tpu.matmul %192, %194, %cst_113 {dimension_numbers = #tpu.dot_dimension_numbers<[1], [0], [0], [1], [0, 0, 1, 1], [], []>} : vector<8x64xbf16>, vector<64x32xbf16>, vector<8x32xf32> -> vector<8x32xf32>
    %196 = arith.addf %191, %195 : vector<8x32xf32>
    %197 = vector.extract_strided_slice %40 {offsets = [344, 0], sizes = [8, 64], strides = [1, 1]} : vector<536x64xbf16> to vector<8x64xbf16>
    %c31 = arith.constant 31 : index
    %c0_114 = arith.constant 0 : index
    %c0_115 = arith.constant 0 : index
    %198 = vector.load %arg8[%c31, %c0_114, %c0_115] : memref<49x64x32xbf16, #tpu.memory_space<vmem>>, vector<1x64x32xbf16>
    %199 = vector.shape_cast %198 : vector<1x64x32xbf16> to vector<64x32xbf16>
    %cst_116 = arith.constant dense<0.000000e+00> : vector<8x32xf32>
    %200 = tpu.matmul %197, %199, %cst_116 {dimension_numbers = #tpu.dot_dimension_numbers<[1], [0], [0], [1], [0, 0, 1, 1], [], []>} : vector<8x64xbf16>, vector<64x32xbf16>, vector<8x32xf32> -> vector<8x32xf32>
    %201 = arith.addf %196, %200 : vector<8x32xf32>
    %202 = vector.extract_strided_slice %40 {offsets = [352, 0], sizes = [8, 64], strides = [1, 1]} : vector<536x64xbf16> to vector<8x64xbf16>
    %c32 = arith.constant 32 : index
    %c0_117 = arith.constant 0 : index
    %c0_118 = arith.constant 0 : index
    %203 = vector.load %arg8[%c32, %c0_117, %c0_118] : memref<49x64x32xbf16, #tpu.memory_space<vmem>>, vector<1x64x32xbf16>
    %204 = vector.shape_cast %203 : vector<1x64x32xbf16> to vector<64x32xbf16>
    %cst_119 = arith.constant dense<0.000000e+00> : vector<8x32xf32>
    %205 = tpu.matmul %202, %204, %cst_119 {dimension_numbers = #tpu.dot_dimension_numbers<[1], [0], [0], [1], [0, 0, 1, 1], [], []>} : vector<8x64xbf16>, vector<64x32xbf16>, vector<8x32xf32> -> vector<8x32xf32>
    %206 = arith.addf %201, %205 : vector<8x32xf32>
    %207 = vector.extract_strided_slice %40 {offsets = [360, 0], sizes = [8, 64], strides = [1, 1]} : vector<536x64xbf16> to vector<8x64xbf16>
    %c33 = arith.constant 33 : index
    %c0_120 = arith.constant 0 : index
    %c0_121 = arith.constant 0 : index
    %208 = vector.load %arg8[%c33, %c0_120, %c0_121] : memref<49x64x32xbf16, #tpu.memory_space<vmem>>, vector<1x64x32xbf16>
    %209 = vector.shape_cast %208 : vector<1x64x32xbf16> to vector<64x32xbf16>
    %cst_122 = arith.constant dense<0.000000e+00> : vector<8x32xf32>
    %210 = tpu.matmul %207, %209, %cst_122 {dimension_numbers = #tpu.dot_dimension_numbers<[1], [0], [0], [1], [0, 0, 1, 1], [], []>} : vector<8x64xbf16>, vector<64x32xbf16>, vector<8x32xf32> -> vector<8x32xf32>
    %211 = arith.addf %206, %210 : vector<8x32xf32>
    %212 = vector.extract_strided_slice %40 {offsets = [368, 0], sizes = [8, 64], strides = [1, 1]} : vector<536x64xbf16> to vector<8x64xbf16>
    %c34 = arith.constant 34 : index
    %c0_123 = arith.constant 0 : index
    %c0_124 = arith.constant 0 : index
    %213 = vector.load %arg8[%c34, %c0_123, %c0_124] : memref<49x64x32xbf16, #tpu.memory_space<vmem>>, vector<1x64x32xbf16>
    %214 = vector.shape_cast %213 : vector<1x64x32xbf16> to vector<64x32xbf16>
    %cst_125 = arith.constant dense<0.000000e+00> : vector<8x32xf32>
    %215 = tpu.matmul %212, %214, %cst_125 {dimension_numbers = #tpu.dot_dimension_numbers<[1], [0], [0], [1], [0, 0, 1, 1], [], []>} : vector<8x64xbf16>, vector<64x32xbf16>, vector<8x32xf32> -> vector<8x32xf32>
    %216 = arith.addf %211, %215 : vector<8x32xf32>
    %217 = vector.extract_strided_slice %40 {offsets = [400, 0], sizes = [8, 64], strides = [1, 1]} : vector<536x64xbf16> to vector<8x64xbf16>
    %c35 = arith.constant 35 : index
    %c0_126 = arith.constant 0 : index
    %c0_127 = arith.constant 0 : index
    %218 = vector.load %arg8[%c35, %c0_126, %c0_127] : memref<49x64x32xbf16, #tpu.memory_space<vmem>>, vector<1x64x32xbf16>
    %219 = vector.shape_cast %218 : vector<1x64x32xbf16> to vector<64x32xbf16>
    %cst_128 = arith.constant dense<0.000000e+00> : vector<8x32xf32>
    %220 = tpu.matmul %217, %219, %cst_128 {dimension_numbers = #tpu.dot_dimension_numbers<[1], [0], [0], [1], [0, 0, 1, 1], [], []>} : vector<8x64xbf16>, vector<64x32xbf16>, vector<8x32xf32> -> vector<8x32xf32>
    %221 = arith.addf %216, %220 : vector<8x32xf32>
    %222 = vector.extract_strided_slice %40 {offsets = [408, 0], sizes = [8, 64], strides = [1, 1]} : vector<536x64xbf16> to vector<8x64xbf16>
    %c36 = arith.constant 36 : index
    %c0_129 = arith.constant 0 : index
    %c0_130 = arith.constant 0 : index
    %223 = vector.load %arg8[%c36, %c0_129, %c0_130] : memref<49x64x32xbf16, #tpu.memory_space<vmem>>, vector<1x64x32xbf16>
    %224 = vector.shape_cast %223 : vector<1x64x32xbf16> to vector<64x32xbf16>
    %cst_131 = arith.constant dense<0.000000e+00> : vector<8x32xf32>
    %225 = tpu.matmul %222, %224, %cst_131 {dimension_numbers = #tpu.dot_dimension_numbers<[1], [0], [0], [1], [0, 0, 1, 1], [], []>} : vector<8x64xbf16>, vector<64x32xbf16>, vector<8x32xf32> -> vector<8x32xf32>
    %226 = arith.addf %221, %225 : vector<8x32xf32>
    %227 = vector.extract_strided_slice %40 {offsets = [416, 0], sizes = [8, 64], strides = [1, 1]} : vector<536x64xbf16> to vector<8x64xbf16>
    %c37 = arith.constant 37 : index
    %c0_132 = arith.constant 0 : index
    %c0_133 = arith.constant 0 : index
    %228 = vector.load %arg8[%c37, %c0_132, %c0_133] : memref<49x64x32xbf16, #tpu.memory_space<vmem>>, vector<1x64x32xbf16>
    %229 = vector.shape_cast %228 : vector<1x64x32xbf16> to vector<64x32xbf16>
    %cst_134 = arith.constant dense<0.000000e+00> : vector<8x32xf32>
    %230 = tpu.matmul %227, %229, %cst_134 {dimension_numbers = #tpu.dot_dimension_numbers<[1], [0], [0], [1], [0, 0, 1, 1], [], []>} : vector<8x64xbf16>, vector<64x32xbf16>, vector<8x32xf32> -> vector<8x32xf32>
    %231 = arith.addf %226, %230 : vector<8x32xf32>
    %232 = vector.extract_strided_slice %40 {offsets = [424, 0], sizes = [8, 64], strides = [1, 1]} : vector<536x64xbf16> to vector<8x64xbf16>
    %c38 = arith.constant 38 : index
    %c0_135 = arith.constant 0 : index
    %c0_136 = arith.constant 0 : index
    %233 = vector.load %arg8[%c38, %c0_135, %c0_136] : memref<49x64x32xbf16, #tpu.memory_space<vmem>>, vector<1x64x32xbf16>
    %234 = vector.shape_cast %233 : vector<1x64x32xbf16> to vector<64x32xbf16>
    %cst_137 = arith.constant dense<0.000000e+00> : vector<8x32xf32>
    %235 = tpu.matmul %232, %234, %cst_137 {dimension_numbers = #tpu.dot_dimension_numbers<[1], [0], [0], [1], [0, 0, 1, 1], [], []>} : vector<8x64xbf16>, vector<64x32xbf16>, vector<8x32xf32> -> vector<8x32xf32>
    %236 = arith.addf %231, %235 : vector<8x32xf32>
    %237 = vector.extract_strided_slice %40 {offsets = [432, 0], sizes = [8, 64], strides = [1, 1]} : vector<536x64xbf16> to vector<8x64xbf16>
    %c39 = arith.constant 39 : index
    %c0_138 = arith.constant 0 : index
    %c0_139 = arith.constant 0 : index
    %238 = vector.load %arg8[%c39, %c0_138, %c0_139] : memref<49x64x32xbf16, #tpu.memory_space<vmem>>, vector<1x64x32xbf16>
    %239 = vector.shape_cast %238 : vector<1x64x32xbf16> to vector<64x32xbf16>
    %cst_140 = arith.constant dense<0.000000e+00> : vector<8x32xf32>
    %240 = tpu.matmul %237, %239, %cst_140 {dimension_numbers = #tpu.dot_dimension_numbers<[1], [0], [0], [1], [0, 0, 1, 1], [], []>} : vector<8x64xbf16>, vector<64x32xbf16>, vector<8x32xf32> -> vector<8x32xf32>
    %241 = arith.addf %236, %240 : vector<8x32xf32>
    %242 = vector.extract_strided_slice %40 {offsets = [440, 0], sizes = [8, 64], strides = [1, 1]} : vector<536x64xbf16> to vector<8x64xbf16>
    %c40 = arith.constant 40 : index
    %c0_141 = arith.constant 0 : index
    %c0_142 = arith.constant 0 : index
    %243 = vector.load %arg8[%c40, %c0_141, %c0_142] : memref<49x64x32xbf16, #tpu.memory_space<vmem>>, vector<1x64x32xbf16>
    %244 = vector.shape_cast %243 : vector<1x64x32xbf16> to vector<64x32xbf16>
    %cst_143 = arith.constant dense<0.000000e+00> : vector<8x32xf32>
    %245 = tpu.matmul %242, %244, %cst_143 {dimension_numbers = #tpu.dot_dimension_numbers<[1], [0], [0], [1], [0, 0, 1, 1], [], []>} : vector<8x64xbf16>, vector<64x32xbf16>, vector<8x32xf32> -> vector<8x32xf32>
    %246 = arith.addf %241, %245 : vector<8x32xf32>
    %247 = vector.extract_strided_slice %40 {offsets = [448, 0], sizes = [8, 64], strides = [1, 1]} : vector<536x64xbf16> to vector<8x64xbf16>
    %c41 = arith.constant 41 : index
    %c0_144 = arith.constant 0 : index
    %c0_145 = arith.constant 0 : index
    %248 = vector.load %arg8[%c41, %c0_144, %c0_145] : memref<49x64x32xbf16, #tpu.memory_space<vmem>>, vector<1x64x32xbf16>
    %249 = vector.shape_cast %248 : vector<1x64x32xbf16> to vector<64x32xbf16>
    %cst_146 = arith.constant dense<0.000000e+00> : vector<8x32xf32>
    %250 = tpu.matmul %247, %249, %cst_146 {dimension_numbers = #tpu.dot_dimension_numbers<[1], [0], [0], [1], [0, 0, 1, 1], [], []>} : vector<8x64xbf16>, vector<64x32xbf16>, vector<8x32xf32> -> vector<8x32xf32>
    %251 = arith.addf %246, %250 : vector<8x32xf32>
    %252 = vector.extract_strided_slice %40 {offsets = [480, 0], sizes = [8, 64], strides = [1, 1]} : vector<536x64xbf16> to vector<8x64xbf16>
    %c42 = arith.constant 42 : index
    %c0_147 = arith.constant 0 : index
    %c0_148 = arith.constant 0 : index
    %253 = vector.load %arg8[%c42, %c0_147, %c0_148] : memref<49x64x32xbf16, #tpu.memory_space<vmem>>, vector<1x64x32xbf16>
    %254 = vector.shape_cast %253 : vector<1x64x32xbf16> to vector<64x32xbf16>
    %cst_149 = arith.constant dense<0.000000e+00> : vector<8x32xf32>
    %255 = tpu.matmul %252, %254, %cst_149 {dimension_numbers = #tpu.dot_dimension_numbers<[1], [0], [0], [1], [0, 0, 1, 1], [], []>} : vector<8x64xbf16>, vector<64x32xbf16>, vector<8x32xf32> -> vector<8x32xf32>
    %256 = arith.addf %251, %255 : vector<8x32xf32>
    %257 = vector.extract_strided_slice %40 {offsets = [488, 0], sizes = [8, 64], strides = [1, 1]} : vector<536x64xbf16> to vector<8x64xbf16>
    %c43 = arith.constant 43 : index
    %c0_150 = arith.constant 0 : index
    %c0_151 = arith.constant 0 : index
    %258 = vector.load %arg8[%c43, %c0_150, %c0_151] : memref<49x64x32xbf16, #tpu.memory_space<vmem>>, vector<1x64x32xbf16>
    %259 = vector.shape_cast %258 : vector<1x64x32xbf16> to vector<64x32xbf16>
    %cst_152 = arith.constant dense<0.000000e+00> : vector<8x32xf32>
    %260 = tpu.matmul %257, %259, %cst_152 {dimension_numbers = #tpu.dot_dimension_numbers<[1], [0], [0], [1], [0, 0, 1, 1], [], []>} : vector<8x64xbf16>, vector<64x32xbf16>, vector<8x32xf32> -> vector<8x32xf32>
    %261 = arith.addf %256, %260 : vector<8x32xf32>
    %262 = vector.extract_strided_slice %40 {offsets = [496, 0], sizes = [8, 64], strides = [1, 1]} : vector<536x64xbf16> to vector<8x64xbf16>
    %c44 = arith.constant 44 : index
    %c0_153 = arith.constant 0 : index
    %c0_154 = arith.constant 0 : index
    %263 = vector.load %arg8[%c44, %c0_153, %c0_154] : memref<49x64x32xbf16, #tpu.memory_space<vmem>>, vector<1x64x32xbf16>
    %264 = vector.shape_cast %263 : vector<1x64x32xbf16> to vector<64x32xbf16>
    %cst_155 = arith.constant dense<0.000000e+00> : vector<8x32xf32>
    %265 = tpu.matmul %262, %264, %cst_155 {dimension_numbers = #tpu.dot_dimension_numbers<[1], [0], [0], [1], [0, 0, 1, 1], [], []>} : vector<8x64xbf16>, vector<64x32xbf16>, vector<8x32xf32> -> vector<8x32xf32>
    %266 = arith.addf %261, %265 : vector<8x32xf32>
    %267 = vector.extract_strided_slice %40 {offsets = [504, 0], sizes = [8, 64], strides = [1, 1]} : vector<536x64xbf16> to vector<8x64xbf16>
    %c45 = arith.constant 45 : index
    %c0_156 = arith.constant 0 : index
    %c0_157 = arith.constant 0 : index
    %268 = vector.load %arg8[%c45, %c0_156, %c0_157] : memref<49x64x32xbf16, #tpu.memory_space<vmem>>, vector<1x64x32xbf16>
    %269 = vector.shape_cast %268 : vector<1x64x32xbf16> to vector<64x32xbf16>
    %cst_158 = arith.constant dense<0.000000e+00> : vector<8x32xf32>
    %270 = tpu.matmul %267, %269, %cst_158 {dimension_numbers = #tpu.dot_dimension_numbers<[1], [0], [0], [1], [0, 0, 1, 1], [], []>} : vector<8x64xbf16>, vector<64x32xbf16>, vector<8x32xf32> -> vector<8x32xf32>
    %271 = arith.addf %266, %270 : vector<8x32xf32>
    %272 = vector.extract_strided_slice %40 {offsets = [512, 0], sizes = [8, 64], strides = [1, 1]} : vector<536x64xbf16> to vector<8x64xbf16>
    %c46 = arith.constant 46 : index
    %c0_159 = arith.constant 0 : index
    %c0_160 = arith.constant 0 : index
    %273 = vector.load %arg8[%c46, %c0_159, %c0_160] : memref<49x64x32xbf16, #tpu.memory_space<vmem>>, vector<1x64x32xbf16>
    %274 = vector.shape_cast %273 : vector<1x64x32xbf16> to vector<64x32xbf16>
    %cst_161 = arith.constant dense<0.000000e+00> : vector<8x32xf32>
    %275 = tpu.matmul %272, %274, %cst_161 {dimension_numbers = #tpu.dot_dimension_numbers<[1], [0], [0], [1], [0, 0, 1, 1], [], []>} : vector<8x64xbf16>, vector<64x32xbf16>, vector<8x32xf32> -> vector<8x32xf32>
    %276 = arith.addf %271, %275 : vector<8x32xf32>
    %277 = vector.extract_strided_slice %40 {offsets = [520, 0], sizes = [8, 64], strides = [1, 1]} : vector<536x64xbf16> to vector<8x64xbf16>
    %c47 = arith.constant 47 : index
    %c0_162 = arith.constant 0 : index
    %c0_163 = arith.constant 0 : index
    %278 = vector.load %arg8[%c47, %c0_162, %c0_163] : memref<49x64x32xbf16, #tpu.memory_space<vmem>>, vector<1x64x32xbf16>
    %279 = vector.shape_cast %278 : vector<1x64x32xbf16> to vector<64x32xbf16>
    %cst_164 = arith.constant dense<0.000000e+00> : vector<8x32xf32>
    %280 = tpu.matmul %277, %279, %cst_164 {dimension_numbers = #tpu.dot_dimension_numbers<[1], [0], [0], [1], [0, 0, 1, 1], [], []>} : vector<8x64xbf16>, vector<64x32xbf16>, vector<8x32xf32> -> vector<8x32xf32>
    %281 = arith.addf %276, %280 : vector<8x32xf32>
    %282 = vector.extract_strided_slice %40 {offsets = [528, 0], sizes = [8, 64], strides = [1, 1]} : vector<536x64xbf16> to vector<8x64xbf16>
    %c48 = arith.constant 48 : index
    %c0_165 = arith.constant 0 : index
    %c0_166 = arith.constant 0 : index
    %283 = vector.load %arg8[%c48, %c0_165, %c0_166] : memref<49x64x32xbf16, #tpu.memory_space<vmem>>, vector<1x64x32xbf16>
    %284 = vector.shape_cast %283 : vector<1x64x32xbf16> to vector<64x32xbf16>
    %cst_167 = arith.constant dense<0.000000e+00> : vector<8x32xf32>
    %285 = tpu.matmul %282, %284, %cst_167 {dimension_numbers = #tpu.dot_dimension_numbers<[1], [0], [0], [1], [0, 0, 1, 1], [], []>} : vector<8x64xbf16>, vector<64x32xbf16>, vector<8x32xf32> -> vector<8x32xf32>
    %286 = arith.addf %281, %285 : vector<8x32xf32>
    %c0_168 = arith.constant 0 : index
    %c0_169 = arith.constant 0 : index
    %287 = vector.load %arg9[%c0_168, %c0_169] : memref<1x32xf32, #tpu.memory_space<vmem>>, vector<1x32xf32>
    %288 = vector.broadcast %287 : vector<1x32xf32> to vector<8x32xf32>
    %289 = arith.addf %286, %288 : vector<8x32xf32>
    %c0_170 = arith.constant 0 : index
    %c0_171 = arith.constant 0 : index
    %c0_172 = arith.constant 0 : index
    %290 = vector.load %arg10[%c0_170, %c0_171, %c0_172] : memref<1x8x32xf32, #tpu.memory_space<vmem>>, vector<1x8x32xf32>
    %291 = vector.shape_cast %290 : vector<1x8x32xf32> to vector<8x32xf32>
    %292 = vector.shape_cast %289 : vector<8x32xf32> to vector<1x8x32xf32>
    tpu.vector_store %arg10[%c0_170, %c0_171, %c0_172], %292 {strides = array<i32>} : memref<1x8x32xf32, #tpu.memory_space<vmem>>, vector<1x8x32xf32>,
    return
  }
  func.func @transform_0(%arg0: i32) -> (i32, i32, i32) {
    %c0_i32 = arith.constant 0 : i32
    %c0_i32_0 = arith.constant 0 : i32
    %c0_i32_1 = arith.constant 0 : i32
    return %arg0, %c0_i32, %c0_i32_0 : i32, i32, i32
  }
  func.func @transform_1(%arg0: i32) -> (i32, i32) {
    %c0_i32 = arith.constant 0 : i32
    %c0_i32_0 = arith.constant 0 : i32
    %c0_i32_1 = arith.constant 0 : i32
    return %c0_i32, %c0_i32_0 : i32, i32
  }
  func.func @transform_2(%arg0: i32) -> (i32, i32) {
    %c0_i32 = arith.constant 0 : i32
    %c0_i32_0 = arith.constant 0 : i32
    %c0_i32_1 = arith.constant 0 : i32
    return %c0_i32, %c0_i32_0 : i32, i32
  }
  func.func @transform_3(%arg0: i32) -> (i32, i32) {
    %c0_i32 = arith.constant 0 : i32
    %c0_i32_0 = arith.constant 0 : i32
    %c0_i32_1 = arith.constant 0 : i32
    return %c0_i32, %c0_i32_0 : i32, i32
  }
  func.func @transform_4(%arg0: i32) -> (i32, i32) {
    %c0_i32 = arith.constant 0 : i32
    %c0_i32_0 = arith.constant 0 : i32
    %c0_i32_1 = arith.constant 0 : i32
    return %c0_i32, %c0_i32_0 : i32, i32
  }
  func.func @transform_5(%arg0: i32) -> (i32, i32) {
    %c0_i32 = arith.constant 0 : i32
    %c0_i32_0 = arith.constant 0 : i32
    %c0_i32_1 = arith.constant 0 : i32
    return %c0_i32, %c0_i32_0 : i32, i32
  }
  func.func @transform_6(%arg0: i32) -> (i32, i32) {
    %c0_i32 = arith.constant 0 : i32
    %c0_i32_0 = arith.constant 0 : i32
    %c0_i32_1 = arith.constant 0 : i32
    return %c0_i32, %c0_i32_0 : i32, i32
  }
  func.func @transform_7(%arg0: i32) -> (i32, i32, i32) {
    %c0_i32 = arith.constant 0 : i32
    %c0_i32_0 = arith.constant 0 : i32
    %c0_i32_1 = arith.constant 0 : i32
    %c0_i32_2 = arith.constant 0 : i32
    return %c0_i32, %c0_i32_0, %c0_i32_1 : i32, i32, i32
  }
  func.func @transform_8(%arg0: i32) -> (i32, i32) {
    %c0_i32 = arith.constant 0 : i32
    %c0_i32_0 = arith.constant 0 : i32
    %c0_i32_1 = arith.constant 0 : i32
    return %c0_i32, %c0_i32_0 : i32, i32
  }
  func.func @transform_9(%arg0: i32) -> (i32, i32, i32) {
    %c0_i32 = arith.constant 0 : i32
    %c0_i32_0 = arith.constant 0 : i32
    %c0_i32_1 = arith.constant 0 : i32
    return %arg0, %c0_i32, %c0_i32_0 : i32, i32, i32
  }
}

</mosaic_0001>

<llo_original>
// kernel: _forward.1
$region0: #{_forward.1}
  #allocation0 [shape = 'u32[]', space=smem, size = 0x4, offset = 0x4, fixed_abs, tag = 'smem constant byte address 0x4 - core index']
  #allocation1 [shape = 'u32[72,128]{1,0:T(1,128)}', space=vmem, size = 0x9000, scoped, tag = 'internal scratch']
  %s0 = inlined_call_operand.vmem [shape: bf16[2,800,1024], index: 0, kind: input, shape index: {}]
  %s1 = inlined_call_operand.vmem [shape: bf16[1024,128], index: 1, kind: input, shape index: {}]
  %s2 = inlined_call_operand.vmem [shape: f32[1,128], index: 2, kind: input, shape index: {}]
  %s3 = inlined_call_operand.vmem [shape: bf16[512,64], index: 3, kind: input, shape index: {}]
  %s4 = inlined_call_operand.vmem [shape: f32[1,64], index: 4, kind: input, shape index: {}]
  %s5 = inlined_call_operand.vmem [shape: bf16[576,64], index: 5, kind: input, shape index: {}]
  %s6 = inlined_call_operand.vmem [shape: f32[1,64], index: 6, kind: input, shape index: {}]
  %s7 = inlined_call_operand.vmem [shape: bf16[49,64,32], index: 7, kind: input, shape index: {}]
  %s8 = inlined_call_operand.vmem [shape: f32[1,32], index: 8, kind: input, shape index: {}]
  %s9 = inlined_call_operand.hbm [shape: f32[2,8,32], index: 9, kind: output, shape index: {}]
  %s10 = sld [smem:[#allocation0]]
  $region69: #{_forward.1} parent=0
    _
  %s12 = ssub.s32 1, %s10
  %s13 = scalar_select 0, %s12, %s10
  $region1: #{_forward.1} parent=0
    #allocation2 [shape = 'u8[8192]{0}', space=vmem, size = 0x2000, scoped, tag = 'output window, operand 0']
    #allocation3 [shape = 's32[2]{0}', space=sflag, size = 0x8, scoped, tag = 'scoped memory for _forward.1']
    %14 = vsyncpa [#allocation3], 0
    %s15 = scalar_lea.sflag [#allocation3], 1
    %16 = vsyncpa %s15, 0
    loop: start=0, step=1, limit=4
    $region2: #{_forward.1} parent=1 // loop_pre_header
      _
    $region3: #{_forward.1} parent=1 // loop_header
      %s18 = sphi 0, %s22
      %p19 = scmp.ge.s32.totalorder %s18, 4
      %s28 = sphi 0, %s30
      %s31 = sphi 0, %s28
      %s32 = sphi 0, %s31
      %s48 = sphi 0, %s32
      %s52 = sphi 0, %s52
      %s54 = sphi 0, %s52
      %s55 = sphi 0, %s54
      %s69 = sphi 0, %s55
      %s73 = sphi 0, %s73
      %s75 = sphi 0, %s73
      %s76 = sphi 0, %s75
      %s90 = sphi 0, %s76
      %s94 = sphi 0, %s94
      %s96 = sphi 0, %s94
      %s97 = sphi 0, %s96
      %s111 = sphi 0, %s97
      %s115 = sphi 0, %s115
      %s117 = sphi 0, %s115
      %s118 = sphi 0, %s117
      %s132 = sphi 0, %s118
      %s136 = sphi 0, %s136
      %s138 = sphi 0, %s136
      %s139 = sphi 0, %s138
      %s153 = sphi 0, %s139
      %s157 = sphi 0, %s157
      %s159 = sphi 0, %s157
      %s160 = sphi 0, %s159
      %s174 = sphi 0, %s160
      %s178 = sphi 0, %s178
      %s180 = sphi 0, %s178
      %s181 = sphi 0, %s180
      %s195 = sphi 0, %s181
      %s199 = sphi 0, %s199
      %s201 = sphi 0, %s199
      %s202 = sphi 0, %s201
      %s216 = sphi 0, %s202
      %s222 = sphi 0, %s224
      %s225 = sphi 0, %s222
      %s226 = sphi 0, %s225
      %s242 = sphi 0, %s226
    $region4: #{_forward.1} parent=1 // loop_header_branch
      %21 = sbr.rel (%p19) target = $region8
    $region5: #{_forward.1} parent=1 // loop_body
      %s23 = ssub.s32 %s18, 1
      %s24 = ssub.s32 %s18, 2
      %s25 = sadd.s32 %s18, 1
      %s26 = ssub.s32 %s18, %s25
      %p27 = scmp.eq.s32.totalorder %s26, 0
      %s29 = sadd.s32 %s28, 1
      %s30 = scalar_select %p27, %s28, %s29
      %p33 = pneg %p27
      %p34 = scmp.eq.s32.totalorder %s18, 1
      %p35 = por %p33, %p34
      %p36 = scmp.ne.s32.totalorder %s28, %s31
      %p37 = scmp.eq.s32.totalorder %s18, 0
      %p38 = por %p36, %p37
      %p39 = scmp.ne.s32.totalorder %s28, %s31
      %p40 = scmp.eq.s32.totalorder %s23, 1
      %p41 = por %p39, %p40
      %p42 = scmp.ne.s32.totalorder %s31, %s32
      %p43 = scmp.eq.s32.totalorder %s23, 0
      %p44 = por %p42, %p43
      %p45 = scmp.ne.s32.totalorder %s31, %s32
      %p46 = scmp.eq.s32.totalorder %s24, 1
      %p47 = por %p45, %p46
      %p49 = scmp.ne.s32.totalorder %s32, %s48
      %p50 = scmp.eq.s32.totalorder %s24, 0
      %p51 = por %p49, %p50
      %s53 = sadd.s32 %s52, 1
      %p56 = scmp.eq.s32.totalorder %s18, 1
      %p57 = scmp.ne.s32.totalorder %s52, %s54
      %p58 = scmp.eq.s32.totalorder %s18, 0
      %p59 = por %p57, %p58
      %p60 = scmp.ne.s32.totalorder %s52, %s54
      %p61 = scmp.eq.s32.totalorder %s23, 1
      %p62 = por %p60, %p61
      %p63 = scmp.ne.s32.totalorder %s54, %s55
      %p64 = scmp.eq.s32.totalorder %s23, 0
      %p65 = por %p63, %p64
      %p66 = scmp.ne.s32.totalorder %s54, %s55
      %p67 = scmp.eq.s32.totalorder %s24, 1
      %p68 = por %p66, %p67
      %p70 = scmp.ne.s32.totalorder %s55, %s69
      %p71 = scmp.eq.s32.totalorder %s24, 0
      %p72 = por %p70, %p71
      %s74 = sadd.s32 %s73, 1
      %p77 = scmp.eq.s32.totalorder %s18, 1
      %p78 = scmp.ne.s32.totalorder %s73, %s75
      %p79 = scmp.eq.s32.totalorder %s18, 0
      %p80 = por %p78, %p79
      %p81 = scmp.ne.s32.totalorder %s73, %s75
      %p82 = scmp.eq.s32.totalorder %s23, 1
      %p83 = por %p81, %p82
      %p84 = scmp.ne.s32.totalorder %s75, %s76
      %p85 = scmp.eq.s32.totalorder %s23, 0
      %p86 = por %p84, %p85
      %p87 = scmp.ne.s32.totalorder %s75, %s76
      %p88 = scmp.eq.s32.totalorder %s24, 1
      %p89 = por %p87, %p88
      %p91 = scmp.ne.s32.totalorder %s76, %s90
      %p92 = scmp.eq.s32.totalorder %s24, 0
      %p93 = por %p91, %p92
      %s95 = sadd.s32 %s94, 1
      %p98 = scmp.eq.s32.totalorder %s18, 1
      %p99 = scmp.ne.s32.totalorder %s94, %s96
      %p100 = scmp.eq.s32.totalorder %s18, 0
      %p101 = por %p99, %p100
      %p102 = scmp.ne.s32.totalorder %s94, %s96
      %p103 = scmp.eq.s32.totalorder %s23, 1
      %p104 = por %p102, %p103
      %p105 = scmp.ne.s32.totalorder %s96, %s97
      %p106 = scmp.eq.s32.totalorder %s23, 0
      %p107 = por %p105, %p106
      %p108 = scmp.ne.s32.totalorder %s96, %s97
      %p109 = scmp.eq.s32.totalorder %s24, 1
      %p110 = por %p108, %p109
      %p112 = scmp.ne.s32.totalorder %s97, %s111
      %p113 = scmp.eq.s32.totalorder %s24, 0
      %p114 = por %p112, %p113
      %s116 = sadd.s32 %s115, 1
      %p119 = scmp.eq.s32.totalorder %s18, 1
      %p120 = scmp.ne.s32.totalorder %s115, %s117
      %p121 = scmp.eq.s32.totalorder %s18, 0
      %p122 = por %p120, %p121
      %p123 = scmp.ne.s32.totalorder %s115, %s117
      %p124 = scmp.eq.s32.totalorder %s23, 1
      %p125 = por %p123, %p124
      %p126 = scmp.ne.s32.totalorder %s117, %s118
      %p127 = scmp.eq.s32.totalorder %s23, 0
      %p128 = por %p126, %p127
      %p129 = scmp.ne.s32.totalorder %s117, %s118
      %p130 = scmp.eq.s32.totalorder %s24, 1
      %p131 = por %p129, %p130
      %p133 = scmp.ne.s32.totalorder %s118, %s132
      %p134 = scmp.eq.s32.totalorder %s24, 0
      %p135 = por %p133, %p134
      %s137 = sadd.s32 %s136, 1
      %p140 = scmp.eq.s32.totalorder %s18, 1
      %p141 = scmp.ne.s32.totalorder %s136, %s138
      %p142 = scmp.eq.s32.totalorder %s18, 0
      %p143 = por %p141, %p142
      %p144 = scmp.ne.s32.totalorder %s136, %s138
      %p145 = scmp.eq.s32.totalorder %s23, 1
      %p146 = por %p144, %p145
      %p147 = scmp.ne.s32.totalorder %s138, %s139
      %p148 = scmp.eq.s32.totalorder %s23, 0
      %p149 = por %p147, %p148
      %p150 = scmp.ne.s32.totalorder %s138, %s139
      %p151 = scmp.eq.s32.totalorder %s24, 1
      %p152 = por %p150, %p151
      %p154 = scmp.ne.s32.totalorder %s139, %s153
      %p155 = scmp.eq.s32.totalorder %s24, 0
      %p156 = por %p154, %p155
      %s158 = sadd.s32 %s157, 1
      %p161 = scmp.eq.s32.totalorder %s18, 1
      %p162 = scmp.ne.s32.totalorder %s157, %s159
      %p163 = scmp.eq.s32.totalorder %s18, 0
      %p164 = por %p162, %p163
      %p165 = scmp.ne.s32.totalorder %s157, %s159
      %p166 = scmp.eq.s32.totalorder %s23, 1
      %p167 = por %p165, %p166
      %p168 = scmp.ne.s32.totalorder %s159, %s160
      %p169 = scmp.eq.s32.totalorder %s23, 0
      %p170 = por %p168, %p169
      %p171 = scmp.ne.s32.totalorder %s159, %s160
      %p172 = scmp.eq.s32.totalorder %s24, 1
      %p173 = por %p171, %p172
      %p175 = scmp.ne.s32.totalorder %s160, %s174
      %p176 = scmp.eq.s32.totalorder %s24, 0
      %p177 = por %p175, %p176
      %s179 = sadd.s32 %s178, 1
      %p182 = scmp.eq.s32.totalorder %s18, 1
      %p183 = scmp.ne.s32.totalorder %s178, %s180
      %p184 = scmp.eq.s32.totalorder %s18, 0
      %p185 = por %p183, %p184
      %p186 = scmp.ne.s32.totalorder %s178, %s180
      %p187 = scmp.eq.s32.totalorder %s23, 1
      %p188 = por %p186, %p187
      %p189 = scmp.ne.s32.totalorder %s180, %s181
      %p190 = scmp.eq.s32.totalorder %s23, 0
      %p191 = por %p189, %p190
      %p192 = scmp.ne.s32.totalorder %s180, %s181
      %p193 = scmp.eq.s32.totalorder %s24, 1
      %p194 = por %p192, %p193
      %p196 = scmp.ne.s32.totalorder %s181, %s195
      %p197 = scmp.eq.s32.totalorder %s24, 0
      %p198 = por %p196, %p197
      %s200 = sadd.s32 %s199, 1
      %p203 = scmp.eq.s32.totalorder %s18, 1
      %p204 = scmp.ne.s32.totalorder %s199, %s201
      %p205 = scmp.eq.s32.totalorder %s18, 0
      %p206 = por %p204, %p205
      %p207 = scmp.ne.s32.totalorder %s199, %s201
      %p208 = scmp.eq.s32.totalorder %s23, 1
      %p209 = por %p207, %p208
      %p210 = scmp.ne.s32.totalorder %s201, %s202
      %p211 = scmp.eq.s32.totalorder %s23, 0
      %p212 = por %p210, %p211
      %p213 = scmp.ne.s32.totalorder %s201, %s202
      %p214 = scmp.eq.s32.totalorder %s24, 1
      %p215 = por %p213, %p214
      %p217 = scmp.ne.s32.totalorder %s202, %s216
      %p218 = scmp.eq.s32.totalorder %s24, 0
      %p219 = por %p217, %p218
      %s220 = ssub.s32 %s18, %s25
      %p221 = scmp.eq.s32.totalorder %s220, 0
      %s223 = sadd.s32 %s222, 1
      %s224 = scalar_select %p221, %s222, %s223
      %p227 = pneg %p221
      %p228 = scmp.eq.s32.totalorder %s18, 1
      %p229 = por %p227, %p228
      %p230 = scmp.ne.s32.totalorder %s222, %s225
      %p231 = scmp.eq.s32.totalorder %s18, 0
      %p232 = por %p230, %p231
      %p233 = scmp.ne.s32.totalorder %s222, %s225
      %p234 = scmp.eq.s32.totalorder %s23, 1
      %p235 = por %p233, %p234
      %p236 = scmp.ne.s32.totalorder %s225, %s226
      %p237 = scmp.eq.s32.totalorder %s23, 0
      %p238 = por %p236, %p237
      %p239 = scmp.ne.s32.totalorder %s225, %s226
      %p240 = scmp.eq.s32.totalorder %s24, 1
      %p241 = por %p239, %p240
      %p243 = scmp.ne.s32.totalorder %s226, %s242
      %p244 = scmp.eq.s32.totalorder %s24, 0
      %p245 = por %p243, %p244
      %p246 = scmp.le.s32.totalorder 1, %s18
      %p247 = scmp.lt.s32.totalorder %s18, 3
      %p248 = pnand %p246, %p247
      %p249 = pneg %p248
      // Predicated region
      $region9: #{_forward.1} parent=5 // pred_check
        _
      $region10: #{_forward.1} parent=5 // pred_check_branch
        %251 = sbr.rel (%p248) target = $region12
      $region11: #{_forward.1} parent=5 // pred_region
        %s252 = ssub.s32 %s18, 1
        // Predicated region
        $region13: #{_forward.1} parent=11 // pred_check
          %p253 = pneg %p65
        $region14: #{_forward.1} parent=11 // pred_check_branch
          %255 = sbr.rel (%p253) target = $region16
        $region15: #{_forward.1} parent=11 // pred_region
          _
        $region16: #{_forward.1} parent=11 // pred_fallthru
          _
        // Predicated region
        $region17: #{_forward.1} parent=11 // pred_check
          %p256 = pneg %p86
        $region18: #{_forward.1} parent=11 // pred_check_branch
          %258 = sbr.rel (%p256) target = $region20
        $region19: #{_forward.1} parent=11 // pred_region
          _
        $region20: #{_forward.1} parent=11 // pred_fallthru
          _
        // Predicated region
        $region21: #{_forward.1} parent=11 // pred_check
          %p259 = pneg %p107
        $region22: #{_forward.1} parent=11 // pred_check_branch
          %261 = sbr.rel (%p259) target = $region24
        $region23: #{_forward.1} parent=11 // pred_region
          _
        $region24: #{_forward.1} parent=11 // pred_fallthru
          _
        // Predicated region
        $region25: #{_forward.1} parent=11 // pred_check
          %p262 = pneg %p128
        $region26: #{_forward.1} parent=11 // pred_check_branch
          %264 = sbr.rel (%p262) target = $region28
        $region27: #{_forward.1} parent=11 // pred_region
          _
        $region28: #{_forward.1} parent=11 // pred_fallthru
          _
        // Predicated region
        $region29: #{_forward.1} parent=11 // pred_check
          %p265 = pneg %p149
        $region30: #{_forward.1} parent=11 // pred_check_branch
          %267 = sbr.rel (%p265) target = $region32
        $region31: #{_forward.1} parent=11 // pred_region
          _
        $region32: #{_forward.1} parent=11 // pred_fallthru
          _
        // Predicated region
        $region33: #{_forward.1} parent=11 // pred_check
          %p268 = pneg %p170
        $region34: #{_forward.1} parent=11 // pred_check_branch
          %270 = sbr.rel (%p268) target = $region36
        $region35: #{_forward.1} parent=11 // pred_region
          _
        $region36: #{_forward.1} parent=11 // pred_fallthru
          _
        // Predicated region
        $region37: #{_forward.1} parent=11 // pred_check
          %p271 = pneg %p191
        $region38: #{_forward.1} parent=11 // pred_check_branch
          %273 = sbr.rel (%p271) target = $region40
        $region39: #{_forward.1} parent=11 // pred_region
          _
        $region40: #{_forward.1} parent=11 // pred_fallthru
          _
        // Predicated region
        $region41: #{_forward.1} parent=11 // pred_check
          %p274 = pneg %p212
        $region42: #{_forward.1} parent=11 // pred_check_branch
          %276 = sbr.rel (%p274) target = $region44
        $region43: #{_forward.1} parent=11 // pred_region
          _
        $region44: #{_forward.1} parent=11 // pred_fallthru
          _
      $region12: #{_forward.1} parent=5 // pred_fallthru
        _
      %p277 = scmp.lt.s32.totalorder %s18, 2
      // Predicated region
      $region45: #{_forward.1} parent=5 // pred_check
        %p278 = pneg %p277
      $region46: #{_forward.1} parent=5 // pred_check_branch
        %280 = sbr.rel (%p278) target = $region48
      $region47: #{_forward.1} parent=5 // pred_region
        // Predicated region
        $region49: #{_forward.1} parent=47 // pred_check
          %p281 = pneg %p38
        $region50: #{_forward.1} parent=47 // pred_check_branch
          %283 = sbr.rel (%p281) target = $region52
        $region51: #{_forward.1} parent=47 // pred_region
          %p284 = scmp.lt.s32.totalorder %s18, 1
          %s285 = scalar_select %p284, %s18, 1
          %s286 = smul.addr %s285, 800
          %s287 = smul.addr %s286, 4
          %s288 = scalar_lea.vmem %s0, %s287
        $region52: #{_forward.1} parent=47 // pred_fallthru
          _
      $region48: #{_forward.1} parent=5 // pred_fallthru
        _
      %p289 = scmp.le.s32.totalorder 1, %s18
      %p290 = scmp.lt.s32.totalorder %s18, 3
      %p291 = pnand %p289, %p290
      %p292 = pneg %p291
      // Predicated region
      $region53: #{_forward.1} parent=5 // pred_check
        _
      $region54: #{_forward.1} parent=5 // pred_check_branch
        %294 = sbr.rel (%p291) target = $region56
      $region55: #{_forward.1} parent=5 // pred_region
        %s295 = ssub.s32 %s18, 1
        %p296 = scmp.lt.s32.totalorder %s23, 1
        %s297 = scalar_select %p296, %s23, 1
        %s298 = smul.addr %s297, 800
        %s299 = smul.addr %s298, 4
        %s300 = scalar_lea.vmem %s0, %s299
        %p301 = pneg %p44
        %p302 = pneg %p41
        %p303 = pneg %p65
        %p304 = pneg %p62
        %p305 = pneg %p86
        %p306 = pneg %p83
        %p307 = pneg %p107
        %p308 = pneg %p104
        %p309 = pneg %p128
        %p310 = pneg %p125
        %p311 = pneg %p149
        %p312 = pneg %p146
        %p313 = pneg %p170
        %p314 = pneg %p167
        %p315 = pneg %p191
        %p316 = pneg %p188
        %p317 = pneg %p212
        %p318 = pneg %p209
        %p319 = pneg %p238
        %p320 = pneg %p235
        %s321 = sand.u32 %s225, 1
        %s322 = scalar_lea.sflag [#allocation3], %s321
        %s323 = sand.u32 %s225, 1
        %s324 = smul.addr %s323, 8
        %s325 = scalar_lea.vmem [#allocation2], %s324
        %p326 = scmp.lt.s32.totalorder %s23, 1
        %s327 = scalar_select %p326, %s23, 1
        %s328 = smul.addr %s327, 800
        %s329 = smul.addr %s328, 4
        %s330 = scalar_lea.vmem %s0, %s329
        %v332 = vld [vmem:[%s330] sm:$0xff]
        %v333 = vld [vmem:[%s330 + $0x8] sm:$0xff]
        %v334 = vld [vmem:[%s330 + $0x10] sm:$0xff]
        %v335 = vld [vmem:[%s330 + $0x18] sm:$0xff]
        %v336 = vld [vmem:[%s330 + $0x20] sm:$0xff]
        %v337 = vld [vmem:[%s330 + $0x28] sm:$0xff]
        %v338 = vld [vmem:[%s330 + $0x30] sm:$0xff]
        %v339 = vld [vmem:[%s330 + $0x38] sm:$0xff]
        %v340 = vld [vmem:[%s330 + $0x40] sm:$0xff]
        %v341 = vld [vmem:[%s330 + $0x48] sm:$0xff]
        %v342 = vld [vmem:[%s330 + $0x50] sm:$0xff]
        %v343 = vld [vmem:[%s330 + $0x58] sm:$0xff]
        %v344 = vld [vmem:[%s330 + $0x60] sm:$0xff]
        %v345 = vld [vmem:[%s330 + $0x68] sm:$0xff]
        %v346 = vld [vmem:[%s330 + $0x70] sm:$0xff]
        %v347 = vld [vmem:[%s330 + $0x78] sm:$0xff]
        %v348 = vld [vmem:[%s330 + $0x80] sm:$0xff]
        %v349 = vld [vmem:[%s330 + $0x88] sm:$0xff]
        %v350 = vld [vmem:[%s330 + $0x90] sm:$0xff]
        %v351 = vld [vmem:[%s330 + $0x98] sm:$0xff]
        %v352 = vld [vmem:[%s330 + $0xa0] sm:$0xff]
        %v353 = vld [vmem:[%s330 + $0xa8] sm:$0xff]
        %v354 = vld [vmem:[%s330 + $0xb0] sm:$0xff]
        %v355 = vld [vmem:[%s330 + $0xb8] sm:$0xff]
        %v356 = vld [vmem:[%s330 + $0xc0] sm:$0xff]
        %v357 = vld [vmem:[%s330 + $0xc8] sm:$0xff]
        %v358 = vld [vmem:[%s330 + $0xd0] sm:$0xff]
        %v359 = vld [vmem:[%s330 + $0xd8] sm:$0xff]
        %v360 = vld [vmem:[%s330 + $0xe0] sm:$0xff]
        %v361 = vld [vmem:[%s330 + $0xe8] sm:$0xff]
        %v362 = vld [vmem:[%s330 + $0xf0] sm:$0xff]
        %v363 = vld [vmem:[%s330 + $0xf8] sm:$0xff]
        %v364 = vld [vmem:[%s330 + $0x100] sm:$0xff]
        %v365 = vld [vmem:[%s330 + $0x108] sm:$0xff]
        %v366 = vld [vmem:[%s330 + $0x110] sm:$0xff]
        %v367 = vld [vmem:[%s330 + $0x118] sm:$0xff]
        %v368 = vld [vmem:[%s330 + $0x120] sm:$0xff]
        %v369 = vld [vmem:[%s330 + $0x128] sm:$0xff]
        %v370 = vld [vmem:[%s330 + $0x130] sm:$0xff]
        %v371 = vld [vmem:[%s330 + $0x138] sm:$0xff]
        %v372 = vld [vmem:[%s330 + $0x140] sm:$0xff]
        %v373 = vld [vmem:[%s330 + $0x148] sm:$0xff]
        %v374 = vld [vmem:[%s330 + $0x150] sm:$0xff]
        %v375 = vld [vmem:[%s330 + $0x158] sm:$0xff]
        %v376 = vld [vmem:[%s330 + $0x160] sm:$0xff]
        %v377 = vld [vmem:[%s330 + $0x168] sm:$0xff]
        %v378 = vld [vmem:[%s330 + $0x170] sm:$0xff]
        %v379 = vld [vmem:[%s330 + $0x178] sm:$0xff]
        %v380 = vld [vmem:[%s330 + $0x180] sm:$0xff]
        %v381 = vld [vmem:[%s330 + $0x188] sm:$0xff]
        %v382 = vld [vmem:[%s330 + $0x190] sm:$0xff]
        %v383 = vld [vmem:[%s330 + $0x198] sm:$0xff]
        %v384 = vld [vmem:[%s330 + $0x1a0] sm:$0xff]
        %v385 = vld [vmem:[%s330 + $0x1a8] sm:$0xff]
        %v386 = vld [vmem:[%s330 + $0x1b0] sm:$0xff]
        %v387 = vld [vmem:[%s330 + $0x1b8] sm:$0xff]
        %v388 = vld [vmem:[%s330 + $0x1c0] sm:$0xff]
        %v389 = vld [vmem:[%s330 + $0x1c8] sm:$0xff]
        %v390 = vld [vmem:[%s330 + $0x1d0] sm:$0xff]
        %v391 = vld [vmem:[%s330 + $0x1d8] sm:$0xff]
        %v392 = vld [vmem:[%s330 + $0x1e0] sm:$0xff]
        %v393 = vld [vmem:[%s330 + $0x1e8] sm:$0xff]
        %v394 = vld [vmem:[%s330 + $0x1f0] sm:$0xff]
        %v395 = vld [vmem:[%s330 + $0x1f8] sm:$0xff]
        %v396 = vld [vmem:[%s330 + $0x200] sm:$0xff]
        %v397 = vld [vmem:[%s330 + $0x208] sm:$0xff]
        %v398 = vld [vmem:[%s330 + $0x210] sm:$0xff]
        %v399 = vld [vmem:[%s330 + $0x218] sm:$0xff]
        %v400 = vld [vmem:[%s330 + $0x220] sm:$0xff]
        %v401 = vld [vmem:[%s330 + $0x228] sm:$0xff]
        %v402 = vld [vmem:[%s330 + $0x230] sm:$0xff]
        %v403 = vld [vmem:[%s330 + $0x238] sm:$0xff]
        %v404 = vld [vmem:[%s330 + $0x240] sm:$0xff]
        %v405 = vld [vmem:[%s330 + $0x248] sm:$0xff]
        %v406 = vld [vmem:[%s330 + $0x250] sm:$0xff]
        %v407 = vld [vmem:[%s330 + $0x258] sm:$0xff]
        %v408 = vld [vmem:[%s330 + $0x260] sm:$0xff]
        %v409 = vld [vmem:[%s330 + $0x268] sm:$0xff]
        %v410 = vld [vmem:[%s330 + $0x270] sm:$0xff]
        %v411 = vld [vmem:[%s330 + $0x278] sm:$0xff]
        %v412 = vld [vmem:[%s330 + $0x280] sm:$0xff]
        %v413 = vld [vmem:[%s330 + $0x288] sm:$0xff]
        %v414 = vld [vmem:[%s330 + $0x290] sm:$0xff]
        %v415 = vld [vmem:[%s330 + $0x298] sm:$0xff]
        %v416 = vld [vmem:[%s330 + $0x2a0] sm:$0xff]
        %v417 = vld [vmem:[%s330 + $0x2a8] sm:$0xff]
        %v418 = vld [vmem:[%s330 + $0x2b0] sm:$0xff]
        %v419 = vld [vmem:[%s330 + $0x2b8] sm:$0xff]
        %v420 = vld [vmem:[%s330 + $0x2c0] sm:$0xff]
        %v421 = vld [vmem:[%s330 + $0x2c8] sm:$0xff]
        %v422 = vld [vmem:[%s330 + $0x2d0] sm:$0xff]
        %v423 = vld [vmem:[%s330 + $0x2d8] sm:$0xff]
        %v424 = vld [vmem:[%s330 + $0x2e0] sm:$0xff]
        %v425 = vld [vmem:[%s330 + $0x2e8] sm:$0xff]
        %v426 = vld [vmem:[%s330 + $0x2f0] sm:$0xff]
        %v427 = vld [vmem:[%s330 + $0x2f8] sm:$0xff]
        %v428 = vld [vmem:[%s330 + $0x300] sm:$0xff]
        %v429 = vld [vmem:[%s330 + $0x308] sm:$0xff]
        %v430 = vld [vmem:[%s330 + $0x310] sm:$0xff]
        %v431 = vld [vmem:[%s330 + $0x318] sm:$0xff]
        %v432 = vld [vmem:[%s330 + $0x320] sm:$0xff]
        %v433 = vld [vmem:[%s330 + $0x328] sm:$0xff]
        %v434 = vld [vmem:[%s330 + $0x330] sm:$0xff]
        %v435 = vld [vmem:[%s330 + $0x338] sm:$0xff]
        %v436 = vld [vmem:[%s330 + $0x340] sm:$0xff]
        %v437 = vld [vmem:[%s330 + $0x348] sm:$0xff]
        %v438 = vld [vmem:[%s330 + $0x350] sm:$0xff]
        %v439 = vld [vmem:[%s330 + $0x358] sm:$0xff]
        %v440 = vld [vmem:[%s330 + $0x360] sm:$0xff]
        %v441 = vld [vmem:[%s330 + $0x368] sm:$0xff]
        %v442 = vld [vmem:[%s330 + $0x370] sm:$0xff]
        %v443 = vld [vmem:[%s330 + $0x378] sm:$0xff]
        %v444 = vld [vmem:[%s330 + $0x380] sm:$0xff]
        %v445 = vld [vmem:[%s330 + $0x388] sm:$0xff]
        %v446 = vld [vmem:[%s330 + $0x390] sm:$0xff]
        %v447 = vld [vmem:[%s330 + $0x398] sm:$0xff]
        %v448 = vld [vmem:[%s330 + $0x3a0] sm:$0xff]
        %v449 = vld [vmem:[%s330 + $0x3a8] sm:$0xff]
        %v450 = vld [vmem:[%s330 + $0x3b0] sm:$0xff]
        %v451 = vld [vmem:[%s330 + $0x3b8] sm:$0xff]
        %v452 = vld [vmem:[%s330 + $0x3c0] sm:$0xff]
        %v453 = vld [vmem:[%s330 + $0x3c8] sm:$0xff]
        %v454 = vld [vmem:[%s330 + $0x3d0] sm:$0xff]
        %v455 = vld [vmem:[%s330 + $0x3d8] sm:$0xff]
        %v456 = vld [vmem:[%s330 + $0x3e0] sm:$0xff]
        %v457 = vld [vmem:[%s330 + $0x3e8] sm:$0xff]
        %v458 = vld [vmem:[%s330 + $0x3f0] sm:$0xff]
        %v459 = vld [vmem:[%s330 + $0x3f8] sm:$0xff]
        %v460 = vld [vmem:[%s330 + $0x400] sm:$0xff]
        %v461 = vld [vmem:[%s330 + $0x408] sm:$0xff]
        %v462 = vld [vmem:[%s330 + $0x410] sm:$0xff]
        %v463 = vld [vmem:[%s330 + $0x418] sm:$0xff]
        %v464 = vld [vmem:[%s330 + $0x420] sm:$0xff]
        %v465 = vld [vmem:[%s330 + $0x428] sm:$0xff]
        %v466 = vld [vmem:[%s330 + $0x430] sm:$0xff]
        %v467 = vld [vmem:[%s330 + $0x438] sm:$0xff]
        %v468 = vld [vmem:[%s330 + $0x440] sm:$0xff]
        %v469 = vld [vmem:[%s330 + $0x448] sm:$0xff]
        %v470 = vld [vmem:[%s330 + $0x450] sm:$0xff]
        %v471 = vld [vmem:[%s330 + $0x458] sm:$0xff]
        %v472 = vld [vmem:[%s330 + $0x460] sm:$0xff]
        %v473 = vld [vmem:[%s330 + $0x468] sm:$0xff]
        %v474 = vld [vmem:[%s330 + $0x470] sm:$0xff]
        %v475 = vld [vmem:[%s330 + $0x478] sm:$0xff]
        %v476 = vld [vmem:[%s330 + $0x480] sm:$0xff]
        %v477 = vld [vmem:[%s330 + $0x488] sm:$0xff]
        %v478 = vld [vmem:[%s330 + $0x490] sm:$0xff]
        %v479 = vld [vmem:[%s330 + $0x498] sm:$0xff]
        %v480 = vld [vmem:[%s330 + $0x4a0] sm:$0xff]
        %v481 = vld [vmem:[%s330 + $0x4a8] sm:$0xff]
        %v482 = vld [vmem:[%s330 + $0x4b0] sm:$0xff]
        %v483 = vld [vmem:[%s330 + $0x4b8] sm:$0xff]
        %v484 = vld [vmem:[%s330 + $0x4c0] sm:$0xff]
        %v485 = vld [vmem:[%s330 + $0x4c8] sm:$0xff]
        %v486 = vld [vmem:[%s330 + $0x4d0] sm:$0xff]
        %v487 = vld [vmem:[%s330 + $0x4d8] sm:$0xff]
        %v488 = vld [vmem:[%s330 + $0x4e0] sm:$0xff]
        %v489 = vld [vmem:[%s330 + $0x4e8] sm:$0xff]
        %v490 = vld [vmem:[%s330 + $0x4f0] sm:$0xff]
        %v491 = vld [vmem:[%s330 + $0x4f8] sm:$0xff]
        %v492 = vld [vmem:[%s330 + $0x500] sm:$0xff]
        %v493 = vld [vmem:[%s330 + $0x508] sm:$0xff]
        %v494 = vld [vmem:[%s330 + $0x510] sm:$0xff]
        %v495 = vld [vmem:[%s330 + $0x518] sm:$0xff]
        %v496 = vld [vmem:[%s330 + $0x520] sm:$0xff]
        %v497 = vld [vmem:[%s330 + $0x528] sm:$0xff]
        %v498 = vld [vmem:[%s330 + $0x530] sm:$0xff]
        %v499 = vld [vmem:[%s330 + $0x538] sm:$0xff]
        %v500 = vld [vmem:[%s330 + $0x540] sm:$0xff]
        %v501 = vld [vmem:[%s330 + $0x548] sm:$0xff]
        %v502 = vld [vmem:[%s330 + $0x550] sm:$0xff]
        %v503 = vld [vmem:[%s330 + $0x558] sm:$0xff]
        %v504 = vld [vmem:[%s330 + $0x560] sm:$0xff]
        %v505 = vld [vmem:[%s330 + $0x568] sm:$0xff]
        %v506 = vld [vmem:[%s330 + $0x570] sm:$0xff]
        %v507 = vld [vmem:[%s330 + $0x578] sm:$0xff]
        %v508 = vld [vmem:[%s330 + $0x580] sm:$0xff]
        %v509 = vld [vmem:[%s330 + $0x588] sm:$0xff]
        %v510 = vld [vmem:[%s330 + $0x590] sm:$0xff]
        %v511 = vld [vmem:[%s330 + $0x598] sm:$0xff]
        %v512 = vld [vmem:[%s330 + $0x5a0] sm:$0xff]
        %v513 = vld [vmem:[%s330 + $0x5a8] sm:$0xff]
        %v514 = vld [vmem:[%s330 + $0x5b0] sm:$0xff]
        %v515 = vld [vmem:[%s330 + $0x5b8] sm:$0xff]
        %v516 = vld [vmem:[%s330 + $0x5c0] sm:$0xff]
        %v517 = vld [vmem:[%s330 + $0x5c8] sm:$0xff]
        %v518 = vld [vmem:[%s330 + $0x5d0] sm:$0xff]
        %v519 = vld [vmem:[%s330 + $0x5d8] sm:$0xff]
        %v520 = vld [vmem:[%s330 + $0x5e0] sm:$0xff]
        %v521 = vld [vmem:[%s330 + $0x5e8] sm:$0xff]
        %v522 = vld [vmem:[%s330 + $0x5f0] sm:$0xff]
        %v523 = vld [vmem:[%s330 + $0x5f8] sm:$0xff]
        %v524 = vld [vmem:[%s330 + $0x600] sm:$0xff]
        %v525 = vld [vmem:[%s330 + $0x608] sm:$0xff]
        %v526 = vld [vmem:[%s330 + $0x610] sm:$0xff]
        %v527 = vld [vmem:[%s330 + $0x618] sm:$0xff]
        %v528 = vld [vmem:[%s330 + $0x620] sm:$0xff]
        %v529 = vld [vmem:[%s330 + $0x628] sm:$0xff]
        %v530 = vld [vmem:[%s330 + $0x630] sm:$0xff]
        %v531 = vld [vmem:[%s330 + $0x638] sm:$0xff]
        %v532 = vld [vmem:[%s330 + $0x640] sm:$0xff]
        %v533 = vld [vmem:[%s330 + $0x648] sm:$0xff]
        %v534 = vld [vmem:[%s330 + $0x650] sm:$0xff]
        %v535 = vld [vmem:[%s330 + $0x658] sm:$0xff]
        %v536 = vld [vmem:[%s330 + $0x660] sm:$0xff]
        %v537 = vld [vmem:[%s330 + $0x668] sm:$0xff]
        %v538 = vld [vmem:[%s330 + $0x670] sm:$0xff]
        %v539 = vld [vmem:[%s330 + $0x678] sm:$0xff]
        %v540 = vld [vmem:[%s330 + $0x680] sm:$0xff]
        %v541 = vld [vmem:[%s330 + $0x688] sm:$0xff]
        %v542 = vld [vmem:[%s330 + $0x690] sm:$0xff]
        %v543 = vld [vmem:[%s330 + $0x698] sm:$0xff]
        %v544 = vld [vmem:[%s330 + $0x6a0] sm:$0xff]
        %v545 = vld [vmem:[%s330 + $0x6a8] sm:$0xff]
        %v546 = vld [vmem:[%s330 + $0x6b0] sm:$0xff]
        %v547 = vld [vmem:[%s330 + $0x6b8] sm:$0xff]
        %v548 = vld [vmem:[%s330 + $0x6c0] sm:$0xff]
        %v549 = vld [vmem:[%s330 + $0x6c8] sm:$0xff]
        %v550 = vld [vmem:[%s330 + $0x6d0] sm:$0xff]
        %v551 = vld [vmem:[%s330 + $0x6d8] sm:$0xff]
        %v552 = vld [vmem:[%s330 + $0x6e0] sm:$0xff]
        %v553 = vld [vmem:[%s330 + $0x6e8] sm:$0xff]
        %v554 = vld [vmem:[%s330 + $0x6f0] sm:$0xff]
        %v555 = vld [vmem:[%s330 + $0x6f8] sm:$0xff]
        %v556 = vld [vmem:[%s330 + $0x700] sm:$0xff]
        %v557 = vld [vmem:[%s330 + $0x708] sm:$0xff]
        %v558 = vld [vmem:[%s330 + $0x710] sm:$0xff]
        %v559 = vld [vmem:[%s330 + $0x718] sm:$0xff]
        %v560 = vld [vmem:[%s330 + $0x720] sm:$0xff]
        %v561 = vld [vmem:[%s330 + $0x728] sm:$0xff]
        %v562 = vld [vmem:[%s330 + $0x730] sm:$0xff]
        %v563 = vld [vmem:[%s330 + $0x738] sm:$0xff]
        %v564 = vld [vmem:[%s330 + $0x740] sm:$0xff]
        %v565 = vld [vmem:[%s330 + $0x748] sm:$0xff]
        %v566 = vld [vmem:[%s330 + $0x750] sm:$0xff]
        %v567 = vld [vmem:[%s330 + $0x758] sm:$0xff]
        %v568 = vld [vmem:[%s330 + $0x760] sm:$0xff]
        %v569 = vld [vmem:[%s330 + $0x768] sm:$0xff]
        %v570 = vld [vmem:[%s330 + $0x770] sm:$0xff]
        %v571 = vld [vmem:[%s330 + $0x778] sm:$0xff]
        %v572 = vld [vmem:[%s330 + $0x780] sm:$0xff]
        %v573 = vld [vmem:[%s330 + $0x788] sm:$0xff]
        %v574 = vld [vmem:[%s330 + $0x790] sm:$0xff]
        %v575 = vld [vmem:[%s330 + $0x798] sm:$0xff]
        %v576 = vld [vmem:[%s330 + $0x7a0] sm:$0xff]
        %v577 = vld [vmem:[%s330 + $0x7a8] sm:$0xff]
        %v578 = vld [vmem:[%s330 + $0x7b0] sm:$0xff]
        %v579 = vld [vmem:[%s330 + $0x7b8] sm:$0xff]
        %v580 = vld [vmem:[%s330 + $0x7c0] sm:$0xff]
        %v581 = vld [vmem:[%s330 + $0x7c8] sm:$0xff]
        %v582 = vld [vmem:[%s330 + $0x7d0] sm:$0xff]
        %v583 = vld [vmem:[%s330 + $0x7d8] sm:$0xff]
        %v584 = vld [vmem:[%s330 + $0x7e0] sm:$0xff]
        %v585 = vld [vmem:[%s330 + $0x7e8] sm:$0xff]
        %v586 = vld [vmem:[%s330 + $0x7f0] sm:$0xff]
        %v587 = vld [vmem:[%s330 + $0x7f8] sm:$0xff]
        %v588 = vld [vmem:[%s330 + $0x800] sm:$0xff]
        %v589 = vld [vmem:[%s330 + $0x808] sm:$0xff]
        %v590 = vld [vmem:[%s330 + $0x810] sm:$0xff]
        %v591 = vld [vmem:[%s330 + $0x818] sm:$0xff]
        %v592 = vld [vmem:[%s330 + $0x820] sm:$0xff]
        %v593 = vld [vmem:[%s330 + $0x828] sm:$0xff]
        %v594 = vld [vmem:[%s330 + $0x830] sm:$0xff]
        %v595 = vld [vmem:[%s330 + $0x838] sm:$0xff]
        %v596 = vld [vmem:[%s330 + $0x840] sm:$0xff]
        %v597 = vld [vmem:[%s330 + $0x848] sm:$0xff]
        %v598 = vld [vmem:[%s330 + $0x850] sm:$0xff]
        %v599 = vld [vmem:[%s330 + $0x858] sm:$0xff]
        %v600 = vld [vmem:[%s330 + $0x860] sm:$0xff]
        %v601 = vld [vmem:[%s330 + $0x868] sm:$0xff]
        %v602 = vld [vmem:[%s330 + $0x870] sm:$0xff]
        %v603 = vld [vmem:[%s330 + $0x878] sm:$0xff]
        %v604 = vld [vmem:[%s330 + $0x880] sm:$0xff]
        %v605 = vld [vmem:[%s330 + $0x888] sm:$0xff]
        %v606 = vld [vmem:[%s330 + $0x890] sm:$0xff]
        %v607 = vld [vmem:[%s330 + $0x898] sm:$0xff]
        %v608 = vld [vmem:[%s330 + $0x8a0] sm:$0xff]
        %v609 = vld [vmem:[%s330 + $0x8a8] sm:$0xff]
        %v610 = vld [vmem:[%s330 + $0x8b0] sm:$0xff]
        %v611 = vld [vmem:[%s330 + $0x8b8] sm:$0xff]
        %v612 = vld [vmem:[%s330 + $0x8c0] sm:$0xff]
        %v613 = vld [vmem:[%s330 + $0x8c8] sm:$0xff]
        %v614 = vld [vmem:[%s330 + $0x8d0] sm:$0xff]
        %v615 = vld [vmem:[%s330 + $0x8d8] sm:$0xff]
        %v616 = vld [vmem:[%s330 + $0x8e0] sm:$0xff]
        %v617 = vld [vmem:[%s330 + $0x8e8] sm:$0xff]
        %v618 = vld [vmem:[%s330 + $0x8f0] sm:$0xff]
        %v619 = vld [vmem:[%s330 + $0x8f8] sm:$0xff]
        %v620 = vld [vmem:[%s330 + $0x900] sm:$0xff]
        %v621 = vld [vmem:[%s330 + $0x908] sm:$0xff]
        %v622 = vld [vmem:[%s330 + $0x910] sm:$0xff]
        %v623 = vld [vmem:[%s330 + $0x918] sm:$0xff]
        %v624 = vld [vmem:[%s330 + $0x920] sm:$0xff]
        %v625 = vld [vmem:[%s330 + $0x928] sm:$0xff]
        %v626 = vld [vmem:[%s330 + $0x930] sm:$0xff]
        %v627 = vld [vmem:[%s330 + $0x938] sm:$0xff]
        %v628 = vld [vmem:[%s330 + $0x940] sm:$0xff]
        %v629 = vld [vmem:[%s330 + $0x948] sm:$0xff]
        %v630 = vld [vmem:[%s330 + $0x950] sm:$0xff]
        %v631 = vld [vmem:[%s330 + $0x958] sm:$0xff]
        %v632 = vld [vmem:[%s330 + $0x960] sm:$0xff]
        %v633 = vld [vmem:[%s330 + $0x968] sm:$0xff]
        %v634 = vld [vmem:[%s330 + $0x970] sm:$0xff]
        %v635 = vld [vmem:[%s330 + $0x978] sm:$0xff]
        %v636 = vld [vmem:[%s330 + $0x980] sm:$0xff]
        %v637 = vld [vmem:[%s330 + $0x988] sm:$0xff]
        %v638 = vld [vmem:[%s330 + $0x990] sm:$0xff]
        %v639 = vld [vmem:[%s330 + $0x998] sm:$0xff]
        %v640 = vld [vmem:[%s330 + $0x9a0] sm:$0xff]
        %v641 = vld [vmem:[%s330 + $0x9a8] sm:$0xff]
        %v642 = vld [vmem:[%s330 + $0x9b0] sm:$0xff]
        %v643 = vld [vmem:[%s330 + $0x9b8] sm:$0xff]
        %v644 = vld [vmem:[%s330 + $0x9c0] sm:$0xff]
        %v645 = vld [vmem:[%s330 + $0x9c8] sm:$0xff]
        %v646 = vld [vmem:[%s330 + $0x9d0] sm:$0xff]
        %v647 = vld [vmem:[%s330 + $0x9d8] sm:$0xff]
        %v648 = vld [vmem:[%s330 + $0x9e0] sm:$0xff]
        %v649 = vld [vmem:[%s330 + $0x9e8] sm:$0xff]
        %v650 = vld [vmem:[%s330 + $0x9f0] sm:$0xff]
        %v651 = vld [vmem:[%s330 + $0x9f8] sm:$0xff]
        %v652 = vld [vmem:[%s330 + $0xa00] sm:$0xff]
        %v653 = vld [vmem:[%s330 + $0xa08] sm:$0xff]
        %v654 = vld [vmem:[%s330 + $0xa10] sm:$0xff]
        %v655 = vld [vmem:[%s330 + $0xa18] sm:$0xff]
        %v656 = vld [vmem:[%s330 + $0xa20] sm:$0xff]
        %v657 = vld [vmem:[%s330 + $0xa28] sm:$0xff]
        %v658 = vld [vmem:[%s330 + $0xa30] sm:$0xff]
        %v659 = vld [vmem:[%s330 + $0xa38] sm:$0xff]
        %v660 = vld [vmem:[%s330 + $0xa40] sm:$0xff]
        %v661 = vld [vmem:[%s330 + $0xa48] sm:$0xff]
        %v662 = vld [vmem:[%s330 + $0xa50] sm:$0xff]
        %v663 = vld [vmem:[%s330 + $0xa58] sm:$0xff]
        %v664 = vld [vmem:[%s330 + $0xa60] sm:$0xff]
        %v665 = vld [vmem:[%s330 + $0xa68] sm:$0xff]
        %v666 = vld [vmem:[%s330 + $0xa70] sm:$0xff]
        %v667 = vld [vmem:[%s330 + $0xa78] sm:$0xff]
        %v668 = vld [vmem:[%s330 + $0xa80] sm:$0xff]
        %v669 = vld [vmem:[%s330 + $0xa88] sm:$0xff]
        %v670 = vld [vmem:[%s330 + $0xa90] sm:$0xff]
        %v671 = vld [vmem:[%s330 + $0xa98] sm:$0xff]
        %v672 = vld [vmem:[%s330 + $0xaa0] sm:$0xff]
        %v673 = vld [vmem:[%s330 + $0xaa8] sm:$0xff]
        %v674 = vld [vmem:[%s330 + $0xab0] sm:$0xff]
        %v675 = vld [vmem:[%s330 + $0xab8] sm:$0xff]
        %v676 = vld [vmem:[%s330 + $0xac0] sm:$0xff]
        %v677 = vld [vmem:[%s330 + $0xac8] sm:$0xff]
        %v678 = vld [vmem:[%s330 + $0xad0] sm:$0xff]
        %v679 = vld [vmem:[%s330 + $0xad8] sm:$0xff]
        %v680 = vld [vmem:[%s330 + $0xae0] sm:$0xff]
        %v681 = vld [vmem:[%s330 + $0xae8] sm:$0xff]
        %v682 = vld [vmem:[%s330 + $0xaf0] sm:$0xff]
        %v683 = vld [vmem:[%s330 + $0xaf8] sm:$0xff]
        %v684 = vld [vmem:[%s330 + $0xb00] sm:$0xff]
        %v685 = vld [vmem:[%s330 + $0xb08] sm:$0xff]
        %v686 = vld [vmem:[%s330 + $0xb10] sm:$0xff]
        %v687 = vld [vmem:[%s330 + $0xb18] sm:$0xff]
        %v688 = vld [vmem:[%s330 + $0xb20] sm:$0xff]
        %v689 = vld [vmem:[%s330 + $0xb28] sm:$0xff]
        %v690 = vld [vmem:[%s330 + $0xb30] sm:$0xff]
        %v691 = vld [vmem:[%s330 + $0xb38] sm:$0xff]
        %v692 = vld [vmem:[%s330 + $0xb40] sm:$0xff]
        %v693 = vld [vmem:[%s330 + $0xb48] sm:$0xff]
        %v694 = vld [vmem:[%s330 + $0xb50] sm:$0xff]
        %v695 = vld [vmem:[%s330 + $0xb58] sm:$0xff]
        %v696 = vld [vmem:[%s330 + $0xb60] sm:$0xff]
        %v697 = vld [vmem:[%s330 + $0xb68] sm:$0xff]
        %v698 = vld [vmem:[%s330 + $0xb70] sm:$0xff]
        %v699 = vld [vmem:[%s330 + $0xb78] sm:$0xff]
        %v700 = vld [vmem:[%s330 + $0xb80] sm:$0xff]
        %v701 = vld [vmem:[%s330 + $0xb88] sm:$0xff]
        %v702 = vld [vmem:[%s330 + $0xb90] sm:$0xff]
        %v703 = vld [vmem:[%s330 + $0xb98] sm:$0xff]
        %v704 = vld [vmem:[%s330 + $0xba0] sm:$0xff]
        %v705 = vld [vmem:[%s330 + $0xba8] sm:$0xff]
        %v706 = vld [vmem:[%s330 + $0xbb0] sm:$0xff]
        %v707 = vld [vmem:[%s330 + $0xbb8] sm:$0xff]
        %v708 = vld [vmem:[%s330 + $0xbc0] sm:$0xff]
        %v709 = vld [vmem:[%s330 + $0xbc8] sm:$0xff]
        %v710 = vld [vmem:[%s330 + $0xbd0] sm:$0xff]
        %v711 = vld [vmem:[%s330 + $0xbd8] sm:$0xff]
        %v712 = vld [vmem:[%s330 + $0xbe0] sm:$0xff]
        %v713 = vld [vmem:[%s330 + $0xbe8] sm:$0xff]
        %v714 = vld [vmem:[%s330 + $0xbf0] sm:$0xff]
        %v715 = vld [vmem:[%s330 + $0xbf8] sm:$0xff]
        %v716 = vld [vmem:[%s330 + $0xc00] sm:$0xff]
        %v717 = vld [vmem:[%s330 + $0xc08] sm:$0xff]
        %v718 = vld [vmem:[%s330 + $0xc10] sm:$0xff]
        %v719 = vld [vmem:[%s330 + $0xc18] sm:$0xff]
        %v720 = vld [vmem:[%s330 + $0xc20] sm:$0xff]
        %v721 = vld [vmem:[%s330 + $0xc28] sm:$0xff]
        %v722 = vld [vmem:[%s330 + $0xc30] sm:$0xff]
        %v723 = vld [vmem:[%s330 + $0xc38] sm:$0xff]
        %v724 = vld [vmem:[%s330 + $0xc40] sm:$0xff]
        %v725 = vld [vmem:[%s330 + $0xc48] sm:$0xff]
        %v726 = vld [vmem:[%s330 + $0xc50] sm:$0xff]
        %v727 = vld [vmem:[%s330 + $0xc58] sm:$0xff]
        %v728 = vld [vmem:[%s330 + $0xc60] sm:$0xff]
        %v729 = vld [vmem:[%s330 + $0xc68] sm:$0xff]
        %v730 = vld [vmem:[%s330 + $0xc70] sm:$0xff]
        %v731 = vld [vmem:[%s330 + $0xc78] sm:$0xff]
        %v732 = vld [vmem:[%s1] sm:$0xf]
        %v733 = vld [vmem:[%s1 + $0x4] sm:$0xf]
        %v734 = vld [vmem:[%s1 + $0x8] sm:$0xf]
        %v735 = vld [vmem:[%s1 + $0xc] sm:$0xf]
        %v736 = vld [vmem:[%s1 + $0x10] sm:$0xf]
        %v737 = vld [vmem:[%s1 + $0x14] sm:$0xf]
        %v738 = vld [vmem:[%s1 + $0x18] sm:$0xf]
        %v739 = vld [vmem:[%s1 + $0x1c] sm:$0xf]
        %v740 = vld [vmem:[%s1 + $0x20] sm:$0xf]
        %v741 = vld [vmem:[%s1 + $0x24] sm:$0xf]
        %v742 = vld [vmem:[%s1 + $0x28] sm:$0xf]
        %v743 = vld [vmem:[%s1 + $0x2c] sm:$0xf]
        %v744 = vld [vmem:[%s1 + $0x30] sm:$0xf]
        %v745 = vld [vmem:[%s1 + $0x34] sm:$0xf]
        %v746 = vld [vmem:[%s1 + $0x38] sm:$0xf]
        %v747 = vld [vmem:[%s1 + $0x3c] sm:$0xf]
        %v748 = vld [vmem:[%s1 + $0x40] sm:$0xf]
        %v749 = vld [vmem:[%s1 + $0x44] sm:$0xf]
        %v750 = vld [vmem:[%s1 + $0x48] sm:$0xf]
        %v751 = vld [vmem:[%s1 + $0x4c] sm:$0xf]
        %v752 = vld [vmem:[%s1 + $0x50] sm:$0xf]
        %v753 = vld [vmem:[%s1 + $0x54] sm:$0xf]
        %v754 = vld [vmem:[%s1 + $0x58] sm:$0xf]
        %v755 = vld [vmem:[%s1 + $0x5c] sm:$0xf]
        %v756 = vld [vmem:[%s1 + $0x60] sm:$0xf]
        %v757 = vld [vmem:[%s1 + $0x64] sm:$0xf]
        %v758 = vld [vmem:[%s1 + $0x68] sm:$0xf]
        %v759 = vld [vmem:[%s1 + $0x6c] sm:$0xf]
        %v760 = vld [vmem:[%s1 + $0x70] sm:$0xf]
        %v761 = vld [vmem:[%s1 + $0x74] sm:$0xf]
        %v762 = vld [vmem:[%s1 + $0x78] sm:$0xf]
        %v763 = vld [vmem:[%s1 + $0x7c] sm:$0xf]
        %v764 = vld [vmem:[%s1 + $0x80] sm:$0xf]
        %v765 = vld [vmem:[%s1 + $0x84] sm:$0xf]
        %v766 = vld [vmem:[%s1 + $0x88] sm:$0xf]
        %v767 = vld [vmem:[%s1 + $0x8c] sm:$0xf]
        %v768 = vld [vmem:[%s1 + $0x90] sm:$0xf]
        %v769 = vld [vmem:[%s1 + $0x94] sm:$0xf]
        %v770 = vld [vmem:[%s1 + $0x98] sm:$0xf]
        %v771 = vld [vmem:[%s1 + $0x9c] sm:$0xf]
        %v772 = vld [vmem:[%s1 + $0xa0] sm:$0xf]
        %v773 = vld [vmem:[%s1 + $0xa4] sm:$0xf]
        %v774 = vld [vmem:[%s1 + $0xa8] sm:$0xf]
        %v775 = vld [vmem:[%s1 + $0xac] sm:$0xf]
        %v776 = vld [vmem:[%s1 + $0xb0] sm:$0xf]
        %v777 = vld [vmem:[%s1 + $0xb4] sm:$0xf]
        %v778 = vld [vmem:[%s1 + $0xb8] sm:$0xf]
        %v779 = vld [vmem:[%s1 + $0xbc] sm:$0xf]
        %v780 = vld [vmem:[%s1 + $0xc0] sm:$0xf]
        %v781 = vld [vmem:[%s1 + $0xc4] sm:$0xf]
        %v782 = vld [vmem:[%s1 + $0xc8] sm:$0xf]
        %v783 = vld [vmem:[%s1 + $0xcc] sm:$0xf]
        %v784 = vld [vmem:[%s1 + $0xd0] sm:$0xf]
        %v785 = vld [vmem:[%s1 + $0xd4] sm:$0xf]
        %v786 = vld [vmem:[%s1 + $0xd8] sm:$0xf]
        %v787 = vld [vmem:[%s1 + $0xdc] sm:$0xf]
        %v788 = vld [vmem:[%s1 + $0xe0] sm:$0xf]
        %v789 = vld [vmem:[%s1 + $0xe4] sm:$0xf]
        %v790 = vld [vmem:[%s1 + $0xe8] sm:$0xf]
        %v791 = vld [vmem:[%s1 + $0xec] sm:$0xf]
        %v792 = vld [vmem:[%s1 + $0xf0] sm:$0xf]
        %v793 = vld [vmem:[%s1 + $0xf4] sm:$0xf]
        %v794 = vld [vmem:[%s1 + $0xf8] sm:$0xf]
        %v795 = vld [vmem:[%s1 + $0xfc] sm:$0xf]
        %v796 = vld [vmem:[%s1 + $0x100] sm:$0xf]
        %v797 = vld [vmem:[%s1 + $0x104] sm:$0xf]
        %v798 = vld [vmem:[%s1 + $0x108] sm:$0xf]
        %v799 = vld [vmem:[%s1 + $0x10c] sm:$0xf]
        %v800 = vld [vmem:[%s1 + $0x110] sm:$0xf]
        %v801 = vld [vmem:[%s1 + $0x114] sm:$0xf]
        %v802 = vld [vmem:[%s1 + $0x118] sm:$0xf]
        %v803 = vld [vmem:[%s1 + $0x11c] sm:$0xf]
        %v804 = vld [vmem:[%s1 + $0x120] sm:$0xf]
        %v805 = vld [vmem:[%s1 + $0x124] sm:$0xf]
        %v806 = vld [vmem:[%s1 + $0x128] sm:$0xf]
        %v807 = vld [vmem:[%s1 + $0x12c] sm:$0xf]
        %v808 = vld [vmem:[%s1 + $0x130] sm:$0xf]
        %v809 = vld [vmem:[%s1 + $0x134] sm:$0xf]
        %v810 = vld [vmem:[%s1 + $0x138] sm:$0xf]
        %v811 = vld [vmem:[%s1 + $0x13c] sm:$0xf]
        %v812 = vld [vmem:[%s1 + $0x140] sm:$0xf]
        %v813 = vld [vmem:[%s1 + $0x144] sm:$0xf]
        %v814 = vld [vmem:[%s1 + $0x148] sm:$0xf]
        %v815 = vld [vmem:[%s1 + $0x14c] sm:$0xf]
        %v816 = vld [vmem:[%s1 + $0x150] sm:$0xf]
        %v817 = vld [vmem:[%s1 + $0x154] sm:$0xf]
        %v818 = vld [vmem:[%s1 + $0x158] sm:$0xf]
        %v819 = vld [vmem:[%s1 + $0x15c] sm:$0xf]
        %v820 = vld [vmem:[%s1 + $0x160] sm:$0xf]
        %v821 = vld [vmem:[%s1 + $0x164] sm:$0xf]
        %v822 = vld [vmem:[%s1 + $0x168] sm:$0xf]
        %v823 = vld [vmem:[%s1 + $0x16c] sm:$0xf]
        %v824 = vld [vmem:[%s1 + $0x170] sm:$0xf]
        %v825 = vld [vmem:[%s1 + $0x174] sm:$0xf]
        %v826 = vld [vmem:[%s1 + $0x178] sm:$0xf]
        %v827 = vld [vmem:[%s1 + $0x17c] sm:$0xf]
        %v828 = vld [vmem:[%s1 + $0x180] sm:$0xf]
        %v829 = vld [vmem:[%s1 + $0x184] sm:$0xf]
        %v830 = vld [vmem:[%s1 + $0x188] sm:$0xf]
        %v831 = vld [vmem:[%s1 + $0x18c] sm:$0xf]
        %v832 = vld [vmem:[%s1 + $0x190] sm:$0xf]
        %v833 = vld [vmem:[%s1 + $0x194] sm:$0xf]
        %v834 = vld [vmem:[%s1 + $0x198] sm:$0xf]
        %v835 = vld [vmem:[%s1 + $0x19c] sm:$0xf]
        %v836 = vld [vmem:[%s1 + $0x1a0] sm:$0xf]
        %v837 = vld [vmem:[%s1 + $0x1a4] sm:$0xf]
        %v838 = vld [vmem:[%s1 + $0x1a8] sm:$0xf]
        %v839 = vld [vmem:[%s1 + $0x1ac] sm:$0xf]
        %v840 = vld [vmem:[%s1 + $0x1b0] sm:$0xf]
        %v841 = vld [vmem:[%s1 + $0x1b4] sm:$0xf]
        %v842 = vld [vmem:[%s1 + $0x1b8] sm:$0xf]
        %v843 = vld [vmem:[%s1 + $0x1bc] sm:$0xf]
        %v844 = vld [vmem:[%s1 + $0x1c0] sm:$0xf]
        %v845 = vld [vmem:[%s1 + $0x1c4] sm:$0xf]
        %v846 = vld [vmem:[%s1 + $0x1c8] sm:$0xf]
        %v847 = vld [vmem:[%s1 + $0x1cc] sm:$0xf]
        %v848 = vld [vmem:[%s1 + $0x1d0] sm:$0xf]
        %v849 = vld [vmem:[%s1 + $0x1d4] sm:$0xf]
        %v850 = vld [vmem:[%s1 + $0x1d8] sm:$0xf]
        %v851 = vld [vmem:[%s1 + $0x1dc] sm:$0xf]
        %v852 = vld [vmem:[%s1 + $0x1e0] sm:$0xf]
        %v853 = vld [vmem:[%s1 + $0x1e4] sm:$0xf]
        %v854 = vld [vmem:[%s1 + $0x1e8] sm:$0xf]
        %v855 = vld [vmem:[%s1 + $0x1ec] sm:$0xf]
        %v856 = vld [vmem:[%s1 + $0x1f0] sm:$0xf]
        %v857 = vld [vmem:[%s1 + $0x1f4] sm:$0xf]
        %v858 = vld [vmem:[%s1 + $0x1f8] sm:$0xf]
        %v859 = vld [vmem:[%s1 + $0x1fc] sm:$0xf]
        %v860 = vld [vmem:[%s2] sm:$0x1]
        %v862 = vperm.slane %v860, 0
        %v1264 = vunpack.c.l.b16 %v332
        %v1265 = vunpack.c.h.b16 %v332
        %v1266 = vunpack.c.l.b16 %v333
        %v1267 = vunpack.c.h.b16 %v333
        %v1268 = vunpack.c.l.b16 %v334
        %v1269 = vunpack.c.h.b16 %v334
        %v1270 = vunpack.c.l.b16 %v335
        %v1271 = vunpack.c.h.b16 %v335
        %v1272 = vunpack.c.l.b16 %v336
        %v1273 = vunpack.c.h.b16 %v336
        %v1274 = vunpack.c.l.b16 %v337
        %v1275 = vunpack.c.h.b16 %v337
        %v1276 = vunpack.c.l.b16 %v338
        %v1277 = vunpack.c.h.b16 %v338
        %v1278 = vunpack.c.l.b16 %v339
        %v1279 = vunpack.c.h.b16 %v339
        %v1280 = vunpack.c.l.b16 %v340
        %v1281 = vunpack.c.h.b16 %v340
        %v1282 = vunpack.c.l.b16 %v341
        %v1283 = vunpack.c.h.b16 %v341
        %v1284 = vunpack.c.l.b16 %v342
        %v1285 = vunpack.c.h.b16 %v342
        %v1286 = vunpack.c.l.b16 %v343
        %v1287 = vunpack.c.h.b16 %v343
        %v1288 = vunpack.c.l.b16 %v344
        %v1289 = vunpack.c.h.b16 %v344
        %v1290 = vunpack.c.l.b16 %v345
        %v1291 = vunpack.c.h.b16 %v345
        %v1292 = vunpack.c.l.b16 %v346
        %v1293 = vunpack.c.h.b16 %v346
        %v1294 = vunpack.c.l.b16 %v347
        %v1295 = vunpack.c.h.b16 %v347
        %v1296 = vunpack.c.l.b16 %v348
        %v1297 = vunpack.c.h.b16 %v348
        %v1298 = vunpack.c.l.b16 %v349
        %v1299 = vunpack.c.h.b16 %v349
        %v1300 = vunpack.c.l.b16 %v350
        %v1301 = vunpack.c.h.b16 %v350
        %v1302 = vunpack.c.l.b16 %v351
        %v1303 = vunpack.c.h.b16 %v351
        %v1304 = vunpack.c.l.b16 %v352
        %v1305 = vunpack.c.h.b16 %v352
        %v1306 = vunpack.c.l.b16 %v353
        %v1307 = vunpack.c.h.b16 %v353
        %v1308 = vunpack.c.l.b16 %v354
        %v1309 = vunpack.c.h.b16 %v354
        %v1310 = vunpack.c.l.b16 %v355
        %v1311 = vunpack.c.h.b16 %v355
        %v1312 = vunpack.c.l.b16 %v356
        %v1313 = vunpack.c.h.b16 %v356
        %v1314 = vunpack.c.l.b16 %v357
        %v1315 = vunpack.c.h.b16 %v357
        %v1316 = vunpack.c.l.b16 %v358
        %v1317 = vunpack.c.h.b16 %v358
        %v1318 = vunpack.c.l.b16 %v359
        %v1319 = vunpack.c.h.b16 %v359
        %v1320 = vunpack.c.l.b16 %v360
        %v1321 = vunpack.c.h.b16 %v360
        %v1322 = vunpack.c.l.b16 %v361
        %v1323 = vunpack.c.h.b16 %v361
        %v1324 = vunpack.c.l.b16 %v362
        %v1325 = vunpack.c.h.b16 %v362
        %v1326 = vunpack.c.l.b16 %v363
        %v1327 = vunpack.c.h.b16 %v363
        %v1328 = vunpack.c.l.b16 %v364
        %v1329 = vunpack.c.h.b16 %v364
        %v1330 = vunpack.c.l.b16 %v365
        %v1331 = vunpack.c.h.b16 %v365
        %v1332 = vunpack.c.l.b16 %v366
        %v1333 = vunpack.c.h.b16 %v366
        %v1334 = vunpack.c.l.b16 %v367
        %v1335 = vunpack.c.h.b16 %v367
        %v1336 = vunpack.c.l.b16 %v368
        %v1337 = vunpack.c.h.b16 %v368
        %v1338 = vunpack.c.l.b16 %v369
        %v1339 = vunpack.c.h.b16 %v369
        %v1340 = vunpack.c.l.b16 %v370
        %v1341 = vunpack.c.h.b16 %v370
        %v1342 = vunpack.c.l.b16 %v371
        %v1343 = vunpack.c.h.b16 %v371
        %v1344 = vunpack.c.l.b16 %v372
        %v1345 = vunpack.c.h.b16 %v372
        %v1346 = vunpack.c.l.b16 %v373
        %v1347 = vunpack.c.h.b16 %v373
        %v1348 = vunpack.c.l.b16 %v374
        %v1349 = vunpack.c.h.b16 %v374
        %v1350 = vunpack.c.l.b16 %v375
        %v1351 = vunpack.c.h.b16 %v375
        %v1352 = vunpack.c.l.b16 %v376
        %v1353 = vunpack.c.h.b16 %v376
        %v1354 = vunpack.c.l.b16 %v377
        %v1355 = vunpack.c.h.b16 %v377
        %v1356 = vunpack.c.l.b16 %v378
        %v1357 = vunpack.c.h.b16 %v378
        %v1358 = vunpack.c.l.b16 %v379
        %v1359 = vunpack.c.h.b16 %v379
        %v1360 = vunpack.c.l.b16 %v380
        %v1361 = vunpack.c.h.b16 %v380
        %v1362 = vunpack.c.l.b16 %v381
        %v1363 = vunpack.c.h.b16 %v381
        %v1364 = vunpack.c.l.b16 %v382
        %v1365 = vunpack.c.h.b16 %v382
        %v1366 = vunpack.c.l.b16 %v383
        %v1367 = vunpack.c.h.b16 %v383
        %v1368 = vunpack.c.l.b16 %v384
        %v1369 = vunpack.c.h.b16 %v384
        %v1370 = vunpack.c.l.b16 %v385
        %v1371 = vunpack.c.h.b16 %v385
        %v1372 = vunpack.c.l.b16 %v386
        %v1373 = vunpack.c.h.b16 %v386
        %v1374 = vunpack.c.l.b16 %v387
        %v1375 = vunpack.c.h.b16 %v387
        %v1376 = vunpack.c.l.b16 %v388
        %v1377 = vunpack.c.h.b16 %v388
        %v1378 = vunpack.c.l.b16 %v389
        %v1379 = vunpack.c.h.b16 %v389
        %v1380 = vunpack.c.l.b16 %v390
        %v1381 = vunpack.c.h.b16 %v390
        %v1382 = vunpack.c.l.b16 %v391
        %v1383 = vunpack.c.h.b16 %v391
        %v1384 = vunpack.c.l.b16 %v392
        %v1385 = vunpack.c.h.b16 %v392
        %v1386 = vunpack.c.l.b16 %v393
        %v1387 = vunpack.c.h.b16 %v393
        %v1388 = vunpack.c.l.b16 %v394
        %v1389 = vunpack.c.h.b16 %v394
        %v1390 = vunpack.c.l.b16 %v395
        %v1391 = vunpack.c.h.b16 %v395
        %v1392 = vunpack.c.l.b16 %v396
        %v1393 = vunpack.c.h.b16 %v396
        %v1394 = vunpack.c.l.b16 %v397
        %v1395 = vunpack.c.h.b16 %v397
        %v1396 = vunpack.c.l.b16 %v398
        %v1397 = vunpack.c.h.b16 %v398
        %v1398 = vunpack.c.l.b16 %v399
        %v1399 = vunpack.c.h.b16 %v399
        %v1400 = vunpack.c.l.b16 %v400
        %v1401 = vunpack.c.h.b16 %v400
        %v1402 = vunpack.c.l.b16 %v401
        %v1403 = vunpack.c.h.b16 %v401
        %v1404 = vunpack.c.l.b16 %v402
        %v1405 = vunpack.c.h.b16 %v402
        %v1406 = vunpack.c.l.b16 %v403
        %v1407 = vunpack.c.h.b16 %v403
        %v1408 = vunpack.c.l.b16 %v404
        %v1409 = vunpack.c.h.b16 %v404
        %v1410 = vunpack.c.l.b16 %v405
        %v1411 = vunpack.c.h.b16 %v405
        %v1412 = vunpack.c.l.b16 %v406
        %v1413 = vunpack.c.h.b16 %v406
        %v1414 = vunpack.c.l.b16 %v407
        %v1415 = vunpack.c.h.b16 %v407
        %v1416 = vunpack.c.l.b16 %v408
        %v1417 = vunpack.c.h.b16 %v408
        %v1418 = vunpack.c.l.b16 %v409
        %v1419 = vunpack.c.h.b16 %v409
        %v1420 = vunpack.c.l.b16 %v410
        %v1421 = vunpack.c.h.b16 %v410
        %v1422 = vunpack.c.l.b16 %v411
        %v1423 = vunpack.c.h.b16 %v411
        %v1424 = vunpack.c.l.b16 %v412
        %v1425 = vunpack.c.h.b16 %v412
        %v1426 = vunpack.c.l.b16 %v413
        %v1427 = vunpack.c.h.b16 %v413
        %v1428 = vunpack.c.l.b16 %v414
        %v1429 = vunpack.c.h.b16 %v414
        %v1430 = vunpack.c.l.b16 %v415
        %v1431 = vunpack.c.h.b16 %v415
        %v1432 = vunpack.c.l.b16 %v416
        %v1433 = vunpack.c.h.b16 %v416
        %v1434 = vunpack.c.l.b16 %v417
        %v1435 = vunpack.c.h.b16 %v417
        %v1436 = vunpack.c.l.b16 %v418
        %v1437 = vunpack.c.h.b16 %v418
        %v1438 = vunpack.c.l.b16 %v419
        %v1439 = vunpack.c.h.b16 %v419
        %v1440 = vunpack.c.l.b16 %v420
        %v1441 = vunpack.c.h.b16 %v420
        %v1442 = vunpack.c.l.b16 %v421
        %v1443 = vunpack.c.h.b16 %v421
        %v1444 = vunpack.c.l.b16 %v422
        %v1445 = vunpack.c.h.b16 %v422
        %v1446 = vunpack.c.l.b16 %v423
        %v1447 = vunpack.c.h.b16 %v423
        %v1448 = vunpack.c.l.b16 %v424
        %v1449 = vunpack.c.h.b16 %v424
        %v1450 = vunpack.c.l.b16 %v425
        %v1451 = vunpack.c.h.b16 %v425
        %v1452 = vunpack.c.l.b16 %v426
        %v1453 = vunpack.c.h.b16 %v426
        %v1454 = vunpack.c.l.b16 %v427
        %v1455 = vunpack.c.h.b16 %v427
        %v1456 = vunpack.c.l.b16 %v428
        %v1457 = vunpack.c.h.b16 %v428
        %v1458 = vunpack.c.l.b16 %v429
        %v1459 = vunpack.c.h.b16 %v429
        %v1460 = vunpack.c.l.b16 %v430
        %v1461 = vunpack.c.h.b16 %v430
        %v1462 = vunpack.c.l.b16 %v431
        %v1463 = vunpack.c.h.b16 %v431
        %v1464 = vunpack.c.l.b16 %v432
        %v1465 = vunpack.c.h.b16 %v432
        %v1466 = vunpack.c.l.b16 %v433
        %v1467 = vunpack.c.h.b16 %v433
        %v1468 = vunpack.c.l.b16 %v434
        %v1469 = vunpack.c.h.b16 %v434
        %v1470 = vunpack.c.l.b16 %v435
        %v1471 = vunpack.c.h.b16 %v435
        %v1472 = vunpack.c.l.b16 %v436
        %v1473 = vunpack.c.h.b16 %v436
        %v1474 = vunpack.c.l.b16 %v437
        %v1475 = vunpack.c.h.b16 %v437
        %v1476 = vunpack.c.l.b16 %v438
        %v1477 = vunpack.c.h.b16 %v438
        %v1478 = vunpack.c.l.b16 %v439
        %v1479 = vunpack.c.h.b16 %v439
        %v1480 = vunpack.c.l.b16 %v440
        %v1481 = vunpack.c.h.b16 %v440
        %v1482 = vunpack.c.l.b16 %v441
        %v1483 = vunpack.c.h.b16 %v441
        %v1484 = vunpack.c.l.b16 %v442
        %v1485 = vunpack.c.h.b16 %v442
        %v1486 = vunpack.c.l.b16 %v443
        %v1487 = vunpack.c.h.b16 %v443
        %v1488 = vunpack.c.l.b16 %v444
        %v1489 = vunpack.c.h.b16 %v444
        %v1490 = vunpack.c.l.b16 %v445
        %v1491 = vunpack.c.h.b16 %v445
        %v1492 = vunpack.c.l.b16 %v446
        %v1493 = vunpack.c.h.b16 %v446
        %v1494 = vunpack.c.l.b16 %v447
        %v1495 = vunpack.c.h.b16 %v447
        %v1496 = vunpack.c.l.b16 %v448
        %v1497 = vunpack.c.h.b16 %v448
        %v1498 = vunpack.c.l.b16 %v449
        %v1499 = vunpack.c.h.b16 %v449
        %v1500 = vunpack.c.l.b16 %v450
        %v1501 = vunpack.c.h.b16 %v450
        %v1502 = vunpack.c.l.b16 %v451
        %v1503 = vunpack.c.h.b16 %v451
        %v1504 = vunpack.c.l.b16 %v452
        %v1505 = vunpack.c.h.b16 %v452
        %v1506 = vunpack.c.l.b16 %v453
        %v1507 = vunpack.c.h.b16 %v453
        %v1508 = vunpack.c.l.b16 %v454
        %v1509 = vunpack.c.h.b16 %v454
        %v1510 = vunpack.c.l.b16 %v455
        %v1511 = vunpack.c.h.b16 %v455
        %v1512 = vunpack.c.l.b16 %v456
        %v1513 = vunpack.c.h.b16 %v456
        %v1514 = vunpack.c.l.b16 %v457
        %v1515 = vunpack.c.h.b16 %v457
        %v1516 = vunpack.c.l.b16 %v458
        %v1517 = vunpack.c.h.b16 %v458
        %v1518 = vunpack.c.l.b16 %v459
        %v1519 = vunpack.c.h.b16 %v459
        %v1520 = vunpack.c.l.b16 %v460
        %v1521 = vunpack.c.h.b16 %v460
        %v1522 = vunpack.c.l.b16 %v461
        %v1523 = vunpack.c.h.b16 %v461
        %v1524 = vunpack.c.l.b16 %v462
        %v1525 = vunpack.c.h.b16 %v462
        %v1526 = vunpack.c.l.b16 %v463
        %v1527 = vunpack.c.h.b16 %v463
        %v1528 = vunpack.c.l.b16 %v464
        %v1529 = vunpack.c.h.b16 %v464
        %v1530 = vunpack.c.l.b16 %v465
        %v1531 = vunpack.c.h.b16 %v465
        %v1532 = vunpack.c.l.b16 %v466
        %v1533 = vunpack.c.h.b16 %v466
        %v1534 = vunpack.c.l.b16 %v467
        %v1535 = vunpack.c.h.b16 %v467
        %v1536 = vunpack.c.l.b16 %v468
        %v1537 = vunpack.c.h.b16 %v468
        %v1538 = vunpack.c.l.b16 %v469
        %v1539 = vunpack.c.h.b16 %v469
        %v1540 = vunpack.c.l.b16 %v470
        %v1541 = vunpack.c.h.b16 %v470
        %v1542 = vunpack.c.l.b16 %v471
        %v1543 = vunpack.c.h.b16 %v471
        %v1544 = vunpack.c.l.b16 %v472
        %v1545 = vunpack.c.h.b16 %v472
        %v1546 = vunpack.c.l.b16 %v473
        %v1547 = vunpack.c.h.b16 %v473
        %v1548 = vunpack.c.l.b16 %v474
        %v1549 = vunpack.c.h.b16 %v474
        %v1550 = vunpack.c.l.b16 %v475
        %v1551 = vunpack.c.h.b16 %v475
        %v1552 = vunpack.c.l.b16 %v476
        %v1553 = vunpack.c.h.b16 %v476
        %v1554 = vunpack.c.l.b16 %v477
        %v1555 = vunpack.c.h.b16 %v477
        %v1556 = vunpack.c.l.b16 %v478
        %v1557 = vunpack.c.h.b16 %v478
        %v1558 = vunpack.c.l.b16 %v479
        %v1559 = vunpack.c.h.b16 %v479
        %v1560 = vunpack.c.l.b16 %v480
        %v1561 = vunpack.c.h.b16 %v480
        %v1562 = vunpack.c.l.b16 %v481
        %v1563 = vunpack.c.h.b16 %v481
        %v1564 = vunpack.c.l.b16 %v482
        %v1565 = vunpack.c.h.b16 %v482
        %v1566 = vunpack.c.l.b16 %v483
        %v1567 = vunpack.c.h.b16 %v483
        %v1568 = vunpack.c.l.b16 %v484
        %v1569 = vunpack.c.h.b16 %v484
        %v1570 = vunpack.c.l.b16 %v485
        %v1571 = vunpack.c.h.b16 %v485
        %v1572 = vunpack.c.l.b16 %v486
        %v1573 = vunpack.c.h.b16 %v486
        %v1574 = vunpack.c.l.b16 %v487
        %v1575 = vunpack.c.h.b16 %v487
        %v1576 = vunpack.c.l.b16 %v488
        %v1577 = vunpack.c.h.b16 %v488
        %v1578 = vunpack.c.l.b16 %v489
        %v1579 = vunpack.c.h.b16 %v489
        %v1580 = vunpack.c.l.b16 %v490
        %v1581 = vunpack.c.h.b16 %v490
        %v1582 = vunpack.c.l.b16 %v491
        %v1583 = vunpack.c.h.b16 %v491
        %v1584 = vunpack.c.l.b16 %v492
        %v1585 = vunpack.c.h.b16 %v492
        %v1586 = vunpack.c.l.b16 %v493
        %v1587 = vunpack.c.h.b16 %v493
        %v1588 = vunpack.c.l.b16 %v494
        %v1589 = vunpack.c.h.b16 %v494
        %v1590 = vunpack.c.l.b16 %v495
        %v1591 = vunpack.c.h.b16 %v495
        %v1592 = vunpack.c.l.b16 %v496
        %v1593 = vunpack.c.h.b16 %v496
        %v1594 = vunpack.c.l.b16 %v497
        %v1595 = vunpack.c.h.b16 %v497
        %v1596 = vunpack.c.l.b16 %v498
        %v1597 = vunpack.c.h.b16 %v498
        %v1598 = vunpack.c.l.b16 %v499
        %v1599 = vunpack.c.h.b16 %v499
        %v1600 = vunpack.c.l.b16 %v500
        %v1601 = vunpack.c.h.b16 %v500
        %v1602 = vunpack.c.l.b16 %v501
        %v1603 = vunpack.c.h.b16 %v501
        %v1604 = vunpack.c.l.b16 %v502
        %v1605 = vunpack.c.h.b16 %v502
        %v1606 = vunpack.c.l.b16 %v503
        %v1607 = vunpack.c.h.b16 %v503
        %v1608 = vunpack.c.l.b16 %v504
        %v1609 = vunpack.c.h.b16 %v504
        %v1610 = vunpack.c.l.b16 %v505
        %v1611 = vunpack.c.h.b16 %v505
        %v1612 = vunpack.c.l.b16 %v506
        %v1613 = vunpack.c.h.b16 %v506
        %v1614 = vunpack.c.l.b16 %v507
        %v1615 = vunpack.c.h.b16 %v507
        %v1616 = vunpack.c.l.b16 %v508
        %v1617 = vunpack.c.h.b16 %v508
        %v1618 = vunpack.c.l.b16 %v509
        %v1619 = vunpack.c.h.b16 %v509
        %v1620 = vunpack.c.l.b16 %v510
        %v1621 = vunpack.c.h.b16 %v510
        %v1622 = vunpack.c.l.b16 %v511
        %v1623 = vunpack.c.h.b16 %v511
        %v1624 = vunpack.c.l.b16 %v512
        %v1625 = vunpack.c.h.b16 %v512
        %v1626 = vunpack.c.l.b16 %v513
        %v1627 = vunpack.c.h.b16 %v513
        %v1628 = vunpack.c.l.b16 %v514
        %v1629 = vunpack.c.h.b16 %v514
        %v1630 = vunpack.c.l.b16 %v515
        %v1631 = vunpack.c.h.b16 %v515
        %v1632 = vunpack.c.l.b16 %v516
        %v1633 = vunpack.c.h.b16 %v516
        %v1634 = vunpack.c.l.b16 %v517
        %v1635 = vunpack.c.h.b16 %v517
        %v1636 = vunpack.c.l.b16 %v518
        %v1637 = vunpack.c.h.b16 %v518
        %v1638 = vunpack.c.l.b16 %v519
        %v1639 = vunpack.c.h.b16 %v519
        %v1640 = vunpack.c.l.b16 %v520
        %v1641 = vunpack.c.h.b16 %v520
        %v1642 = vunpack.c.l.b16 %v521
        %v1643 = vunpack.c.h.b16 %v521
        %v1644 = vunpack.c.l.b16 %v522
        %v1645 = vunpack.c.h.b16 %v522
        %v1646 = vunpack.c.l.b16 %v523
        %v1647 = vunpack.c.h.b16 %v523
        %v1648 = vunpack.c.l.b16 %v524
        %v1649 = vunpack.c.h.b16 %v524
        %v1650 = vunpack.c.l.b16 %v525
        %v1651 = vunpack.c.h.b16 %v525
        %v1652 = vunpack.c.l.b16 %v526
        %v1653 = vunpack.c.h.b16 %v526
        %v1654 = vunpack.c.l.b16 %v527
        %v1655 = vunpack.c.h.b16 %v527
        %v1656 = vunpack.c.l.b16 %v528
        %v1657 = vunpack.c.h.b16 %v528
        %v1658 = vunpack.c.l.b16 %v529
        %v1659 = vunpack.c.h.b16 %v529
        %v1660 = vunpack.c.l.b16 %v530
        %v1661 = vunpack.c.h.b16 %v530
        %v1662 = vunpack.c.l.b16 %v531
        %v1663 = vunpack.c.h.b16 %v531
        %v1664 = vunpack.c.l.b16 %v532
        %v1665 = vunpack.c.h.b16 %v532
        %v1666 = vunpack.c.l.b16 %v533
        %v1667 = vunpack.c.h.b16 %v533
        %v1668 = vunpack.c.l.b16 %v534
        %v1669 = vunpack.c.h.b16 %v534
        %v1670 = vunpack.c.l.b16 %v535
        %v1671 = vunpack.c.h.b16 %v535
        %v1672 = vunpack.c.l.b16 %v536
        %v1673 = vunpack.c.h.b16 %v536
        %v1674 = vunpack.c.l.b16 %v537
        %v1675 = vunpack.c.h.b16 %v537
        %v1676 = vunpack.c.l.b16 %v538
        %v1677 = vunpack.c.h.b16 %v538
        %v1678 = vunpack.c.l.b16 %v539
        %v1679 = vunpack.c.h.b16 %v539
        %v1680 = vunpack.c.l.b16 %v540
        %v1681 = vunpack.c.h.b16 %v540
        %v1682 = vunpack.c.l.b16 %v541
        %v1683 = vunpack.c.h.b16 %v541
        %v1684 = vunpack.c.l.b16 %v542
        %v1685 = vunpack.c.h.b16 %v542
        %v1686 = vunpack.c.l.b16 %v543
        %v1687 = vunpack.c.h.b16 %v543
        %v1688 = vunpack.c.l.b16 %v544
        %v1689 = vunpack.c.h.b16 %v544
        %v1690 = vunpack.c.l.b16 %v545
        %v1691 = vunpack.c.h.b16 %v545
        %v1692 = vunpack.c.l.b16 %v546
        %v1693 = vunpack.c.h.b16 %v546
        %v1694 = vunpack.c.l.b16 %v547
        %v1695 = vunpack.c.h.b16 %v547
        %v1696 = vunpack.c.l.b16 %v548
        %v1697 = vunpack.c.h.b16 %v548
        %v1698 = vunpack.c.l.b16 %v549
        %v1699 = vunpack.c.h.b16 %v549
        %v1700 = vunpack.c.l.b16 %v550
        %v1701 = vunpack.c.h.b16 %v550
        %v1702 = vunpack.c.l.b16 %v551
        %v1703 = vunpack.c.h.b16 %v551
        %v1704 = vunpack.c.l.b16 %v552
        %v1705 = vunpack.c.h.b16 %v552
        %v1706 = vunpack.c.l.b16 %v553
        %v1707 = vunpack.c.h.b16 %v553
        %v1708 = vunpack.c.l.b16 %v554
        %v1709 = vunpack.c.h.b16 %v554
        %v1710 = vunpack.c.l.b16 %v555
        %v1711 = vunpack.c.h.b16 %v555
        %v1712 = vunpack.c.l.b16 %v556
        %v1713 = vunpack.c.h.b16 %v556
        %v1714 = vunpack.c.l.b16 %v557
        %v1715 = vunpack.c.h.b16 %v557
        %v1716 = vunpack.c.l.b16 %v558
        %v1717 = vunpack.c.h.b16 %v558
        %v1718 = vunpack.c.l.b16 %v559
        %v1719 = vunpack.c.h.b16 %v559
        %v1720 = vunpack.c.l.b16 %v560
        %v1721 = vunpack.c.h.b16 %v560
        %v1722 = vunpack.c.l.b16 %v561
        %v1723 = vunpack.c.h.b16 %v561
        %v1724 = vunpack.c.l.b16 %v562
        %v1725 = vunpack.c.h.b16 %v562
        %v1726 = vunpack.c.l.b16 %v563
        %v1727 = vunpack.c.h.b16 %v563
        %v1728 = vunpack.c.l.b16 %v564
        %v1729 = vunpack.c.h.b16 %v564
        %v1730 = vunpack.c.l.b16 %v565
        %v1731 = vunpack.c.h.b16 %v565
        %v1732 = vunpack.c.l.b16 %v566
        %v1733 = vunpack.c.h.b16 %v566
        %v1734 = vunpack.c.l.b16 %v567
        %v1735 = vunpack.c.h.b16 %v567
        %v1736 = vunpack.c.l.b16 %v568
        %v1737 = vunpack.c.h.b16 %v568
        %v1738 = vunpack.c.l.b16 %v569
        %v1739 = vunpack.c.h.b16 %v569
        %v1740 = vunpack.c.l.b16 %v570
        %v1741 = vunpack.c.h.b16 %v570
        %v1742 = vunpack.c.l.b16 %v571
        %v1743 = vunpack.c.h.b16 %v571
        %v1744 = vunpack.c.l.b16 %v572
        %v1745 = vunpack.c.h.b16 %v572
        %v1746 = vunpack.c.l.b16 %v573
        %v1747 = vunpack.c.h.b16 %v573
        %v1748 = vunpack.c.l.b16 %v574
        %v1749 = vunpack.c.h.b16 %v574
        %v1750 = vunpack.c.l.b16 %v575
        %v1751 = vunpack.c.h.b16 %v575
        %v1752 = vunpack.c.l.b16 %v576
        %v1753 = vunpack.c.h.b16 %v576
        %v1754 = vunpack.c.l.b16 %v577
        %v1755 = vunpack.c.h.b16 %v577
        %v1756 = vunpack.c.l.b16 %v578
        %v1757 = vunpack.c.h.b16 %v578
        %v1758 = vunpack.c.l.b16 %v579
        %v1759 = vunpack.c.h.b16 %v579
        %v1760 = vunpack.c.l.b16 %v580
        %v1761 = vunpack.c.h.b16 %v580
        %v1762 = vunpack.c.l.b16 %v581
        %v1763 = vunpack.c.h.b16 %v581
        %v1764 = vunpack.c.l.b16 %v582
        %v1765 = vunpack.c.h.b16 %v582
        %v1766 = vunpack.c.l.b16 %v583
        %v1767 = vunpack.c.h.b16 %v583
        %v1768 = vunpack.c.l.b16 %v584
        %v1769 = vunpack.c.h.b16 %v584
        %v1770 = vunpack.c.l.b16 %v585
        %v1771 = vunpack.c.h.b16 %v585
        %v1772 = vunpack.c.l.b16 %v586
        %v1773 = vunpack.c.h.b16 %v586
        %v1774 = vunpack.c.l.b16 %v587
        %v1775 = vunpack.c.h.b16 %v587
        %v1776 = vunpack.c.l.b16 %v588
        %v1777 = vunpack.c.h.b16 %v588
        %v1778 = vunpack.c.l.b16 %v589
        %v1779 = vunpack.c.h.b16 %v589
        %v1780 = vunpack.c.l.b16 %v590
        %v1781 = vunpack.c.h.b16 %v590
        %v1782 = vunpack.c.l.b16 %v591
        %v1783 = vunpack.c.h.b16 %v591
        %v1784 = vunpack.c.l.b16 %v592
        %v1785 = vunpack.c.h.b16 %v592
        %v1786 = vunpack.c.l.b16 %v593
        %v1787 = vunpack.c.h.b16 %v593
        %v1788 = vunpack.c.l.b16 %v594
        %v1789 = vunpack.c.h.b16 %v594
        %v1790 = vunpack.c.l.b16 %v595
        %v1791 = vunpack.c.h.b16 %v595
        %v1792 = vunpack.c.l.b16 %v596
        %v1793 = vunpack.c.h.b16 %v596
        %v1794 = vunpack.c.l.b16 %v597
        %v1795 = vunpack.c.h.b16 %v597
        %v1796 = vunpack.c.l.b16 %v598
        %v1797 = vunpack.c.h.b16 %v598
        %v1798 = vunpack.c.l.b16 %v599
        %v1799 = vunpack.c.h.b16 %v599
        %v1800 = vunpack.c.l.b16 %v600
        %v1801 = vunpack.c.h.b16 %v600
        %v1802 = vunpack.c.l.b16 %v601
        %v1803 = vunpack.c.h.b16 %v601
        %v1804 = vunpack.c.l.b16 %v602
        %v1805 = vunpack.c.h.b16 %v602
        %v1806 = vunpack.c.l.b16 %v603
        %v1807 = vunpack.c.h.b16 %v603
        %v1808 = vunpack.c.l.b16 %v604
        %v1809 = vunpack.c.h.b16 %v604
        %v1810 = vunpack.c.l.b16 %v605
        %v1811 = vunpack.c.h.b16 %v605
        %v1812 = vunpack.c.l.b16 %v606
        %v1813 = vunpack.c.h.b16 %v606
        %v1814 = vunpack.c.l.b16 %v607
        %v1815 = vunpack.c.h.b16 %v607
        %v1816 = vunpack.c.l.b16 %v608
        %v1817 = vunpack.c.h.b16 %v608
        %v1818 = vunpack.c.l.b16 %v609
        %v1819 = vunpack.c.h.b16 %v609
        %v1820 = vunpack.c.l.b16 %v610
        %v1821 = vunpack.c.h.b16 %v610
        %v1822 = vunpack.c.l.b16 %v611
        %v1823 = vunpack.c.h.b16 %v611
        %v1824 = vunpack.c.l.b16 %v612
        %v1825 = vunpack.c.h.b16 %v612
        %v1826 = vunpack.c.l.b16 %v613
        %v1827 = vunpack.c.h.b16 %v613
        %v1828 = vunpack.c.l.b16 %v614
        %v1829 = vunpack.c.h.b16 %v614
        %v1830 = vunpack.c.l.b16 %v615
        %v1831 = vunpack.c.h.b16 %v615
        %v1832 = vunpack.c.l.b16 %v616
        %v1833 = vunpack.c.h.b16 %v616
        %v1834 = vunpack.c.l.b16 %v617
        %v1835 = vunpack.c.h.b16 %v617
        %v1836 = vunpack.c.l.b16 %v618
        %v1837 = vunpack.c.h.b16 %v618
        %v1838 = vunpack.c.l.b16 %v619
        %v1839 = vunpack.c.h.b16 %v619
        %v1840 = vunpack.c.l.b16 %v620
        %v1841 = vunpack.c.h.b16 %v620
        %v1842 = vunpack.c.l.b16 %v621
        %v1843 = vunpack.c.h.b16 %v621
        %v1844 = vunpack.c.l.b16 %v622
        %v1845 = vunpack.c.h.b16 %v622
        %v1846 = vunpack.c.l.b16 %v623
        %v1847 = vunpack.c.h.b16 %v623
        %v1848 = vunpack.c.l.b16 %v624
        %v1849 = vunpack.c.h.b16 %v624
        %v1850 = vunpack.c.l.b16 %v625
        %v1851 = vunpack.c.h.b16 %v625
        %v1852 = vunpack.c.l.b16 %v626
        %v1853 = vunpack.c.h.b16 %v626
        %v1854 = vunpack.c.l.b16 %v627
        %v1855 = vunpack.c.h.b16 %v627
        %v1856 = vunpack.c.l.b16 %v628
        %v1857 = vunpack.c.h.b16 %v628
        %v1858 = vunpack.c.l.b16 %v629
        %v1859 = vunpack.c.h.b16 %v629
        %v1860 = vunpack.c.l.b16 %v630
        %v1861 = vunpack.c.h.b16 %v630
        %v1862 = vunpack.c.l.b16 %v631
        %v1863 = vunpack.c.h.b16 %v631
        %v1864 = vunpack.c.l.b16 %v632
        %v1865 = vunpack.c.h.b16 %v632
        %v1866 = vunpack.c.l.b16 %v633
        %v1867 = vunpack.c.h.b16 %v633
        %v1868 = vunpack.c.l.b16 %v634
        %v1869 = vunpack.c.h.b16 %v634
        %v1870 = vunpack.c.l.b16 %v635
        %v1871 = vunpack.c.h.b16 %v635
        %v1872 = vunpack.c.l.b16 %v636
        %v1873 = vunpack.c.h.b16 %v636
        %v1874 = vunpack.c.l.b16 %v637
        %v1875 = vunpack.c.h.b16 %v637
        %v1876 = vunpack.c.l.b16 %v638
        %v1877 = vunpack.c.h.b16 %v638
        %v1878 = vunpack.c.l.b16 %v639
        %v1879 = vunpack.c.h.b16 %v639
        %v1880 = vunpack.c.l.b16 %v640
        %v1881 = vunpack.c.h.b16 %v640
        %v1882 = vunpack.c.l.b16 %v641
        %v1883 = vunpack.c.h.b16 %v641
        %v1884 = vunpack.c.l.b16 %v642
        %v1885 = vunpack.c.h.b16 %v642
        %v1886 = vunpack.c.l.b16 %v643
        %v1887 = vunpack.c.h.b16 %v643
        %v1888 = vunpack.c.l.b16 %v644
        %v1889 = vunpack.c.h.b16 %v644
        %v1890 = vunpack.c.l.b16 %v645
        %v1891 = vunpack.c.h.b16 %v645
        %v1892 = vunpack.c.l.b16 %v646
        %v1893 = vunpack.c.h.b16 %v646
        %v1894 = vunpack.c.l.b16 %v647
        %v1895 = vunpack.c.h.b16 %v647
        %v1896 = vunpack.c.l.b16 %v648
        %v1897 = vunpack.c.h.b16 %v648
        %v1898 = vunpack.c.l.b16 %v649
        %v1899 = vunpack.c.h.b16 %v649
        %v1900 = vunpack.c.l.b16 %v650
        %v1901 = vunpack.c.h.b16 %v650
        %v1902 = vunpack.c.l.b16 %v651
        %v1903 = vunpack.c.h.b16 %v651
        %v1904 = vunpack.c.l.b16 %v652
        %v1905 = vunpack.c.h.b16 %v652
        %v1906 = vunpack.c.l.b16 %v653
        %v1907 = vunpack.c.h.b16 %v653
        %v1908 = vunpack.c.l.b16 %v654
        %v1909 = vunpack.c.h.b16 %v654
        %v1910 = vunpack.c.l.b16 %v655
        %v1911 = vunpack.c.h.b16 %v655
        %v1912 = vunpack.c.l.b16 %v656
        %v1913 = vunpack.c.h.b16 %v656
        %v1914 = vunpack.c.l.b16 %v657
        %v1915 = vunpack.c.h.b16 %v657
        %v1916 = vunpack.c.l.b16 %v658
        %v1917 = vunpack.c.h.b16 %v658
        %v1918 = vunpack.c.l.b16 %v659
        %v1919 = vunpack.c.h.b16 %v659
        %v1920 = vunpack.c.l.b16 %v660
        %v1921 = vunpack.c.h.b16 %v660
        %v1922 = vunpack.c.l.b16 %v661
        %v1923 = vunpack.c.h.b16 %v661
        %v1924 = vunpack.c.l.b16 %v662
        %v1925 = vunpack.c.h.b16 %v662
        %v1926 = vunpack.c.l.b16 %v663
        %v1927 = vunpack.c.h.b16 %v663
        %v1928 = vunpack.c.l.b16 %v664
        %v1929 = vunpack.c.h.b16 %v664
        %v1930 = vunpack.c.l.b16 %v665
        %v1931 = vunpack.c.h.b16 %v665
        %v1932 = vunpack.c.l.b16 %v666
        %v1933 = vunpack.c.h.b16 %v666
        %v1934 = vunpack.c.l.b16 %v667
        %v1935 = vunpack.c.h.b16 %v667
        %v1936 = vunpack.c.l.b16 %v668
        %v1937 = vunpack.c.h.b16 %v668
        %v1938 = vunpack.c.l.b16 %v669
        %v1939 = vunpack.c.h.b16 %v669
        %v1940 = vunpack.c.l.b16 %v670
        %v1941 = vunpack.c.h.b16 %v670
        %v1942 = vunpack.c.l.b16 %v671
        %v1943 = vunpack.c.h.b16 %v671
        %v1944 = vunpack.c.l.b16 %v672
        %v1945 = vunpack.c.h.b16 %v672
        %v1946 = vunpack.c.l.b16 %v673
        %v1947 = vunpack.c.h.b16 %v673
        %v1948 = vunpack.c.l.b16 %v674
        %v1949 = vunpack.c.h.b16 %v674
        %v1950 = vunpack.c.l.b16 %v675
        %v1951 = vunpack.c.h.b16 %v675
        %v1952 = vunpack.c.l.b16 %v676
        %v1953 = vunpack.c.h.b16 %v676
        %v1954 = vunpack.c.l.b16 %v677
        %v1955 = vunpack.c.h.b16 %v677
        %v1956 = vunpack.c.l.b16 %v678
        %v1957 = vunpack.c.h.b16 %v678
        %v1958 = vunpack.c.l.b16 %v679
        %v1959 = vunpack.c.h.b16 %v679
        %v1960 = vunpack.c.l.b16 %v680
        %v1961 = vunpack.c.h.b16 %v680
        %v1962 = vunpack.c.l.b16 %v681
        %v1963 = vunpack.c.h.b16 %v681
        %v1964 = vunpack.c.l.b16 %v682
        %v1965 = vunpack.c.h.b16 %v682
        %v1966 = vunpack.c.l.b16 %v683
        %v1967 = vunpack.c.h.b16 %v683
        %v1968 = vunpack.c.l.b16 %v684
        %v1969 = vunpack.c.h.b16 %v684
        %v1970 = vunpack.c.l.b16 %v685
        %v1971 = vunpack.c.h.b16 %v685
        %v1972 = vunpack.c.l.b16 %v686
        %v1973 = vunpack.c.h.b16 %v686
        %v1974 = vunpack.c.l.b16 %v687
        %v1975 = vunpack.c.h.b16 %v687
        %v1976 = vunpack.c.l.b16 %v688
        %v1977 = vunpack.c.h.b16 %v688
        %v1978 = vunpack.c.l.b16 %v689
        %v1979 = vunpack.c.h.b16 %v689
        %v1980 = vunpack.c.l.b16 %v690
        %v1981 = vunpack.c.h.b16 %v690
        %v1982 = vunpack.c.l.b16 %v691
        %v1983 = vunpack.c.h.b16 %v691
        %v1984 = vunpack.c.l.b16 %v692
        %v1985 = vunpack.c.h.b16 %v692
        %v1986 = vunpack.c.l.b16 %v693
        %v1987 = vunpack.c.h.b16 %v693
        %v1988 = vunpack.c.l.b16 %v694
        %v1989 = vunpack.c.h.b16 %v694
        %v1990 = vunpack.c.l.b16 %v695
        %v1991 = vunpack.c.h.b16 %v695
        %v1992 = vunpack.c.l.b16 %v696
        %v1993 = vunpack.c.h.b16 %v696
        %v1994 = vunpack.c.l.b16 %v697
        %v1995 = vunpack.c.h.b16 %v697
        %v1996 = vunpack.c.l.b16 %v698
        %v1997 = vunpack.c.h.b16 %v698
        %v1998 = vunpack.c.l.b16 %v699
        %v1999 = vunpack.c.h.b16 %v699
        %v2000 = vunpack.c.l.b16 %v700
        %v2001 = vunpack.c.h.b16 %v700
        %v2002 = vunpack.c.l.b16 %v701
        %v2003 = vunpack.c.h.b16 %v701
        %v2004 = vunpack.c.l.b16 %v702
        %v2005 = vunpack.c.h.b16 %v702
        %v2006 = vunpack.c.l.b16 %v703
        %v2007 = vunpack.c.h.b16 %v703
        %v2008 = vunpack.c.l.b16 %v704
        %v2009 = vunpack.c.h.b16 %v704
        %v2010 = vunpack.c.l.b16 %v705
        %v2011 = vunpack.c.h.b16 %v705
        %v2012 = vunpack.c.l.b16 %v706
        %v2013 = vunpack.c.h.b16 %v706
        %v2014 = vunpack.c.l.b16 %v707
        %v2015 = vunpack.c.h.b16 %v707
        %v2016 = vunpack.c.l.b16 %v708
        %v2017 = vunpack.c.h.b16 %v708
        %v2018 = vunpack.c.l.b16 %v709
        %v2019 = vunpack.c.h.b16 %v709
        %v2020 = vunpack.c.l.b16 %v710
        %v2021 = vunpack.c.h.b16 %v710
        %v2022 = vunpack.c.l.b16 %v711
        %v2023 = vunpack.c.h.b16 %v711
        %v2024 = vunpack.c.l.b16 %v712
        %v2025 = vunpack.c.h.b16 %v712
        %v2026 = vunpack.c.l.b16 %v713
        %v2027 = vunpack.c.h.b16 %v713
        %v2028 = vunpack.c.l.b16 %v714
        %v2029 = vunpack.c.h.b16 %v714
        %v2030 = vunpack.c.l.b16 %v715
        %v2031 = vunpack.c.h.b16 %v715
        %v2032 = vunpack.c.l.b16 %v716
        %v2033 = vunpack.c.h.b16 %v716
        %v2034 = vunpack.c.l.b16 %v717
        %v2035 = vunpack.c.h.b16 %v717
        %v2036 = vunpack.c.l.b16 %v718
        %v2037 = vunpack.c.h.b16 %v718
        %v2038 = vunpack.c.l.b16 %v719
        %v2039 = vunpack.c.h.b16 %v719
        %v2040 = vunpack.c.l.b16 %v720
        %v2041 = vunpack.c.h.b16 %v720
        %v2042 = vunpack.c.l.b16 %v721
        %v2043 = vunpack.c.h.b16 %v721
        %v2044 = vunpack.c.l.b16 %v722
        %v2045 = vunpack.c.h.b16 %v722
        %v2046 = vunpack.c.l.b16 %v723
        %v2047 = vunpack.c.h.b16 %v723
        %v2048 = vunpack.c.l.b16 %v724
        %v2049 = vunpack.c.h.b16 %v724
        %v2050 = vunpack.c.l.b16 %v725
        %v2051 = vunpack.c.h.b16 %v725
        %v2052 = vunpack.c.l.b16 %v726
        %v2053 = vunpack.c.h.b16 %v726
        %v2054 = vunpack.c.l.b16 %v727
        %v2055 = vunpack.c.h.b16 %v727
        %v2056 = vunpack.c.l.b16 %v728
        %v2057 = vunpack.c.h.b16 %v728
        %v2058 = vunpack.c.l.b16 %v729
        %v2059 = vunpack.c.h.b16 %v729
        %v2060 = vunpack.c.l.b16 %v730
        %v2061 = vunpack.c.h.b16 %v730
        %v2062 = vunpack.c.l.b16 %v731
        %v2063 = vunpack.c.h.b16 %v731
        %v2064 = vpack.c.b16 %v1272, %v1264
        %v2065 = vpack.c.b16 %v1273, %v1265
        %v2066 = vpack.c.b16 %v1274, %v1266
        %v2067 = vpack.c.b16 %v1275, %v1267
        %v2068 = vpack.c.b16 %v1276, %v1268
        %v2069 = vpack.c.b16 %v1277, %v1269
        %v2070 = vpack.c.b16 %v1278, %v1270
        %v2071 = vpack.c.b16 %v1279, %v1271
        %v2072 = vpack.c.b16 %v1288, %v1280
        %v2073 = vpack.c.b16 %v1289, %v1281
        %v2074 = vpack.c.b16 %v1290, %v1282
        %v2075 = vpack.c.b16 %v1291, %v1283
        %v2076 = vpack.c.b16 %v1292, %v1284
        %v2077 = vpack.c.b16 %v1293, %v1285
        %v2078 = vpack.c.b16 %v1294, %v1286
        %v2079 = vpack.c.b16 %v1295, %v1287
        %v2080 = vpack.c.b16 %v1304, %v1296
        %v2081 = vpack.c.b16 %v1305, %v1297
        %v2082 = vpack.c.b16 %v1306, %v1298
        %v2083 = vpack.c.b16 %v1307, %v1299
        %v2084 = vpack.c.b16 %v1308, %v1300
        %v2085 = vpack.c.b16 %v1309, %v1301
        %v2086 = vpack.c.b16 %v1310, %v1302
        %v2087 = vpack.c.b16 %v1311, %v1303
        %v2088 = vpack.c.b16 %v1320, %v1312
        %v2089 = vpack.c.b16 %v1321, %v1313
        %v2090 = vpack.c.b16 %v1322, %v1314
        %v2091 = vpack.c.b16 %v1323, %v1315
        %v2092 = vpack.c.b16 %v1324, %v1316
        %v2093 = vpack.c.b16 %v1325, %v1317
        %v2094 = vpack.c.b16 %v1326, %v1318
        %v2095 = vpack.c.b16 %v1327, %v1319
        %v2096 = vpack.c.b16 %v1336, %v1328
        %v2097 = vpack.c.b16 %v1337, %v1329
        %v2098 = vpack.c.b16 %v1338, %v1330
        %v2099 = vpack.c.b16 %v1339, %v1331
        %v2100 = vpack.c.b16 %v1340, %v1332
        %v2101 = vpack.c.b16 %v1341, %v1333
        %v2102 = vpack.c.b16 %v1342, %v1334
        %v2103 = vpack.c.b16 %v1343, %v1335
        %v2104 = vpack.c.b16 %v1352, %v1344
        %v2105 = vpack.c.b16 %v1353, %v1345
        %v2106 = vpack.c.b16 %v1354, %v1346
        %v2107 = vpack.c.b16 %v1355, %v1347
        %v2108 = vpack.c.b16 %v1356, %v1348
        %v2109 = vpack.c.b16 %v1357, %v1349
        %v2110 = vpack.c.b16 %v1358, %v1350
        %v2111 = vpack.c.b16 %v1359, %v1351
        %v2112 = vpack.c.b16 %v1368, %v1360
        %v2113 = vpack.c.b16 %v1369, %v1361
        %v2114 = vpack.c.b16 %v1370, %v1362
        %v2115 = vpack.c.b16 %v1371, %v1363
        %v2116 = vpack.c.b16 %v1372, %v1364
        %v2117 = vpack.c.b16 %v1373, %v1365
        %v2118 = vpack.c.b16 %v1374, %v1366
        %v2119 = vpack.c.b16 %v1375, %v1367
        %v2120 = vpack.c.b16 %v1384, %v1376
        %v2121 = vpack.c.b16 %v1385, %v1377
        %v2122 = vpack.c.b16 %v1386, %v1378
        %v2123 = vpack.c.b16 %v1387, %v1379
        %v2124 = vpack.c.b16 %v1388, %v1380
        %v2125 = vpack.c.b16 %v1389, %v1381
        %v2126 = vpack.c.b16 %v1390, %v1382
        %v2127 = vpack.c.b16 %v1391, %v1383
        %v2128 = vpack.c.b16 %v1400, %v1392
        %v2129 = vpack.c.b16 %v1401, %v1393
        %v2130 = vpack.c.b16 %v1402, %v1394
        %v2131 = vpack.c.b16 %v1403, %v1395
        %v2132 = vpack.c.b16 %v1404, %v1396
        %v2133 = vpack.c.b16 %v1405, %v1397
        %v2134 = vpack.c.b16 %v1406, %v1398
        %v2135 = vpack.c.b16 %v1407, %v1399
        %v2136 = vpack.c.b16 %v1416, %v1408
        %v2137 = vpack.c.b16 %v1417, %v1409
        %v2138 = vpack.c.b16 %v1418, %v1410
        %v2139 = vpack.c.b16 %v1419, %v1411
        %v2140 = vpack.c.b16 %v1420, %v1412
        %v2141 = vpack.c.b16 %v1421, %v1413
        %v2142 = vpack.c.b16 %v1422, %v1414
        %v2143 = vpack.c.b16 %v1423, %v1415
        %v2144 = vpack.c.b16 %v1432, %v1424
        %v2145 = vpack.c.b16 %v1433, %v1425
        %v2146 = vpack.c.b16 %v1434, %v1426
        %v2147 = vpack.c.b16 %v1435, %v1427
        %v2148 = vpack.c.b16 %v1436, %v1428
        %v2149 = vpack.c.b16 %v1437, %v1429
        %v2150 = vpack.c.b16 %v1438, %v1430
        %v2151 = vpack.c.b16 %v1439, %v1431
        %v2152 = vpack.c.b16 %v1448, %v1440
        %v2153 = vpack.c.b16 %v1449, %v1441
        %v2154 = vpack.c.b16 %v1450, %v1442
        %v2155 = vpack.c.b16 %v1451, %v1443
        %v2156 = vpack.c.b16 %v1452, %v1444
        %v2157 = vpack.c.b16 %v1453, %v1445
        %v2158 = vpack.c.b16 %v1454, %v1446
        %v2159 = vpack.c.b16 %v1455, %v1447
        %v2160 = vpack.c.b16 %v1464, %v1456
        %v2161 = vpack.c.b16 %v1465, %v1457
        %v2162 = vpack.c.b16 %v1466, %v1458
        %v2163 = vpack.c.b16 %v1467, %v1459
        %v2164 = vpack.c.b16 %v1468, %v1460
        %v2165 = vpack.c.b16 %v1469, %v1461
        %v2166 = vpack.c.b16 %v1470, %v1462
        %v2167 = vpack.c.b16 %v1471, %v1463
        %v2168 = vpack.c.b16 %v1480, %v1472
        %v2169 = vpack.c.b16 %v1481, %v1473
        %v2170 = vpack.c.b16 %v1482, %v1474
        %v2171 = vpack.c.b16 %v1483, %v1475
        %v2172 = vpack.c.b16 %v1484, %v1476
        %v2173 = vpack.c.b16 %v1485, %v1477
        %v2174 = vpack.c.b16 %v1486, %v1478
        %v2175 = vpack.c.b16 %v1487, %v1479
        %v2176 = vpack.c.b16 %v1496, %v1488
        %v2177 = vpack.c.b16 %v1497, %v1489
        %v2178 = vpack.c.b16 %v1498, %v1490
        %v2179 = vpack.c.b16 %v1499, %v1491
        %v2180 = vpack.c.b16 %v1500, %v1492
        %v2181 = vpack.c.b16 %v1501, %v1493
        %v2182 = vpack.c.b16 %v1502, %v1494
        %v2183 = vpack.c.b16 %v1503, %v1495
        %v2184 = vpack.c.b16 %v1512, %v1504
        %v2185 = vpack.c.b16 %v1513, %v1505
        %v2186 = vpack.c.b16 %v1514, %v1506
        %v2187 = vpack.c.b16 %v1515, %v1507
        %v2188 = vpack.c.b16 %v1516, %v1508
        %v2189 = vpack.c.b16 %v1517, %v1509
        %v2190 = vpack.c.b16 %v1518, %v1510
        %v2191 = vpack.c.b16 %v1519, %v1511
        %v2192 = vpack.c.b16 %v1528, %v1520
        %v2193 = vpack.c.b16 %v1529, %v1521
        %v2194 = vpack.c.b16 %v1530, %v1522
        %v2195 = vpack.c.b16 %v1531, %v1523
        %v2196 = vpack.c.b16 %v1532, %v1524
        %v2197 = vpack.c.b16 %v1533, %v1525
        %v2198 = vpack.c.b16 %v1534, %v1526
        %v2199 = vpack.c.b16 %v1535, %v1527
        %v2200 = vpack.c.b16 %v1544, %v1536
        %v2201 = vpack.c.b16 %v1545, %v1537
        %v2202 = vpack.c.b16 %v1546, %v1538
        %v2203 = vpack.c.b16 %v1547, %v1539
        %v2204 = vpack.c.b16 %v1548, %v1540
        %v2205 = vpack.c.b16 %v1549, %v1541
        %v2206 = vpack.c.b16 %v1550, %v1542
        %v2207 = vpack.c.b16 %v1551, %v1543
        %v2208 = vpack.c.b16 %v1560, %v1552
        %v2209 = vpack.c.b16 %v1561, %v1553
        %v2210 = vpack.c.b16 %v1562, %v1554
        %v2211 = vpack.c.b16 %v1563, %v1555
        %v2212 = vpack.c.b16 %v1564, %v1556
        %v2213 = vpack.c.b16 %v1565, %v1557
        %v2214 = vpack.c.b16 %v1566, %v1558
        %v2215 = vpack.c.b16 %v1567, %v1559
        %v2216 = vpack.c.b16 %v1576, %v1568
        %v2217 = vpack.c.b16 %v1577, %v1569
        %v2218 = vpack.c.b16 %v1578, %v1570
        %v2219 = vpack.c.b16 %v1579, %v1571
        %v2220 = vpack.c.b16 %v1580, %v1572
        %v2221 = vpack.c.b16 %v1581, %v1573
        %v2222 = vpack.c.b16 %v1582, %v1574
        %v2223 = vpack.c.b16 %v1583, %v1575
        %v2224 = vpack.c.b16 %v1592, %v1584
        %v2225 = vpack.c.b16 %v1593, %v1585
        %v2226 = vpack.c.b16 %v1594, %v1586
        %v2227 = vpack.c.b16 %v1595, %v1587
        %v2228 = vpack.c.b16 %v1596, %v1588
        %v2229 = vpack.c.b16 %v1597, %v1589
        %v2230 = vpack.c.b16 %v1598, %v1590
        %v2231 = vpack.c.b16 %v1599, %v1591
        %v2232 = vpack.c.b16 %v1608, %v1600
        %v2233 = vpack.c.b16 %v1609, %v1601
        %v2234 = vpack.c.b16 %v1610, %v1602
        %v2235 = vpack.c.b16 %v1611, %v1603
        %v2236 = vpack.c.b16 %v1612, %v1604
        %v2237 = vpack.c.b16 %v1613, %v1605
        %v2238 = vpack.c.b16 %v1614, %v1606
        %v2239 = vpack.c.b16 %v1615, %v1607
        %v2240 = vpack.c.b16 %v1624, %v1616
        %v2241 = vpack.c.b16 %v1625, %v1617
        %v2242 = vpack.c.b16 %v1626, %v1618
        %v2243 = vpack.c.b16 %v1627, %v1619
        %v2244 = vpack.c.b16 %v1628, %v1620
        %v2245 = vpack.c.b16 %v1629, %v1621
        %v2246 = vpack.c.b16 %v1630, %v1622
        %v2247 = vpack.c.b16 %v1631, %v1623
        %v2248 = vpack.c.b16 %v1640, %v1632
        %v2249 = vpack.c.b16 %v1641, %v1633
        %v2250 = vpack.c.b16 %v1642, %v1634
        %v2251 = vpack.c.b16 %v1643, %v1635
        %v2252 = vpack.c.b16 %v1644, %v1636
        %v2253 = vpack.c.b16 %v1645, %v1637
        %v2254 = vpack.c.b16 %v1646, %v1638
        %v2255 = vpack.c.b16 %v1647, %v1639
        %v2256 = vpack.c.b16 %v1656, %v1648
        %v2257 = vpack.c.b16 %v1657, %v1649
        %v2258 = vpack.c.b16 %v1658, %v1650
        %v2259 = vpack.c.b16 %v1659, %v1651
        %v2260 = vpack.c.b16 %v1660, %v1652
        %v2261 = vpack.c.b16 %v1661, %v1653
        %v2262 = vpack.c.b16 %v1662, %v1654
        %v2263 = vpack.c.b16 %v1663, %v1655
        %v2264 = vpack.c.b16 %v1672, %v1664
        %v2265 = vpack.c.b16 %v1673, %v1665
        %v2266 = vpack.c.b16 %v1674, %v1666
        %v2267 = vpack.c.b16 %v1675, %v1667
        %v2268 = vpack.c.b16 %v1676, %v1668
        %v2269 = vpack.c.b16 %v1677, %v1669
        %v2270 = vpack.c.b16 %v1678, %v1670
        %v2271 = vpack.c.b16 %v1679, %v1671
        %v2272 = vpack.c.b16 %v1688, %v1680
        %v2273 = vpack.c.b16 %v1689, %v1681
        %v2274 = vpack.c.b16 %v1690, %v1682
        %v2275 = vpack.c.b16 %v1691, %v1683
        %v2276 = vpack.c.b16 %v1692, %v1684
        %v2277 = vpack.c.b16 %v1693, %v1685
        %v2278 = vpack.c.b16 %v1694, %v1686
        %v2279 = vpack.c.b16 %v1695, %v1687
        %v2280 = vpack.c.b16 %v1704, %v1696
        %v2281 = vpack.c.b16 %v1705, %v1697
        %v2282 = vpack.c.b16 %v1706, %v1698
        %v2283 = vpack.c.b16 %v1707, %v1699
        %v2284 = vpack.c.b16 %v1708, %v1700
        %v2285 = vpack.c.b16 %v1709, %v1701
        %v2286 = vpack.c.b16 %v1710, %v1702
        %v2287 = vpack.c.b16 %v1711, %v1703
        %v2288 = vpack.c.b16 %v1720, %v1712
        %v2289 = vpack.c.b16 %v1721, %v1713
        %v2290 = vpack.c.b16 %v1722, %v1714
        %v2291 = vpack.c.b16 %v1723, %v1715
        %v2292 = vpack.c.b16 %v1724, %v1716
        %v2293 = vpack.c.b16 %v1725, %v1717
        %v2294 = vpack.c.b16 %v1726, %v1718
        %v2295 = vpack.c.b16 %v1727, %v1719
        %v2296 = vpack.c.b16 %v1736, %v1728
        %v2297 = vpack.c.b16 %v1737, %v1729
        %v2298 = vpack.c.b16 %v1738, %v1730
        %v2299 = vpack.c.b16 %v1739, %v1731
        %v2300 = vpack.c.b16 %v1740, %v1732
        %v2301 = vpack.c.b16 %v1741, %v1733
        %v2302 = vpack.c.b16 %v1742, %v1734
        %v2303 = vpack.c.b16 %v1743, %v1735
        %v2304 = vpack.c.b16 %v1752, %v1744
        %v2305 = vpack.c.b16 %v1753, %v1745
        %v2306 = vpack.c.b16 %v1754, %v1746
        %v2307 = vpack.c.b16 %v1755, %v1747
        %v2308 = vpack.c.b16 %v1756, %v1748
        %v2309 = vpack.c.b16 %v1757, %v1749
        %v2310 = vpack.c.b16 %v1758, %v1750
        %v2311 = vpack.c.b16 %v1759, %v1751
        %v2312 = vpack.c.b16 %v1768, %v1760
        %v2313 = vpack.c.b16 %v1769, %v1761
        %v2314 = vpack.c.b16 %v1770, %v1762
        %v2315 = vpack.c.b16 %v1771, %v1763
        %v2316 = vpack.c.b16 %v1772, %v1764
        %v2317 = vpack.c.b16 %v1773, %v1765
        %v2318 = vpack.c.b16 %v1774, %v1766
        %v2319 = vpack.c.b16 %v1775, %v1767
        %v2320 = vpack.c.b16 %v1784, %v1776
        %v2321 = vpack.c.b16 %v1785, %v1777
        %v2322 = vpack.c.b16 %v1786, %v1778
        %v2323 = vpack.c.b16 %v1787, %v1779
        %v2324 = vpack.c.b16 %v1788, %v1780
        %v2325 = vpack.c.b16 %v1789, %v1781
        %v2326 = vpack.c.b16 %v1790, %v1782
        %v2327 = vpack.c.b16 %v1791, %v1783
        %v2328 = vpack.c.b16 %v1800, %v1792
        %v2329 = vpack.c.b16 %v1801, %v1793
        %v2330 = vpack.c.b16 %v1802, %v1794
        %v2331 = vpack.c.b16 %v1803, %v1795
        %v2332 = vpack.c.b16 %v1804, %v1796
        %v2333 = vpack.c.b16 %v1805, %v1797
        %v2334 = vpack.c.b16 %v1806, %v1798
        %v2335 = vpack.c.b16 %v1807, %v1799
        %v2336 = vpack.c.b16 %v1816, %v1808
        %v2337 = vpack.c.b16 %v1817, %v1809
        %v2338 = vpack.c.b16 %v1818, %v1810
        %v2339 = vpack.c.b16 %v1819, %v1811
        %v2340 = vpack.c.b16 %v1820, %v1812
        %v2341 = vpack.c.b16 %v1821, %v1813
        %v2342 = vpack.c.b16 %v1822, %v1814
        %v2343 = vpack.c.b16 %v1823, %v1815
        %v2344 = vpack.c.b16 %v1832, %v1824
        %v2345 = vpack.c.b16 %v1833, %v1825
        %v2346 = vpack.c.b16 %v1834, %v1826
        %v2347 = vpack.c.b16 %v1835, %v1827
        %v2348 = vpack.c.b16 %v1836, %v1828
        %v2349 = vpack.c.b16 %v1837, %v1829
        %v2350 = vpack.c.b16 %v1838, %v1830
        %v2351 = vpack.c.b16 %v1839, %v1831
        %v2352 = vpack.c.b16 %v1848, %v1840
        %v2353 = vpack.c.b16 %v1849, %v1841
        %v2354 = vpack.c.b16 %v1850, %v1842
        %v2355 = vpack.c.b16 %v1851, %v1843
        %v2356 = vpack.c.b16 %v1852, %v1844
        %v2357 = vpack.c.b16 %v1853, %v1845
        %v2358 = vpack.c.b16 %v1854, %v1846
        %v2359 = vpack.c.b16 %v1855, %v1847
        %v2360 = vpack.c.b16 %v1864, %v1856
        %v2361 = vpack.c.b16 %v1865, %v1857
        %v2362 = vpack.c.b16 %v1866, %v1858
        %v2363 = vpack.c.b16 %v1867, %v1859
        %v2364 = vpack.c.b16 %v1868, %v1860
        %v2365 = vpack.c.b16 %v1869, %v1861
        %v2366 = vpack.c.b16 %v1870, %v1862
        %v2367 = vpack.c.b16 %v1871, %v1863
        %v2368 = vpack.c.b16 %v1880, %v1872
        %v2369 = vpack.c.b16 %v1881, %v1873
        %v2370 = vpack.c.b16 %v1882, %v1874
        %v2371 = vpack.c.b16 %v1883, %v1875
        %v2372 = vpack.c.b16 %v1884, %v1876
        %v2373 = vpack.c.b16 %v1885, %v1877
        %v2374 = vpack.c.b16 %v1886, %v1878
        %v2375 = vpack.c.b16 %v1887, %v1879
        %v2376 = vpack.c.b16 %v1896, %v1888
        %v2377 = vpack.c.b16 %v1897, %v1889
        %v2378 = vpack.c.b16 %v1898, %v1890
        %v2379 = vpack.c.b16 %v1899, %v1891
        %v2380 = vpack.c.b16 %v1900, %v1892
        %v2381 = vpack.c.b16 %v1901, %v1893
        %v2382 = vpack.c.b16 %v1902, %v1894
        %v2383 = vpack.c.b16 %v1903, %v1895
        %v2384 = vpack.c.b16 %v1912, %v1904
        %v2385 = vpack.c.b16 %v1913, %v1905
        %v2386 = vpack.c.b16 %v1914, %v1906
        %v2387 = vpack.c.b16 %v1915, %v1907
        %v2388 = vpack.c.b16 %v1916, %v1908
        %v2389 = vpack.c.b16 %v1917, %v1909
        %v2390 = vpack.c.b16 %v1918, %v1910
        %v2391 = vpack.c.b16 %v1919, %v1911
        %v2392 = vpack.c.b16 %v1928, %v1920
        %v2393 = vpack.c.b16 %v1929, %v1921
        %v2394 = vpack.c.b16 %v1930, %v1922
        %v2395 = vpack.c.b16 %v1931, %v1923
        %v2396 = vpack.c.b16 %v1932, %v1924
        %v2397 = vpack.c.b16 %v1933, %v1925
        %v2398 = vpack.c.b16 %v1934, %v1926
        %v2399 = vpack.c.b16 %v1935, %v1927
        %v2400 = vpack.c.b16 %v1944, %v1936
        %v2401 = vpack.c.b16 %v1945, %v1937
        %v2402 = vpack.c.b16 %v1946, %v1938
        %v2403 = vpack.c.b16 %v1947, %v1939
        %v2404 = vpack.c.b16 %v1948, %v1940
        %v2405 = vpack.c.b16 %v1949, %v1941
        %v2406 = vpack.c.b16 %v1950, %v1942
        %v2407 = vpack.c.b16 %v1951, %v1943
        %v2408 = vpack.c.b16 %v1960, %v1952
        %v2409 = vpack.c.b16 %v1961, %v1953
        %v2410 = vpack.c.b16 %v1962, %v1954
        %v2411 = vpack.c.b16 %v1963, %v1955
        %v2412 = vpack.c.b16 %v1964, %v1956
        %v2413 = vpack.c.b16 %v1965, %v1957
        %v2414 = vpack.c.b16 %v1966, %v1958
        %v2415 = vpack.c.b16 %v1967, %v1959
        %v2416 = vpack.c.b16 %v1976, %v1968
        %v2417 = vpack.c.b16 %v1977, %v1969
        %v2418 = vpack.c.b16 %v1978, %v1970
        %v2419 = vpack.c.b16 %v1979, %v1971
        %v2420 = vpack.c.b16 %v1980, %v1972
        %v2421 = vpack.c.b16 %v1981, %v1973
        %v2422 = vpack.c.b16 %v1982, %v1974
        %v2423 = vpack.c.b16 %v1983, %v1975
        %v2424 = vpack.c.b16 %v1992, %v1984
        %v2425 = vpack.c.b16 %v1993, %v1985
        %v2426 = vpack.c.b16 %v1994, %v1986
        %v2427 = vpack.c.b16 %v1995, %v1987
        %v2428 = vpack.c.b16 %v1996, %v1988
        %v2429 = vpack.c.b16 %v1997, %v1989
        %v2430 = vpack.c.b16 %v1998, %v1990
        %v2431 = vpack.c.b16 %v1999, %v1991
        %v2432 = vpack.c.b16 %v2008, %v2000
        %v2433 = vpack.c.b16 %v2009, %v2001
        %v2434 = vpack.c.b16 %v2010, %v2002
        %v2435 = vpack.c.b16 %v2011, %v2003
        %v2436 = vpack.c.b16 %v2012, %v2004
        %v2437 = vpack.c.b16 %v2013, %v2005
        %v2438 = vpack.c.b16 %v2014, %v2006
        %v2439 = vpack.c.b16 %v2015, %v2007
        %v2440 = vpack.c.b16 %v2024, %v2016
        %v2441 = vpack.c.b16 %v2025, %v2017
        %v2442 = vpack.c.b16 %v2026, %v2018
        %v2443 = vpack.c.b16 %v2027, %v2019
        %v2444 = vpack.c.b16 %v2028, %v2020
        %v2445 = vpack.c.b16 %v2029, %v2021
        %v2446 = vpack.c.b16 %v2030, %v2022
        %v2447 = vpack.c.b16 %v2031, %v2023
        %v2448 = vpack.c.b16 %v2040, %v2032
        %v2449 = vpack.c.b16 %v2041, %v2033
        %v2450 = vpack.c.b16 %v2042, %v2034
        %v2451 = vpack.c.b16 %v2043, %v2035
        %v2452 = vpack.c.b16 %v2044, %v2036
        %v2453 = vpack.c.b16 %v2045, %v2037
        %v2454 = vpack.c.b16 %v2046, %v2038
        %v2455 = vpack.c.b16 %v2047, %v2039
        %v2456 = vpack.c.b16 %v2056, %v2048
        %v2457 = vpack.c.b16 %v2057, %v2049
        %v2458 = vpack.c.b16 %v2058, %v2050
        %v2459 = vpack.c.b16 %v2059, %v2051
        %v2460 = vpack.c.b16 %v2060, %v2052
        %v2461 = vpack.c.b16 %v2061, %v2053
        %v2462 = vpack.c.b16 %v2062, %v2054
        %v2463 = vpack.c.b16 %v2063, %v2055
        %v2992 = vunpack.c.l.b16 %v732
        %v2993 = vunpack.c.l.b16 %v733
        %v2994 = vunpack.c.l.b16 %v734
        %v2995 = vunpack.c.l.b16 %v735
        %v2996 = vunpack.c.l.b16 %v736
        %v2997 = vunpack.c.l.b16 %v737
        %v2998 = vunpack.c.l.b16 %v738
        %v2999 = vunpack.c.l.b16 %v739
        %v3000 = vunpack.c.l.b16 %v740
        %v3001 = vunpack.c.l.b16 %v741
        %v3002 = vunpack.c.l.b16 %v742
        %v3003 = vunpack.c.l.b16 %v743
        %v3004 = vunpack.c.l.b16 %v744
        %v3005 = vunpack.c.l.b16 %v745
        %v3006 = vunpack.c.l.b16 %v746
        %v3007 = vunpack.c.l.b16 %v747
        %v3008 = vunpack.c.l.b16 %v748
        %v3009 = vunpack.c.l.b16 %v749
        %v3010 = vunpack.c.l.b16 %v750
        %v3011 = vunpack.c.l.b16 %v751
        %v3012 = vunpack.c.l.b16 %v752
        %v3013 = vunpack.c.l.b16 %v753
        %v3014 = vunpack.c.l.b16 %v754
        %v3015 = vunpack.c.l.b16 %v755
        %v3016 = vunpack.c.l.b16 %v756
        %v3017 = vunpack.c.l.b16 %v757
        %v3018 = vunpack.c.l.b16 %v758
        %v3019 = vunpack.c.l.b16 %v759
        %v3020 = vunpack.c.l.b16 %v760
        %v3021 = vunpack.c.l.b16 %v761
        %v3022 = vunpack.c.l.b16 %v762
        %v3023 = vunpack.c.l.b16 %v763
        %v3024 = vunpack.c.l.b16 %v764
        %v3025 = vunpack.c.l.b16 %v765
        %v3026 = vunpack.c.l.b16 %v766
        %v3027 = vunpack.c.l.b16 %v767
        %v3028 = vunpack.c.l.b16 %v768
        %v3029 = vunpack.c.l.b16 %v769
        %v3030 = vunpack.c.l.b16 %v770
        %v3031 = vunpack.c.l.b16 %v771
        %v3032 = vunpack.c.l.b16 %v772
        %v3033 = vunpack.c.l.b16 %v773
        %v3034 = vunpack.c.l.b16 %v774
        %v3035 = vunpack.c.l.b16 %v775
        %v3036 = vunpack.c.l.b16 %v776
        %v3037 = vunpack.c.l.b16 %v777
        %v3038 = vunpack.c.l.b16 %v778
        %v3039 = vunpack.c.l.b16 %v779
        %v3040 = vunpack.c.l.b16 %v780
        %v3041 = vunpack.c.l.b16 %v781
        %v3042 = vunpack.c.l.b16 %v782
        %v3043 = vunpack.c.l.b16 %v783
        %v3044 = vunpack.c.l.b16 %v784
        %v3045 = vunpack.c.l.b16 %v785
        %v3046 = vunpack.c.l.b16 %v786
        %v3047 = vunpack.c.l.b16 %v787
        %v3048 = vunpack.c.l.b16 %v788
        %v3049 = vunpack.c.l.b16 %v789
        %v3050 = vunpack.c.l.b16 %v790
        %v3051 = vunpack.c.l.b16 %v791
        %v3052 = vunpack.c.l.b16 %v792
        %v3053 = vunpack.c.l.b16 %v793
        %v3054 = vunpack.c.l.b16 %v794
        %v3055 = vunpack.c.l.b16 %v795
        %v3056 = vunpack.c.l.b16 %v796
        %v3057 = vunpack.c.l.b16 %v797
        %v3058 = vunpack.c.l.b16 %v798
        %v3059 = vunpack.c.l.b16 %v799
        %v3060 = vunpack.c.l.b16 %v800
        %v3061 = vunpack.c.l.b16 %v801
        %v3062 = vunpack.c.l.b16 %v802
        %v3063 = vunpack.c.l.b16 %v803
        %v3064 = vunpack.c.l.b16 %v804
        %v3065 = vunpack.c.l.b16 %v805
        %v3066 = vunpack.c.l.b16 %v806
        %v3067 = vunpack.c.l.b16 %v807
        %v3068 = vunpack.c.l.b16 %v808
        %v3069 = vunpack.c.l.b16 %v809
        %v3070 = vunpack.c.l.b16 %v810
        %v3071 = vunpack.c.l.b16 %v811
        %v3072 = vunpack.c.l.b16 %v812
        %v3073 = vunpack.c.l.b16 %v813
        %v3074 = vunpack.c.l.b16 %v814
        %v3075 = vunpack.c.l.b16 %v815
        %v3076 = vunpack.c.l.b16 %v816
        %v3077 = vunpack.c.l.b16 %v817
        %v3078 = vunpack.c.l.b16 %v818
        %v3079 = vunpack.c.l.b16 %v819
        %v3080 = vunpack.c.l.b16 %v820
        %v3081 = vunpack.c.l.b16 %v821
        %v3082 = vunpack.c.l.b16 %v822
        %v3083 = vunpack.c.l.b16 %v823
        %v3084 = vunpack.c.l.b16 %v824
        %v3085 = vunpack.c.l.b16 %v825
        %v3086 = vunpack.c.l.b16 %v826
        %v3087 = vunpack.c.l.b16 %v827
        %v3088 = vunpack.c.l.b16 %v828
        %v3089 = vunpack.c.l.b16 %v829
        %v3090 = vunpack.c.l.b16 %v830
        %v3091 = vunpack.c.l.b16 %v831
        %v3092 = vunpack.c.l.b16 %v832
        %v3093 = vunpack.c.l.b16 %v833
        %v3094 = vunpack.c.l.b16 %v834
        %v3095 = vunpack.c.l.b16 %v835
        %v3096 = vunpack.c.l.b16 %v836
        %v3097 = vunpack.c.l.b16 %v837
        %v3098 = vunpack.c.l.b16 %v838
        %v3099 = vunpack.c.l.b16 %v839
        %v3100 = vunpack.c.l.b16 %v840
        %v3101 = vunpack.c.l.b16 %v841
        %v3102 = vunpack.c.l.b16 %v842
        %v3103 = vunpack.c.l.b16 %v843
        %v3104 = vunpack.c.l.b16 %v844
        %v3105 = vunpack.c.l.b16 %v845
        %v3106 = vunpack.c.l.b16 %v846
        %v3107 = vunpack.c.l.b16 %v847
        %v3108 = vunpack.c.l.b16 %v848
        %v3109 = vunpack.c.l.b16 %v849
        %v3110 = vunpack.c.l.b16 %v850
        %v3111 = vunpack.c.l.b16 %v851
        %v3112 = vunpack.c.l.b16 %v852
        %v3113 = vunpack.c.l.b16 %v853
        %v3114 = vunpack.c.l.b16 %v854
        %v3115 = vunpack.c.l.b16 %v855
        %v3116 = vunpack.c.l.b16 %v856
        %v3117 = vunpack.c.l.b16 %v857
        %v3118 = vunpack.c.l.b16 %v858
        %v3119 = vunpack.c.l.b16 %v859
        %v3120 = vpack.c.b16 %v2993, %v2992
        %v3121 = vpack.c.b16 %v2995, %v2994
        %v3122 = vpack.c.b16 %v2997, %v2996
        %v3123 = vpack.c.b16 %v2999, %v2998
        %v3124 = vpack.c.b16 %v3001, %v3000
        %v3125 = vpack.c.b16 %v3003, %v3002
        %v3126 = vpack.c.b16 %v3005, %v3004
        %v3127 = vpack.c.b16 %v3007, %v3006
        %v3128 = vpack.c.b16 %v3009, %v3008
        %v3129 = vpack.c.b16 %v3011, %v3010
        %v3130 = vpack.c.b16 %v3013, %v3012
        %v3131 = vpack.c.b16 %v3015, %v3014
        %v3132 = vpack.c.b16 %v3017, %v3016
        %v3133 = vpack.c.b16 %v3019, %v3018
        %v3134 = vpack.c.b16 %v3021, %v3020
        %v3135 = vpack.c.b16 %v3023, %v3022
        %v3136 = vpack.c.b16 %v3025, %v3024
        %v3137 = vpack.c.b16 %v3027, %v3026
        %v3138 = vpack.c.b16 %v3029, %v3028
        %v3139 = vpack.c.b16 %v3031, %v3030
        %v3140 = vpack.c.b16 %v3033, %v3032
        %v3141 = vpack.c.b16 %v3035, %v3034
        %v3142 = vpack.c.b16 %v3037, %v3036
        %v3143 = vpack.c.b16 %v3039, %v3038
        %v3144 = vpack.c.b16 %v3041, %v3040
        %v3145 = vpack.c.b16 %v3043, %v3042
        %v3146 = vpack.c.b16 %v3045, %v3044
        %v3147 = vpack.c.b16 %v3047, %v3046
        %v3148 = vpack.c.b16 %v3049, %v3048
        %v3149 = vpack.c.b16 %v3051, %v3050
        %v3150 = vpack.c.b16 %v3053, %v3052
        %v3151 = vpack.c.b16 %v3055, %v3054
        %v3152 = vpack.c.b16 %v3057, %v3056
        %v3153 = vpack.c.b16 %v3059, %v3058
        %v3154 = vpack.c.b16 %v3061, %v3060
        %v3155 = vpack.c.b16 %v3063, %v3062
        %v3156 = vpack.c.b16 %v3065, %v3064
        %v3157 = vpack.c.b16 %v3067, %v3066
        %v3158 = vpack.c.b16 %v3069, %v3068
        %v3159 = vpack.c.b16 %v3071, %v3070
        %v3160 = vpack.c.b16 %v3073, %v3072
        %v3161 = vpack.c.b16 %v3075, %v3074
        %v3162 = vpack.c.b16 %v3077, %v3076
        %v3163 = vpack.c.b16 %v3079, %v3078
        %v3164 = vpack.c.b16 %v3081, %v3080
        %v3165 = vpack.c.b16 %v3083, %v3082
        %v3166 = vpack.c.b16 %v3085, %v3084
        %v3167 = vpack.c.b16 %v3087, %v3086
        %v3168 = vpack.c.b16 %v3089, %v3088
        %v3169 = vpack.c.b16 %v3091, %v3090
        %v3170 = vpack.c.b16 %v3093, %v3092
        %v3171 = vpack.c.b16 %v3095, %v3094
        %v3172 = vpack.c.b16 %v3097, %v3096
        %v3173 = vpack.c.b16 %v3099, %v3098
        %v3174 = vpack.c.b16 %v3101, %v3100
        %v3175 = vpack.c.b16 %v3103, %v3102
        %v3176 = vpack.c.b16 %v3105, %v3104
        %v3177 = vpack.c.b16 %v3107, %v3106
        %v3178 = vpack.c.b16 %v3109, %v3108
        %v3179 = vpack.c.b16 %v3111, %v3110
        %v3180 = vpack.c.b16 %v3113, %v3112
        %v3181 = vpack.c.b16 %v3115, %v3114
        %v3182 = vpack.c.b16 %v3117, %v3116
        %v3183 = vpack.c.b16 %v3119, %v3118
        %3248 = vmatpush.bf16.msra.mxu0 %v3127
        %3249 = vmatpush.bf16.msra.mxu0 %v3126
        %3250 = vmatpush.bf16.msra.mxu0 %v3125
        %3251 = vmatpush.bf16.msra.mxu0 %v3124
        %3252 = vmatpush.bf16.msra.mxu0 %v3123
        %3253 = vmatpush.bf16.msra.mxu0 %v3122
        %3254 = vmatpush.bf16.msra.mxu0 %v3121
        %3255 = vmatpush.bf16.msra.mxu0 %v3120
        %3256 = vmatmul.bf16.gmra.mxu0 %v2064
        %v3257 = vpop.f32.mrf.mxu0
        %v3258 = vadd.f32 %v862, %v3257
        %v3259 = vpop.f32.mrf.mxu0
        %v3260 = vadd.f32 %v862, %v3259
        %3261 = vmatmul.bf16.gmra.mxu0 %v2072
        %v3262 = vpop.f32.mrf.mxu0
        %v3263 = vadd.f32 %v862, %v3262
        %v3264 = vpop.f32.mrf.mxu0
        %v3265 = vadd.f32 %v862, %v3264
        %3266 = vmatmul.bf16.gmra.mxu0 %v2080
        %v3267 = vpop.f32.mrf.mxu0
        %v3268 = vadd.f32 %v862, %v3267
        %v3269 = vpop.f32.mrf.mxu0
        %v3270 = vadd.f32 %v862, %v3269
        %3271 = vmatmul.bf16.gmra.mxu0 %v2088
        %v3272 = vpop.f32.mrf.mxu0
        %v3273 = vadd.f32 %v862, %v3272
        %v3274 = vpop.f32.mrf.mxu0
        %v3275 = vadd.f32 %v862, %v3274
        %3276 = vmatmul.bf16.gmra.mxu0 %v2096
        %v3277 = vpop.f32.mrf.mxu0
        %v3278 = vadd.f32 %v862, %v3277
        %v3279 = vpop.f32.mrf.mxu0
        %v3280 = vadd.f32 %v862, %v3279
        %3281 = vmatmul.bf16.gmra.mxu0 %v2104
        %v3282 = vpop.f32.mrf.mxu0
        %v3283 = vadd.f32 %v862, %v3282
        %v3284 = vpop.f32.mrf.mxu0
        %v3285 = vadd.f32 %v862, %v3284
        %3286 = vmatmul.bf16.gmra.mxu0 %v2112
        %v3287 = vpop.f32.mrf.mxu0
        %v3288 = vadd.f32 %v862, %v3287
        %v3289 = vpop.f32.mrf.mxu0
        %v3290 = vadd.f32 %v862, %v3289
        %3291 = vmatmul.bf16.gmra.mxu0 %v2120
        %v3292 = vpop.f32.mrf.mxu0
        %v3293 = vadd.f32 %v862, %v3292
        %v3294 = vpop.f32.mrf.mxu0
        %v3295 = vadd.f32 %v862, %v3294
        %3296 = vmatmul.bf16.gmra.mxu0 %v2128
        %v3297 = vpop.f32.mrf.mxu0
        %v3298 = vadd.f32 %v862, %v3297
        %v3299 = vpop.f32.mrf.mxu0
        %v3300 = vadd.f32 %v862, %v3299
        %3301 = vmatmul.bf16.gmra.mxu0 %v2136
        %v3302 = vpop.f32.mrf.mxu0
        %v3303 = vadd.f32 %v862, %v3302
        %v3304 = vpop.f32.mrf.mxu0
        %v3305 = vadd.f32 %v862, %v3304
        %3306 = vmatmul.bf16.gmra.mxu0 %v2144
        %v3307 = vpop.f32.mrf.mxu0
        %v3308 = vadd.f32 %v862, %v3307
        %v3309 = vpop.f32.mrf.mxu0
        %v3310 = vadd.f32 %v862, %v3309
        %3311 = vmatmul.bf16.gmra.mxu0 %v2152
        %v3312 = vpop.f32.mrf.mxu0
        %v3313 = vadd.f32 %v862, %v3312
        %v3314 = vpop.f32.mrf.mxu0
        %v3315 = vadd.f32 %v862, %v3314
        %3316 = vmatmul.bf16.gmra.mxu0 %v2160
        %v3317 = vpop.f32.mrf.mxu0
        %v3318 = vadd.f32 %v862, %v3317
        %v3319 = vpop.f32.mrf.mxu0
        %v3320 = vadd.f32 %v862, %v3319
        %3321 = vmatmul.bf16.gmra.mxu0 %v2168
        %v3322 = vpop.f32.mrf.mxu0
        %v3323 = vadd.f32 %v862, %v3322
        %v3324 = vpop.f32.mrf.mxu0
        %v3325 = vadd.f32 %v862, %v3324
        %3326 = vmatmul.bf16.gmra.mxu0 %v2176
        %v3327 = vpop.f32.mrf.mxu0
        %v3328 = vadd.f32 %v862, %v3327
        %v3329 = vpop.f32.mrf.mxu0
        %v3330 = vadd.f32 %v862, %v3329
        %3331 = vmatmul.bf16.gmra.mxu0 %v2184
        %v3332 = vpop.f32.mrf.mxu0
        %v3333 = vadd.f32 %v862, %v3332
        %v3334 = vpop.f32.mrf.mxu0
        %v3335 = vadd.f32 %v862, %v3334
        %3336 = vmatmul.bf16.gmra.mxu0 %v2192
        %v3337 = vpop.f32.mrf.mxu0
        %v3338 = vadd.f32 %v862, %v3337
        %v3339 = vpop.f32.mrf.mxu0
        %v3340 = vadd.f32 %v862, %v3339
        %3341 = vmatmul.bf16.gmra.mxu0 %v2200
        %v3342 = vpop.f32.mrf.mxu0
        %v3343 = vadd.f32 %v862, %v3342
        %v3344 = vpop.f32.mrf.mxu0
        %v3345 = vadd.f32 %v862, %v3344
        %3346 = vmatmul.bf16.gmra.mxu0 %v2208
        %v3347 = vpop.f32.mrf.mxu0
        %v3348 = vadd.f32 %v862, %v3347
        %v3349 = vpop.f32.mrf.mxu0
        %v3350 = vadd.f32 %v862, %v3349
        %3351 = vmatmul.bf16.gmra.mxu0 %v2216
        %v3352 = vpop.f32.mrf.mxu0
        %v3353 = vadd.f32 %v862, %v3352
        %v3354 = vpop.f32.mrf.mxu0
        %v3355 = vadd.f32 %v862, %v3354
        %3356 = vmatmul.bf16.gmra.mxu0 %v2224
        %v3357 = vpop.f32.mrf.mxu0
        %v3358 = vadd.f32 %v862, %v3357
        %v3359 = vpop.f32.mrf.mxu0
        %v3360 = vadd.f32 %v862, %v3359
        %3361 = vmatmul.bf16.gmra.mxu0 %v2232
        %v3362 = vpop.f32.mrf.mxu0
        %v3363 = vadd.f32 %v862, %v3362
        %v3364 = vpop.f32.mrf.mxu0
        %v3365 = vadd.f32 %v862, %v3364
        %3366 = vmatmul.bf16.gmra.mxu0 %v2240
        %v3367 = vpop.f32.mrf.mxu0
        %v3368 = vadd.f32 %v862, %v3367
        %v3369 = vpop.f32.mrf.mxu0
        %v3370 = vadd.f32 %v862, %v3369
        %3371 = vmatmul.bf16.gmra.mxu0 %v2248
        %v3372 = vpop.f32.mrf.mxu0
        %v3373 = vadd.f32 %v862, %v3372
        %v3374 = vpop.f32.mrf.mxu0
        %v3375 = vadd.f32 %v862, %v3374
        %3376 = vmatmul.bf16.gmra.mxu0 %v2256
        %v3377 = vpop.f32.mrf.mxu0
        %v3378 = vadd.f32 %v862, %v3377
        %v3379 = vpop.f32.mrf.mxu0
        %v3380 = vadd.f32 %v862, %v3379
        %3381 = vmatmul.bf16.gmra.mxu0 %v2264
        %v3382 = vpop.f32.mrf.mxu0
        %v3383 = vadd.f32 %v862, %v3382
        %v3384 = vpop.f32.mrf.mxu0
        %v3385 = vadd.f32 %v862, %v3384
        %3386 = vmatmul.bf16.gmra.mxu0 %v2272
        %v3387 = vpop.f32.mrf.mxu0
        %v3388 = vadd.f32 %v862, %v3387
        %v3389 = vpop.f32.mrf.mxu0
        %v3390 = vadd.f32 %v862, %v3389
        %3391 = vmatmul.bf16.gmra.mxu0 %v2280
        %v3392 = vpop.f32.mrf.mxu0
        %v3393 = vadd.f32 %v862, %v3392
        %v3394 = vpop.f32.mrf.mxu0
        %v3395 = vadd.f32 %v862, %v3394
        %3396 = vmatmul.bf16.gmra.mxu0 %v2288
        %v3397 = vpop.f32.mrf.mxu0
        %v3398 = vadd.f32 %v862, %v3397
        %v3399 = vpop.f32.mrf.mxu0
        %v3400 = vadd.f32 %v862, %v3399
        %3401 = vmatmul.bf16.gmra.mxu0 %v2296
        %v3402 = vpop.f32.mrf.mxu0
        %v3403 = vadd.f32 %v862, %v3402
        %v3404 = vpop.f32.mrf.mxu0
        %v3405 = vadd.f32 %v862, %v3404
        %3406 = vmatmul.bf16.gmra.mxu0 %v2304
        %v3407 = vpop.f32.mrf.mxu0
        %v3408 = vadd.f32 %v862, %v3407
        %v3409 = vpop.f32.mrf.mxu0
        %v3410 = vadd.f32 %v862, %v3409
        %3411 = vmatmul.bf16.gmra.mxu0 %v2312
        %v3412 = vpop.f32.mrf.mxu0
        %v3413 = vadd.f32 %v862, %v3412
        %v3414 = vpop.f32.mrf.mxu0
        %v3415 = vadd.f32 %v862, %v3414
        %3416 = vmatmul.bf16.gmra.mxu0 %v2320
        %v3417 = vpop.f32.mrf.mxu0
        %v3418 = vadd.f32 %v862, %v3417
        %v3419 = vpop.f32.mrf.mxu0
        %v3420 = vadd.f32 %v862, %v3419
        %3421 = vmatmul.bf16.gmra.mxu0 %v2328
        %v3422 = vpop.f32.mrf.mxu0
        %v3423 = vadd.f32 %v862, %v3422
        %v3424 = vpop.f32.mrf.mxu0
        %v3425 = vadd.f32 %v862, %v3424
        %3426 = vmatmul.bf16.gmra.mxu0 %v2336
        %v3427 = vpop.f32.mrf.mxu0
        %v3428 = vadd.f32 %v862, %v3427
        %v3429 = vpop.f32.mrf.mxu0
        %v3430 = vadd.f32 %v862, %v3429
        %3431 = vmatmul.bf16.gmra.mxu0 %v2344
        %v3432 = vpop.f32.mrf.mxu0
        %v3433 = vadd.f32 %v862, %v3432
        %v3434 = vpop.f32.mrf.mxu0
        %v3435 = vadd.f32 %v862, %v3434
        %3436 = vmatmul.bf16.gmra.mxu0 %v2352
        %v3437 = vpop.f32.mrf.mxu0
        %v3438 = vadd.f32 %v862, %v3437
        %v3439 = vpop.f32.mrf.mxu0
        %v3440 = vadd.f32 %v862, %v3439
        %3441 = vmatmul.bf16.gmra.mxu0 %v2360
        %v3442 = vpop.f32.mrf.mxu0
        %v3443 = vadd.f32 %v862, %v3442
        %v3444 = vpop.f32.mrf.mxu0
        %v3445 = vadd.f32 %v862, %v3444
        %3446 = vmatmul.bf16.gmra.mxu0 %v2368
        %v3447 = vpop.f32.mrf.mxu0
        %v3448 = vadd.f32 %v862, %v3447
        %v3449 = vpop.f32.mrf.mxu0
        %v3450 = vadd.f32 %v862, %v3449
        %3451 = vmatmul.bf16.gmra.mxu0 %v2376
        %v3452 = vpop.f32.mrf.mxu0
        %v3453 = vadd.f32 %v862, %v3452
        %v3454 = vpop.f32.mrf.mxu0
        %v3455 = vadd.f32 %v862, %v3454
        %3456 = vmatmul.bf16.gmra.mxu0 %v2384
        %v3457 = vpop.f32.mrf.mxu0
        %v3458 = vadd.f32 %v862, %v3457
        %v3459 = vpop.f32.mrf.mxu0
        %v3460 = vadd.f32 %v862, %v3459
        %3461 = vmatmul.bf16.gmra.mxu0 %v2392
        %v3462 = vpop.f32.mrf.mxu0
        %v3463 = vadd.f32 %v862, %v3462
        %v3464 = vpop.f32.mrf.mxu0
        %v3465 = vadd.f32 %v862, %v3464
        %3466 = vmatmul.bf16.gmra.mxu0 %v2400
        %v3467 = vpop.f32.mrf.mxu0
        %v3468 = vadd.f32 %v862, %v3467
        %v3469 = vpop.f32.mrf.mxu0
        %v3470 = vadd.f32 %v862, %v3469
        %3471 = vmatmul.bf16.gmra.mxu0 %v2408
        %v3472 = vpop.f32.mrf.mxu0
        %v3473 = vadd.f32 %v862, %v3472
        %v3474 = vpop.f32.mrf.mxu0
        %v3475 = vadd.f32 %v862, %v3474
        %3476 = vmatmul.bf16.gmra.mxu0 %v2416
        %v3477 = vpop.f32.mrf.mxu0
        %v3478 = vadd.f32 %v862, %v3477
        %v3479 = vpop.f32.mrf.mxu0
        %v3480 = vadd.f32 %v862, %v3479
        %3481 = vmatmul.bf16.gmra.mxu0 %v2424
        %v3482 = vpop.f32.mrf.mxu0
        %v3483 = vadd.f32 %v862, %v3482
        %v3484 = vpop.f32.mrf.mxu0
        %v3485 = vadd.f32 %v862, %v3484
        %3486 = vmatmul.bf16.gmra.mxu0 %v2432
        %v3487 = vpop.f32.mrf.mxu0
        %v3488 = vadd.f32 %v862, %v3487
        %v3489 = vpop.f32.mrf.mxu0
        %v3490 = vadd.f32 %v862, %v3489
        %3491 = vmatmul.bf16.gmra.mxu0 %v2440
        %v3492 = vpop.f32.mrf.mxu0
        %v3493 = vadd.f32 %v862, %v3492
        %v3494 = vpop.f32.mrf.mxu0
        %v3495 = vadd.f32 %v862, %v3494
        %3496 = vmatmul.bf16.gmra.mxu0 %v2448
        %v3497 = vpop.f32.mrf.mxu0
        %v3498 = vadd.f32 %v862, %v3497
        %v3499 = vpop.f32.mrf.mxu0
        %v3500 = vadd.f32 %v862, %v3499
        %3501 = vmatmul.bf16.gmra.mxu0 %v2456
        %v3502 = vpop.f32.mrf.mxu0
        %v3503 = vadd.f32 %v862, %v3502
        %v3504 = vpop.f32.mrf.mxu0
        %v3505 = vadd.f32 %v862, %v3504
        %3506 = vdwg.mxu0
        %3507 = vmatpush.bf16.msra.mxu0 %v3135
        %3508 = vmatpush.bf16.msra.mxu0 %v3134
        %3509 = vmatpush.bf16.msra.mxu0 %v3133
        %3510 = vmatpush.bf16.msra.mxu0 %v3132
        %3511 = vmatpush.bf16.msra.mxu0 %v3131
        %3512 = vmatpush.bf16.msra.mxu0 %v3130
        %3513 = vmatpush.bf16.msra.mxu0 %v3129
        %3514 = vmatpush.bf16.msra.mxu0 %v3128
        %3515 = vmatmul.bf16.gmra.mxu0 %v2065
        %v3516 = vpop.f32.mrf.mxu0
        %v3517 = vadd.f32 %v3258, %v3516
        %v3518 = vpop.f32.mrf.mxu0
        %v3519 = vadd.f32 %v3260, %v3518
        %3520 = vmatmul.bf16.gmra.mxu0 %v2073
        %v3521 = vpop.f32.mrf.mxu0
        %v3522 = vadd.f32 %v3263, %v3521
        %v3523 = vpop.f32.mrf.mxu0
        %v3524 = vadd.f32 %v3265, %v3523
        %3525 = vmatmul.bf16.gmra.mxu0 %v2081
        %v3526 = vpop.f32.mrf.mxu0
        %v3527 = vadd.f32 %v3268, %v3526
        %v3528 = vpop.f32.mrf.mxu0
        %v3529 = vadd.f32 %v3270, %v3528
        %3530 = vmatmul.bf16.gmra.mxu0 %v2089
        %v3531 = vpop.f32.mrf.mxu0
        %v3532 = vadd.f32 %v3273, %v3531
        %v3533 = vpop.f32.mrf.mxu0
        %v3534 = vadd.f32 %v3275, %v3533
        %3535 = vmatmul.bf16.gmra.mxu0 %v2097
        %v3536 = vpop.f32.mrf.mxu0
        %v3537 = vadd.f32 %v3278, %v3536
        %v3538 = vpop.f32.mrf.mxu0
        %v3539 = vadd.f32 %v3280, %v3538
        %3540 = vmatmul.bf16.gmra.mxu0 %v2105
        %v3541 = vpop.f32.mrf.mxu0
        %v3542 = vadd.f32 %v3283, %v3541
        %v3543 = vpop.f32.mrf.mxu0
        %v3544 = vadd.f32 %v3285, %v3543
        %3545 = vmatmul.bf16.gmra.mxu0 %v2113
        %v3546 = vpop.f32.mrf.mxu0
        %v3547 = vadd.f32 %v3288, %v3546
        %v3548 = vpop.f32.mrf.mxu0
        %v3549 = vadd.f32 %v3290, %v3548
        %3550 = vmatmul.bf16.gmra.mxu0 %v2121
        %v3551 = vpop.f32.mrf.mxu0
        %v3552 = vadd.f32 %v3293, %v3551
        %v3553 = vpop.f32.mrf.mxu0
        %v3554 = vadd.f32 %v3295, %v3553
        %3555 = vmatmul.bf16.gmra.mxu0 %v2129
        %v3556 = vpop.f32.mrf.mxu0
        %v3557 = vadd.f32 %v3298, %v3556
        %v3558 = vpop.f32.mrf.mxu0
        %v3559 = vadd.f32 %v3300, %v3558
        %3560 = vmatmul.bf16.gmra.mxu0 %v2137
        %v3561 = vpop.f32.mrf.mxu0
        %v3562 = vadd.f32 %v3303, %v3561
        %v3563 = vpop.f32.mrf.mxu0
        %v3564 = vadd.f32 %v3305, %v3563
        %3565 = vmatmul.bf16.gmra.mxu0 %v2145
        %v3566 = vpop.f32.mrf.mxu0
        %v3567 = vadd.f32 %v3308, %v3566
        %v3568 = vpop.f32.mrf.mxu0
        %v3569 = vadd.f32 %v3310, %v3568
        %3570 = vmatmul.bf16.gmra.mxu0 %v2153
        %v3571 = vpop.f32.mrf.mxu0
        %v3572 = vadd.f32 %v3313, %v3571
        %v3573 = vpop.f32.mrf.mxu0
        %v3574 = vadd.f32 %v3315, %v3573
        %3575 = vmatmul.bf16.gmra.mxu0 %v2161
        %v3576 = vpop.f32.mrf.mxu0
        %v3577 = vadd.f32 %v3318, %v3576
        %v3578 = vpop.f32.mrf.mxu0
        %v3579 = vadd.f32 %v3320, %v3578
        %3580 = vmatmul.bf16.gmra.mxu0 %v2169
        %v3581 = vpop.f32.mrf.mxu0
        %v3582 = vadd.f32 %v3323, %v3581
        %v3583 = vpop.f32.mrf.mxu0
        %v3584 = vadd.f32 %v3325, %v3583
        %3585 = vmatmul.bf16.gmra.mxu0 %v2177
        %v3586 = vpop.f32.mrf.mxu0
        %v3587 = vadd.f32 %v3328, %v3586
        %v3588 = vpop.f32.mrf.mxu0
        %v3589 = vadd.f32 %v3330, %v3588
        %3590 = vmatmul.bf16.gmra.mxu0 %v2185
        %v3591 = vpop.f32.mrf.mxu0
        %v3592 = vadd.f32 %v3333, %v3591
        %v3593 = vpop.f32.mrf.mxu0
        %v3594 = vadd.f32 %v3335, %v3593
        %3595 = vmatmul.bf16.gmra.mxu0 %v2193
        %v3596 = vpop.f32.mrf.mxu0
        %v3597 = vadd.f32 %v3338, %v3596
        %v3598 = vpop.f32.mrf.mxu0
        %v3599 = vadd.f32 %v3340, %v3598
        %3600 = vmatmul.bf16.gmra.mxu0 %v2201
        %v3601 = vpop.f32.mrf.mxu0
        %v3602 = vadd.f32 %v3343, %v3601
        %v3603 = vpop.f32.mrf.mxu0
        %v3604 = vadd.f32 %v3345, %v3603
        %3605 = vmatmul.bf16.gmra.mxu0 %v2209
        %v3606 = vpop.f32.mrf.mxu0
        %v3607 = vadd.f32 %v3348, %v3606
        %v3608 = vpop.f32.mrf.mxu0
        %v3609 = vadd.f32 %v3350, %v3608
        %3610 = vmatmul.bf16.gmra.mxu0 %v2217
        %v3611 = vpop.f32.mrf.mxu0
        %v3612 = vadd.f32 %v3353, %v3611
        %v3613 = vpop.f32.mrf.mxu0
        %v3614 = vadd.f32 %v3355, %v3613
        %3615 = vmatmul.bf16.gmra.mxu0 %v2225
        %v3616 = vpop.f32.mrf.mxu0
        %v3617 = vadd.f32 %v3358, %v3616
        %v3618 = vpop.f32.mrf.mxu0
        %v3619 = vadd.f32 %v3360, %v3618
        %3620 = vmatmul.bf16.gmra.mxu0 %v2233
        %v3621 = vpop.f32.mrf.mxu0
        %v3622 = vadd.f32 %v3363, %v3621
        %v3623 = vpop.f32.mrf.mxu0
        %v3624 = vadd.f32 %v3365, %v3623
        %3625 = vmatmul.bf16.gmra.mxu0 %v2241
        %v3626 = vpop.f32.mrf.mxu0
        %v3627 = vadd.f32 %v3368, %v3626
        %v3628 = vpop.f32.mrf.mxu0
        %v3629 = vadd.f32 %v3370, %v3628
        %3630 = vmatmul.bf16.gmra.mxu0 %v2249
        %v3631 = vpop.f32.mrf.mxu0
        %v3632 = vadd.f32 %v3373, %v3631
        %v3633 = vpop.f32.mrf.mxu0
        %v3634 = vadd.f32 %v3375, %v3633
        %3635 = vmatmul.bf16.gmra.mxu0 %v2257
        %v3636 = vpop.f32.mrf.mxu0
        %v3637 = vadd.f32 %v3378, %v3636
        %v3638 = vpop.f32.mrf.mxu0
        %v3639 = vadd.f32 %v3380, %v3638
        %3640 = vmatmul.bf16.gmra.mxu0 %v2265
        %v3641 = vpop.f32.mrf.mxu0
        %v3642 = vadd.f32 %v3383, %v3641
        %v3643 = vpop.f32.mrf.mxu0
        %v3644 = vadd.f32 %v3385, %v3643
        %3645 = vmatmul.bf16.gmra.mxu0 %v2273
        %v3646 = vpop.f32.mrf.mxu0
        %v3647 = vadd.f32 %v3388, %v3646
        %v3648 = vpop.f32.mrf.mxu0
        %v3649 = vadd.f32 %v3390, %v3648
        %3650 = vmatmul.bf16.gmra.mxu0 %v2281
        %v3651 = vpop.f32.mrf.mxu0
        %v3652 = vadd.f32 %v3393, %v3651
        %v3653 = vpop.f32.mrf.mxu0
        %v3654 = vadd.f32 %v3395, %v3653
        %3655 = vmatmul.bf16.gmra.mxu0 %v2289
        %v3656 = vpop.f32.mrf.mxu0
        %v3657 = vadd.f32 %v3398, %v3656
        %v3658 = vpop.f32.mrf.mxu0
        %v3659 = vadd.f32 %v3400, %v3658
        %3660 = vmatmul.bf16.gmra.mxu0 %v2297
        %v3661 = vpop.f32.mrf.mxu0
        %v3662 = vadd.f32 %v3403, %v3661
        %v3663 = vpop.f32.mrf.mxu0
        %v3664 = vadd.f32 %v3405, %v3663
        %3665 = vmatmul.bf16.gmra.mxu0 %v2305
        %v3666 = vpop.f32.mrf.mxu0
        %v3667 = vadd.f32 %v3408, %v3666
        %v3668 = vpop.f32.mrf.mxu0
        %v3669 = vadd.f32 %v3410, %v3668
        %3670 = vmatmul.bf16.gmra.mxu0 %v2313
        %v3671 = vpop.f32.mrf.mxu0
        %v3672 = vadd.f32 %v3413, %v3671
        %v3673 = vpop.f32.mrf.mxu0
        %v3674 = vadd.f32 %v3415, %v3673
        %3675 = vmatmul.bf16.gmra.mxu0 %v2321
        %v3676 = vpop.f32.mrf.mxu0
        %v3677 = vadd.f32 %v3418, %v3676
        %v3678 = vpop.f32.mrf.mxu0
        %v3679 = vadd.f32 %v3420, %v3678
        %3680 = vmatmul.bf16.gmra.mxu0 %v2329
        %v3681 = vpop.f32.mrf.mxu0
        %v3682 = vadd.f32 %v3423, %v3681
        %v3683 = vpop.f32.mrf.mxu0
        %v3684 = vadd.f32 %v3425, %v3683
        %3685 = vmatmul.bf16.gmra.mxu0 %v2337
        %v3686 = vpop.f32.mrf.mxu0
        %v3687 = vadd.f32 %v3428, %v3686
        %v3688 = vpop.f32.mrf.mxu0
        %v3689 = vadd.f32 %v3430, %v3688
        %3690 = vmatmul.bf16.gmra.mxu0 %v2345
        %v3691 = vpop.f32.mrf.mxu0
        %v3692 = vadd.f32 %v3433, %v3691
        %v3693 = vpop.f32.mrf.mxu0
        %v3694 = vadd.f32 %v3435, %v3693
        %3695 = vmatmul.bf16.gmra.mxu0 %v2353
        %v3696 = vpop.f32.mrf.mxu0
        %v3697 = vadd.f32 %v3438, %v3696
        %v3698 = vpop.f32.mrf.mxu0
        %v3699 = vadd.f32 %v3440, %v3698
        %3700 = vmatmul.bf16.gmra.mxu0 %v2361
        %v3701 = vpop.f32.mrf.mxu0
        %v3702 = vadd.f32 %v3443, %v3701
        %v3703 = vpop.f32.mrf.mxu0
        %v3704 = vadd.f32 %v3445, %v3703
        %3705 = vmatmul.bf16.gmra.mxu0 %v2369
        %v3706 = vpop.f32.mrf.mxu0
        %v3707 = vadd.f32 %v3448, %v3706
        %v3708 = vpop.f32.mrf.mxu0
        %v3709 = vadd.f32 %v3450, %v3708
        %3710 = vmatmul.bf16.gmra.mxu0 %v2377
        %v3711 = vpop.f32.mrf.mxu0
        %v3712 = vadd.f32 %v3453, %v3711
        %v3713 = vpop.f32.mrf.mxu0
        %v3714 = vadd.f32 %v3455, %v3713
        %3715 = vmatmul.bf16.gmra.mxu0 %v2385
        %v3716 = vpop.f32.mrf.mxu0
        %v3717 = vadd.f32 %v3458, %v3716
        %v3718 = vpop.f32.mrf.mxu0
        %v3719 = vadd.f32 %v3460, %v3718
        %3720 = vmatmul.bf16.gmra.mxu0 %v2393
        %v3721 = vpop.f32.mrf.mxu0
        %v3722 = vadd.f32 %v3463, %v3721
        %v3723 = vpop.f32.mrf.mxu0
        %v3724 = vadd.f32 %v3465, %v3723
        %3725 = vmatmul.bf16.gmra.mxu0 %v2401
        %v3726 = vpop.f32.mrf.mxu0
        %v3727 = vadd.f32 %v3468, %v3726
        %v3728 = vpop.f32.mrf.mxu0
        %v3729 = vadd.f32 %v3470, %v3728
        %3730 = vmatmul.bf16.gmra.mxu0 %v2409
        %v3731 = vpop.f32.mrf.mxu0
        %v3732 = vadd.f32 %v3473, %v3731
        %v3733 = vpop.f32.mrf.mxu0
        %v3734 = vadd.f32 %v3475, %v3733
        %3735 = vmatmul.bf16.gmra.mxu0 %v2417
        %v3736 = vpop.f32.mrf.mxu0
        %v3737 = vadd.f32 %v3478, %v3736
        %v3738 = vpop.f32.mrf.mxu0
        %v3739 = vadd.f32 %v3480, %v3738
        %3740 = vmatmul.bf16.gmra.mxu0 %v2425
        %v3741 = vpop.f32.mrf.mxu0
        %v3742 = vadd.f32 %v3483, %v3741
        %v3743 = vpop.f32.mrf.mxu0
        %v3744 = vadd.f32 %v3485, %v3743
        %3745 = vmatmul.bf16.gmra.mxu0 %v2433
        %v3746 = vpop.f32.mrf.mxu0
        %v3747 = vadd.f32 %v3488, %v3746
        %v3748 = vpop.f32.mrf.mxu0
        %v3749 = vadd.f32 %v3490, %v3748
        %3750 = vmatmul.bf16.gmra.mxu0 %v2441
        %v3751 = vpop.f32.mrf.mxu0
        %v3752 = vadd.f32 %v3493, %v3751
        %v3753 = vpop.f32.mrf.mxu0
        %v3754 = vadd.f32 %v3495, %v3753
        %3755 = vmatmul.bf16.gmra.mxu0 %v2449
        %v3756 = vpop.f32.mrf.mxu0
        %v3757 = vadd.f32 %v3498, %v3756
        %v3758 = vpop.f32.mrf.mxu0
        %v3759 = vadd.f32 %v3500, %v3758
        %3760 = vmatmul.bf16.gmra.mxu0 %v2457
        %v3761 = vpop.f32.mrf.mxu0
        %v3762 = vadd.f32 %v3503, %v3761
        %v3763 = vpop.f32.mrf.mxu0
        %v3764 = vadd.f32 %v3505, %v3763
        %3765 = vdwg.mxu0
        %3766 = vmatpush.bf16.msra.mxu0 %v3143
        %3767 = vmatpush.bf16.msra.mxu0 %v3142
        %3768 = vmatpush.bf16.msra.mxu0 %v3141
        %3769 = vmatpush.bf16.msra.mxu0 %v3140
        %3770 = vmatpush.bf16.msra.mxu0 %v3139
        %3771 = vmatpush.bf16.msra.mxu0 %v3138
        %3772 = vmatpush.bf16.msra.mxu0 %v3137
        %3773 = vmatpush.bf16.msra.mxu0 %v3136
        %3774 = vmatmul.bf16.gmra.mxu0 %v2066
        %v3775 = vpop.f32.mrf.mxu0
        %v3776 = vadd.f32 %v3517, %v3775
        %v3777 = vpop.f32.mrf.mxu0
        %v3778 = vadd.f32 %v3519, %v3777
        %3779 = vmatmul.bf16.gmra.mxu0 %v2074
        %v3780 = vpop.f32.mrf.mxu0
        %v3781 = vadd.f32 %v3522, %v3780
        %v3782 = vpop.f32.mrf.mxu0
        %v3783 = vadd.f32 %v3524, %v3782
        %3784 = vmatmul.bf16.gmra.mxu0 %v2082
        %v3785 = vpop.f32.mrf.mxu0
        %v3786 = vadd.f32 %v3527, %v3785
        %v3787 = vpop.f32.mrf.mxu0
        %v3788 = vadd.f32 %v3529, %v3787
        %3789 = vmatmul.bf16.gmra.mxu0 %v2090
        %v3790 = vpop.f32.mrf.mxu0
        %v3791 = vadd.f32 %v3532, %v3790
        %v3792 = vpop.f32.mrf.mxu0
        %v3793 = vadd.f32 %v3534, %v3792
        %3794 = vmatmul.bf16.gmra.mxu0 %v2098
        %v3795 = vpop.f32.mrf.mxu0
        %v3796 = vadd.f32 %v3537, %v3795
        %v3797 = vpop.f32.mrf.mxu0
        %v3798 = vadd.f32 %v3539, %v3797
        %3799 = vmatmul.bf16.gmra.mxu0 %v2106
        %v3800 = vpop.f32.mrf.mxu0
        %v3801 = vadd.f32 %v3542, %v3800
        %v3802 = vpop.f32.mrf.mxu0
        %v3803 = vadd.f32 %v3544, %v3802
        %3804 = vmatmul.bf16.gmra.mxu0 %v2114
        %v3805 = vpop.f32.mrf.mxu0
        %v3806 = vadd.f32 %v3547, %v3805
        %v3807 = vpop.f32.mrf.mxu0
        %v3808 = vadd.f32 %v3549, %v3807
        %3809 = vmatmul.bf16.gmra.mxu0 %v2122
        %v3810 = vpop.f32.mrf.mxu0
        %v3811 = vadd.f32 %v3552, %v3810
        %v3812 = vpop.f32.mrf.mxu0
        %v3813 = vadd.f32 %v3554, %v3812
        %3814 = vmatmul.bf16.gmra.mxu0 %v2130
        %v3815 = vpop.f32.mrf.mxu0
        %v3816 = vadd.f32 %v3557, %v3815
        %v3817 = vpop.f32.mrf.mxu0
        %v3818 = vadd.f32 %v3559, %v3817
        %3819 = vmatmul.bf16.gmra.mxu0 %v2138
        %v3820 = vpop.f32.mrf.mxu0
        %v3821 = vadd.f32 %v3562, %v3820
        %v3822 = vpop.f32.mrf.mxu0
        %v3823 = vadd.f32 %v3564, %v3822
        %3824 = vmatmul.bf16.gmra.mxu0 %v2146
        %v3825 = vpop.f32.mrf.mxu0
        %v3826 = vadd.f32 %v3567, %v3825
        %v3827 = vpop.f32.mrf.mxu0
        %v3828 = vadd.f32 %v3569, %v3827
        %3829 = vmatmul.bf16.gmra.mxu0 %v2154
        %v3830 = vpop.f32.mrf.mxu0
        %v3831 = vadd.f32 %v3572, %v3830
        %v3832 = vpop.f32.mrf.mxu0
        %v3833 = vadd.f32 %v3574, %v3832
        %3834 = vmatmul.bf16.gmra.mxu0 %v2162
        %v3835 = vpop.f32.mrf.mxu0
        %v3836 = vadd.f32 %v3577, %v3835
        %v3837 = vpop.f32.mrf.mxu0
        %v3838 = vadd.f32 %v3579, %v3837
        %3839 = vmatmul.bf16.gmra.mxu0 %v2170
        %v3840 = vpop.f32.mrf.mxu0
        %v3841 = vadd.f32 %v3582, %v3840
        %v3842 = vpop.f32.mrf.mxu0
        %v3843 = vadd.f32 %v3584, %v3842
        %3844 = vmatmul.bf16.gmra.mxu0 %v2178
        %v3845 = vpop.f32.mrf.mxu0
        %v3846 = vadd.f32 %v3587, %v3845
        %v3847 = vpop.f32.mrf.mxu0
        %v3848 = vadd.f32 %v3589, %v3847
        %3849 = vmatmul.bf16.gmra.mxu0 %v2186
        %v3850 = vpop.f32.mrf.mxu0
        %v3851 = vadd.f32 %v3592, %v3850
        %v3852 = vpop.f32.mrf.mxu0
        %v3853 = vadd.f32 %v3594, %v3852
        %3854 = vmatmul.bf16.gmra.mxu0 %v2194
        %v3855 = vpop.f32.mrf.mxu0
        %v3856 = vadd.f32 %v3597, %v3855
        %v3857 = vpop.f32.mrf.mxu0
        %v3858 = vadd.f32 %v3599, %v3857
        %3859 = vmatmul.bf16.gmra.mxu0 %v2202
        %v3860 = vpop.f32.mrf.mxu0
        %v3861 = vadd.f32 %v3602, %v3860
        %v3862 = vpop.f32.mrf.mxu0
        %v3863 = vadd.f32 %v3604, %v3862
        %3864 = vmatmul.bf16.gmra.mxu0 %v2210
        %v3865 = vpop.f32.mrf.mxu0
        %v3866 = vadd.f32 %v3607, %v3865
        %v3867 = vpop.f32.mrf.mxu0
        %v3868 = vadd.f32 %v3609, %v3867
        %3869 = vmatmul.bf16.gmra.mxu0 %v2218
        %v3870 = vpop.f32.mrf.mxu0
        %v3871 = vadd.f32 %v3612, %v3870
        %v3872 = vpop.f32.mrf.mxu0
        %v3873 = vadd.f32 %v3614, %v3872
        %3874 = vmatmul.bf16.gmra.mxu0 %v2226
        %v3875 = vpop.f32.mrf.mxu0
        %v3876 = vadd.f32 %v3617, %v3875
        %v3877 = vpop.f32.mrf.mxu0
        %v3878 = vadd.f32 %v3619, %v3877
        %3879 = vmatmul.bf16.gmra.mxu0 %v2234
        %v3880 = vpop.f32.mrf.mxu0
        %v3881 = vadd.f32 %v3622, %v3880
        %v3882 = vpop.f32.mrf.mxu0
        %v3883 = vadd.f32 %v3624, %v3882
        %3884 = vmatmul.bf16.gmra.mxu0 %v2242
        %v3885 = vpop.f32.mrf.mxu0
        %v3886 = vadd.f32 %v3627, %v3885
        %v3887 = vpop.f32.mrf.mxu0
        %v3888 = vadd.f32 %v3629, %v3887
        %3889 = vmatmul.bf16.gmra.mxu0 %v2250
        %v3890 = vpop.f32.mrf.mxu0
        %v3891 = vadd.f32 %v3632, %v3890
        %v3892 = vpop.f32.mrf.mxu0
        %v3893 = vadd.f32 %v3634, %v3892
        %3894 = vmatmul.bf16.gmra.mxu0 %v2258
        %v3895 = vpop.f32.mrf.mxu0
        %v3896 = vadd.f32 %v3637, %v3895
        %v3897 = vpop.f32.mrf.mxu0
        %v3898 = vadd.f32 %v3639, %v3897
        %3899 = vmatmul.bf16.gmra.mxu0 %v2266
        %v3900 = vpop.f32.mrf.mxu0
        %v3901 = vadd.f32 %v3642, %v3900
        %v3902 = vpop.f32.mrf.mxu0
        %v3903 = vadd.f32 %v3644, %v3902
        %3904 = vmatmul.bf16.gmra.mxu0 %v2274
        %v3905 = vpop.f32.mrf.mxu0
        %v3906 = vadd.f32 %v3647, %v3905
        %v3907 = vpop.f32.mrf.mxu0
        %v3908 = vadd.f32 %v3649, %v3907
        %3909 = vmatmul.bf16.gmra.mxu0 %v2282
        %v3910 = vpop.f32.mrf.mxu0
        %v3911 = vadd.f32 %v3652, %v3910
        %v3912 = vpop.f32.mrf.mxu0
        %v3913 = vadd.f32 %v3654, %v3912
        %3914 = vmatmul.bf16.gmra.mxu0 %v2290
        %v3915 = vpop.f32.mrf.mxu0
        %v3916 = vadd.f32 %v3657, %v3915
        %v3917 = vpop.f32.mrf.mxu0
        %v3918 = vadd.f32 %v3659, %v3917
        %3919 = vmatmul.bf16.gmra.mxu0 %v2298
        %v3920 = vpop.f32.mrf.mxu0
        %v3921 = vadd.f32 %v3662, %v3920
        %v3922 = vpop.f32.mrf.mxu0
        %v3923 = vadd.f32 %v3664, %v3922
        %3924 = vmatmul.bf16.gmra.mxu0 %v2306
        %v3925 = vpop.f32.mrf.mxu0
        %v3926 = vadd.f32 %v3667, %v3925
        %v3927 = vpop.f32.mrf.mxu0
        %v3928 = vadd.f32 %v3669, %v3927
        %3929 = vmatmul.bf16.gmra.mxu0 %v2314
        %v3930 = vpop.f32.mrf.mxu0
        %v3931 = vadd.f32 %v3672, %v3930
        %v3932 = vpop.f32.mrf.mxu0
        %v3933 = vadd.f32 %v3674, %v3932
        %3934 = vmatmul.bf16.gmra.mxu0 %v2322
        %v3935 = vpop.f32.mrf.mxu0
        %v3936 = vadd.f32 %v3677, %v3935
        %v3937 = vpop.f32.mrf.mxu0
        %v3938 = vadd.f32 %v3679, %v3937
        %3939 = vmatmul.bf16.gmra.mxu0 %v2330
        %v3940 = vpop.f32.mrf.mxu0
        %v3941 = vadd.f32 %v3682, %v3940
        %v3942 = vpop.f32.mrf.mxu0
        %v3943 = vadd.f32 %v3684, %v3942
        %3944 = vmatmul.bf16.gmra.mxu0 %v2338
        %v3945 = vpop.f32.mrf.mxu0
        %v3946 = vadd.f32 %v3687, %v3945
        %v3947 = vpop.f32.mrf.mxu0
        %v3948 = vadd.f32 %v3689, %v3947
        %3949 = vmatmul.bf16.gmra.mxu0 %v2346
        %v3950 = vpop.f32.mrf.mxu0
        %v3951 = vadd.f32 %v3692, %v3950
        %v3952 = vpop.f32.mrf.mxu0
        %v3953 = vadd.f32 %v3694, %v3952
        %3954 = vmatmul.bf16.gmra.mxu0 %v2354
        %v3955 = vpop.f32.mrf.mxu0
        %v3956 = vadd.f32 %v3697, %v3955
        %v3957 = vpop.f32.mrf.mxu0
        %v3958 = vadd.f32 %v3699, %v3957
        %3959 = vmatmul.bf16.gmra.mxu0 %v2362
        %v3960 = vpop.f32.mrf.mxu0
        %v3961 = vadd.f32 %v3702, %v3960
        %v3962 = vpop.f32.mrf.mxu0
        %v3963 = vadd.f32 %v3704, %v3962
        %3964 = vmatmul.bf16.gmra.mxu0 %v2370
        %v3965 = vpop.f32.mrf.mxu0
        %v3966 = vadd.f32 %v3707, %v3965
        %v3967 = vpop.f32.mrf.mxu0
        %v3968 = vadd.f32 %v3709, %v3967
        %3969 = vmatmul.bf16.gmra.mxu0 %v2378
        %v3970 = vpop.f32.mrf.mxu0
        %v3971 = vadd.f32 %v3712, %v3970
        %v3972 = vpop.f32.mrf.mxu0
        %v3973 = vadd.f32 %v3714, %v3972
        %3974 = vmatmul.bf16.gmra.mxu0 %v2386
        %v3975 = vpop.f32.mrf.mxu0
        %v3976 = vadd.f32 %v3717, %v3975
        %v3977 = vpop.f32.mrf.mxu0
        %v3978 = vadd.f32 %v3719, %v3977
        %3979 = vmatmul.bf16.gmra.mxu0 %v2394
        %v3980 = vpop.f32.mrf.mxu0
        %v3981 = vadd.f32 %v3722, %v3980
        %v3982 = vpop.f32.mrf.mxu0
        %v3983 = vadd.f32 %v3724, %v3982
        %3984 = vmatmul.bf16.gmra.mxu0 %v2402
        %v3985 = vpop.f32.mrf.mxu0
        %v3986 = vadd.f32 %v3727, %v3985
        %v3987 = vpop.f32.mrf.mxu0
        %v3988 = vadd.f32 %v3729, %v3987
        %3989 = vmatmul.bf16.gmra.mxu0 %v2410
        %v3990 = vpop.f32.mrf.mxu0
        %v3991 = vadd.f32 %v3732, %v3990
        %v3992 = vpop.f32.mrf.mxu0
        %v3993 = vadd.f32 %v3734, %v3992
        %3994 = vmatmul.bf16.gmra.mxu0 %v2418
        %v3995 = vpop.f32.mrf.mxu0
        %v3996 = vadd.f32 %v3737, %v3995
        %v3997 = vpop.f32.mrf.mxu0
        %v3998 = vadd.f32 %v3739, %v3997
        %3999 = vmatmul.bf16.gmra.mxu0 %v2426
        %v4000 = vpop.f32.mrf.mxu0
        %v4001 = vadd.f32 %v3742, %v4000
        %v4002 = vpop.f32.mrf.mxu0
        %v4003 = vadd.f32 %v3744, %v4002
        %4004 = vmatmul.bf16.gmra.mxu0 %v2434
        %v4005 = vpop.f32.mrf.mxu0
        %v4006 = vadd.f32 %v3747, %v4005
        %v4007 = vpop.f32.mrf.mxu0
        %v4008 = vadd.f32 %v3749, %v4007
        %4009 = vmatmul.bf16.gmra.mxu0 %v2442
        %v4010 = vpop.f32.mrf.mxu0
        %v4011 = vadd.f32 %v3752, %v4010
        %v4012 = vpop.f32.mrf.mxu0
        %v4013 = vadd.f32 %v3754, %v4012
        %4014 = vmatmul.bf16.gmra.mxu0 %v2450
        %v4015 = vpop.f32.mrf.mxu0
        %v4016 = vadd.f32 %v3757, %v4015
        %v4017 = vpop.f32.mrf.mxu0
        %v4018 = vadd.f32 %v3759, %v4017
        %4019 = vmatmul.bf16.gmra.mxu0 %v2458
        %v4020 = vpop.f32.mrf.mxu0
        %v4021 = vadd.f32 %v3762, %v4020
        %v4022 = vpop.f32.mrf.mxu0
        %v4023 = vadd.f32 %v3764, %v4022
        %4024 = vdwg.mxu0
        %4025 = vmatpush.bf16.msra.mxu0 %v3151
        %4026 = vmatpush.bf16.msra.mxu0 %v3150
        %4027 = vmatpush.bf16.msra.mxu0 %v3149
        %4028 = vmatpush.bf16.msra.mxu0 %v3148
        %4029 = vmatpush.bf16.msra.mxu0 %v3147
        %4030 = vmatpush.bf16.msra.mxu0 %v3146
        %4031 = vmatpush.bf16.msra.mxu0 %v3145
        %4032 = vmatpush.bf16.msra.mxu0 %v3144
        %4033 = vmatmul.bf16.gmra.mxu0 %v2067
        %v4034 = vpop.f32.mrf.mxu0
        %v4035 = vadd.f32 %v3776, %v4034
        %v4036 = vpop.f32.mrf.mxu0
        %v4037 = vadd.f32 %v3778, %v4036
        %4038 = vmatmul.bf16.gmra.mxu0 %v2075
        %v4039 = vpop.f32.mrf.mxu0
        %v4040 = vadd.f32 %v3781, %v4039
        %v4041 = vpop.f32.mrf.mxu0
        %v4042 = vadd.f32 %v3783, %v4041
        %4043 = vmatmul.bf16.gmra.mxu0 %v2083
        %v4044 = vpop.f32.mrf.mxu0
        %v4045 = vadd.f32 %v3786, %v4044
        %v4046 = vpop.f32.mrf.mxu0
        %v4047 = vadd.f32 %v3788, %v4046
        %4048 = vmatmul.bf16.gmra.mxu0 %v2091
        %v4049 = vpop.f32.mrf.mxu0
        %v4050 = vadd.f32 %v3791, %v4049
        %v4051 = vpop.f32.mrf.mxu0
        %v4052 = vadd.f32 %v3793, %v4051
        %4053 = vmatmul.bf16.gmra.mxu0 %v2099
        %v4054 = vpop.f32.mrf.mxu0
        %v4055 = vadd.f32 %v3796, %v4054
        %v4056 = vpop.f32.mrf.mxu0
        %v4057 = vadd.f32 %v3798, %v4056
        %4058 = vmatmul.bf16.gmra.mxu0 %v2107
        %v4059 = vpop.f32.mrf.mxu0
        %v4060 = vadd.f32 %v3801, %v4059
        %v4061 = vpop.f32.mrf.mxu0
        %v4062 = vadd.f32 %v3803, %v4061
        %4063 = vmatmul.bf16.gmra.mxu0 %v2115
        %v4064 = vpop.f32.mrf.mxu0
        %v4065 = vadd.f32 %v3806, %v4064
        %v4066 = vpop.f32.mrf.mxu0
        %v4067 = vadd.f32 %v3808, %v4066
        %4068 = vmatmul.bf16.gmra.mxu0 %v2123
        %v4069 = vpop.f32.mrf.mxu0
        %v4070 = vadd.f32 %v3811, %v4069
        %v4071 = vpop.f32.mrf.mxu0
        %v4072 = vadd.f32 %v3813, %v4071
        %4073 = vmatmul.bf16.gmra.mxu0 %v2131
        %v4074 = vpop.f32.mrf.mxu0
        %v4075 = vadd.f32 %v3816, %v4074
        %v4076 = vpop.f32.mrf.mxu0
        %v4077 = vadd.f32 %v3818, %v4076
        %4078 = vmatmul.bf16.gmra.mxu0 %v2139
        %v4079 = vpop.f32.mrf.mxu0
        %v4080 = vadd.f32 %v3821, %v4079
        %v4081 = vpop.f32.mrf.mxu0
        %v4082 = vadd.f32 %v3823, %v4081
        %4083 = vmatmul.bf16.gmra.mxu0 %v2147
        %v4084 = vpop.f32.mrf.mxu0
        %v4085 = vadd.f32 %v3826, %v4084
        %v4086 = vpop.f32.mrf.mxu0
        %v4087 = vadd.f32 %v3828, %v4086
        %4088 = vmatmul.bf16.gmra.mxu0 %v2155
        %v4089 = vpop.f32.mrf.mxu0
        %v4090 = vadd.f32 %v3831, %v4089
        %v4091 = vpop.f32.mrf.mxu0
        %v4092 = vadd.f32 %v3833, %v4091
        %4093 = vmatmul.bf16.gmra.mxu0 %v2163
        %v4094 = vpop.f32.mrf.mxu0
        %v4095 = vadd.f32 %v3836, %v4094
        %v4096 = vpop.f32.mrf.mxu0
        %v4097 = vadd.f32 %v3838, %v4096
        %4098 = vmatmul.bf16.gmra.mxu0 %v2171
        %v4099 = vpop.f32.mrf.mxu0
        %v4100 = vadd.f32 %v3841, %v4099
        %v4101 = vpop.f32.mrf.mxu0
        %v4102 = vadd.f32 %v3843, %v4101
        %4103 = vmatmul.bf16.gmra.mxu0 %v2179
        %v4104 = vpop.f32.mrf.mxu0
        %v4105 = vadd.f32 %v3846, %v4104
        %v4106 = vpop.f32.mrf.mxu0
        %v4107 = vadd.f32 %v3848, %v4106
        %4108 = vmatmul.bf16.gmra.mxu0 %v2187
        %v4109 = vpop.f32.mrf.mxu0
        %v4110 = vadd.f32 %v3851, %v4109
        %v4111 = vpop.f32.mrf.mxu0
        %v4112 = vadd.f32 %v3853, %v4111
        %4113 = vmatmul.bf16.gmra.mxu0 %v2195
        %v4114 = vpop.f32.mrf.mxu0
        %v4115 = vadd.f32 %v3856, %v4114
        %v4116 = vpop.f32.mrf.mxu0
        %v4117 = vadd.f32 %v3858, %v4116
        %4118 = vmatmul.bf16.gmra.mxu0 %v2203
        %v4119 = vpop.f32.mrf.mxu0
        %v4120 = vadd.f32 %v3861, %v4119
        %v4121 = vpop.f32.mrf.mxu0
        %v4122 = vadd.f32 %v3863, %v4121
        %4123 = vmatmul.bf16.gmra.mxu0 %v2211
        %v4124 = vpop.f32.mrf.mxu0
        %v4125 = vadd.f32 %v3866, %v4124
        %v4126 = vpop.f32.mrf.mxu0
        %v4127 = vadd.f32 %v3868, %v4126
        %4128 = vmatmul.bf16.gmra.mxu0 %v2219
        %v4129 = vpop.f32.mrf.mxu0
        %v4130 = vadd.f32 %v3871, %v4129
        %v4131 = vpop.f32.mrf.mxu0
        %v4132 = vadd.f32 %v3873, %v4131
        %4133 = vmatmul.bf16.gmra.mxu0 %v2227
        %v4134 = vpop.f32.mrf.mxu0
        %v4135 = vadd.f32 %v3876, %v4134
        %v4136 = vpop.f32.mrf.mxu0
        %v4137 = vadd.f32 %v3878, %v4136
        %4138 = vmatmul.bf16.gmra.mxu0 %v2235
        %v4139 = vpop.f32.mrf.mxu0
        %v4140 = vadd.f32 %v3881, %v4139
        %v4141 = vpop.f32.mrf.mxu0
        %v4142 = vadd.f32 %v3883, %v4141
        %4143 = vmatmul.bf16.gmra.mxu0 %v2243
        %v4144 = vpop.f32.mrf.mxu0
        %v4145 = vadd.f32 %v3886, %v4144
        %v4146 = vpop.f32.mrf.mxu0
        %v4147 = vadd.f32 %v3888, %v4146
        %4148 = vmatmul.bf16.gmra.mxu0 %v2251
        %v4149 = vpop.f32.mrf.mxu0
        %v4150 = vadd.f32 %v3891, %v4149
        %v4151 = vpop.f32.mrf.mxu0
        %v4152 = vadd.f32 %v3893, %v4151
        %4153 = vmatmul.bf16.gmra.mxu0 %v2259
        %v4154 = vpop.f32.mrf.mxu0
        %v4155 = vadd.f32 %v3896, %v4154
        %v4156 = vpop.f32.mrf.mxu0
        %v4157 = vadd.f32 %v3898, %v4156
        %4158 = vmatmul.bf16.gmra.mxu0 %v2267
        %v4159 = vpop.f32.mrf.mxu0
        %v4160 = vadd.f32 %v3901, %v4159
        %v4161 = vpop.f32.mrf.mxu0
        %v4162 = vadd.f32 %v3903, %v4161
        %4163 = vmatmul.bf16.gmra.mxu0 %v2275
        %v4164 = vpop.f32.mrf.mxu0
        %v4165 = vadd.f32 %v3906, %v4164
        %v4166 = vpop.f32.mrf.mxu0
        %v4167 = vadd.f32 %v3908, %v4166
        %4168 = vmatmul.bf16.gmra.mxu0 %v2283
        %v4169 = vpop.f32.mrf.mxu0
        %v4170 = vadd.f32 %v3911, %v4169
        %v4171 = vpop.f32.mrf.mxu0
        %v4172 = vadd.f32 %v3913, %v4171
        %4173 = vmatmul.bf16.gmra.mxu0 %v2291
        %v4174 = vpop.f32.mrf.mxu0
        %v4175 = vadd.f32 %v3916, %v4174
        %v4176 = vpop.f32.mrf.mxu0
        %v4177 = vadd.f32 %v3918, %v4176
        %4178 = vmatmul.bf16.gmra.mxu0 %v2299
        %v4179 = vpop.f32.mrf.mxu0
        %v4180 = vadd.f32 %v3921, %v4179
        %v4181 = vpop.f32.mrf.mxu0
        %v4182 = vadd.f32 %v3923, %v4181
        %4183 = vmatmul.bf16.gmra.mxu0 %v2307
        %v4184 = vpop.f32.mrf.mxu0
        %v4185 = vadd.f32 %v3926, %v4184
        %v4186 = vpop.f32.mrf.mxu0
        %v4187 = vadd.f32 %v3928, %v4186
        %4188 = vmatmul.bf16.gmra.mxu0 %v2315
        %v4189 = vpop.f32.mrf.mxu0
        %v4190 = vadd.f32 %v3931, %v4189
        %v4191 = vpop.f32.mrf.mxu0
        %v4192 = vadd.f32 %v3933, %v4191
        %4193 = vmatmul.bf16.gmra.mxu0 %v2323
        %v4194 = vpop.f32.mrf.mxu0
        %v4195 = vadd.f32 %v3936, %v4194
        %v4196 = vpop.f32.mrf.mxu0
        %v4197 = vadd.f32 %v3938, %v4196
        %4198 = vmatmul.bf16.gmra.mxu0 %v2331
        %v4199 = vpop.f32.mrf.mxu0
        %v4200 = vadd.f32 %v3941, %v4199
        %v4201 = vpop.f32.mrf.mxu0
        %v4202 = vadd.f32 %v3943, %v4201
        %4203 = vmatmul.bf16.gmra.mxu0 %v2339
        %v4204 = vpop.f32.mrf.mxu0
        %v4205 = vadd.f32 %v3946, %v4204
        %v4206 = vpop.f32.mrf.mxu0
        %v4207 = vadd.f32 %v3948, %v4206
        %4208 = vmatmul.bf16.gmra.mxu0 %v2347
        %v4209 = vpop.f32.mrf.mxu0
        %v4210 = vadd.f32 %v3951, %v4209
        %v4211 = vpop.f32.mrf.mxu0
        %v4212 = vadd.f32 %v3953, %v4211
        %4213 = vmatmul.bf16.gmra.mxu0 %v2355
        %v4214 = vpop.f32.mrf.mxu0
        %v4215 = vadd.f32 %v3956, %v4214
        %v4216 = vpop.f32.mrf.mxu0
        %v4217 = vadd.f32 %v3958, %v4216
        %4218 = vmatmul.bf16.gmra.mxu0 %v2363
        %v4219 = vpop.f32.mrf.mxu0
        %v4220 = vadd.f32 %v3961, %v4219
        %v4221 = vpop.f32.mrf.mxu0
        %v4222 = vadd.f32 %v3963, %v4221
        %4223 = vmatmul.bf16.gmra.mxu0 %v2371
        %v4224 = vpop.f32.mrf.mxu0
        %v4225 = vadd.f32 %v3966, %v4224
        %v4226 = vpop.f32.mrf.mxu0
        %v4227 = vadd.f32 %v3968, %v4226
        %4228 = vmatmul.bf16.gmra.mxu0 %v2379
        %v4229 = vpop.f32.mrf.mxu0
        %v4230 = vadd.f32 %v3971, %v4229
        %v4231 = vpop.f32.mrf.mxu0
        %v4232 = vadd.f32 %v3973, %v4231
        %4233 = vmatmul.bf16.gmra.mxu0 %v2387
        %v4234 = vpop.f32.mrf.mxu0
        %v4235 = vadd.f32 %v3976, %v4234
        %v4236 = vpop.f32.mrf.mxu0
        %v4237 = vadd.f32 %v3978, %v4236
        %4238 = vmatmul.bf16.gmra.mxu0 %v2395
        %v4239 = vpop.f32.mrf.mxu0
        %v4240 = vadd.f32 %v3981, %v4239
        %v4241 = vpop.f32.mrf.mxu0
        %v4242 = vadd.f32 %v3983, %v4241
        %4243 = vmatmul.bf16.gmra.mxu0 %v2403
        %v4244 = vpop.f32.mrf.mxu0
        %v4245 = vadd.f32 %v3986, %v4244
        %v4246 = vpop.f32.mrf.mxu0
        %v4247 = vadd.f32 %v3988, %v4246
        %4248 = vmatmul.bf16.gmra.mxu0 %v2411
        %v4249 = vpop.f32.mrf.mxu0
        %v4250 = vadd.f32 %v3991, %v4249
        %v4251 = vpop.f32.mrf.mxu0
        %v4252 = vadd.f32 %v3993, %v4251
        %4253 = vmatmul.bf16.gmra.mxu0 %v2419
        %v4254 = vpop.f32.mrf.mxu0
        %v4255 = vadd.f32 %v3996, %v4254
        %v4256 = vpop.f32.mrf.mxu0
        %v4257 = vadd.f32 %v3998, %v4256
        %4258 = vmatmul.bf16.gmra.mxu0 %v2427
        %v4259 = vpop.f32.mrf.mxu0
        %v4260 = vadd.f32 %v4001, %v4259
        %v4261 = vpop.f32.mrf.mxu0
        %v4262 = vadd.f32 %v4003, %v4261
        %4263 = vmatmul.bf16.gmra.mxu0 %v2435
        %v4264 = vpop.f32.mrf.mxu0
        %v4265 = vadd.f32 %v4006, %v4264
        %v4266 = vpop.f32.mrf.mxu0
        %v4267 = vadd.f32 %v4008, %v4266
        %4268 = vmatmul.bf16.gmra.mxu0 %v2443
        %v4269 = vpop.f32.mrf.mxu0
        %v4270 = vadd.f32 %v4011, %v4269
        %v4271 = vpop.f32.mrf.mxu0
        %v4272 = vadd.f32 %v4013, %v4271
        %4273 = vmatmul.bf16.gmra.mxu0 %v2451
        %v4274 = vpop.f32.mrf.mxu0
        %v4275 = vadd.f32 %v4016, %v4274
        %v4276 = vpop.f32.mrf.mxu0
        %v4277 = vadd.f32 %v4018, %v4276
        %4278 = vmatmul.bf16.gmra.mxu0 %v2459
        %v4279 = vpop.f32.mrf.mxu0
        %v4280 = vadd.f32 %v4021, %v4279
        %v4281 = vpop.f32.mrf.mxu0
        %v4282 = vadd.f32 %v4023, %v4281
        %4283 = vdwg.mxu0
        %4284 = vmatpush.bf16.msra.mxu0 %v3159
        %4285 = vmatpush.bf16.msra.mxu0 %v3158
        %4286 = vmatpush.bf16.msra.mxu0 %v3157
        %4287 = vmatpush.bf16.msra.mxu0 %v3156
        %4288 = vmatpush.bf16.msra.mxu0 %v3155
        %4289 = vmatpush.bf16.msra.mxu0 %v3154
        %4290 = vmatpush.bf16.msra.mxu0 %v3153
        %4291 = vmatpush.bf16.msra.mxu0 %v3152
        %4292 = vmatmul.bf16.gmra.mxu0 %v2068
        %v4293 = vpop.f32.mrf.mxu0
        %v4294 = vadd.f32 %v4035, %v4293
        %v4295 = vpop.f32.mrf.mxu0
        %v4296 = vadd.f32 %v4037, %v4295
        %4297 = vmatmul.bf16.gmra.mxu0 %v2076
        %v4298 = vpop.f32.mrf.mxu0
        %v4299 = vadd.f32 %v4040, %v4298
        %v4300 = vpop.f32.mrf.mxu0
        %v4301 = vadd.f32 %v4042, %v4300
        %4302 = vmatmul.bf16.gmra.mxu0 %v2084
        %v4303 = vpop.f32.mrf.mxu0
        %v4304 = vadd.f32 %v4045, %v4303
        %v4305 = vpop.f32.mrf.mxu0
        %v4306 = vadd.f32 %v4047, %v4305
        %4307 = vmatmul.bf16.gmra.mxu0 %v2092
        %v4308 = vpop.f32.mrf.mxu0
        %v4309 = vadd.f32 %v4050, %v4308
        %v4310 = vpop.f32.mrf.mxu0
        %v4311 = vadd.f32 %v4052, %v4310
        %4312 = vmatmul.bf16.gmra.mxu0 %v2100
        %v4313 = vpop.f32.mrf.mxu0
        %v4314 = vadd.f32 %v4055, %v4313
        %v4315 = vpop.f32.mrf.mxu0
        %v4316 = vadd.f32 %v4057, %v4315
        %4317 = vmatmul.bf16.gmra.mxu0 %v2108
        %v4318 = vpop.f32.mrf.mxu0
        %v4319 = vadd.f32 %v4060, %v4318
        %v4320 = vpop.f32.mrf.mxu0
        %v4321 = vadd.f32 %v4062, %v4320
        %4322 = vmatmul.bf16.gmra.mxu0 %v2116
        %v4323 = vpop.f32.mrf.mxu0
        %v4324 = vadd.f32 %v4065, %v4323
        %v4325 = vpop.f32.mrf.mxu0
        %v4326 = vadd.f32 %v4067, %v4325
        %4327 = vmatmul.bf16.gmra.mxu0 %v2124
        %v4328 = vpop.f32.mrf.mxu0
        %v4329 = vadd.f32 %v4070, %v4328
        %v4330 = vpop.f32.mrf.mxu0
        %v4331 = vadd.f32 %v4072, %v4330
        %4332 = vmatmul.bf16.gmra.mxu0 %v2132
        %v4333 = vpop.f32.mrf.mxu0
        %v4334 = vadd.f32 %v4075, %v4333
        %v4335 = vpop.f32.mrf.mxu0
        %v4336 = vadd.f32 %v4077, %v4335
        %4337 = vmatmul.bf16.gmra.mxu0 %v2140
        %v4338 = vpop.f32.mrf.mxu0
        %v4339 = vadd.f32 %v4080, %v4338
        %v4340 = vpop.f32.mrf.mxu0
        %v4341 = vadd.f32 %v4082, %v4340
        %4342 = vmatmul.bf16.gmra.mxu0 %v2148
        %v4343 = vpop.f32.mrf.mxu0
        %v4344 = vadd.f32 %v4085, %v4343
        %v4345 = vpop.f32.mrf.mxu0
        %v4346 = vadd.f32 %v4087, %v4345
        %4347 = vmatmul.bf16.gmra.mxu0 %v2156
        %v4348 = vpop.f32.mrf.mxu0
        %v4349 = vadd.f32 %v4090, %v4348
        %v4350 = vpop.f32.mrf.mxu0
        %v4351 = vadd.f32 %v4092, %v4350
        %4352 = vmatmul.bf16.gmra.mxu0 %v2164
        %v4353 = vpop.f32.mrf.mxu0
        %v4354 = vadd.f32 %v4095, %v4353
        %v4355 = vpop.f32.mrf.mxu0
        %v4356 = vadd.f32 %v4097, %v4355
        %4357 = vmatmul.bf16.gmra.mxu0 %v2172
        %v4358 = vpop.f32.mrf.mxu0
        %v4359 = vadd.f32 %v4100, %v4358
        %v4360 = vpop.f32.mrf.mxu0
        %v4361 = vadd.f32 %v4102, %v4360
        %4362 = vmatmul.bf16.gmra.mxu0 %v2180
        %v4363 = vpop.f32.mrf.mxu0
        %v4364 = vadd.f32 %v4105, %v4363
        %v4365 = vpop.f32.mrf.mxu0
        %v4366 = vadd.f32 %v4107, %v4365
        %4367 = vmatmul.bf16.gmra.mxu0 %v2188
        %v4368 = vpop.f32.mrf.mxu0
        %v4369 = vadd.f32 %v4110, %v4368
        %v4370 = vpop.f32.mrf.mxu0
        %v4371 = vadd.f32 %v4112, %v4370
        %4372 = vmatmul.bf16.gmra.mxu0 %v2196
        %v4373 = vpop.f32.mrf.mxu0
        %v4374 = vadd.f32 %v4115, %v4373
        %v4375 = vpop.f32.mrf.mxu0
        %v4376 = vadd.f32 %v4117, %v4375
        %4377 = vmatmul.bf16.gmra.mxu0 %v2204
        %v4378 = vpop.f32.mrf.mxu0
        %v4379 = vadd.f32 %v4120, %v4378
        %v4380 = vpop.f32.mrf.mxu0
        %v4381 = vadd.f32 %v4122, %v4380
        %4382 = vmatmul.bf16.gmra.mxu0 %v2212
        %v4383 = vpop.f32.mrf.mxu0
        %v4384 = vadd.f32 %v4125, %v4383
        %v4385 = vpop.f32.mrf.mxu0
        %v4386 = vadd.f32 %v4127, %v4385
        %4387 = vmatmul.bf16.gmra.mxu0 %v2220
        %v4388 = vpop.f32.mrf.mxu0
        %v4389 = vadd.f32 %v4130, %v4388
        %v4390 = vpop.f32.mrf.mxu0
        %v4391 = vadd.f32 %v4132, %v4390
        %4392 = vmatmul.bf16.gmra.mxu0 %v2228
        %v4393 = vpop.f32.mrf.mxu0
        %v4394 = vadd.f32 %v4135, %v4393
        %v4395 = vpop.f32.mrf.mxu0
        %v4396 = vadd.f32 %v4137, %v4395
        %4397 = vmatmul.bf16.gmra.mxu0 %v2236
        %v4398 = vpop.f32.mrf.mxu0
        %v4399 = vadd.f32 %v4140, %v4398
        %v4400 = vpop.f32.mrf.mxu0
        %v4401 = vadd.f32 %v4142, %v4400
        %4402 = vmatmul.bf16.gmra.mxu0 %v2244
        %v4403 = vpop.f32.mrf.mxu0
        %v4404 = vadd.f32 %v4145, %v4403
        %v4405 = vpop.f32.mrf.mxu0
        %v4406 = vadd.f32 %v4147, %v4405
        %4407 = vmatmul.bf16.gmra.mxu0 %v2252
        %v4408 = vpop.f32.mrf.mxu0
        %v4409 = vadd.f32 %v4150, %v4408
        %v4410 = vpop.f32.mrf.mxu0
        %v4411 = vadd.f32 %v4152, %v4410
        %4412 = vmatmul.bf16.gmra.mxu0 %v2260
        %v4413 = vpop.f32.mrf.mxu0
        %v4414 = vadd.f32 %v4155, %v4413
        %v4415 = vpop.f32.mrf.mxu0
        %v4416 = vadd.f32 %v4157, %v4415
        %4417 = vmatmul.bf16.gmra.mxu0 %v2268
        %v4418 = vpop.f32.mrf.mxu0
        %v4419 = vadd.f32 %v4160, %v4418
        %v4420 = vpop.f32.mrf.mxu0
        %v4421 = vadd.f32 %v4162, %v4420
        %4422 = vmatmul.bf16.gmra.mxu0 %v2276
        %v4423 = vpop.f32.mrf.mxu0
        %v4424 = vadd.f32 %v4165, %v4423
        %v4425 = vpop.f32.mrf.mxu0
        %v4426 = vadd.f32 %v4167, %v4425
        %4427 = vmatmul.bf16.gmra.mxu0 %v2284
        %v4428 = vpop.f32.mrf.mxu0
        %v4429 = vadd.f32 %v4170, %v4428
        %v4430 = vpop.f32.mrf.mxu0
        %v4431 = vadd.f32 %v4172, %v4430
        %4432 = vmatmul.bf16.gmra.mxu0 %v2292
        %v4433 = vpop.f32.mrf.mxu0
        %v4434 = vadd.f32 %v4175, %v4433
        %v4435 = vpop.f32.mrf.mxu0
        %v4436 = vadd.f32 %v4177, %v4435
        %4437 = vmatmul.bf16.gmra.mxu0 %v2300
        %v4438 = vpop.f32.mrf.mxu0
        %v4439 = vadd.f32 %v4180, %v4438
        %v4440 = vpop.f32.mrf.mxu0
        %v4441 = vadd.f32 %v4182, %v4440
        %4442 = vmatmul.bf16.gmra.mxu0 %v2308
        %v4443 = vpop.f32.mrf.mxu0
        %v4444 = vadd.f32 %v4185, %v4443
        %v4445 = vpop.f32.mrf.mxu0
        %v4446 = vadd.f32 %v4187, %v4445
        %4447 = vmatmul.bf16.gmra.mxu0 %v2316
        %v4448 = vpop.f32.mrf.mxu0
        %v4449 = vadd.f32 %v4190, %v4448
        %v4450 = vpop.f32.mrf.mxu0
        %v4451 = vadd.f32 %v4192, %v4450
        %4452 = vmatmul.bf16.gmra.mxu0 %v2324
        %v4453 = vpop.f32.mrf.mxu0
        %v4454 = vadd.f32 %v4195, %v4453
        %v4455 = vpop.f32.mrf.mxu0
        %v4456 = vadd.f32 %v4197, %v4455
        %4457 = vmatmul.bf16.gmra.mxu0 %v2332
        %v4458 = vpop.f32.mrf.mxu0
        %v4459 = vadd.f32 %v4200, %v4458
        %v4460 = vpop.f32.mrf.mxu0
        %v4461 = vadd.f32 %v4202, %v4460
        %4462 = vmatmul.bf16.gmra.mxu0 %v2340
        %v4463 = vpop.f32.mrf.mxu0
        %v4464 = vadd.f32 %v4205, %v4463
        %v4465 = vpop.f32.mrf.mxu0
        %v4466 = vadd.f32 %v4207, %v4465
        %4467 = vmatmul.bf16.gmra.mxu0 %v2348
        %v4468 = vpop.f32.mrf.mxu0
        %v4469 = vadd.f32 %v4210, %v4468
        %v4470 = vpop.f32.mrf.mxu0
        %v4471 = vadd.f32 %v4212, %v4470
        %4472 = vmatmul.bf16.gmra.mxu0 %v2356
        %v4473 = vpop.f32.mrf.mxu0
        %v4474 = vadd.f32 %v4215, %v4473
        %v4475 = vpop.f32.mrf.mxu0
        %v4476 = vadd.f32 %v4217, %v4475
        %4477 = vmatmul.bf16.gmra.mxu0 %v2364
        %v4478 = vpop.f32.mrf.mxu0
        %v4479 = vadd.f32 %v4220, %v4478
        %v4480 = vpop.f32.mrf.mxu0
        %v4481 = vadd.f32 %v4222, %v4480
        %4482 = vmatmul.bf16.gmra.mxu0 %v2372
        %v4483 = vpop.f32.mrf.mxu0
        %v4484 = vadd.f32 %v4225, %v4483
        %v4485 = vpop.f32.mrf.mxu0
        %v4486 = vadd.f32 %v4227, %v4485
        %4487 = vmatmul.bf16.gmra.mxu0 %v2380
        %v4488 = vpop.f32.mrf.mxu0
        %v4489 = vadd.f32 %v4230, %v4488
        %v4490 = vpop.f32.mrf.mxu0
        %v4491 = vadd.f32 %v4232, %v4490
        %4492 = vmatmul.bf16.gmra.mxu0 %v2388
        %v4493 = vpop.f32.mrf.mxu0
        %v4494 = vadd.f32 %v4235, %v4493
        %v4495 = vpop.f32.mrf.mxu0
        %v4496 = vadd.f32 %v4237, %v4495
        %4497 = vmatmul.bf16.gmra.mxu0 %v2396
        %v4498 = vpop.f32.mrf.mxu0
        %v4499 = vadd.f32 %v4240, %v4498
        %v4500 = vpop.f32.mrf.mxu0
        %v4501 = vadd.f32 %v4242, %v4500
        %4502 = vmatmul.bf16.gmra.mxu0 %v2404
        %v4503 = vpop.f32.mrf.mxu0
        %v4504 = vadd.f32 %v4245, %v4503
        %v4505 = vpop.f32.mrf.mxu0
        %v4506 = vadd.f32 %v4247, %v4505
        %4507 = vmatmul.bf16.gmra.mxu0 %v2412
        %v4508 = vpop.f32.mrf.mxu0
        %v4509 = vadd.f32 %v4250, %v4508
        %v4510 = vpop.f32.mrf.mxu0
        %v4511 = vadd.f32 %v4252, %v4510
        %4512 = vmatmul.bf16.gmra.mxu0 %v2420
        %v4513 = vpop.f32.mrf.mxu0
        %v4514 = vadd.f32 %v4255, %v4513
        %v4515 = vpop.f32.mrf.mxu0
        %v4516 = vadd.f32 %v4257, %v4515
        %4517 = vmatmul.bf16.gmra.mxu0 %v2428
        %v4518 = vpop.f32.mrf.mxu0
        %v4519 = vadd.f32 %v4260, %v4518
        %v4520 = vpop.f32.mrf.mxu0
        %v4521 = vadd.f32 %v4262, %v4520
        %4522 = vmatmul.bf16.gmra.mxu0 %v2436
        %v4523 = vpop.f32.mrf.mxu0
        %v4524 = vadd.f32 %v4265, %v4523
        %v4525 = vpop.f32.mrf.mxu0
        %v4526 = vadd.f32 %v4267, %v4525
        %4527 = vmatmul.bf16.gmra.mxu0 %v2444
        %v4528 = vpop.f32.mrf.mxu0
        %v4529 = vadd.f32 %v4270, %v4528
        %v4530 = vpop.f32.mrf.mxu0
        %v4531 = vadd.f32 %v4272, %v4530
        %4532 = vmatmul.bf16.gmra.mxu0 %v2452
        %v4533 = vpop.f32.mrf.mxu0
        %v4534 = vadd.f32 %v4275, %v4533
        %v4535 = vpop.f32.mrf.mxu0
        %v4536 = vadd.f32 %v4277, %v4535
        %4537 = vmatmul.bf16.gmra.mxu0 %v2460
        %v4538 = vpop.f32.mrf.mxu0
        %v4539 = vadd.f32 %v4280, %v4538
        %v4540 = vpop.f32.mrf.mxu0
        %v4541 = vadd.f32 %v4282, %v4540
        %4542 = vdwg.mxu0
        %4543 = vmatpush.bf16.msra.mxu0 %v3167
        %4544 = vmatpush.bf16.msra.mxu0 %v3166
        %4545 = vmatpush.bf16.msra.mxu0 %v3165
        %4546 = vmatpush.bf16.msra.mxu0 %v3164
        %4547 = vmatpush.bf16.msra.mxu0 %v3163
        %4548 = vmatpush.bf16.msra.mxu0 %v3162
        %4549 = vmatpush.bf16.msra.mxu0 %v3161
        %4550 = vmatpush.bf16.msra.mxu0 %v3160
        %4551 = vmatmul.bf16.gmra.mxu0 %v2069
        %v4552 = vpop.f32.mrf.mxu0
        %v4553 = vadd.f32 %v4294, %v4552
        %v4554 = vpop.f32.mrf.mxu0
        %v4555 = vadd.f32 %v4296, %v4554
        %4556 = vmatmul.bf16.gmra.mxu0 %v2077
        %v4557 = vpop.f32.mrf.mxu0
        %v4558 = vadd.f32 %v4299, %v4557
        %v4559 = vpop.f32.mrf.mxu0
        %v4560 = vadd.f32 %v4301, %v4559
        %4561 = vmatmul.bf16.gmra.mxu0 %v2085
        %v4562 = vpop.f32.mrf.mxu0
        %v4563 = vadd.f32 %v4304, %v4562
        %v4564 = vpop.f32.mrf.mxu0
        %v4565 = vadd.f32 %v4306, %v4564
        %4566 = vmatmul.bf16.gmra.mxu0 %v2093
        %v4567 = vpop.f32.mrf.mxu0
        %v4568 = vadd.f32 %v4309, %v4567
        %v4569 = vpop.f32.mrf.mxu0
        %v4570 = vadd.f32 %v4311, %v4569
        %4571 = vmatmul.bf16.gmra.mxu0 %v2101
        %v4572 = vpop.f32.mrf.mxu0
        %v4573 = vadd.f32 %v4314, %v4572
        %v4574 = vpop.f32.mrf.mxu0
        %v4575 = vadd.f32 %v4316, %v4574
        %4576 = vmatmul.bf16.gmra.mxu0 %v2109
        %v4577 = vpop.f32.mrf.mxu0
        %v4578 = vadd.f32 %v4319, %v4577
        %v4579 = vpop.f32.mrf.mxu0
        %v4580 = vadd.f32 %v4321, %v4579
        %4581 = vmatmul.bf16.gmra.mxu0 %v2117
        %v4582 = vpop.f32.mrf.mxu0
        %v4583 = vadd.f32 %v4324, %v4582
        %v4584 = vpop.f32.mrf.mxu0
        %v4585 = vadd.f32 %v4326, %v4584
        %4586 = vmatmul.bf16.gmra.mxu0 %v2125
        %v4587 = vpop.f32.mrf.mxu0
        %v4588 = vadd.f32 %v4329, %v4587
        %v4589 = vpop.f32.mrf.mxu0
        %v4590 = vadd.f32 %v4331, %v4589
        %4591 = vmatmul.bf16.gmra.mxu0 %v2133
        %v4592 = vpop.f32.mrf.mxu0
        %v4593 = vadd.f32 %v4334, %v4592
        %v4594 = vpop.f32.mrf.mxu0
        %v4595 = vadd.f32 %v4336, %v4594
        %4596 = vmatmul.bf16.gmra.mxu0 %v2141
        %v4597 = vpop.f32.mrf.mxu0
        %v4598 = vadd.f32 %v4339, %v4597
        %v4599 = vpop.f32.mrf.mxu0
        %v4600 = vadd.f32 %v4341, %v4599
        %4601 = vmatmul.bf16.gmra.mxu0 %v2149
        %v4602 = vpop.f32.mrf.mxu0
        %v4603 = vadd.f32 %v4344, %v4602
        %v4604 = vpop.f32.mrf.mxu0
        %v4605 = vadd.f32 %v4346, %v4604
        %4606 = vmatmul.bf16.gmra.mxu0 %v2157
        %v4607 = vpop.f32.mrf.mxu0
        %v4608 = vadd.f32 %v4349, %v4607
        %v4609 = vpop.f32.mrf.mxu0
        %v4610 = vadd.f32 %v4351, %v4609
        %4611 = vmatmul.bf16.gmra.mxu0 %v2165
        %v4612 = vpop.f32.mrf.mxu0
        %v4613 = vadd.f32 %v4354, %v4612
        %v4614 = vpop.f32.mrf.mxu0
        %v4615 = vadd.f32 %v4356, %v4614
        %4616 = vmatmul.bf16.gmra.mxu0 %v2173
        %v4617 = vpop.f32.mrf.mxu0
        %v4618 = vadd.f32 %v4359, %v4617
        %v4619 = vpop.f32.mrf.mxu0
        %v4620 = vadd.f32 %v4361, %v4619
        %4621 = vmatmul.bf16.gmra.mxu0 %v2181
        %v4622 = vpop.f32.mrf.mxu0
        %v4623 = vadd.f32 %v4364, %v4622
        %v4624 = vpop.f32.mrf.mxu0
        %v4625 = vadd.f32 %v4366, %v4624
        %4626 = vmatmul.bf16.gmra.mxu0 %v2189
        %v4627 = vpop.f32.mrf.mxu0
        %v4628 = vadd.f32 %v4369, %v4627
        %v4629 = vpop.f32.mrf.mxu0
        %v4630 = vadd.f32 %v4371, %v4629
        %4631 = vmatmul.bf16.gmra.mxu0 %v2197
        %v4632 = vpop.f32.mrf.mxu0
        %v4633 = vadd.f32 %v4374, %v4632
        %v4634 = vpop.f32.mrf.mxu0
        %v4635 = vadd.f32 %v4376, %v4634
        %4636 = vmatmul.bf16.gmra.mxu0 %v2205
        %v4637 = vpop.f32.mrf.mxu0
        %v4638 = vadd.f32 %v4379, %v4637
        %v4639 = vpop.f32.mrf.mxu0
        %v4640 = vadd.f32 %v4381, %v4639
        %4641 = vmatmul.bf16.gmra.mxu0 %v2213
        %v4642 = vpop.f32.mrf.mxu0
        %v4643 = vadd.f32 %v4384, %v4642
        %v4644 = vpop.f32.mrf.mxu0
        %v4645 = vadd.f32 %v4386, %v4644
        %4646 = vmatmul.bf16.gmra.mxu0 %v2221
        %v4647 = vpop.f32.mrf.mxu0
        %v4648 = vadd.f32 %v4389, %v4647
        %v4649 = vpop.f32.mrf.mxu0
        %v4650 = vadd.f32 %v4391, %v4649
        %4651 = vmatmul.bf16.gmra.mxu0 %v2229
        %v4652 = vpop.f32.mrf.mxu0
        %v4653 = vadd.f32 %v4394, %v4652
        %v4654 = vpop.f32.mrf.mxu0
        %v4655 = vadd.f32 %v4396, %v4654
        %4656 = vmatmul.bf16.gmra.mxu0 %v2237
        %v4657 = vpop.f32.mrf.mxu0
        %v4658 = vadd.f32 %v4399, %v4657
        %v4659 = vpop.f32.mrf.mxu0
        %v4660 = vadd.f32 %v4401, %v4659
        %4661 = vmatmul.bf16.gmra.mxu0 %v2245
        %v4662 = vpop.f32.mrf.mxu0
        %v4663 = vadd.f32 %v4404, %v4662
        %v4664 = vpop.f32.mrf.mxu0
        %v4665 = vadd.f32 %v4406, %v4664
        %4666 = vmatmul.bf16.gmra.mxu0 %v2253
        %v4667 = vpop.f32.mrf.mxu0
        %v4668 = vadd.f32 %v4409, %v4667
        %v4669 = vpop.f32.mrf.mxu0
        %v4670 = vadd.f32 %v4411, %v4669
        %4671 = vmatmul.bf16.gmra.mxu0 %v2261
        %v4672 = vpop.f32.mrf.mxu0
        %v4673 = vadd.f32 %v4414, %v4672
        %v4674 = vpop.f32.mrf.mxu0
        %v4675 = vadd.f32 %v4416, %v4674
        %4676 = vmatmul.bf16.gmra.mxu0 %v2269
        %v4677 = vpop.f32.mrf.mxu0
        %v4678 = vadd.f32 %v4419, %v4677
        %v4679 = vpop.f32.mrf.mxu0
        %v4680 = vadd.f32 %v4421, %v4679
        %4681 = vmatmul.bf16.gmra.mxu0 %v2277
        %v4682 = vpop.f32.mrf.mxu0
        %v4683 = vadd.f32 %v4424, %v4682
        %v4684 = vpop.f32.mrf.mxu0
        %v4685 = vadd.f32 %v4426, %v4684
        %4686 = vmatmul.bf16.gmra.mxu0 %v2285
        %v4687 = vpop.f32.mrf.mxu0
        %v4688 = vadd.f32 %v4429, %v4687
        %v4689 = vpop.f32.mrf.mxu0
        %v4690 = vadd.f32 %v4431, %v4689
        %4691 = vmatmul.bf16.gmra.mxu0 %v2293
        %v4692 = vpop.f32.mrf.mxu0
        %v4693 = vadd.f32 %v4434, %v4692
        %v4694 = vpop.f32.mrf.mxu0
        %v4695 = vadd.f32 %v4436, %v4694
        %4696 = vmatmul.bf16.gmra.mxu0 %v2301
        %v4697 = vpop.f32.mrf.mxu0
        %v4698 = vadd.f32 %v4439, %v4697
        %v4699 = vpop.f32.mrf.mxu0
        %v4700 = vadd.f32 %v4441, %v4699
        %4701 = vmatmul.bf16.gmra.mxu0 %v2309
        %v4702 = vpop.f32.mrf.mxu0
        %v4703 = vadd.f32 %v4444, %v4702
        %v4704 = vpop.f32.mrf.mxu0
        %v4705 = vadd.f32 %v4446, %v4704
        %4706 = vmatmul.bf16.gmra.mxu0 %v2317
        %v4707 = vpop.f32.mrf.mxu0
        %v4708 = vadd.f32 %v4449, %v4707
        %v4709 = vpop.f32.mrf.mxu0
        %v4710 = vadd.f32 %v4451, %v4709
        %4711 = vmatmul.bf16.gmra.mxu0 %v2325
        %v4712 = vpop.f32.mrf.mxu0
        %v4713 = vadd.f32 %v4454, %v4712
        %v4714 = vpop.f32.mrf.mxu0
        %v4715 = vadd.f32 %v4456, %v4714
        %4716 = vmatmul.bf16.gmra.mxu0 %v2333
        %v4717 = vpop.f32.mrf.mxu0
        %v4718 = vadd.f32 %v4459, %v4717
        %v4719 = vpop.f32.mrf.mxu0
        %v4720 = vadd.f32 %v4461, %v4719
        %4721 = vmatmul.bf16.gmra.mxu0 %v2341
        %v4722 = vpop.f32.mrf.mxu0
        %v4723 = vadd.f32 %v4464, %v4722
        %v4724 = vpop.f32.mrf.mxu0
        %v4725 = vadd.f32 %v4466, %v4724
        %4726 = vmatmul.bf16.gmra.mxu0 %v2349
        %v4727 = vpop.f32.mrf.mxu0
        %v4728 = vadd.f32 %v4469, %v4727
        %v4729 = vpop.f32.mrf.mxu0
        %v4730 = vadd.f32 %v4471, %v4729
        %4731 = vmatmul.bf16.gmra.mxu0 %v2357
        %v4732 = vpop.f32.mrf.mxu0
        %v4733 = vadd.f32 %v4474, %v4732
        %v4734 = vpop.f32.mrf.mxu0
        %v4735 = vadd.f32 %v4476, %v4734
        %4736 = vmatmul.bf16.gmra.mxu0 %v2365
        %v4737 = vpop.f32.mrf.mxu0
        %v4738 = vadd.f32 %v4479, %v4737
        %v4739 = vpop.f32.mrf.mxu0
        %v4740 = vadd.f32 %v4481, %v4739
        %4741 = vmatmul.bf16.gmra.mxu0 %v2373
        %v4742 = vpop.f32.mrf.mxu0
        %v4743 = vadd.f32 %v4484, %v4742
        %v4744 = vpop.f32.mrf.mxu0
        %v4745 = vadd.f32 %v4486, %v4744
        %4746 = vmatmul.bf16.gmra.mxu0 %v2381
        %v4747 = vpop.f32.mrf.mxu0
        %v4748 = vadd.f32 %v4489, %v4747
        %v4749 = vpop.f32.mrf.mxu0
        %v4750 = vadd.f32 %v4491, %v4749
        %4751 = vmatmul.bf16.gmra.mxu0 %v2389
        %v4752 = vpop.f32.mrf.mxu0
        %v4753 = vadd.f32 %v4494, %v4752
        %v4754 = vpop.f32.mrf.mxu0
        %v4755 = vadd.f32 %v4496, %v4754
        %4756 = vmatmul.bf16.gmra.mxu0 %v2397
        %v4757 = vpop.f32.mrf.mxu0
        %v4758 = vadd.f32 %v4499, %v4757
        %v4759 = vpop.f32.mrf.mxu0
        %v4760 = vadd.f32 %v4501, %v4759
        %4761 = vmatmul.bf16.gmra.mxu0 %v2405
        %v4762 = vpop.f32.mrf.mxu0
        %v4763 = vadd.f32 %v4504, %v4762
        %v4764 = vpop.f32.mrf.mxu0
        %v4765 = vadd.f32 %v4506, %v4764
        %4766 = vmatmul.bf16.gmra.mxu0 %v2413
        %v4767 = vpop.f32.mrf.mxu0
        %v4768 = vadd.f32 %v4509, %v4767
        %v4769 = vpop.f32.mrf.mxu0
        %v4770 = vadd.f32 %v4511, %v4769
        %4771 = vmatmul.bf16.gmra.mxu0 %v2421
        %v4772 = vpop.f32.mrf.mxu0
        %v4773 = vadd.f32 %v4514, %v4772
        %v4774 = vpop.f32.mrf.mxu0
        %v4775 = vadd.f32 %v4516, %v4774
        %4776 = vmatmul.bf16.gmra.mxu0 %v2429
        %v4777 = vpop.f32.mrf.mxu0
        %v4778 = vadd.f32 %v4519, %v4777
        %v4779 = vpop.f32.mrf.mxu0
        %v4780 = vadd.f32 %v4521, %v4779
        %4781 = vmatmul.bf16.gmra.mxu0 %v2437
        %v4782 = vpop.f32.mrf.mxu0
        %v4783 = vadd.f32 %v4524, %v4782
        %v4784 = vpop.f32.mrf.mxu0
        %v4785 = vadd.f32 %v4526, %v4784
        %4786 = vmatmul.bf16.gmra.mxu0 %v2445
        %v4787 = vpop.f32.mrf.mxu0
        %v4788 = vadd.f32 %v4529, %v4787
        %v4789 = vpop.f32.mrf.mxu0
        %v4790 = vadd.f32 %v4531, %v4789
        %4791 = vmatmul.bf16.gmra.mxu0 %v2453
        %v4792 = vpop.f32.mrf.mxu0
        %v4793 = vadd.f32 %v4534, %v4792
        %v4794 = vpop.f32.mrf.mxu0
        %v4795 = vadd.f32 %v4536, %v4794
        %4796 = vmatmul.bf16.gmra.mxu0 %v2461
        %v4797 = vpop.f32.mrf.mxu0
        %v4798 = vadd.f32 %v4539, %v4797
        %v4799 = vpop.f32.mrf.mxu0
        %v4800 = vadd.f32 %v4541, %v4799
        %4801 = vdwg.mxu0
        %4802 = vmatpush.bf16.msra.mxu0 %v3175
        %4803 = vmatpush.bf16.msra.mxu0 %v3174
        %4804 = vmatpush.bf16.msra.mxu0 %v3173
        %4805 = vmatpush.bf16.msra.mxu0 %v3172
        %4806 = vmatpush.bf16.msra.mxu0 %v3171
        %4807 = vmatpush.bf16.msra.mxu0 %v3170
        %4808 = vmatpush.bf16.msra.mxu0 %v3169
        %4809 = vmatpush.bf16.msra.mxu0 %v3168
        %4810 = vmatmul.bf16.gmra.mxu0 %v2070
        %v4811 = vpop.f32.mrf.mxu0
        %v4812 = vadd.f32 %v4553, %v4811
        %v4813 = vpop.f32.mrf.mxu0
        %v4814 = vadd.f32 %v4555, %v4813
        %4815 = vmatmul.bf16.gmra.mxu0 %v2078
        %v4816 = vpop.f32.mrf.mxu0
        %v4817 = vadd.f32 %v4558, %v4816
        %v4818 = vpop.f32.mrf.mxu0
        %v4819 = vadd.f32 %v4560, %v4818
        %4820 = vmatmul.bf16.gmra.mxu0 %v2086
        %v4821 = vpop.f32.mrf.mxu0
        %v4822 = vadd.f32 %v4563, %v4821
        %v4823 = vpop.f32.mrf.mxu0
        %v4824 = vadd.f32 %v4565, %v4823
        %4825 = vmatmul.bf16.gmra.mxu0 %v2094
        %v4826 = vpop.f32.mrf.mxu0
        %v4827 = vadd.f32 %v4568, %v4826
        %v4828 = vpop.f32.mrf.mxu0
        %v4829 = vadd.f32 %v4570, %v4828
        %4830 = vmatmul.bf16.gmra.mxu0 %v2102
        %v4831 = vpop.f32.mrf.mxu0
        %v4832 = vadd.f32 %v4573, %v4831
        %v4833 = vpop.f32.mrf.mxu0
        %v4834 = vadd.f32 %v4575, %v4833
        %4835 = vmatmul.bf16.gmra.mxu0 %v2110
        %v4836 = vpop.f32.mrf.mxu0
        %v4837 = vadd.f32 %v4578, %v4836
        %v4838 = vpop.f32.mrf.mxu0
        %v4839 = vadd.f32 %v4580, %v4838
        %4840 = vmatmul.bf16.gmra.mxu0 %v2118
        %v4841 = vpop.f32.mrf.mxu0
        %v4842 = vadd.f32 %v4583, %v4841
        %v4843 = vpop.f32.mrf.mxu0
        %v4844 = vadd.f32 %v4585, %v4843
        %4845 = vmatmul.bf16.gmra.mxu0 %v2126
        %v4846 = vpop.f32.mrf.mxu0
        %v4847 = vadd.f32 %v4588, %v4846
        %v4848 = vpop.f32.mrf.mxu0
        %v4849 = vadd.f32 %v4590, %v4848
        %4850 = vmatmul.bf16.gmra.mxu0 %v2134
        %v4851 = vpop.f32.mrf.mxu0
        %v4852 = vadd.f32 %v4593, %v4851
        %v4853 = vpop.f32.mrf.mxu0
        %v4854 = vadd.f32 %v4595, %v4853
        %4855 = vmatmul.bf16.gmra.mxu0 %v2142
        %v4856 = vpop.f32.mrf.mxu0
        %v4857 = vadd.f32 %v4598, %v4856
        %v4858 = vpop.f32.mrf.mxu0
        %v4859 = vadd.f32 %v4600, %v4858
        %4860 = vmatmul.bf16.gmra.mxu0 %v2150
        %v4861 = vpop.f32.mrf.mxu0
        %v4862 = vadd.f32 %v4603, %v4861
        %v4863 = vpop.f32.mrf.mxu0
        %v4864 = vadd.f32 %v4605, %v4863
        %4865 = vmatmul.bf16.gmra.mxu0 %v2158
        %v4866 = vpop.f32.mrf.mxu0
        %v4867 = vadd.f32 %v4608, %v4866
        %v4868 = vpop.f32.mrf.mxu0
        %v4869 = vadd.f32 %v4610, %v4868
        %4870 = vmatmul.bf16.gmra.mxu0 %v2166
        %v4871 = vpop.f32.mrf.mxu0
        %v4872 = vadd.f32 %v4613, %v4871
        %v4873 = vpop.f32.mrf.mxu0
        %v4874 = vadd.f32 %v4615, %v4873
        %4875 = vmatmul.bf16.gmra.mxu0 %v2174
        %v4876 = vpop.f32.mrf.mxu0
        %v4877 = vadd.f32 %v4618, %v4876
        %v4878 = vpop.f32.mrf.mxu0
        %v4879 = vadd.f32 %v4620, %v4878
        %4880 = vmatmul.bf16.gmra.mxu0 %v2182
        %v4881 = vpop.f32.mrf.mxu0
        %v4882 = vadd.f32 %v4623, %v4881
        %v4883 = vpop.f32.mrf.mxu0
        %v4884 = vadd.f32 %v4625, %v4883
        %4885 = vmatmul.bf16.gmra.mxu0 %v2190
        %v4886 = vpop.f32.mrf.mxu0
        %v4887 = vadd.f32 %v4628, %v4886
        %v4888 = vpop.f32.mrf.mxu0
        %v4889 = vadd.f32 %v4630, %v4888
        %4890 = vmatmul.bf16.gmra.mxu0 %v2198
        %v4891 = vpop.f32.mrf.mxu0
        %v4892 = vadd.f32 %v4633, %v4891
        %v4893 = vpop.f32.mrf.mxu0
        %v4894 = vadd.f32 %v4635, %v4893
        %4895 = vmatmul.bf16.gmra.mxu0 %v2206
        %v4896 = vpop.f32.mrf.mxu0
        %v4897 = vadd.f32 %v4638, %v4896
        %v4898 = vpop.f32.mrf.mxu0
        %v4899 = vadd.f32 %v4640, %v4898
        %4900 = vmatmul.bf16.gmra.mxu0 %v2214
        %v4901 = vpop.f32.mrf.mxu0
        %v4902 = vadd.f32 %v4643, %v4901
        %v4903 = vpop.f32.mrf.mxu0
        %v4904 = vadd.f32 %v4645, %v4903
        %4905 = vmatmul.bf16.gmra.mxu0 %v2222
        %v4906 = vpop.f32.mrf.mxu0
        %v4907 = vadd.f32 %v4648, %v4906
        %v4908 = vpop.f32.mrf.mxu0
        %v4909 = vadd.f32 %v4650, %v4908
        %4910 = vmatmul.bf16.gmra.mxu0 %v2230
        %v4911 = vpop.f32.mrf.mxu0
        %v4912 = vadd.f32 %v4653, %v4911
        %v4913 = vpop.f32.mrf.mxu0
        %v4914 = vadd.f32 %v4655, %v4913
        %4915 = vmatmul.bf16.gmra.mxu0 %v2238
        %v4916 = vpop.f32.mrf.mxu0
        %v4917 = vadd.f32 %v4658, %v4916
        %v4918 = vpop.f32.mrf.mxu0
        %v4919 = vadd.f32 %v4660, %v4918
        %4920 = vmatmul.bf16.gmra.mxu0 %v2246
        %v4921 = vpop.f32.mrf.mxu0
        %v4922 = vadd.f32 %v4663, %v4921
        %v4923 = vpop.f32.mrf.mxu0
        %v4924 = vadd.f32 %v4665, %v4923
        %4925 = vmatmul.bf16.gmra.mxu0 %v2254
        %v4926 = vpop.f32.mrf.mxu0
        %v4927 = vadd.f32 %v4668, %v4926
        %v4928 = vpop.f32.mrf.mxu0
        %v4929 = vadd.f32 %v4670, %v4928
        %4930 = vmatmul.bf16.gmra.mxu0 %v2262
        %v4931 = vpop.f32.mrf.mxu0
        %v4932 = vadd.f32 %v4673, %v4931
        %v4933 = vpop.f32.mrf.mxu0
        %v4934 = vadd.f32 %v4675, %v4933
        %4935 = vmatmul.bf16.gmra.mxu0 %v2270
        %v4936 = vpop.f32.mrf.mxu0
        %v4937 = vadd.f32 %v4678, %v4936
        %v4938 = vpop.f32.mrf.mxu0
        %v4939 = vadd.f32 %v4680, %v4938
        %4940 = vmatmul.bf16.gmra.mxu0 %v2278
        %v4941 = vpop.f32.mrf.mxu0
        %v4942 = vadd.f32 %v4683, %v4941
        %v4943 = vpop.f32.mrf.mxu0
        %v4944 = vadd.f32 %v4685, %v4943
        %4945 = vmatmul.bf16.gmra.mxu0 %v2286
        %v4946 = vpop.f32.mrf.mxu0
        %v4947 = vadd.f32 %v4688, %v4946
        %v4948 = vpop.f32.mrf.mxu0
        %v4949 = vadd.f32 %v4690, %v4948
        %4950 = vmatmul.bf16.gmra.mxu0 %v2294
        %v4951 = vpop.f32.mrf.mxu0
        %v4952 = vadd.f32 %v4693, %v4951
        %v4953 = vpop.f32.mrf.mxu0
        %v4954 = vadd.f32 %v4695, %v4953
        %4955 = vmatmul.bf16.gmra.mxu0 %v2302
        %v4956 = vpop.f32.mrf.mxu0
        %v4957 = vadd.f32 %v4698, %v4956
        %v4958 = vpop.f32.mrf.mxu0
        %v4959 = vadd.f32 %v4700, %v4958
        %4960 = vmatmul.bf16.gmra.mxu0 %v2310
        %v4961 = vpop.f32.mrf.mxu0
        %v4962 = vadd.f32 %v4703, %v4961
        %v4963 = vpop.f32.mrf.mxu0
        %v4964 = vadd.f32 %v4705, %v4963
        %4965 = vmatmul.bf16.gmra.mxu0 %v2318
        %v4966 = vpop.f32.mrf.mxu0
        %v4967 = vadd.f32 %v4708, %v4966
        %v4968 = vpop.f32.mrf.mxu0
        %v4969 = vadd.f32 %v4710, %v4968
        %4970 = vmatmul.bf16.gmra.mxu0 %v2326
        %v4971 = vpop.f32.mrf.mxu0
        %v4972 = vadd.f32 %v4713, %v4971
        %v4973 = vpop.f32.mrf.mxu0
        %v4974 = vadd.f32 %v4715, %v4973
        %4975 = vmatmul.bf16.gmra.mxu0 %v2334
        %v4976 = vpop.f32.mrf.mxu0
        %v4977 = vadd.f32 %v4718, %v4976
        %v4978 = vpop.f32.mrf.mxu0
        %v4979 = vadd.f32 %v4720, %v4978
        %4980 = vmatmul.bf16.gmra.mxu0 %v2342
        %v4981 = vpop.f32.mrf.mxu0
        %v4982 = vadd.f32 %v4723, %v4981
        %v4983 = vpop.f32.mrf.mxu0
        %v4984 = vadd.f32 %v4725, %v4983
        %4985 = vmatmul.bf16.gmra.mxu0 %v2350
        %v4986 = vpop.f32.mrf.mxu0
        %v4987 = vadd.f32 %v4728, %v4986
        %v4988 = vpop.f32.mrf.mxu0
        %v4989 = vadd.f32 %v4730, %v4988
        %4990 = vmatmul.bf16.gmra.mxu0 %v2358
        %v4991 = vpop.f32.mrf.mxu0
        %v4992 = vadd.f32 %v4733, %v4991
        %v4993 = vpop.f32.mrf.mxu0
        %v4994 = vadd.f32 %v4735, %v4993
        %4995 = vmatmul.bf16.gmra.mxu0 %v2366
        %v4996 = vpop.f32.mrf.mxu0
        %v4997 = vadd.f32 %v4738, %v4996
        %v4998 = vpop.f32.mrf.mxu0
        %v4999 = vadd.f32 %v4740, %v4998
        %5000 = vmatmul.bf16.gmra.mxu0 %v2374
        %v5001 = vpop.f32.mrf.mxu0
        %v5002 = vadd.f32 %v4743, %v5001
        %v5003 = vpop.f32.mrf.mxu0
        %v5004 = vadd.f32 %v4745, %v5003
        %5005 = vmatmul.bf16.gmra.mxu0 %v2382
        %v5006 = vpop.f32.mrf.mxu0
        %v5007 = vadd.f32 %v4748, %v5006
        %v5008 = vpop.f32.mrf.mxu0
        %v5009 = vadd.f32 %v4750, %v5008
        %5010 = vmatmul.bf16.gmra.mxu0 %v2390
        %v5011 = vpop.f32.mrf.mxu0
        %v5012 = vadd.f32 %v4753, %v5011
        %v5013 = vpop.f32.mrf.mxu0
        %v5014 = vadd.f32 %v4755, %v5013
        %5015 = vmatmul.bf16.gmra.mxu0 %v2398
        %v5016 = vpop.f32.mrf.mxu0
        %v5017 = vadd.f32 %v4758, %v5016
        %v5018 = vpop.f32.mrf.mxu0
        %v5019 = vadd.f32 %v4760, %v5018
        %5020 = vmatmul.bf16.gmra.mxu0 %v2406
        %v5021 = vpop.f32.mrf.mxu0
        %v5022 = vadd.f32 %v4763, %v5021
        %v5023 = vpop.f32.mrf.mxu0
        %v5024 = vadd.f32 %v4765, %v5023
        %5025 = vmatmul.bf16.gmra.mxu0 %v2414
        %v5026 = vpop.f32.mrf.mxu0
        %v5027 = vadd.f32 %v4768, %v5026
        %v5028 = vpop.f32.mrf.mxu0
        %v5029 = vadd.f32 %v4770, %v5028
        %5030 = vmatmul.bf16.gmra.mxu0 %v2422
        %v5031 = vpop.f32.mrf.mxu0
        %v5032 = vadd.f32 %v4773, %v5031
        %v5033 = vpop.f32.mrf.mxu0
        %v5034 = vadd.f32 %v4775, %v5033
        %5035 = vmatmul.bf16.gmra.mxu0 %v2430
        %v5036 = vpop.f32.mrf.mxu0
        %v5037 = vadd.f32 %v4778, %v5036
        %v5038 = vpop.f32.mrf.mxu0
        %v5039 = vadd.f32 %v4780, %v5038
        %5040 = vmatmul.bf16.gmra.mxu0 %v2438
        %v5041 = vpop.f32.mrf.mxu0
        %v5042 = vadd.f32 %v4783, %v5041
        %v5043 = vpop.f32.mrf.mxu0
        %v5044 = vadd.f32 %v4785, %v5043
        %5045 = vmatmul.bf16.gmra.mxu0 %v2446
        %v5046 = vpop.f32.mrf.mxu0
        %v5047 = vadd.f32 %v4788, %v5046
        %v5048 = vpop.f32.mrf.mxu0
        %v5049 = vadd.f32 %v4790, %v5048
        %5050 = vmatmul.bf16.gmra.mxu0 %v2454
        %v5051 = vpop.f32.mrf.mxu0
        %v5052 = vadd.f32 %v4793, %v5051
        %v5053 = vpop.f32.mrf.mxu0
        %v5054 = vadd.f32 %v4795, %v5053
        %5055 = vmatmul.bf16.gmra.mxu0 %v2462
        %v5056 = vpop.f32.mrf.mxu0
        %v5057 = vadd.f32 %v4798, %v5056
        %v5058 = vpop.f32.mrf.mxu0
        %v5059 = vadd.f32 %v4800, %v5058
        %5060 = vdwg.mxu0
        %5061 = vmatpush.bf16.msra.mxu0 %v3183
        %5062 = vmatpush.bf16.msra.mxu0 %v3182
        %5063 = vmatpush.bf16.msra.mxu0 %v3181
        %5064 = vmatpush.bf16.msra.mxu0 %v3180
        %5065 = vmatpush.bf16.msra.mxu0 %v3179
        %5066 = vmatpush.bf16.msra.mxu0 %v3178
        %5067 = vmatpush.bf16.msra.mxu0 %v3177
        %5068 = vmatpush.bf16.msra.mxu0 %v3176
        %5069 = vmatmul.bf16.gmra.mxu0 %v2071
        %v5070 = vpop.f32.mrf.mxu0
        %v5071 = vadd.f32 %v4812, %v5070
        %v5072 = vpop.f32.mrf.mxu0
        %v5073 = vadd.f32 %v4814, %v5072
        %5074 = vmatmul.bf16.gmra.mxu0 %v2079
        %v5075 = vpop.f32.mrf.mxu0
        %v5076 = vadd.f32 %v4817, %v5075
        %v5077 = vpop.f32.mrf.mxu0
        %v5078 = vadd.f32 %v4819, %v5077
        %5079 = vmatmul.bf16.gmra.mxu0 %v2087
        %v5080 = vpop.f32.mrf.mxu0
        %v5081 = vadd.f32 %v4822, %v5080
        %v5082 = vpop.f32.mrf.mxu0
        %v5083 = vadd.f32 %v4824, %v5082
        %5084 = vmatmul.bf16.gmra.mxu0 %v2095
        %v5085 = vpop.f32.mrf.mxu0
        %v5086 = vadd.f32 %v4827, %v5085
        %v5087 = vpop.f32.mrf.mxu0
        %v5088 = vadd.f32 %v4829, %v5087
        %5089 = vmatmul.bf16.gmra.mxu0 %v2103
        %v5090 = vpop.f32.mrf.mxu0
        %v5091 = vadd.f32 %v4832, %v5090
        %v5092 = vpop.f32.mrf.mxu0
        %v5093 = vadd.f32 %v4834, %v5092
        %5094 = vmatmul.bf16.gmra.mxu0 %v2111
        %v5095 = vpop.f32.mrf.mxu0
        %v5096 = vadd.f32 %v4837, %v5095
        %v5097 = vpop.f32.mrf.mxu0
        %v5098 = vadd.f32 %v4839, %v5097
        %5099 = vmatmul.bf16.gmra.mxu0 %v2119
        %v5100 = vpop.f32.mrf.mxu0
        %v5101 = vadd.f32 %v4842, %v5100
        %v5102 = vpop.f32.mrf.mxu0
        %v5103 = vadd.f32 %v4844, %v5102
        %5104 = vmatmul.bf16.gmra.mxu0 %v2127
        %v5105 = vpop.f32.mrf.mxu0
        %v5106 = vadd.f32 %v4847, %v5105
        %v5107 = vpop.f32.mrf.mxu0
        %v5108 = vadd.f32 %v4849, %v5107
        %5109 = vmatmul.bf16.gmra.mxu0 %v2135
        %v5110 = vpop.f32.mrf.mxu0
        %v5111 = vadd.f32 %v4852, %v5110
        %v5112 = vpop.f32.mrf.mxu0
        %v5113 = vadd.f32 %v4854, %v5112
        %5114 = vmatmul.bf16.gmra.mxu0 %v2143
        %v5115 = vpop.f32.mrf.mxu0
        %v5116 = vadd.f32 %v4857, %v5115
        %v5117 = vpop.f32.mrf.mxu0
        %v5118 = vadd.f32 %v4859, %v5117
        %5119 = vmatmul.bf16.gmra.mxu0 %v2151
        %v5120 = vpop.f32.mrf.mxu0
        %v5121 = vadd.f32 %v4862, %v5120
        %v5122 = vpop.f32.mrf.mxu0
        %v5123 = vadd.f32 %v4864, %v5122
        %5124 = vmatmul.bf16.gmra.mxu0 %v2159
        %v5125 = vpop.f32.mrf.mxu0
        %v5126 = vadd.f32 %v4867, %v5125
        %v5127 = vpop.f32.mrf.mxu0
        %v5128 = vadd.f32 %v4869, %v5127
        %5129 = vmatmul.bf16.gmra.mxu0 %v2167
        %v5130 = vpop.f32.mrf.mxu0
        %v5131 = vadd.f32 %v4872, %v5130
        %v5132 = vpop.f32.mrf.mxu0
        %v5133 = vadd.f32 %v4874, %v5132
        %5134 = vmatmul.bf16.gmra.mxu0 %v2175
        %v5135 = vpop.f32.mrf.mxu0
        %v5136 = vadd.f32 %v4877, %v5135
        %v5137 = vpop.f32.mrf.mxu0
        %v5138 = vadd.f32 %v4879, %v5137
        %5139 = vmatmul.bf16.gmra.mxu0 %v2183
        %v5140 = vpop.f32.mrf.mxu0
        %v5141 = vadd.f32 %v4882, %v5140
        %v5142 = vpop.f32.mrf.mxu0
        %v5143 = vadd.f32 %v4884, %v5142
        %5144 = vmatmul.bf16.gmra.mxu0 %v2191
        %v5145 = vpop.f32.mrf.mxu0
        %v5146 = vadd.f32 %v4887, %v5145
        %v5147 = vpop.f32.mrf.mxu0
        %v5148 = vadd.f32 %v4889, %v5147
        %5149 = vmatmul.bf16.gmra.mxu0 %v2199
        %v5150 = vpop.f32.mrf.mxu0
        %v5151 = vadd.f32 %v4892, %v5150
        %v5152 = vpop.f32.mrf.mxu0
        %v5153 = vadd.f32 %v4894, %v5152
        %5154 = vmatmul.bf16.gmra.mxu0 %v2207
        %v5155 = vpop.f32.mrf.mxu0
        %v5156 = vadd.f32 %v4897, %v5155
        %v5157 = vpop.f32.mrf.mxu0
        %v5158 = vadd.f32 %v4899, %v5157
        %5159 = vmatmul.bf16.gmra.mxu0 %v2215
        %v5160 = vpop.f32.mrf.mxu0
        %v5161 = vadd.f32 %v4902, %v5160
        %v5162 = vpop.f32.mrf.mxu0
        %v5163 = vadd.f32 %v4904, %v5162
        %5164 = vmatmul.bf16.gmra.mxu0 %v2223
        %v5165 = vpop.f32.mrf.mxu0
        %v5166 = vadd.f32 %v4907, %v5165
        %v5167 = vpop.f32.mrf.mxu0
        %v5168 = vadd.f32 %v4909, %v5167
        %5169 = vmatmul.bf16.gmra.mxu0 %v2231
        %v5170 = vpop.f32.mrf.mxu0
        %v5171 = vadd.f32 %v4912, %v5170
        %v5172 = vpop.f32.mrf.mxu0
        %v5173 = vadd.f32 %v4914, %v5172
        %5174 = vmatmul.bf16.gmra.mxu0 %v2239
        %v5175 = vpop.f32.mrf.mxu0
        %v5176 = vadd.f32 %v4917, %v5175
        %v5177 = vpop.f32.mrf.mxu0
        %v5178 = vadd.f32 %v4919, %v5177
        %5179 = vmatmul.bf16.gmra.mxu0 %v2247
        %v5180 = vpop.f32.mrf.mxu0
        %v5181 = vadd.f32 %v4922, %v5180
        %v5182 = vpop.f32.mrf.mxu0
        %v5183 = vadd.f32 %v4924, %v5182
        %5184 = vmatmul.bf16.gmra.mxu0 %v2255
        %v5185 = vpop.f32.mrf.mxu0
        %v5186 = vadd.f32 %v4927, %v5185
        %v5187 = vpop.f32.mrf.mxu0
        %v5188 = vadd.f32 %v4929, %v5187
        %5189 = vmatmul.bf16.gmra.mxu0 %v2263
        %v5190 = vpop.f32.mrf.mxu0
        %v5191 = vadd.f32 %v4932, %v5190
        %v5192 = vpop.f32.mrf.mxu0
        %v5193 = vadd.f32 %v4934, %v5192
        %5194 = vmatmul.bf16.gmra.mxu0 %v2271
        %v5195 = vpop.f32.mrf.mxu0
        %v5196 = vadd.f32 %v4937, %v5195
        %v5197 = vpop.f32.mrf.mxu0
        %v5198 = vadd.f32 %v4939, %v5197
        %5199 = vmatmul.bf16.gmra.mxu0 %v2279
        %v5200 = vpop.f32.mrf.mxu0
        %v5201 = vadd.f32 %v4942, %v5200
        %v5202 = vpop.f32.mrf.mxu0
        %v5203 = vadd.f32 %v4944, %v5202
        %5204 = vmatmul.bf16.gmra.mxu0 %v2287
        %v5205 = vpop.f32.mrf.mxu0
        %v5206 = vadd.f32 %v4947, %v5205
        %v5207 = vpop.f32.mrf.mxu0
        %v5208 = vadd.f32 %v4949, %v5207
        %5209 = vmatmul.bf16.gmra.mxu0 %v2295
        %v5210 = vpop.f32.mrf.mxu0
        %v5211 = vadd.f32 %v4952, %v5210
        %v5212 = vpop.f32.mrf.mxu0
        %v5213 = vadd.f32 %v4954, %v5212
        %5214 = vmatmul.bf16.gmra.mxu0 %v2303
        %v5215 = vpop.f32.mrf.mxu0
        %v5216 = vadd.f32 %v4957, %v5215
        %v5217 = vpop.f32.mrf.mxu0
        %v5218 = vadd.f32 %v4959, %v5217
        %5219 = vmatmul.bf16.gmra.mxu0 %v2311
        %v5220 = vpop.f32.mrf.mxu0
        %v5221 = vadd.f32 %v4962, %v5220
        %v5222 = vpop.f32.mrf.mxu0
        %v5223 = vadd.f32 %v4964, %v5222
        %5224 = vmatmul.bf16.gmra.mxu0 %v2319
        %v5225 = vpop.f32.mrf.mxu0
        %v5226 = vadd.f32 %v4967, %v5225
        %v5227 = vpop.f32.mrf.mxu0
        %v5228 = vadd.f32 %v4969, %v5227
        %5229 = vmatmul.bf16.gmra.mxu0 %v2327
        %v5230 = vpop.f32.mrf.mxu0
        %v5231 = vadd.f32 %v4972, %v5230
        %v5232 = vpop.f32.mrf.mxu0
        %v5233 = vadd.f32 %v4974, %v5232
        %5234 = vmatmul.bf16.gmra.mxu0 %v2335
        %v5235 = vpop.f32.mrf.mxu0
        %v5236 = vadd.f32 %v4977, %v5235
        %v5237 = vpop.f32.mrf.mxu0
        %v5238 = vadd.f32 %v4979, %v5237
        %5239 = vmatmul.bf16.gmra.mxu0 %v2343
        %v5240 = vpop.f32.mrf.mxu0
        %v5241 = vadd.f32 %v4982, %v5240
        %v5242 = vpop.f32.mrf.mxu0
        %v5243 = vadd.f32 %v4984, %v5242
        %5244 = vmatmul.bf16.gmra.mxu0 %v2351
        %v5245 = vpop.f32.mrf.mxu0
        %v5246 = vadd.f32 %v4987, %v5245
        %v5247 = vpop.f32.mrf.mxu0
        %v5248 = vadd.f32 %v4989, %v5247
        %5249 = vmatmul.bf16.gmra.mxu0 %v2359
        %v5250 = vpop.f32.mrf.mxu0
        %v5251 = vadd.f32 %v4992, %v5250
        %v5252 = vpop.f32.mrf.mxu0
        %v5253 = vadd.f32 %v4994, %v5252
        %5254 = vmatmul.bf16.gmra.mxu0 %v2367
        %v5255 = vpop.f32.mrf.mxu0
        %v5256 = vadd.f32 %v4997, %v5255
        %v5257 = vpop.f32.mrf.mxu0
        %v5258 = vadd.f32 %v4999, %v5257
        %5259 = vmatmul.bf16.gmra.mxu0 %v2375
        %v5260 = vpop.f32.mrf.mxu0
        %v5261 = vadd.f32 %v5002, %v5260
        %v5262 = vpop.f32.mrf.mxu0
        %v5263 = vadd.f32 %v5004, %v5262
        %5264 = vmatmul.bf16.gmra.mxu0 %v2383
        %v5265 = vpop.f32.mrf.mxu0
        %v5266 = vadd.f32 %v5007, %v5265
        %v5267 = vpop.f32.mrf.mxu0
        %v5268 = vadd.f32 %v5009, %v5267
        %5269 = vmatmul.bf16.gmra.mxu0 %v2391
        %v5270 = vpop.f32.mrf.mxu0
        %v5271 = vadd.f32 %v5012, %v5270
        %v5272 = vpop.f32.mrf.mxu0
        %v5273 = vadd.f32 %v5014, %v5272
        %5274 = vmatmul.bf16.gmra.mxu0 %v2399
        %v5275 = vpop.f32.mrf.mxu0
        %v5276 = vadd.f32 %v5017, %v5275
        %v5277 = vpop.f32.mrf.mxu0
        %v5278 = vadd.f32 %v5019, %v5277
        %5279 = vmatmul.bf16.gmra.mxu0 %v2407
        %v5280 = vpop.f32.mrf.mxu0
        %v5281 = vadd.f32 %v5022, %v5280
        %v5282 = vpop.f32.mrf.mxu0
        %v5283 = vadd.f32 %v5024, %v5282
        %5284 = vmatmul.bf16.gmra.mxu0 %v2415
        %v5285 = vpop.f32.mrf.mxu0
        %v5286 = vadd.f32 %v5027, %v5285
        %v5287 = vpop.f32.mrf.mxu0
        %v5288 = vadd.f32 %v5029, %v5287
        %5289 = vmatmul.bf16.gmra.mxu0 %v2423
        %v5290 = vpop.f32.mrf.mxu0
        %v5291 = vadd.f32 %v5032, %v5290
        %v5292 = vpop.f32.mrf.mxu0
        %v5293 = vadd.f32 %v5034, %v5292
        %5294 = vmatmul.bf16.gmra.mxu0 %v2431
        %v5295 = vpop.f32.mrf.mxu0
        %v5296 = vadd.f32 %v5037, %v5295
        %v5297 = vpop.f32.mrf.mxu0
        %v5298 = vadd.f32 %v5039, %v5297
        %5299 = vmatmul.bf16.gmra.mxu0 %v2439
        %v5300 = vpop.f32.mrf.mxu0
        %v5301 = vadd.f32 %v5042, %v5300
        %v5302 = vpop.f32.mrf.mxu0
        %v5303 = vadd.f32 %v5044, %v5302
        %5304 = vmatmul.bf16.gmra.mxu0 %v2447
        %v5305 = vpop.f32.mrf.mxu0
        %v5306 = vadd.f32 %v5047, %v5305
        %v5307 = vpop.f32.mrf.mxu0
        %v5308 = vadd.f32 %v5049, %v5307
        %5309 = vmatmul.bf16.gmra.mxu0 %v2455
        %v5310 = vpop.f32.mrf.mxu0
        %v5311 = vadd.f32 %v5052, %v5310
        %v5312 = vpop.f32.mrf.mxu0
        %v5313 = vadd.f32 %v5054, %v5312
        %5314 = vmatmul.bf16.gmra.mxu0 %v2463
        %v5315 = vpop.f32.mrf.mxu0
        %v5316 = vadd.f32 %v5057, %v5315
        %v5317 = vpop.f32.mrf.mxu0
        %v5318 = vadd.f32 %v5059, %v5317
        %5319 = vdwg.mxu0
        %v5320 = vmax.f32 %v5071, 0.0
        %v5321 = vmax.f32 %v5073, 0.0
        %v5322 = vmax.f32 %v5076, 0.0
        %v5323 = vmax.f32 %v5078, 0.0
        %v5324 = vmax.f32 %v5081, 0.0
        %v5325 = vmax.f32 %v5083, 0.0
        %v5326 = vmax.f32 %v5086, 0.0
        %v5327 = vmax.f32 %v5088, 0.0
        %v5328 = vmax.f32 %v5091, 0.0
        %v5329 = vmax.f32 %v5093, 0.0
        %v5330 = vmax.f32 %v5096, 0.0
        %v5331 = vmax.f32 %v5098, 0.0
        %v5332 = vmax.f32 %v5101, 0.0
        %v5333 = vmax.f32 %v5103, 0.0
        %v5334 = vmax.f32 %v5106, 0.0
        %v5335 = vmax.f32 %v5108, 0.0
        %v5336 = vmax.f32 %v5111, 0.0
        %v5337 = vmax.f32 %v5113, 0.0
        %v5338 = vmax.f32 %v5116, 0.0
        %v5339 = vmax.f32 %v5118, 0.0
        %v5340 = vmax.f32 %v5121, 0.0
        %v5341 = vmax.f32 %v5123, 0.0
        %v5342 = vmax.f32 %v5126, 0.0
        %v5343 = vmax.f32 %v5128, 0.0
        %v5344 = vmax.f32 %v5131, 0.0
        %v5345 = vmax.f32 %v5133, 0.0
        %v5346 = vmax.f32 %v5136, 0.0
        %v5347 = vmax.f32 %v5138, 0.0
        %v5348 = vmax.f32 %v5141, 0.0
        %v5349 = vmax.f32 %v5143, 0.0
        %v5350 = vmax.f32 %v5146, 0.0
        %v5351 = vmax.f32 %v5148, 0.0
        %v5352 = vmax.f32 %v5151, 0.0
        %v5353 = vmax.f32 %v5153, 0.0
        %v5354 = vmax.f32 %v5156, 0.0
        %v5355 = vmax.f32 %v5158, 0.0
        %v5356 = vmax.f32 %v5161, 0.0
        %v5357 = vmax.f32 %v5163, 0.0
        %v5358 = vmax.f32 %v5166, 0.0
        %v5359 = vmax.f32 %v5168, 0.0
        %v5360 = vmax.f32 %v5171, 0.0
        %v5361 = vmax.f32 %v5173, 0.0
        %v5362 = vmax.f32 %v5176, 0.0
        %v5363 = vmax.f32 %v5178, 0.0
        %v5364 = vmax.f32 %v5181, 0.0
        %v5365 = vmax.f32 %v5183, 0.0
        %v5366 = vmax.f32 %v5186, 0.0
        %v5367 = vmax.f32 %v5188, 0.0
        %v5368 = vmax.f32 %v5191, 0.0
        %v5369 = vmax.f32 %v5193, 0.0
        %v5370 = vmax.f32 %v5196, 0.0
        %v5371 = vmax.f32 %v5198, 0.0
        %v5372 = vmax.f32 %v5201, 0.0
        %v5373 = vmax.f32 %v5203, 0.0
        %v5374 = vmax.f32 %v5206, 0.0
        %v5375 = vmax.f32 %v5208, 0.0
        %v5376 = vmax.f32 %v5211, 0.0
        %v5377 = vmax.f32 %v5213, 0.0
        %v5378 = vmax.f32 %v5216, 0.0
        %v5379 = vmax.f32 %v5218, 0.0
        %v5380 = vmax.f32 %v5221, 0.0
        %v5381 = vmax.f32 %v5223, 0.0
        %v5382 = vmax.f32 %v5226, 0.0
        %v5383 = vmax.f32 %v5228, 0.0
        %v5384 = vmax.f32 %v5231, 0.0
        %v5385 = vmax.f32 %v5233, 0.0
        %v5386 = vmax.f32 %v5236, 0.0
        %v5387 = vmax.f32 %v5238, 0.0
        %v5388 = vmax.f32 %v5241, 0.0
        %v5389 = vmax.f32 %v5243, 0.0
        %v5390 = vmax.f32 %v5246, 0.0
        %v5391 = vmax.f32 %v5248, 0.0
        %v5392 = vmax.f32 %v5251, 0.0
        %v5393 = vmax.f32 %v5253, 0.0
        %v5394 = vmax.f32 %v5256, 0.0
        %v5395 = vmax.f32 %v5258, 0.0
        %v5396 = vmax.f32 %v5261, 0.0
        %v5397 = vmax.f32 %v5263, 0.0
        %v5398 = vmax.f32 %v5266, 0.0
        %v5399 = vmax.f32 %v5268, 0.0
        %v5400 = vmax.f32 %v5271, 0.0
        %v5401 = vmax.f32 %v5273, 0.0
        %v5402 = vmax.f32 %v5276, 0.0
        %v5403 = vmax.f32 %v5278, 0.0
        %v5404 = vmax.f32 %v5281, 0.0
        %v5405 = vmax.f32 %v5283, 0.0
        %v5406 = vmax.f32 %v5286, 0.0
        %v5407 = vmax.f32 %v5288, 0.0
        %v5408 = vmax.f32 %v5291, 0.0
        %v5409 = vmax.f32 %v5293, 0.0
        %v5410 = vmax.f32 %v5296, 0.0
        %v5411 = vmax.f32 %v5298, 0.0
        %v5412 = vmax.f32 %v5301, 0.0
        %v5413 = vmax.f32 %v5303, 0.0
        %v5414 = vmax.f32 %v5306, 0.0
        %v5415 = vmax.f32 %v5308, 0.0
        %v5416 = vmax.f32 %v5311, 0.0
        %v5417 = vmax.f32 %v5313, 0.0
        %v5418 = vmax.f32 %v5316, 0.0
        %v5419 = vmax.f32 %v5318, 0.0
        %v5420 = vpack.c.bf16 %v5320, %v5320
        %v5421 = vpack.c.bf16 %v5321, %v5321
        %v5422 = vpack.c.bf16 %v5322, %v5322
        %v5423 = vpack.c.bf16 %v5323, %v5323
        %v5424 = vpack.c.bf16 %v5324, %v5324
        %v5425 = vpack.c.bf16 %v5325, %v5325
        %v5426 = vpack.c.bf16 %v5326, %v5326
        %v5427 = vpack.c.bf16 %v5327, %v5327
        %v5428 = vpack.c.bf16 %v5328, %v5328
        %v5429 = vpack.c.bf16 %v5329, %v5329
        %v5430 = vpack.c.bf16 %v5330, %v5330
        %v5431 = vpack.c.bf16 %v5331, %v5331
        %v5432 = vpack.c.bf16 %v5332, %v5332
        %v5433 = vpack.c.bf16 %v5333, %v5333
        %v5434 = vpack.c.bf16 %v5334, %v5334
        %v5435 = vpack.c.bf16 %v5335, %v5335
        %v5436 = vpack.c.bf16 %v5336, %v5336
        %v5437 = vpack.c.bf16 %v5337, %v5337
        %v5438 = vpack.c.bf16 %v5338, %v5338
        %v5439 = vpack.c.bf16 %v5339, %v5339
        %v5440 = vpack.c.bf16 %v5340, %v5340
        %v5441 = vpack.c.bf16 %v5341, %v5341
        %v5442 = vpack.c.bf16 %v5342, %v5342
        %v5443 = vpack.c.bf16 %v5343, %v5343
        %v5444 = vpack.c.bf16 %v5344, %v5344
        %v5445 = vpack.c.bf16 %v5345, %v5345
        %v5446 = vpack.c.bf16 %v5346, %v5346
        %v5447 = vpack.c.bf16 %v5347, %v5347
        %v5448 = vpack.c.bf16 %v5348, %v5348
        %v5449 = vpack.c.bf16 %v5349, %v5349
        %v5450 = vpack.c.bf16 %v5350, %v5350
        %v5451 = vpack.c.bf16 %v5351, %v5351
        %v5452 = vpack.c.bf16 %v5352, %v5352
        %v5453 = vpack.c.bf16 %v5353, %v5353
        %v5454 = vpack.c.bf16 %v5354, %v5354
        %v5455 = vpack.c.bf16 %v5355, %v5355
        %v5456 = vpack.c.bf16 %v5356, %v5356
        %v5457 = vpack.c.bf16 %v5357, %v5357
        %v5458 = vpack.c.bf16 %v5358, %v5358
        %v5459 = vpack.c.bf16 %v5359, %v5359
        %v5460 = vpack.c.bf16 %v5360, %v5360
        %v5461 = vpack.c.bf16 %v5361, %v5361
        %v5462 = vpack.c.bf16 %v5362, %v5362
        %v5463 = vpack.c.bf16 %v5363, %v5363
        %v5464 = vpack.c.bf16 %v5364, %v5364
        %v5465 = vpack.c.bf16 %v5365, %v5365
        %v5466 = vpack.c.bf16 %v5366, %v5366
        %v5467 = vpack.c.bf16 %v5367, %v5367
        %v5468 = vpack.c.bf16 %v5368, %v5368
        %v5469 = vpack.c.bf16 %v5369, %v5369
        %v5470 = vpack.c.bf16 %v5370, %v5370
        %v5471 = vpack.c.bf16 %v5371, %v5371
        %v5472 = vpack.c.bf16 %v5372, %v5372
        %v5473 = vpack.c.bf16 %v5373, %v5373
        %v5474 = vpack.c.bf16 %v5374, %v5374
        %v5475 = vpack.c.bf16 %v5375, %v5375
        %v5476 = vpack.c.bf16 %v5376, %v5376
        %v5477 = vpack.c.bf16 %v5377, %v5377
        %v5478 = vpack.c.bf16 %v5378, %v5378
        %v5479 = vpack.c.bf16 %v5379, %v5379
        %v5480 = vpack.c.bf16 %v5380, %v5380
        %v5481 = vpack.c.bf16 %v5381, %v5381
        %v5482 = vpack.c.bf16 %v5382, %v5382
        %v5483 = vpack.c.bf16 %v5383, %v5383
        %v5484 = vpack.c.bf16 %v5384, %v5384
        %v5485 = vpack.c.bf16 %v5385, %v5385
        %v5486 = vpack.c.bf16 %v5386, %v5386
        %v5487 = vpack.c.bf16 %v5387, %v5387
        %v5488 = vpack.c.bf16 %v5388, %v5388
        %v5489 = vpack.c.bf16 %v5389, %v5389
        %v5490 = vpack.c.bf16 %v5390, %v5390
        %v5491 = vpack.c.bf16 %v5391, %v5391
        %v5492 = vpack.c.bf16 %v5392, %v5392
        %v5493 = vpack.c.bf16 %v5393, %v5393
        %v5494 = vpack.c.bf16 %v5394, %v5394
        %v5495 = vpack.c.bf16 %v5395, %v5395
        %v5496 = vpack.c.bf16 %v5396, %v5396
        %v5497 = vpack.c.bf16 %v5397, %v5397
        %v5498 = vpack.c.bf16 %v5398, %v5398
        %v5499 = vpack.c.bf16 %v5399, %v5399
        %v5500 = vpack.c.bf16 %v5400, %v5400
        %v5501 = vpack.c.bf16 %v5401, %v5401
        %v5502 = vpack.c.bf16 %v5402, %v5402
        %v5503 = vpack.c.bf16 %v5403, %v5403
        %v5504 = vpack.c.bf16 %v5404, %v5404
        %v5505 = vpack.c.bf16 %v5405, %v5405
        %v5506 = vpack.c.bf16 %v5406, %v5406
        %v5507 = vpack.c.bf16 %v5407, %v5407
        %v5508 = vpack.c.bf16 %v5408, %v5408
        %v5509 = vpack.c.bf16 %v5409, %v5409
        %v5510 = vpack.c.bf16 %v5410, %v5410
        %v5511 = vpack.c.bf16 %v5411, %v5411
        %v5512 = vpack.c.bf16 %v5412, %v5412
        %v5513 = vpack.c.bf16 %v5413, %v5413
        %v5514 = vpack.c.bf16 %v5414, %v5414
        %v5515 = vpack.c.bf16 %v5415, %v5415
        %v5516 = vpack.c.bf16 %v5416, %v5416
        %v5517 = vpack.c.bf16 %v5417, %v5417
        %v5518 = vpack.c.bf16 %v5418, %v5418
        %v5519 = vpack.c.bf16 %v5419, %v5419
        %v5609 = vunpack.c.l.b16 %v5420
        %v5610 = vunpack.c.l.b16 %v5421
        %v5611 = vunpack.c.l.b16 %v5422
        %v5612 = vunpack.c.l.b16 %v5423
        %v5613 = vunpack.c.l.b16 %v5424
        %v5614 = vunpack.c.l.b16 %v5425
        %v5615 = vunpack.c.l.b16 %v5426
        %v5616 = vunpack.c.l.b16 %v5427
        %v5617 = vunpack.c.l.b16 %v5428
        %v5618 = vunpack.c.l.b16 %v5429
        %v5619 = vunpack.c.l.b16 %v5430
        %v5620 = vunpack.c.l.b16 %v5431
        %v5621 = vunpack.c.l.b16 %v5432
        %v5622 = vunpack.c.l.b16 %v5433
        %v5623 = vunpack.c.l.b16 %v5434
        %v5624 = vunpack.c.l.b16 %v5435
        %v5625 = vunpack.c.l.b16 %v5436
        %v5626 = vunpack.c.l.b16 %v5437
        %v5627 = vunpack.c.l.b16 %v5438
        %v5628 = vunpack.c.l.b16 %v5439
        %v5629 = vunpack.c.l.b16 %v5440
        %v5630 = vunpack.c.l.b16 %v5441
        %v5631 = vunpack.c.l.b16 %v5442
        %v5632 = vunpack.c.l.b16 %v5443
        %v5633 = vunpack.c.l.b16 %v5444
        %v5634 = vunpack.c.l.b16 %v5445
        %v5635 = vunpack.c.l.b16 %v5446
        %v5636 = vunpack.c.l.b16 %v5447
        %v5637 = vunpack.c.l.b16 %v5448
        %v5638 = vunpack.c.l.b16 %v5449
        %v5639 = vunpack.c.l.b16 %v5450
        %v5640 = vunpack.c.l.b16 %v5451
        %v5641 = vunpack.c.l.b16 %v5452
        %v5642 = vunpack.c.l.b16 %v5453
        %v5643 = vunpack.c.l.b16 %v5454
        %v5644 = vunpack.c.l.b16 %v5455
        %v5645 = vunpack.c.l.b16 %v5456
        %v5646 = vunpack.c.l.b16 %v5457
        %v5647 = vunpack.c.l.b16 %v5458
        %v5648 = vunpack.c.l.b16 %v5459
        %v5649 = vunpack.c.l.b16 %v5460
        %v5650 = vunpack.c.l.b16 %v5461
        %v5651 = vunpack.c.l.b16 %v5462
        %v5652 = vunpack.c.l.b16 %v5463
        %v5653 = vunpack.c.l.b16 %v5464
        %v5654 = vunpack.c.l.b16 %v5465
        %v5655 = vunpack.c.l.b16 %v5466
        %v5656 = vunpack.c.l.b16 %v5467
        %v5657 = vunpack.c.l.b16 %v5468
        %v5658 = vunpack.c.l.b16 %v5469
        %v5659 = vunpack.c.l.b16 %v5470
        %v5660 = vunpack.c.l.b16 %v5471
        %v5661 = vunpack.c.l.b16 %v5472
        %v5662 = vunpack.c.l.b16 %v5473
        %v5663 = vunpack.c.l.b16 %v5474
        %v5664 = vunpack.c.l.b16 %v5475
        %v5665 = vunpack.c.l.b16 %v5476
        %v5666 = vunpack.c.l.b16 %v5477
        %v5667 = vunpack.c.l.b16 %v5478
        %v5668 = vunpack.c.l.b16 %v5479
        %v5669 = vunpack.c.l.b16 %v5480
        %v5670 = vunpack.c.l.b16 %v5481
        %v5671 = vunpack.c.l.b16 %v5482
        %v5672 = vunpack.c.l.b16 %v5483
        %v5673 = vunpack.c.l.b16 %v5484
        %v5674 = vunpack.c.l.b16 %v5485
        %v5675 = vunpack.c.l.b16 %v5486
        %v5676 = vunpack.c.l.b16 %v5487
        %v5677 = vunpack.c.l.b16 %v5488
        %v5678 = vunpack.c.l.b16 %v5489
        %v5679 = vunpack.c.l.b16 %v5490
        %v5680 = vunpack.c.l.b16 %v5491
        %v5681 = vunpack.c.l.b16 %v5492
        %v5682 = vunpack.c.l.b16 %v5493
        %v5683 = vunpack.c.l.b16 %v5494
        %v5684 = vunpack.c.l.b16 %v5495
        %v5685 = vunpack.c.l.b16 %v5496
        %v5686 = vunpack.c.l.b16 %v5497
        %v5687 = vunpack.c.l.b16 %v5498
        %v5688 = vunpack.c.l.b16 %v5499
        %v5689 = vunpack.c.l.b16 %v5500
        %v5690 = vunpack.c.l.b16 %v5501
        %v5691 = vunpack.c.l.b16 %v5502
        %v5692 = vunpack.c.l.b16 %v5503
        %v5693 = vunpack.c.l.b16 %v5504
        %v5694 = vunpack.c.l.b16 %v5505
        %v5695 = vunpack.c.l.b16 %v5506
        %v5696 = vunpack.c.l.b16 %v5507
        %v5697 = vunpack.c.l.b16 %v5508
        %v5698 = vpack.c.b16 %v5610, %v5609
        %v5699 = vpack.c.b16 %v5612, %v5611
        %v5700 = vpack.c.b16 %v5614, %v5613
        %v5701 = vpack.c.b16 %v5616, %v5615
        %v5702 = vpack.c.b16 %v5618, %v5617
        %v5703 = vpack.c.b16 %v5620, %v5619
        %v5704 = vpack.c.b16 %v5622, %v5621
        %v5705 = vpack.c.b16 %v5624, %v5623
        %v5706 = vpack.c.b16 %v5626, %v5625
        %v5707 = vpack.c.b16 %v5628, %v5627
        %v5708 = vpack.c.b16 %v5630, %v5629
        %v5709 = vpack.c.b16 %v5632, %v5631
        %v5710 = vpack.c.b16 %v5634, %v5633
        %v5711 = vpack.c.b16 %v5636, %v5635
        %v5712 = vpack.c.b16 %v5638, %v5637
        %v5713 = vpack.c.b16 %v5640, %v5639
        %v5714 = vpack.c.b16 %v5642, %v5641
        %v5715 = vpack.c.b16 %v5644, %v5643
        %v5716 = vpack.c.b16 %v5646, %v5645
        %v5717 = vpack.c.b16 %v5648, %v5647
        %v5718 = vpack.c.b16 %v5650, %v5649
        %v5719 = vpack.c.b16 %v5652, %v5651
        %v5720 = vpack.c.b16 %v5654, %v5653
        %v5721 = vpack.c.b16 %v5656, %v5655
        %v5722 = vpack.c.b16 %v5658, %v5657
        %v5723 = vpack.c.b16 %v5660, %v5659
        %v5724 = vpack.c.b16 %v5662, %v5661
        %v5725 = vpack.c.b16 %v5664, %v5663
        %v5726 = vpack.c.b16 %v5666, %v5665
        %v5727 = vpack.c.b16 %v5668, %v5667
        %v5728 = vpack.c.b16 %v5670, %v5669
        %v5729 = vpack.c.b16 %v5672, %v5671
        %v5730 = vpack.c.b16 %v5674, %v5673
        %v5731 = vpack.c.b16 %v5676, %v5675
        %v5732 = vpack.c.b16 %v5678, %v5677
        %v5733 = vpack.c.b16 %v5680, %v5679
        %v5734 = vpack.c.b16 %v5682, %v5681
        %v5735 = vpack.c.b16 %v5684, %v5683
        %v5736 = vpack.c.b16 %v5686, %v5685
        %v5737 = vpack.c.b16 %v5688, %v5687
        %v5738 = vpack.c.b16 %v5690, %v5689
        %v5739 = vpack.c.b16 %v5692, %v5691
        %v5740 = vpack.c.b16 %v5694, %v5693
        %v5741 = vpack.c.b16 %v5696, %v5695
        %v5742 = vpack.c.b16 %v5697, %v5697
        %v5789 = vunpack.c.l.b16 %v5509
        %v5790 = vpack.c.b16 %v5611, %v5610
        %v5791 = vpack.c.b16 %v5613, %v5612
        %v5792 = vpack.c.b16 %v5615, %v5614
        %v5793 = vpack.c.b16 %v5617, %v5616
        %v5794 = vpack.c.b16 %v5619, %v5618
        %v5795 = vpack.c.b16 %v5621, %v5620
        %v5796 = vpack.c.b16 %v5623, %v5622
        %v5797 = vpack.c.b16 %v5625, %v5624
        %v5798 = vpack.c.b16 %v5627, %v5626
        %v5799 = vpack.c.b16 %v5629, %v5628
        %v5800 = vpack.c.b16 %v5631, %v5630
        %v5801 = vpack.c.b16 %v5633, %v5632
        %v5802 = vpack.c.b16 %v5635, %v5634
        %v5803 = vpack.c.b16 %v5637, %v5636
        %v5804 = vpack.c.b16 %v5639, %v5638
        %v5805 = vpack.c.b16 %v5641, %v5640
        %v5806 = vpack.c.b16 %v5643, %v5642
        %v5807 = vpack.c.b16 %v5645, %v5644
        %v5808 = vpack.c.b16 %v5647, %v5646
        %v5809 = vpack.c.b16 %v5649, %v5648
        %v5810 = vpack.c.b16 %v5651, %v5650
        %v5811 = vpack.c.b16 %v5653, %v5652
        %v5812 = vpack.c.b16 %v5655, %v5654
        %v5813 = vpack.c.b16 %v5657, %v5656
        %v5814 = vpack.c.b16 %v5659, %v5658
        %v5815 = vpack.c.b16 %v5661, %v5660
        %v5816 = vpack.c.b16 %v5663, %v5662
        %v5817 = vpack.c.b16 %v5665, %v5664
        %v5818 = vpack.c.b16 %v5667, %v5666
        %v5819 = vpack.c.b16 %v5669, %v5668
        %v5820 = vpack.c.b16 %v5671, %v5670
        %v5821 = vpack.c.b16 %v5673, %v5672
        %v5822 = vpack.c.b16 %v5675, %v5674
        %v5823 = vpack.c.b16 %v5677, %v5676
        %v5824 = vpack.c.b16 %v5679, %v5678
        %v5825 = vpack.c.b16 %v5681, %v5680
        %v5826 = vpack.c.b16 %v5683, %v5682
        %v5827 = vpack.c.b16 %v5685, %v5684
        %v5828 = vpack.c.b16 %v5687, %v5686
        %v5829 = vpack.c.b16 %v5689, %v5688
        %v5830 = vpack.c.b16 %v5691, %v5690
        %v5831 = vpack.c.b16 %v5693, %v5692
        %v5832 = vpack.c.b16 %v5695, %v5694
        %v5833 = vpack.c.b16 %v5697, %v5696
        %v5834 = vpack.c.b16 %v5789, %v5789
        %v5889 = vunpack.c.l.b16 %v5510
        %v5890 = vunpack.c.l.b16 %v5511
        %v5891 = vunpack.c.l.b16 %v5512
        %v5892 = vunpack.c.l.b16 %v5513
        %v5893 = vunpack.c.l.b16 %v5514
        %v5894 = vunpack.c.l.b16 %v5515
        %v5895 = vunpack.c.l.b16 %v5516
        %v5896 = vunpack.c.l.b16 %v5517
        %v5897 = vunpack.c.l.b16 %v5518
        %v5898 = vpack.c.b16 %v5789, %v5697
        %v5899 = vpack.c.b16 %v5890, %v5889
        %v5900 = vpack.c.b16 %v5892, %v5891
        %v5901 = vpack.c.b16 %v5894, %v5893
        %v5902 = vpack.c.b16 %v5896, %v5895
        %v5903 = vpack.c.b16 %v5897, %v5897
        %v5911 = vunpack.c.l.b16 %v5519
        %v5912 = vpack.c.b16 %v5889, %v5789
        %v5913 = vpack.c.b16 %v5891, %v5890
        %v5914 = vpack.c.b16 %v5893, %v5892
        %v5915 = vpack.c.b16 %v5895, %v5894
        %v5916 = vpack.c.b16 %v5897, %v5896
        %v5917 = vpack.c.b16 %v5911, %v5911
        %v5924 = vld [vmem:[%s3] sm:$0xf]
        %v5925 = vld [vmem:[%s3 + $0x4] sm:$0xf]
        %v5926 = vld [vmem:[%s3 + $0x8] sm:$0xf]
        %v5927 = vld [vmem:[%s3 + $0xc] sm:$0xf]
        %v5928 = vld [vmem:[%s3 + $0x10] sm:$0xf]
        %v5929 = vld [vmem:[%s3 + $0x14] sm:$0xf]
        %v5930 = vld [vmem:[%s3 + $0x18] sm:$0xf]
        %v5931 = vld [vmem:[%s3 + $0x1c] sm:$0xf]
        %v5932 = vld [vmem:[%s3 + $0x20] sm:$0xf]
        %v5933 = vld [vmem:[%s3 + $0x24] sm:$0xf]
        %v5934 = vld [vmem:[%s3 + $0x28] sm:$0xf]
        %v5935 = vld [vmem:[%s3 + $0x2c] sm:$0xf]
        %v5936 = vld [vmem:[%s3 + $0x30] sm:$0xf]
        %v5937 = vld [vmem:[%s3 + $0x34] sm:$0xf]
        %v5938 = vld [vmem:[%s3 + $0x38] sm:$0xf]
        %v5939 = vld [vmem:[%s3 + $0x3c] sm:$0xf]
        %v5940 = vld [vmem:[%s3 + $0x40] sm:$0xf]
        %v5941 = vld [vmem:[%s3 + $0x44] sm:$0xf]
        %v5942 = vld [vmem:[%s3 + $0x48] sm:$0xf]
        %v5943 = vld [vmem:[%s3 + $0x4c] sm:$0xf]
        %v5944 = vld [vmem:[%s3 + $0x50] sm:$0xf]
        %v5945 = vld [vmem:[%s3 + $0x54] sm:$0xf]
        %v5946 = vld [vmem:[%s3 + $0x58] sm:$0xf]
        %v5947 = vld [vmem:[%s3 + $0x5c] sm:$0xf]
        %v5948 = vld [vmem:[%s3 + $0x60] sm:$0xf]
        %v5949 = vld [vmem:[%s3 + $0x64] sm:$0xf]
        %v5950 = vld [vmem:[%s3 + $0x68] sm:$0xf]
        %v5951 = vld [vmem:[%s3 + $0x6c] sm:$0xf]
        %v5952 = vld [vmem:[%s3 + $0x70] sm:$0xf]
        %v5953 = vld [vmem:[%s3 + $0x74] sm:$0xf]
        %v5954 = vld [vmem:[%s3 + $0x78] sm:$0xf]
        %v5955 = vld [vmem:[%s3 + $0x7c] sm:$0xf]
        %v5956 = vld [vmem:[%s3 + $0x80] sm:$0xf]
        %v5957 = vld [vmem:[%s3 + $0x84] sm:$0xf]
        %v5958 = vld [vmem:[%s3 + $0x88] sm:$0xf]
        %v5959 = vld [vmem:[%s3 + $0x8c] sm:$0xf]
        %v5960 = vld [vmem:[%s3 + $0x90] sm:$0xf]
        %v5961 = vld [vmem:[%s3 + $0x94] sm:$0xf]
        %v5962 = vld [vmem:[%s3 + $0x98] sm:$0xf]
        %v5963 = vld [vmem:[%s3 + $0x9c] sm:$0xf]
        %v5964 = vld [vmem:[%s3 + $0xa0] sm:$0xf]
        %v5965 = vld [vmem:[%s3 + $0xa4] sm:$0xf]
        %v5966 = vld [vmem:[%s3 + $0xa8] sm:$0xf]
        %v5967 = vld [vmem:[%s3 + $0xac] sm:$0xf]
        %v5968 = vld [vmem:[%s3 + $0xb0] sm:$0xf]
        %v5969 = vld [vmem:[%s3 + $0xb4] sm:$0xf]
        %v5970 = vld [vmem:[%s3 + $0xb8] sm:$0xf]
        %v5971 = vld [vmem:[%s3 + $0xbc] sm:$0xf]
        %v5972 = vld [vmem:[%s3 + $0xc0] sm:$0xf]
        %v5973 = vld [vmem:[%s3 + $0xc4] sm:$0xf]
        %v5974 = vld [vmem:[%s3 + $0xc8] sm:$0xf]
        %v5975 = vld [vmem:[%s3 + $0xcc] sm:$0xf]
        %v5976 = vld [vmem:[%s3 + $0xd0] sm:$0xf]
        %v5977 = vld [vmem:[%s3 + $0xd4] sm:$0xf]
        %v5978 = vld [vmem:[%s3 + $0xd8] sm:$0xf]
        %v5979 = vld [vmem:[%s3 + $0xdc] sm:$0xf]
        %v5980 = vld [vmem:[%s3 + $0xe0] sm:$0xf]
        %v5981 = vld [vmem:[%s3 + $0xe4] sm:$0xf]
        %v5982 = vld [vmem:[%s3 + $0xe8] sm:$0xf]
        %v5983 = vld [vmem:[%s3 + $0xec] sm:$0xf]
        %v5984 = vld [vmem:[%s3 + $0xf0] sm:$0xf]
        %v5985 = vld [vmem:[%s3 + $0xf4] sm:$0xf]
        %v5986 = vld [vmem:[%s3 + $0xf8] sm:$0xf]
        %v5987 = vld [vmem:[%s3 + $0xfc] sm:$0xf]
        %v5988 = vld [vmem:[%s4] sm:$0x1]
        %v5990 = vperm.slane %v5988, 0
        %v6056 = vunpack.c.l.b16 %v5924
        %v6057 = vunpack.c.l.b16 %v5925
        %v6058 = vunpack.c.l.b16 %v5926
        %v6059 = vunpack.c.l.b16 %v5927
        %v6060 = vunpack.c.l.b16 %v5928
        %v6061 = vunpack.c.l.b16 %v5929
        %v6062 = vunpack.c.l.b16 %v5930
        %v6063 = vunpack.c.l.b16 %v5931
        %v6064 = vunpack.c.l.b16 %v5932
        %v6065 = vunpack.c.l.b16 %v5933
        %v6066 = vunpack.c.l.b16 %v5934
        %v6067 = vunpack.c.l.b16 %v5935
        %v6068 = vunpack.c.l.b16 %v5936
        %v6069 = vunpack.c.l.b16 %v5937
        %v6070 = vunpack.c.l.b16 %v5938
        %v6071 = vunpack.c.l.b16 %v5939
        %v6072 = vunpack.c.l.b16 %v5940
        %v6073 = vunpack.c.l.b16 %v5941
        %v6074 = vunpack.c.l.b16 %v5942
        %v6075 = vunpack.c.l.b16 %v5943
        %v6076 = vunpack.c.l.b16 %v5944
        %v6077 = vunpack.c.l.b16 %v5945
        %v6078 = vunpack.c.l.b16 %v5946
        %v6079 = vunpack.c.l.b16 %v5947
        %v6080 = vunpack.c.l.b16 %v5948
        %v6081 = vunpack.c.l.b16 %v5949
        %v6082 = vunpack.c.l.b16 %v5950
        %v6083 = vunpack.c.l.b16 %v5951
        %v6084 = vunpack.c.l.b16 %v5952
        %v6085 = vunpack.c.l.b16 %v5953
        %v6086 = vunpack.c.l.b16 %v5954
        %v6087 = vunpack.c.l.b16 %v5955
        %v6088 = vunpack.c.l.b16 %v5956
        %v6089 = vunpack.c.l.b16 %v5957
        %v6090 = vunpack.c.l.b16 %v5958
        %v6091 = vunpack.c.l.b16 %v5959
        %v6092 = vunpack.c.l.b16 %v5960
        %v6093 = vunpack.c.l.b16 %v5961
        %v6094 = vunpack.c.l.b16 %v5962
        %v6095 = vunpack.c.l.b16 %v5963
        %v6096 = vunpack.c.l.b16 %v5964
        %v6097 = vunpack.c.l.b16 %v5965
        %v6098 = vunpack.c.l.b16 %v5966
        %v6099 = vunpack.c.l.b16 %v5967
        %v6100 = vunpack.c.l.b16 %v5968
        %v6101 = vunpack.c.l.b16 %v5969
        %v6102 = vunpack.c.l.b16 %v5970
        %v6103 = vunpack.c.l.b16 %v5971
        %v6104 = vunpack.c.l.b16 %v5972
        %v6105 = vunpack.c.l.b16 %v5973
        %v6106 = vunpack.c.l.b16 %v5974
        %v6107 = vunpack.c.l.b16 %v5975
        %v6108 = vunpack.c.l.b16 %v5976
        %v6109 = vunpack.c.l.b16 %v5977
        %v6110 = vunpack.c.l.b16 %v5978
        %v6111 = vunpack.c.l.b16 %v5979
        %v6112 = vunpack.c.l.b16 %v5980
        %v6113 = vunpack.c.l.b16 %v5981
        %v6114 = vunpack.c.l.b16 %v5982
        %v6115 = vunpack.c.l.b16 %v5983
        %v6116 = vunpack.c.l.b16 %v5984
        %v6117 = vunpack.c.l.b16 %v5985
        %v6118 = vunpack.c.l.b16 %v5986
        %v6119 = vunpack.c.l.b16 %v5987
        %v6120 = vpack.c.b16 %v6057, %v6056
        %v6121 = vpack.c.b16 %v6059, %v6058
        %v6122 = vpack.c.b16 %v6061, %v6060
        %v6123 = vpack.c.b16 %v6063, %v6062
        %v6124 = vpack.c.b16 %v6065, %v6064
        %v6125 = vpack.c.b16 %v6067, %v6066
        %v6126 = vpack.c.b16 %v6069, %v6068
        %v6127 = vpack.c.b16 %v6071, %v6070
        %v6128 = vpack.c.b16 %v6073, %v6072
        %v6129 = vpack.c.b16 %v6075, %v6074
        %v6130 = vpack.c.b16 %v6077, %v6076
        %v6131 = vpack.c.b16 %v6079, %v6078
        %v6132 = vpack.c.b16 %v6081, %v6080
        %v6133 = vpack.c.b16 %v6083, %v6082
        %v6134 = vpack.c.b16 %v6085, %v6084
        %v6135 = vpack.c.b16 %v6087, %v6086
        %v6136 = vpack.c.b16 %v6089, %v6088
        %v6137 = vpack.c.b16 %v6091, %v6090
        %v6138 = vpack.c.b16 %v6093, %v6092
        %v6139 = vpack.c.b16 %v6095, %v6094
        %v6140 = vpack.c.b16 %v6097, %v6096
        %v6141 = vpack.c.b16 %v6099, %v6098
        %v6142 = vpack.c.b16 %v6101, %v6100
        %v6143 = vpack.c.b16 %v6103, %v6102
        %v6144 = vpack.c.b16 %v6105, %v6104
        %v6145 = vpack.c.b16 %v6107, %v6106
        %v6146 = vpack.c.b16 %v6109, %v6108
        %v6147 = vpack.c.b16 %v6111, %v6110
        %v6148 = vpack.c.b16 %v6113, %v6112
        %v6149 = vpack.c.b16 %v6115, %v6114
        %v6150 = vpack.c.b16 %v6117, %v6116
        %v6151 = vpack.c.b16 %v6119, %v6118
        %6184 = vmatpush.bf16.msra.mxu0 %v6127
        %6185 = vmatpush.bf16.msra.mxu0 %v6126
        %6186 = vmatpush.bf16.msra.mxu0 %v6125
        %6187 = vmatpush.bf16.msra.mxu0 %v6124
        %6188 = vmatpush.bf16.msra.mxu0 %v6123
        %6189 = vmatpush.bf16.msra.mxu0 %v6122
        %6190 = vmatpush.bf16.msra.mxu0 %v6121
        %6191 = vmatpush.bf16.msra.mxu0 %v6120
        %6192 = vmatmul.bf16.gmra.mxu0 %v5698
        %v6193 = vpop.f32.mrf.mxu0
        %v6194 = vadd.f32 %v5990, %v6193
        %v6195 = vpop.f32.mrf.mxu0
        %v6196 = vadd.f32 %v5990, %v6195
        %6197 = vmatmul.bf16.gmra.mxu0 %v5699
        %v6198 = vpop.f32.mrf.mxu0
        %v6199 = vadd.f32 %v5990, %v6198
        %v6200 = vpop.f32.mrf.mxu0
        %v6201 = vadd.f32 %v5990, %v6200
        %6202 = vmatmul.bf16.gmra.mxu0 %v5700
        %v6203 = vpop.f32.mrf.mxu0
        %v6204 = vadd.f32 %v5990, %v6203
        %v6205 = vpop.f32.mrf.mxu0
        %v6206 = vadd.f32 %v5990, %v6205
        %6207 = vmatmul.bf16.gmra.mxu0 %v5701
        %v6208 = vpop.f32.mrf.mxu0
        %v6209 = vadd.f32 %v5990, %v6208
        %v6210 = vpop.f32.mrf.mxu0
        %v6211 = vadd.f32 %v5990, %v6210
        %6212 = vmatmul.bf16.gmra.mxu0 %v5702
        %v6213 = vpop.f32.mrf.mxu0
        %v6214 = vadd.f32 %v5990, %v6213
        %v6215 = vpop.f32.mrf.mxu0
        %v6216 = vadd.f32 %v5990, %v6215
        %6217 = vmatmul.bf16.gmra.mxu0 %v5703
        %v6218 = vpop.f32.mrf.mxu0
        %v6219 = vadd.f32 %v5990, %v6218
        %v6220 = vpop.f32.mrf.mxu0
        %v6221 = vadd.f32 %v5990, %v6220
        %6222 = vmatmul.bf16.gmra.mxu0 %v5704
        %v6223 = vpop.f32.mrf.mxu0
        %v6224 = vadd.f32 %v5990, %v6223
        %v6225 = vpop.f32.mrf.mxu0
        %v6226 = vadd.f32 %v5990, %v6225
        %6227 = vmatmul.bf16.gmra.mxu0 %v5705
        %v6228 = vpop.f32.mrf.mxu0
        %v6229 = vadd.f32 %v5990, %v6228
        %v6230 = vpop.f32.mrf.mxu0
        %v6231 = vadd.f32 %v5990, %v6230
        %6232 = vmatmul.bf16.gmra.mxu0 %v5706
        %v6233 = vpop.f32.mrf.mxu0
        %v6234 = vadd.f32 %v5990, %v6233
        %v6235 = vpop.f32.mrf.mxu0
        %v6236 = vadd.f32 %v5990, %v6235
        %6237 = vmatmul.bf16.gmra.mxu0 %v5707
        %v6238 = vpop.f32.mrf.mxu0
        %v6239 = vadd.f32 %v5990, %v6238
        %v6240 = vpop.f32.mrf.mxu0
        %v6241 = vadd.f32 %v5990, %v6240
        %6242 = vmatmul.bf16.gmra.mxu0 %v5708
        %v6243 = vpop.f32.mrf.mxu0
        %v6244 = vadd.f32 %v5990, %v6243
        %v6245 = vpop.f32.mrf.mxu0
        %v6246 = vadd.f32 %v5990, %v6245
        %6247 = vmatmul.bf16.gmra.mxu0 %v5709
        %v6248 = vpop.f32.mrf.mxu0
        %v6249 = vadd.f32 %v5990, %v6248
        %v6250 = vpop.f32.mrf.mxu0
        %v6251 = vadd.f32 %v5990, %v6250
        %6252 = vmatmul.bf16.gmra.mxu0 %v5710
        %v6253 = vpop.f32.mrf.mxu0
        %v6254 = vadd.f32 %v5990, %v6253
        %v6255 = vpop.f32.mrf.mxu0
        %v6256 = vadd.f32 %v5990, %v6255
        %6257 = vmatmul.bf16.gmra.mxu0 %v5711
        %v6258 = vpop.f32.mrf.mxu0
        %v6259 = vadd.f32 %v5990, %v6258
        %v6260 = vpop.f32.mrf.mxu0
        %v6261 = vadd.f32 %v5990, %v6260
        %6262 = vmatmul.bf16.gmra.mxu0 %v5712
        %v6263 = vpop.f32.mrf.mxu0
        %v6264 = vadd.f32 %v5990, %v6263
        %v6265 = vpop.f32.mrf.mxu0
        %v6266 = vadd.f32 %v5990, %v6265
        %6267 = vmatmul.bf16.gmra.mxu0 %v5713
        %v6268 = vpop.f32.mrf.mxu0
        %v6269 = vadd.f32 %v5990, %v6268
        %v6270 = vpop.f32.mrf.mxu0
        %v6271 = vadd.f32 %v5990, %v6270
        %6272 = vmatmul.bf16.gmra.mxu0 %v5714
        %v6273 = vpop.f32.mrf.mxu0
        %v6274 = vadd.f32 %v5990, %v6273
        %v6275 = vpop.f32.mrf.mxu0
        %v6276 = vadd.f32 %v5990, %v6275
        %6277 = vmatmul.bf16.gmra.mxu0 %v5715
        %v6278 = vpop.f32.mrf.mxu0
        %v6279 = vadd.f32 %v5990, %v6278
        %v6280 = vpop.f32.mrf.mxu0
        %v6281 = vadd.f32 %v5990, %v6280
        %6282 = vmatmul.bf16.gmra.mxu0 %v5716
        %v6283 = vpop.f32.mrf.mxu0
        %v6284 = vadd.f32 %v5990, %v6283
        %v6285 = vpop.f32.mrf.mxu0
        %v6286 = vadd.f32 %v5990, %v6285
        %6287 = vmatmul.bf16.gmra.mxu0 %v5717
        %v6288 = vpop.f32.mrf.mxu0
        %v6289 = vadd.f32 %v5990, %v6288
        %v6290 = vpop.f32.mrf.mxu0
        %v6291 = vadd.f32 %v5990, %v6290
        %6292 = vmatmul.bf16.gmra.mxu0 %v5718
        %v6293 = vpop.f32.mrf.mxu0
        %v6294 = vadd.f32 %v5990, %v6293
        %v6295 = vpop.f32.mrf.mxu0
        %v6296 = vadd.f32 %v5990, %v6295
        %6297 = vmatmul.bf16.gmra.mxu0 %v5719
        %v6298 = vpop.f32.mrf.mxu0
        %v6299 = vadd.f32 %v5990, %v6298
        %v6300 = vpop.f32.mrf.mxu0
        %v6301 = vadd.f32 %v5990, %v6300
        %6302 = vmatmul.bf16.gmra.mxu0 %v5720
        %v6303 = vpop.f32.mrf.mxu0
        %v6304 = vadd.f32 %v5990, %v6303
        %v6305 = vpop.f32.mrf.mxu0
        %v6306 = vadd.f32 %v5990, %v6305
        %6307 = vmatmul.bf16.gmra.mxu0 %v5721
        %v6308 = vpop.f32.mrf.mxu0
        %v6309 = vadd.f32 %v5990, %v6308
        %v6310 = vpop.f32.mrf.mxu0
        %v6311 = vadd.f32 %v5990, %v6310
        %6312 = vmatmul.bf16.gmra.mxu0 %v5722
        %v6313 = vpop.f32.mrf.mxu0
        %v6314 = vadd.f32 %v5990, %v6313
        %v6315 = vpop.f32.mrf.mxu0
        %v6316 = vadd.f32 %v5990, %v6315
        %6317 = vmatmul.bf16.gmra.mxu0 %v5723
        %v6318 = vpop.f32.mrf.mxu0
        %v6319 = vadd.f32 %v5990, %v6318
        %v6320 = vpop.f32.mrf.mxu0
        %v6321 = vadd.f32 %v5990, %v6320
        %6322 = vmatmul.bf16.gmra.mxu0 %v5724
        %v6323 = vpop.f32.mrf.mxu0
        %v6324 = vadd.f32 %v5990, %v6323
        %v6325 = vpop.f32.mrf.mxu0
        %v6326 = vadd.f32 %v5990, %v6325
        %6327 = vmatmul.bf16.gmra.mxu0 %v5725
        %v6328 = vpop.f32.mrf.mxu0
        %v6329 = vadd.f32 %v5990, %v6328
        %v6330 = vpop.f32.mrf.mxu0
        %v6331 = vadd.f32 %v5990, %v6330
        %6332 = vmatmul.bf16.gmra.mxu0 %v5726
        %v6333 = vpop.f32.mrf.mxu0
        %v6334 = vadd.f32 %v5990, %v6333
        %v6335 = vpop.f32.mrf.mxu0
        %v6336 = vadd.f32 %v5990, %v6335
        %6337 = vmatmul.bf16.gmra.mxu0 %v5727
        %v6338 = vpop.f32.mrf.mxu0
        %v6339 = vadd.f32 %v5990, %v6338
        %v6340 = vpop.f32.mrf.mxu0
        %v6341 = vadd.f32 %v5990, %v6340
        %6342 = vmatmul.bf16.gmra.mxu0 %v5728
        %v6343 = vpop.f32.mrf.mxu0
        %v6344 = vadd.f32 %v5990, %v6343
        %v6345 = vpop.f32.mrf.mxu0
        %v6346 = vadd.f32 %v5990, %v6345
        %6347 = vmatmul.bf16.gmra.mxu0 %v5729
        %v6348 = vpop.f32.mrf.mxu0
        %v6349 = vadd.f32 %v5990, %v6348
        %v6350 = vpop.f32.mrf.mxu0
        %v6351 = vadd.f32 %v5990, %v6350
        %6352 = vmatmul.bf16.gmra.mxu0 %v5730
        %v6353 = vpop.f32.mrf.mxu0
        %v6354 = vadd.f32 %v5990, %v6353
        %v6355 = vpop.f32.mrf.mxu0
        %v6356 = vadd.f32 %v5990, %v6355
        %6357 = vmatmul.bf16.gmra.mxu0 %v5731
        %v6358 = vpop.f32.mrf.mxu0
        %v6359 = vadd.f32 %v5990, %v6358
        %v6360 = vpop.f32.mrf.mxu0
        %v6361 = vadd.f32 %v5990, %v6360
        %6362 = vmatmul.bf16.gmra.mxu0 %v5732
        %v6363 = vpop.f32.mrf.mxu0
        %v6364 = vadd.f32 %v5990, %v6363
        %v6365 = vpop.f32.mrf.mxu0
        %v6366 = vadd.f32 %v5990, %v6365
        %6367 = vmatmul.bf16.gmra.mxu0 %v5733
        %v6368 = vpop.f32.mrf.mxu0
        %v6369 = vadd.f32 %v5990, %v6368
        %v6370 = vpop.f32.mrf.mxu0
        %v6371 = vadd.f32 %v5990, %v6370
        %6372 = vmatmul.bf16.gmra.mxu0 %v5734
        %v6373 = vpop.f32.mrf.mxu0
        %v6374 = vadd.f32 %v5990, %v6373
        %v6375 = vpop.f32.mrf.mxu0
        %v6376 = vadd.f32 %v5990, %v6375
        %6377 = vmatmul.bf16.gmra.mxu0 %v5735
        %v6378 = vpop.f32.mrf.mxu0
        %v6379 = vadd.f32 %v5990, %v6378
        %v6380 = vpop.f32.mrf.mxu0
        %v6381 = vadd.f32 %v5990, %v6380
        %6382 = vmatmul.bf16.gmra.mxu0 %v5736
        %v6383 = vpop.f32.mrf.mxu0
        %v6384 = vadd.f32 %v5990, %v6383
        %v6385 = vpop.f32.mrf.mxu0
        %v6386 = vadd.f32 %v5990, %v6385
        %6387 = vmatmul.bf16.gmra.mxu0 %v5737
        %v6388 = vpop.f32.mrf.mxu0
        %v6389 = vadd.f32 %v5990, %v6388
        %v6390 = vpop.f32.mrf.mxu0
        %v6391 = vadd.f32 %v5990, %v6390
        %6392 = vmatmul.bf16.gmra.mxu0 %v5738
        %v6393 = vpop.f32.mrf.mxu0
        %v6394 = vadd.f32 %v5990, %v6393
        %v6395 = vpop.f32.mrf.mxu0
        %v6396 = vadd.f32 %v5990, %v6395
        %6397 = vmatmul.bf16.gmra.mxu0 %v5739
        %v6398 = vpop.f32.mrf.mxu0
        %v6399 = vadd.f32 %v5990, %v6398
        %v6400 = vpop.f32.mrf.mxu0
        %v6401 = vadd.f32 %v5990, %v6400
        %6402 = vmatmul.bf16.gmra.mxu0 %v5740
        %v6403 = vpop.f32.mrf.mxu0
        %v6404 = vadd.f32 %v5990, %v6403
        %v6405 = vpop.f32.mrf.mxu0
        %v6406 = vadd.f32 %v5990, %v6405
        %6407 = vmatmul.bf16.gmra.mxu0 %v5741
        %v6408 = vpop.f32.mrf.mxu0
        %v6409 = vadd.f32 %v5990, %v6408
        %v6410 = vpop.f32.mrf.mxu0
        %v6411 = vadd.f32 %v5990, %v6410
        %6412 = vmatmul.bf16.gmra.mxu0 %v5742
        %v6413 = vpop.f32.mrf.mxu0
        %v6414 = vadd.f32 %v5990, %v6413
        %v6415 = vpop.f32.mrf.mxu0
        %6416 = vdwg.mxu0
        %6417 = vmatpush.bf16.msra.mxu0 %v6135
        %6418 = vmatpush.bf16.msra.mxu0 %v6134
        %6419 = vmatpush.bf16.msra.mxu0 %v6133
        %6420 = vmatpush.bf16.msra.mxu0 %v6132
        %6421 = vmatpush.bf16.msra.mxu0 %v6131
        %6422 = vmatpush.bf16.msra.mxu0 %v6130
        %6423 = vmatpush.bf16.msra.mxu0 %v6129
        %6424 = vmatpush.bf16.msra.mxu0 %v6128
        %6425 = vmatmul.bf16.gmra.mxu0 %v5790
        %v6426 = vpop.f32.mrf.mxu0
        %v6427 = vadd.f32 %v6194, %v6426
        %v6428 = vpop.f32.mrf.mxu0
        %v6429 = vadd.f32 %v6196, %v6428
        %6430 = vmatmul.bf16.gmra.mxu0 %v5791
        %v6431 = vpop.f32.mrf.mxu0
        %v6432 = vadd.f32 %v6199, %v6431
        %v6433 = vpop.f32.mrf.mxu0
        %v6434 = vadd.f32 %v6201, %v6433
        %6435 = vmatmul.bf16.gmra.mxu0 %v5792
        %v6436 = vpop.f32.mrf.mxu0
        %v6437 = vadd.f32 %v6204, %v6436
        %v6438 = vpop.f32.mrf.mxu0
        %v6439 = vadd.f32 %v6206, %v6438
        %6440 = vmatmul.bf16.gmra.mxu0 %v5793
        %v6441 = vpop.f32.mrf.mxu0
        %v6442 = vadd.f32 %v6209, %v6441
        %v6443 = vpop.f32.mrf.mxu0
        %v6444 = vadd.f32 %v6211, %v6443
        %6445 = vmatmul.bf16.gmra.mxu0 %v5794
        %v6446 = vpop.f32.mrf.mxu0
        %v6447 = vadd.f32 %v6214, %v6446
        %v6448 = vpop.f32.mrf.mxu0
        %v6449 = vadd.f32 %v6216, %v6448
        %6450 = vmatmul.bf16.gmra.mxu0 %v5795
        %v6451 = vpop.f32.mrf.mxu0
        %v6452 = vadd.f32 %v6219, %v6451
        %v6453 = vpop.f32.mrf.mxu0
        %v6454 = vadd.f32 %v6221, %v6453
        %6455 = vmatmul.bf16.gmra.mxu0 %v5796
        %v6456 = vpop.f32.mrf.mxu0
        %v6457 = vadd.f32 %v6224, %v6456
        %v6458 = vpop.f32.mrf.mxu0
        %v6459 = vadd.f32 %v6226, %v6458
        %6460 = vmatmul.bf16.gmra.mxu0 %v5797
        %v6461 = vpop.f32.mrf.mxu0
        %v6462 = vadd.f32 %v6229, %v6461
        %v6463 = vpop.f32.mrf.mxu0
        %v6464 = vadd.f32 %v6231, %v6463
        %6465 = vmatmul.bf16.gmra.mxu0 %v5798
        %v6466 = vpop.f32.mrf.mxu0
        %v6467 = vadd.f32 %v6234, %v6466
        %v6468 = vpop.f32.mrf.mxu0
        %v6469 = vadd.f32 %v6236, %v6468
        %6470 = vmatmul.bf16.gmra.mxu0 %v5799
        %v6471 = vpop.f32.mrf.mxu0
        %v6472 = vadd.f32 %v6239, %v6471
        %v6473 = vpop.f32.mrf.mxu0
        %v6474 = vadd.f32 %v6241, %v6473
        %6475 = vmatmul.bf16.gmra.mxu0 %v5800
        %v6476 = vpop.f32.mrf.mxu0
        %v6477 = vadd.f32 %v6244, %v6476
        %v6478 = vpop.f32.mrf.mxu0
        %v6479 = vadd.f32 %v6246, %v6478
        %6480 = vmatmul.bf16.gmra.mxu0 %v5801
        %v6481 = vpop.f32.mrf.mxu0
        %v6482 = vadd.f32 %v6249, %v6481
        %v6483 = vpop.f32.mrf.mxu0
        %v6484 = vadd.f32 %v6251, %v6483
        %6485 = vmatmul.bf16.gmra.mxu0 %v5802
        %v6486 = vpop.f32.mrf.mxu0
        %v6487 = vadd.f32 %v6254, %v6486
        %v6488 = vpop.f32.mrf.mxu0
        %v6489 = vadd.f32 %v6256, %v6488
        %6490 = vmatmul.bf16.gmra.mxu0 %v5803
        %v6491 = vpop.f32.mrf.mxu0
        %v6492 = vadd.f32 %v6259, %v6491
        %v6493 = vpop.f32.mrf.mxu0
        %v6494 = vadd.f32 %v6261, %v6493
        %6495 = vmatmul.bf16.gmra.mxu0 %v5804
        %v6496 = vpop.f32.mrf.mxu0
        %v6497 = vadd.f32 %v6264, %v6496
        %v6498 = vpop.f32.mrf.mxu0
        %v6499 = vadd.f32 %v6266, %v6498
        %6500 = vmatmul.bf16.gmra.mxu0 %v5805
        %v6501 = vpop.f32.mrf.mxu0
        %v6502 = vadd.f32 %v6269, %v6501
        %v6503 = vpop.f32.mrf.mxu0
        %v6504 = vadd.f32 %v6271, %v6503
        %6505 = vmatmul.bf16.gmra.mxu0 %v5806
        %v6506 = vpop.f32.mrf.mxu0
        %v6507 = vadd.f32 %v6274, %v6506
        %v6508 = vpop.f32.mrf.mxu0
        %v6509 = vadd.f32 %v6276, %v6508
        %6510 = vmatmul.bf16.gmra.mxu0 %v5807
        %v6511 = vpop.f32.mrf.mxu0
        %v6512 = vadd.f32 %v6279, %v6511
        %v6513 = vpop.f32.mrf.mxu0
        %v6514 = vadd.f32 %v6281, %v6513
        %6515 = vmatmul.bf16.gmra.mxu0 %v5808
        %v6516 = vpop.f32.mrf.mxu0
        %v6517 = vadd.f32 %v6284, %v6516
        %v6518 = vpop.f32.mrf.mxu0
        %v6519 = vadd.f32 %v6286, %v6518
        %6520 = vmatmul.bf16.gmra.mxu0 %v5809
        %v6521 = vpop.f32.mrf.mxu0
        %v6522 = vadd.f32 %v6289, %v6521
        %v6523 = vpop.f32.mrf.mxu0
        %v6524 = vadd.f32 %v6291, %v6523
        %6525 = vmatmul.bf16.gmra.mxu0 %v5810
        %v6526 = vpop.f32.mrf.mxu0
        %v6527 = vadd.f32 %v6294, %v6526
        %v6528 = vpop.f32.mrf.mxu0
        %v6529 = vadd.f32 %v6296, %v6528
        %6530 = vmatmul.bf16.gmra.mxu0 %v5811
        %v6531 = vpop.f32.mrf.mxu0
        %v6532 = vadd.f32 %v6299, %v6531
        %v6533 = vpop.f32.mrf.mxu0
        %v6534 = vadd.f32 %v6301, %v6533
        %6535 = vmatmul.bf16.gmra.mxu0 %v5812
        %v6536 = vpop.f32.mrf.mxu0
        %v6537 = vadd.f32 %v6304, %v6536
        %v6538 = vpop.f32.mrf.mxu0
        %v6539 = vadd.f32 %v6306, %v6538
        %6540 = vmatmul.bf16.gmra.mxu0 %v5813
        %v6541 = vpop.f32.mrf.mxu0
        %v6542 = vadd.f32 %v6309, %v6541
        %v6543 = vpop.f32.mrf.mxu0
        %v6544 = vadd.f32 %v6311, %v6543
        %6545 = vmatmul.bf16.gmra.mxu0 %v5814
        %v6546 = vpop.f32.mrf.mxu0
        %v6547 = vadd.f32 %v6314, %v6546
        %v6548 = vpop.f32.mrf.mxu0
        %v6549 = vadd.f32 %v6316, %v6548
        %6550 = vmatmul.bf16.gmra.mxu0 %v5815
        %v6551 = vpop.f32.mrf.mxu0
        %v6552 = vadd.f32 %v6319, %v6551
        %v6553 = vpop.f32.mrf.mxu0
        %v6554 = vadd.f32 %v6321, %v6553
        %6555 = vmatmul.bf16.gmra.mxu0 %v5816
        %v6556 = vpop.f32.mrf.mxu0
        %v6557 = vadd.f32 %v6324, %v6556
        %v6558 = vpop.f32.mrf.mxu0
        %v6559 = vadd.f32 %v6326, %v6558
        %6560 = vmatmul.bf16.gmra.mxu0 %v5817
        %v6561 = vpop.f32.mrf.mxu0
        %v6562 = vadd.f32 %v6329, %v6561
        %v6563 = vpop.f32.mrf.mxu0
        %v6564 = vadd.f32 %v6331, %v6563
        %6565 = vmatmul.bf16.gmra.mxu0 %v5818
        %v6566 = vpop.f32.mrf.mxu0
        %v6567 = vadd.f32 %v6334, %v6566
        %v6568 = vpop.f32.mrf.mxu0
        %v6569 = vadd.f32 %v6336, %v6568
        %6570 = vmatmul.bf16.gmra.mxu0 %v5819
        %v6571 = vpop.f32.mrf.mxu0
        %v6572 = vadd.f32 %v6339, %v6571
        %v6573 = vpop.f32.mrf.mxu0
        %v6574 = vadd.f32 %v6341, %v6573
        %6575 = vmatmul.bf16.gmra.mxu0 %v5820
        %v6576 = vpop.f32.mrf.mxu0
        %v6577 = vadd.f32 %v6344, %v6576
        %v6578 = vpop.f32.mrf.mxu0
        %v6579 = vadd.f32 %v6346, %v6578
        %6580 = vmatmul.bf16.gmra.mxu0 %v5821
        %v6581 = vpop.f32.mrf.mxu0
        %v6582 = vadd.f32 %v6349, %v6581
        %v6583 = vpop.f32.mrf.mxu0
        %v6584 = vadd.f32 %v6351, %v6583
        %6585 = vmatmul.bf16.gmra.mxu0 %v5822
        %v6586 = vpop.f32.mrf.mxu0
        %v6587 = vadd.f32 %v6354, %v6586
        %v6588 = vpop.f32.mrf.mxu0
        %v6589 = vadd.f32 %v6356, %v6588
        %6590 = vmatmul.bf16.gmra.mxu0 %v5823
        %v6591 = vpop.f32.mrf.mxu0
        %v6592 = vadd.f32 %v6359, %v6591
        %v6593 = vpop.f32.mrf.mxu0
        %v6594 = vadd.f32 %v6361, %v6593
        %6595 = vmatmul.bf16.gmra.mxu0 %v5824
        %v6596 = vpop.f32.mrf.mxu0
        %v6597 = vadd.f32 %v6364, %v6596
        %v6598 = vpop.f32.mrf.mxu0
        %v6599 = vadd.f32 %v6366, %v6598
        %6600 = vmatmul.bf16.gmra.mxu0 %v5825
        %v6601 = vpop.f32.mrf.mxu0
        %v6602 = vadd.f32 %v6369, %v6601
        %v6603 = vpop.f32.mrf.mxu0
        %v6604 = vadd.f32 %v6371, %v6603
        %6605 = vmatmul.bf16.gmra.mxu0 %v5826
        %v6606 = vpop.f32.mrf.mxu0
        %v6607 = vadd.f32 %v6374, %v6606
        %v6608 = vpop.f32.mrf.mxu0
        %v6609 = vadd.f32 %v6376, %v6608
        %6610 = vmatmul.bf16.gmra.mxu0 %v5827
        %v6611 = vpop.f32.mrf.mxu0
        %v6612 = vadd.f32 %v6379, %v6611
        %v6613 = vpop.f32.mrf.mxu0
        %v6614 = vadd.f32 %v6381, %v6613
        %6615 = vmatmul.bf16.gmra.mxu0 %v5828
        %v6616 = vpop.f32.mrf.mxu0
        %v6617 = vadd.f32 %v6384, %v6616
        %v6618 = vpop.f32.mrf.mxu0
        %v6619 = vadd.f32 %v6386, %v6618
        %6620 = vmatmul.bf16.gmra.mxu0 %v5829
        %v6621 = vpop.f32.mrf.mxu0
        %v6622 = vadd.f32 %v6389, %v6621
        %v6623 = vpop.f32.mrf.mxu0
        %v6624 = vadd.f32 %v6391, %v6623
        %6625 = vmatmul.bf16.gmra.mxu0 %v5830
        %v6626 = vpop.f32.mrf.mxu0
        %v6627 = vadd.f32 %v6394, %v6626
        %v6628 = vpop.f32.mrf.mxu0
        %v6629 = vadd.f32 %v6396, %v6628
        %6630 = vmatmul.bf16.gmra.mxu0 %v5831
        %v6631 = vpop.f32.mrf.mxu0
        %v6632 = vadd.f32 %v6399, %v6631
        %v6633 = vpop.f32.mrf.mxu0
        %v6634 = vadd.f32 %v6401, %v6633
        %6635 = vmatmul.bf16.gmra.mxu0 %v5832
        %v6636 = vpop.f32.mrf.mxu0
        %v6637 = vadd.f32 %v6404, %v6636
        %v6638 = vpop.f32.mrf.mxu0
        %v6639 = vadd.f32 %v6406, %v6638
        %6640 = vmatmul.bf16.gmra.mxu0 %v5833
        %v6641 = vpop.f32.mrf.mxu0
        %v6642 = vadd.f32 %v6409, %v6641
        %v6643 = vpop.f32.mrf.mxu0
        %v6644 = vadd.f32 %v6411, %v6643
        %6645 = vmatmul.bf16.gmra.mxu0 %v5834
        %v6646 = vpop.f32.mrf.mxu0
        %v6647 = vadd.f32 %v6414, %v6646
        %v6648 = vpop.f32.mrf.mxu0
        %6649 = vdwg.mxu0
        %6650 = vmatpush.bf16.msra.mxu0 %v6143
        %6651 = vmatpush.bf16.msra.mxu0 %v6142
        %6652 = vmatpush.bf16.msra.mxu0 %v6141
        %6653 = vmatpush.bf16.msra.mxu0 %v6140
        %6654 = vmatpush.bf16.msra.mxu0 %v6139
        %6655 = vmatpush.bf16.msra.mxu0 %v6138
        %6656 = vmatpush.bf16.msra.mxu0 %v6137
        %6657 = vmatpush.bf16.msra.mxu0 %v6136
        %6658 = vmatmul.bf16.gmra.mxu0 %v5703
        %v6659 = vpop.f32.mrf.mxu0
        %v6660 = vadd.f32 %v6427, %v6659
        %v6661 = vpop.f32.mrf.mxu0
        %v6662 = vadd.f32 %v6429, %v6661
        %6663 = vmatmul.bf16.gmra.mxu0 %v5704
        %v6664 = vpop.f32.mrf.mxu0
        %v6665 = vadd.f32 %v6432, %v6664
        %v6666 = vpop.f32.mrf.mxu0
        %v6667 = vadd.f32 %v6434, %v6666
        %6668 = vmatmul.bf16.gmra.mxu0 %v5705
        %v6669 = vpop.f32.mrf.mxu0
        %v6670 = vadd.f32 %v6437, %v6669
        %v6671 = vpop.f32.mrf.mxu0
        %v6672 = vadd.f32 %v6439, %v6671
        %6673 = vmatmul.bf16.gmra.mxu0 %v5706
        %v6674 = vpop.f32.mrf.mxu0
        %v6675 = vadd.f32 %v6442, %v6674
        %v6676 = vpop.f32.mrf.mxu0
        %v6677 = vadd.f32 %v6444, %v6676
        %6678 = vmatmul.bf16.gmra.mxu0 %v5707
        %v6679 = vpop.f32.mrf.mxu0
        %v6680 = vadd.f32 %v6447, %v6679
        %v6681 = vpop.f32.mrf.mxu0
        %v6682 = vadd.f32 %v6449, %v6681
        %6683 = vmatmul.bf16.gmra.mxu0 %v5708
        %v6684 = vpop.f32.mrf.mxu0
        %v6685 = vadd.f32 %v6452, %v6684
        %v6686 = vpop.f32.mrf.mxu0
        %v6687 = vadd.f32 %v6454, %v6686
        %6688 = vmatmul.bf16.gmra.mxu0 %v5709
        %v6689 = vpop.f32.mrf.mxu0
        %v6690 = vadd.f32 %v6457, %v6689
        %v6691 = vpop.f32.mrf.mxu0
        %v6692 = vadd.f32 %v6459, %v6691
        %6693 = vmatmul.bf16.gmra.mxu0 %v5710
        %v6694 = vpop.f32.mrf.mxu0
        %v6695 = vadd.f32 %v6462, %v6694
        %v6696 = vpop.f32.mrf.mxu0
        %v6697 = vadd.f32 %v6464, %v6696
        %6698 = vmatmul.bf16.gmra.mxu0 %v5711
        %v6699 = vpop.f32.mrf.mxu0
        %v6700 = vadd.f32 %v6467, %v6699
        %v6701 = vpop.f32.mrf.mxu0
        %v6702 = vadd.f32 %v6469, %v6701
        %6703 = vmatmul.bf16.gmra.mxu0 %v5712
        %v6704 = vpop.f32.mrf.mxu0
        %v6705 = vadd.f32 %v6472, %v6704
        %v6706 = vpop.f32.mrf.mxu0
        %v6707 = vadd.f32 %v6474, %v6706
        %6708 = vmatmul.bf16.gmra.mxu0 %v5713
        %v6709 = vpop.f32.mrf.mxu0
        %v6710 = vadd.f32 %v6477, %v6709
        %v6711 = vpop.f32.mrf.mxu0
        %v6712 = vadd.f32 %v6479, %v6711
        %6713 = vmatmul.bf16.gmra.mxu0 %v5714
        %v6714 = vpop.f32.mrf.mxu0
        %v6715 = vadd.f32 %v6482, %v6714
        %v6716 = vpop.f32.mrf.mxu0
        %v6717 = vadd.f32 %v6484, %v6716
        %6718 = vmatmul.bf16.gmra.mxu0 %v5715
        %v6719 = vpop.f32.mrf.mxu0
        %v6720 = vadd.f32 %v6487, %v6719
        %v6721 = vpop.f32.mrf.mxu0
        %v6722 = vadd.f32 %v6489, %v6721
        %6723 = vmatmul.bf16.gmra.mxu0 %v5716
        %v6724 = vpop.f32.mrf.mxu0
        %v6725 = vadd.f32 %v6492, %v6724
        %v6726 = vpop.f32.mrf.mxu0
        %v6727 = vadd.f32 %v6494, %v6726
        %6728 = vmatmul.bf16.gmra.mxu0 %v5717
        %v6729 = vpop.f32.mrf.mxu0
        %v6730 = vadd.f32 %v6497, %v6729
        %v6731 = vpop.f32.mrf.mxu0
        %v6732 = vadd.f32 %v6499, %v6731
        %6733 = vmatmul.bf16.gmra.mxu0 %v5718
        %v6734 = vpop.f32.mrf.mxu0
        %v6735 = vadd.f32 %v6502, %v6734
        %v6736 = vpop.f32.mrf.mxu0
        %v6737 = vadd.f32 %v6504, %v6736
        %6738 = vmatmul.bf16.gmra.mxu0 %v5719
        %v6739 = vpop.f32.mrf.mxu0
        %v6740 = vadd.f32 %v6507, %v6739
        %v6741 = vpop.f32.mrf.mxu0
        %v6742 = vadd.f32 %v6509, %v6741
        %6743 = vmatmul.bf16.gmra.mxu0 %v5720
        %v6744 = vpop.f32.mrf.mxu0
        %v6745 = vadd.f32 %v6512, %v6744
        %v6746 = vpop.f32.mrf.mxu0
        %v6747 = vadd.f32 %v6514, %v6746
        %6748 = vmatmul.bf16.gmra.mxu0 %v5721
        %v6749 = vpop.f32.mrf.mxu0
        %v6750 = vadd.f32 %v6517, %v6749
        %v6751 = vpop.f32.mrf.mxu0
        %v6752 = vadd.f32 %v6519, %v6751
        %6753 = vmatmul.bf16.gmra.mxu0 %v5722
        %v6754 = vpop.f32.mrf.mxu0
        %v6755 = vadd.f32 %v6522, %v6754
        %v6756 = vpop.f32.mrf.mxu0
        %v6757 = vadd.f32 %v6524, %v6756
        %6758 = vmatmul.bf16.gmra.mxu0 %v5723
        %v6759 = vpop.f32.mrf.mxu0
        %v6760 = vadd.f32 %v6527, %v6759
        %v6761 = vpop.f32.mrf.mxu0
        %v6762 = vadd.f32 %v6529, %v6761
        %6763 = vmatmul.bf16.gmra.mxu0 %v5724
        %v6764 = vpop.f32.mrf.mxu0
        %v6765 = vadd.f32 %v6532, %v6764
        %v6766 = vpop.f32.mrf.mxu0
        %v6767 = vadd.f32 %v6534, %v6766
        %6768 = vmatmul.bf16.gmra.mxu0 %v5725
        %v6769 = vpop.f32.mrf.mxu0
        %v6770 = vadd.f32 %v6537, %v6769
        %v6771 = vpop.f32.mrf.mxu0
        %v6772 = vadd.f32 %v6539, %v6771
        %6773 = vmatmul.bf16.gmra.mxu0 %v5726
        %v6774 = vpop.f32.mrf.mxu0
        %v6775 = vadd.f32 %v6542, %v6774
        %v6776 = vpop.f32.mrf.mxu0
        %v6777 = vadd.f32 %v6544, %v6776
        %6778 = vmatmul.bf16.gmra.mxu0 %v5727
        %v6779 = vpop.f32.mrf.mxu0
        %v6780 = vadd.f32 %v6547, %v6779
        %v6781 = vpop.f32.mrf.mxu0
        %v6782 = vadd.f32 %v6549, %v6781
        %6783 = vmatmul.bf16.gmra.mxu0 %v5728
        %v6784 = vpop.f32.mrf.mxu0
        %v6785 = vadd.f32 %v6552, %v6784
        %v6786 = vpop.f32.mrf.mxu0
        %v6787 = vadd.f32 %v6554, %v6786
        %6788 = vmatmul.bf16.gmra.mxu0 %v5729
        %v6789 = vpop.f32.mrf.mxu0
        %v6790 = vadd.f32 %v6557, %v6789
        %v6791 = vpop.f32.mrf.mxu0
        %v6792 = vadd.f32 %v6559, %v6791
        %6793 = vmatmul.bf16.gmra.mxu0 %v5730
        %v6794 = vpop.f32.mrf.mxu0
        %v6795 = vadd.f32 %v6562, %v6794
        %v6796 = vpop.f32.mrf.mxu0
        %v6797 = vadd.f32 %v6564, %v6796
        %6798 = vmatmul.bf16.gmra.mxu0 %v5731
        %v6799 = vpop.f32.mrf.mxu0
        %v6800 = vadd.f32 %v6567, %v6799
        %v6801 = vpop.f32.mrf.mxu0
        %v6802 = vadd.f32 %v6569, %v6801
        %6803 = vmatmul.bf16.gmra.mxu0 %v5732
        %v6804 = vpop.f32.mrf.mxu0
        %v6805 = vadd.f32 %v6572, %v6804
        %v6806 = vpop.f32.mrf.mxu0
        %v6807 = vadd.f32 %v6574, %v6806
        %6808 = vmatmul.bf16.gmra.mxu0 %v5733
        %v6809 = vpop.f32.mrf.mxu0
        %v6810 = vadd.f32 %v6577, %v6809
        %v6811 = vpop.f32.mrf.mxu0
        %v6812 = vadd.f32 %v6579, %v6811
        %6813 = vmatmul.bf16.gmra.mxu0 %v5734
        %v6814 = vpop.f32.mrf.mxu0
        %v6815 = vadd.f32 %v6582, %v6814
        %v6816 = vpop.f32.mrf.mxu0
        %v6817 = vadd.f32 %v6584, %v6816
        %6818 = vmatmul.bf16.gmra.mxu0 %v5735
        %v6819 = vpop.f32.mrf.mxu0
        %v6820 = vadd.f32 %v6587, %v6819
        %v6821 = vpop.f32.mrf.mxu0
        %v6822 = vadd.f32 %v6589, %v6821
        %6823 = vmatmul.bf16.gmra.mxu0 %v5736
        %v6824 = vpop.f32.mrf.mxu0
        %v6825 = vadd.f32 %v6592, %v6824
        %v6826 = vpop.f32.mrf.mxu0
        %v6827 = vadd.f32 %v6594, %v6826
        %6828 = vmatmul.bf16.gmra.mxu0 %v5737
        %v6829 = vpop.f32.mrf.mxu0
        %v6830 = vadd.f32 %v6597, %v6829
        %v6831 = vpop.f32.mrf.mxu0
        %v6832 = vadd.f32 %v6599, %v6831
        %6833 = vmatmul.bf16.gmra.mxu0 %v5738
        %v6834 = vpop.f32.mrf.mxu0
        %v6835 = vadd.f32 %v6602, %v6834
        %v6836 = vpop.f32.mrf.mxu0
        %v6837 = vadd.f32 %v6604, %v6836
        %6838 = vmatmul.bf16.gmra.mxu0 %v5739
        %v6839 = vpop.f32.mrf.mxu0
        %v6840 = vadd.f32 %v6607, %v6839
        %v6841 = vpop.f32.mrf.mxu0
        %v6842 = vadd.f32 %v6609, %v6841
        %6843 = vmatmul.bf16.gmra.mxu0 %v5740
        %v6844 = vpop.f32.mrf.mxu0
        %v6845 = vadd.f32 %v6612, %v6844
        %v6846 = vpop.f32.mrf.mxu0
        %v6847 = vadd.f32 %v6614, %v6846
        %6848 = vmatmul.bf16.gmra.mxu0 %v5741
        %v6849 = vpop.f32.mrf.mxu0
        %v6850 = vadd.f32 %v6617, %v6849
        %v6851 = vpop.f32.mrf.mxu0
        %v6852 = vadd.f32 %v6619, %v6851
        %6853 = vmatmul.bf16.gmra.mxu0 %v5898
        %v6854 = vpop.f32.mrf.mxu0
        %v6855 = vadd.f32 %v6622, %v6854
        %v6856 = vpop.f32.mrf.mxu0
        %v6857 = vadd.f32 %v6624, %v6856
        %6858 = vmatmul.bf16.gmra.mxu0 %v5899
        %v6859 = vpop.f32.mrf.mxu0
        %v6860 = vadd.f32 %v6627, %v6859
        %v6861 = vpop.f32.mrf.mxu0
        %v6862 = vadd.f32 %v6629, %v6861
        %6863 = vmatmul.bf16.gmra.mxu0 %v5900
        %v6864 = vpop.f32.mrf.mxu0
        %v6865 = vadd.f32 %v6632, %v6864
        %v6866 = vpop.f32.mrf.mxu0
        %v6867 = vadd.f32 %v6634, %v6866
        %6868 = vmatmul.bf16.gmra.mxu0 %v5901
        %v6869 = vpop.f32.mrf.mxu0
        %v6870 = vadd.f32 %v6637, %v6869
        %v6871 = vpop.f32.mrf.mxu0
        %v6872 = vadd.f32 %v6639, %v6871
        %6873 = vmatmul.bf16.gmra.mxu0 %v5902
        %v6874 = vpop.f32.mrf.mxu0
        %v6875 = vadd.f32 %v6642, %v6874
        %v6876 = vpop.f32.mrf.mxu0
        %v6877 = vadd.f32 %v6644, %v6876
        %6878 = vmatmul.bf16.gmra.mxu0 %v5903
        %v6879 = vpop.f32.mrf.mxu0
        %v6880 = vadd.f32 %v6647, %v6879
        %v6881 = vpop.f32.mrf.mxu0
        %6882 = vdwg.mxu0
        %6883 = vmatpush.bf16.msra.mxu0 %v6151
        %6884 = vmatpush.bf16.msra.mxu0 %v6150
        %6885 = vmatpush.bf16.msra.mxu0 %v6149
        %6886 = vmatpush.bf16.msra.mxu0 %v6148
        %6887 = vmatpush.bf16.msra.mxu0 %v6147
        %6888 = vmatpush.bf16.msra.mxu0 %v6146
        %6889 = vmatpush.bf16.msra.mxu0 %v6145
        %6890 = vmatpush.bf16.msra.mxu0 %v6144
        %6891 = vmatmul.bf16.gmra.mxu0 %v5795
        %v6892 = vpop.f32.mrf.mxu0
        %v6893 = vadd.f32 %v6660, %v6892
        %v6894 = vpop.f32.mrf.mxu0
        %v6895 = vadd.f32 %v6662, %v6894
        %6896 = vmatmul.bf16.gmra.mxu0 %v5796
        %v6897 = vpop.f32.mrf.mxu0
        %v6898 = vadd.f32 %v6665, %v6897
        %v6899 = vpop.f32.mrf.mxu0
        %v6900 = vadd.f32 %v6667, %v6899
        %6901 = vmatmul.bf16.gmra.mxu0 %v5797
        %v6902 = vpop.f32.mrf.mxu0
        %v6903 = vadd.f32 %v6670, %v6902
        %v6904 = vpop.f32.mrf.mxu0
        %v6905 = vadd.f32 %v6672, %v6904
        %6906 = vmatmul.bf16.gmra.mxu0 %v5798
        %v6907 = vpop.f32.mrf.mxu0
        %v6908 = vadd.f32 %v6675, %v6907
        %v6909 = vpop.f32.mrf.mxu0
        %v6910 = vadd.f32 %v6677, %v6909
        %6911 = vmatmul.bf16.gmra.mxu0 %v5799
        %v6912 = vpop.f32.mrf.mxu0
        %v6913 = vadd.f32 %v6680, %v6912
        %v6914 = vpop.f32.mrf.mxu0
        %v6915 = vadd.f32 %v6682, %v6914
        %6916 = vmatmul.bf16.gmra.mxu0 %v5800
        %v6917 = vpop.f32.mrf.mxu0
        %v6918 = vadd.f32 %v6685, %v6917
        %v6919 = vpop.f32.mrf.mxu0
        %v6920 = vadd.f32 %v6687, %v6919
        %6921 = vmatmul.bf16.gmra.mxu0 %v5801
        %v6922 = vpop.f32.mrf.mxu0
        %v6923 = vadd.f32 %v6690, %v6922
        %v6924 = vpop.f32.mrf.mxu0
        %v6925 = vadd.f32 %v6692, %v6924
        %6926 = vmatmul.bf16.gmra.mxu0 %v5802
        %v6927 = vpop.f32.mrf.mxu0
        %v6928 = vadd.f32 %v6695, %v6927
        %v6929 = vpop.f32.mrf.mxu0
        %v6930 = vadd.f32 %v6697, %v6929
        %6931 = vmatmul.bf16.gmra.mxu0 %v5803
        %v6932 = vpop.f32.mrf.mxu0
        %v6933 = vadd.f32 %v6700, %v6932
        %v6934 = vpop.f32.mrf.mxu0
        %v6935 = vadd.f32 %v6702, %v6934
        %6936 = vmatmul.bf16.gmra.mxu0 %v5804
        %v6937 = vpop.f32.mrf.mxu0
        %v6938 = vadd.f32 %v6705, %v6937
        %v6939 = vpop.f32.mrf.mxu0
        %v6940 = vadd.f32 %v6707, %v6939
        %6941 = vmatmul.bf16.gmra.mxu0 %v5805
        %v6942 = vpop.f32.mrf.mxu0
        %v6943 = vadd.f32 %v6710, %v6942
        %v6944 = vpop.f32.mrf.mxu0
        %v6945 = vadd.f32 %v6712, %v6944
        %6946 = vmatmul.bf16.gmra.mxu0 %v5806
        %v6947 = vpop.f32.mrf.mxu0
        %v6948 = vadd.f32 %v6715, %v6947
        %v6949 = vpop.f32.mrf.mxu0
        %v6950 = vadd.f32 %v6717, %v6949
        %6951 = vmatmul.bf16.gmra.mxu0 %v5807
        %v6952 = vpop.f32.mrf.mxu0
        %v6953 = vadd.f32 %v6720, %v6952
        %v6954 = vpop.f32.mrf.mxu0
        %v6955 = vadd.f32 %v6722, %v6954
        %6956 = vmatmul.bf16.gmra.mxu0 %v5808
        %v6957 = vpop.f32.mrf.mxu0
        %v6958 = vadd.f32 %v6725, %v6957
        %v6959 = vpop.f32.mrf.mxu0
        %v6960 = vadd.f32 %v6727, %v6959
        %6961 = vmatmul.bf16.gmra.mxu0 %v5809
        %v6962 = vpop.f32.mrf.mxu0
        %v6963 = vadd.f32 %v6730, %v6962
        %v6964 = vpop.f32.mrf.mxu0
        %v6965 = vadd.f32 %v6732, %v6964
        %6966 = vmatmul.bf16.gmra.mxu0 %v5810
        %v6967 = vpop.f32.mrf.mxu0
        %v6968 = vadd.f32 %v6735, %v6967
        %v6969 = vpop.f32.mrf.mxu0
        %v6970 = vadd.f32 %v6737, %v6969
        %6971 = vmatmul.bf16.gmra.mxu0 %v5811
        %v6972 = vpop.f32.mrf.mxu0
        %v6973 = vadd.f32 %v6740, %v6972
        %v6974 = vpop.f32.mrf.mxu0
        %v6975 = vadd.f32 %v6742, %v6974
        %6976 = vmatmul.bf16.gmra.mxu0 %v5812
        %v6977 = vpop.f32.mrf.mxu0
        %v6978 = vadd.f32 %v6745, %v6977
        %v6979 = vpop.f32.mrf.mxu0
        %v6980 = vadd.f32 %v6747, %v6979
        %6981 = vmatmul.bf16.gmra.mxu0 %v5813
        %v6982 = vpop.f32.mrf.mxu0
        %v6983 = vadd.f32 %v6750, %v6982
        %v6984 = vpop.f32.mrf.mxu0
        %v6985 = vadd.f32 %v6752, %v6984
        %6986 = vmatmul.bf16.gmra.mxu0 %v5814
        %v6987 = vpop.f32.mrf.mxu0
        %v6988 = vadd.f32 %v6755, %v6987
        %v6989 = vpop.f32.mrf.mxu0
        %v6990 = vadd.f32 %v6757, %v6989
        %6991 = vmatmul.bf16.gmra.mxu0 %v5815
        %v6992 = vpop.f32.mrf.mxu0
        %v6993 = vadd.f32 %v6760, %v6992
        %v6994 = vpop.f32.mrf.mxu0
        %v6995 = vadd.f32 %v6762, %v6994
        %6996 = vmatmul.bf16.gmra.mxu0 %v5816
        %v6997 = vpop.f32.mrf.mxu0
        %v6998 = vadd.f32 %v6765, %v6997
        %v6999 = vpop.f32.mrf.mxu0
        %v7000 = vadd.f32 %v6767, %v6999
        %7001 = vmatmul.bf16.gmra.mxu0 %v5817
        %v7002 = vpop.f32.mrf.mxu0
        %v7003 = vadd.f32 %v6770, %v7002
        %v7004 = vpop.f32.mrf.mxu0
        %v7005 = vadd.f32 %v6772, %v7004
        %7006 = vmatmul.bf16.gmra.mxu0 %v5818
        %v7007 = vpop.f32.mrf.mxu0
        %v7008 = vadd.f32 %v6775, %v7007
        %v7009 = vpop.f32.mrf.mxu0
        %v7010 = vadd.f32 %v6777, %v7009
        %7011 = vmatmul.bf16.gmra.mxu0 %v5819
        %v7012 = vpop.f32.mrf.mxu0
        %v7013 = vadd.f32 %v6780, %v7012
        %v7014 = vpop.f32.mrf.mxu0
        %v7015 = vadd.f32 %v6782, %v7014
        %7016 = vmatmul.bf16.gmra.mxu0 %v5820
        %v7017 = vpop.f32.mrf.mxu0
        %v7018 = vadd.f32 %v6785, %v7017
        %v7019 = vpop.f32.mrf.mxu0
        %v7020 = vadd.f32 %v6787, %v7019
        %7021 = vmatmul.bf16.gmra.mxu0 %v5821
        %v7022 = vpop.f32.mrf.mxu0
        %v7023 = vadd.f32 %v6790, %v7022
        %v7024 = vpop.f32.mrf.mxu0
        %v7025 = vadd.f32 %v6792, %v7024
        %7026 = vmatmul.bf16.gmra.mxu0 %v5822
        %v7027 = vpop.f32.mrf.mxu0
        %v7028 = vadd.f32 %v6795, %v7027
        %v7029 = vpop.f32.mrf.mxu0
        %v7030 = vadd.f32 %v6797, %v7029
        %7031 = vmatmul.bf16.gmra.mxu0 %v5823
        %v7032 = vpop.f32.mrf.mxu0
        %v7033 = vadd.f32 %v6800, %v7032
        %v7034 = vpop.f32.mrf.mxu0
        %v7035 = vadd.f32 %v6802, %v7034
        %7036 = vmatmul.bf16.gmra.mxu0 %v5824
        %v7037 = vpop.f32.mrf.mxu0
        %v7038 = vadd.f32 %v6805, %v7037
        %v7039 = vpop.f32.mrf.mxu0
        %v7040 = vadd.f32 %v6807, %v7039
        %7041 = vmatmul.bf16.gmra.mxu0 %v5825
        %v7042 = vpop.f32.mrf.mxu0
        %v7043 = vadd.f32 %v6810, %v7042
        %v7044 = vpop.f32.mrf.mxu0
        %v7045 = vadd.f32 %v6812, %v7044
        %7046 = vmatmul.bf16.gmra.mxu0 %v5826
        %v7047 = vpop.f32.mrf.mxu0
        %v7048 = vadd.f32 %v6815, %v7047
        %v7049 = vpop.f32.mrf.mxu0
        %v7050 = vadd.f32 %v6817, %v7049
        %7051 = vmatmul.bf16.gmra.mxu0 %v5827
        %v7052 = vpop.f32.mrf.mxu0
        %v7053 = vadd.f32 %v6820, %v7052
        %v7054 = vpop.f32.mrf.mxu0
        %v7055 = vadd.f32 %v6822, %v7054
        %7056 = vmatmul.bf16.gmra.mxu0 %v5828
        %v7057 = vpop.f32.mrf.mxu0
        %v7058 = vadd.f32 %v6825, %v7057
        %v7059 = vpop.f32.mrf.mxu0
        %v7060 = vadd.f32 %v6827, %v7059
        %7061 = vmatmul.bf16.gmra.mxu0 %v5829
        %v7062 = vpop.f32.mrf.mxu0
        %v7063 = vadd.f32 %v6830, %v7062
        %v7064 = vpop.f32.mrf.mxu0
        %v7065 = vadd.f32 %v6832, %v7064
        %7066 = vmatmul.bf16.gmra.mxu0 %v5830
        %v7067 = vpop.f32.mrf.mxu0
        %v7068 = vadd.f32 %v6835, %v7067
        %v7069 = vpop.f32.mrf.mxu0
        %v7070 = vadd.f32 %v6837, %v7069
        %7071 = vmatmul.bf16.gmra.mxu0 %v5831
        %v7072 = vpop.f32.mrf.mxu0
        %v7073 = vadd.f32 %v6840, %v7072
        %v7074 = vpop.f32.mrf.mxu0
        %v7075 = vadd.f32 %v6842, %v7074
        %7076 = vmatmul.bf16.gmra.mxu0 %v5832
        %v7077 = vpop.f32.mrf.mxu0
        %v7078 = vadd.f32 %v6845, %v7077
        %v7079 = vpop.f32.mrf.mxu0
        %v7080 = vadd.f32 %v6847, %v7079
        %7081 = vmatmul.bf16.gmra.mxu0 %v5833
        %v7082 = vpop.f32.mrf.mxu0
        %v7083 = vadd.f32 %v6850, %v7082
        %v7084 = vpop.f32.mrf.mxu0
        %v7085 = vadd.f32 %v6852, %v7084
        %7086 = vmatmul.bf16.gmra.mxu0 %v5912
        %v7087 = vpop.f32.mrf.mxu0
        %v7088 = vadd.f32 %v6855, %v7087
        %v7089 = vpop.f32.mrf.mxu0
        %v7090 = vadd.f32 %v6857, %v7089
        %7091 = vmatmul.bf16.gmra.mxu0 %v5913
        %v7092 = vpop.f32.mrf.mxu0
        %v7093 = vadd.f32 %v6860, %v7092
        %v7094 = vpop.f32.mrf.mxu0
        %v7095 = vadd.f32 %v6862, %v7094
        %7096 = vmatmul.bf16.gmra.mxu0 %v5914
        %v7097 = vpop.f32.mrf.mxu0
        %v7098 = vadd.f32 %v6865, %v7097
        %v7099 = vpop.f32.mrf.mxu0
        %v7100 = vadd.f32 %v6867, %v7099
        %7101 = vmatmul.bf16.gmra.mxu0 %v5915
        %v7102 = vpop.f32.mrf.mxu0
        %v7103 = vadd.f32 %v6870, %v7102
        %v7104 = vpop.f32.mrf.mxu0
        %v7105 = vadd.f32 %v6872, %v7104
        %7106 = vmatmul.bf16.gmra.mxu0 %v5916
        %v7107 = vpop.f32.mrf.mxu0
        %v7108 = vadd.f32 %v6875, %v7107
        %v7109 = vpop.f32.mrf.mxu0
        %v7110 = vadd.f32 %v6877, %v7109
        %7111 = vmatmul.bf16.gmra.mxu0 %v5917
        %v7112 = vpop.f32.mrf.mxu0
        %v7113 = vadd.f32 %v6880, %v7112
        %v7114 = vpop.f32.mrf.mxu0
        %7115 = vdwg.mxu0
        %v7116 = vmax.f32 %v6893, 0.0
        %v7117 = vmax.f32 %v6895, 0.0
        %v7118 = vmax.f32 %v6898, 0.0
        %v7119 = vmax.f32 %v6900, 0.0
        %v7120 = vmax.f32 %v6903, 0.0
        %v7121 = vmax.f32 %v6905, 0.0
        %v7122 = vmax.f32 %v6908, 0.0
        %v7123 = vmax.f32 %v6910, 0.0
        %v7124 = vmax.f32 %v6913, 0.0
        %v7125 = vmax.f32 %v6915, 0.0
        %v7126 = vmax.f32 %v6918, 0.0
        %v7127 = vmax.f32 %v6920, 0.0
        %v7128 = vmax.f32 %v6923, 0.0
        %v7129 = vmax.f32 %v6925, 0.0
        %v7130 = vmax.f32 %v6928, 0.0
        %v7131 = vmax.f32 %v6930, 0.0
        %v7132 = vmax.f32 %v6933, 0.0
        %v7133 = vmax.f32 %v6935, 0.0
        %v7134 = vmax.f32 %v6938, 0.0
        %v7135 = vmax.f32 %v6940, 0.0
        %v7136 = vmax.f32 %v6943, 0.0
        %v7137 = vmax.f32 %v6945, 0.0
        %v7138 = vmax.f32 %v6948, 0.0
        %v7139 = vmax.f32 %v6950, 0.0
        %v7140 = vmax.f32 %v6953, 0.0
        %v7141 = vmax.f32 %v6955, 0.0
        %v7142 = vmax.f32 %v6958, 0.0
        %v7143 = vmax.f32 %v6960, 0.0
        %v7144 = vmax.f32 %v6963, 0.0
        %v7145 = vmax.f32 %v6965, 0.0
        %v7146 = vmax.f32 %v6968, 0.0
        %v7147 = vmax.f32 %v6970, 0.0
        %v7148 = vmax.f32 %v6973, 0.0
        %v7149 = vmax.f32 %v6975, 0.0
        %v7150 = vmax.f32 %v6978, 0.0
        %v7151 = vmax.f32 %v6980, 0.0
        %v7152 = vmax.f32 %v6983, 0.0
        %v7153 = vmax.f32 %v6985, 0.0
        %v7154 = vmax.f32 %v6988, 0.0
        %v7155 = vmax.f32 %v6990, 0.0
        %v7156 = vmax.f32 %v6993, 0.0
        %v7157 = vmax.f32 %v6995, 0.0
        %v7158 = vmax.f32 %v6998, 0.0
        %v7159 = vmax.f32 %v7000, 0.0
        %v7160 = vmax.f32 %v7003, 0.0
        %v7161 = vmax.f32 %v7005, 0.0
        %v7162 = vmax.f32 %v7008, 0.0
        %v7163 = vmax.f32 %v7010, 0.0
        %v7164 = vmax.f32 %v7013, 0.0
        %v7165 = vmax.f32 %v7015, 0.0
        %v7166 = vmax.f32 %v7018, 0.0
        %v7167 = vmax.f32 %v7020, 0.0
        %v7168 = vmax.f32 %v7023, 0.0
        %v7169 = vmax.f32 %v7025, 0.0
        %v7170 = vmax.f32 %v7028, 0.0
        %v7171 = vmax.f32 %v7030, 0.0
        %v7172 = vmax.f32 %v7033, 0.0
        %v7173 = vmax.f32 %v7035, 0.0
        %v7174 = vmax.f32 %v7038, 0.0
        %v7175 = vmax.f32 %v7040, 0.0
        %v7176 = vmax.f32 %v7043, 0.0
        %v7177 = vmax.f32 %v7045, 0.0
        %v7178 = vmax.f32 %v7048, 0.0
        %v7179 = vmax.f32 %v7050, 0.0
        %v7180 = vmax.f32 %v7053, 0.0
        %v7181 = vmax.f32 %v7055, 0.0
        %v7182 = vmax.f32 %v7058, 0.0
        %v7183 = vmax.f32 %v7060, 0.0
        %v7184 = vmax.f32 %v7063, 0.0
        %v7185 = vmax.f32 %v7065, 0.0
        %v7186 = vmax.f32 %v7068, 0.0
        %v7187 = vmax.f32 %v7070, 0.0
        %v7188 = vmax.f32 %v7073, 0.0
        %v7189 = vmax.f32 %v7075, 0.0
        %v7190 = vmax.f32 %v7078, 0.0
        %v7191 = vmax.f32 %v7080, 0.0
        %v7192 = vmax.f32 %v7083, 0.0
        %v7193 = vmax.f32 %v7085, 0.0
        %v7194 = vmax.f32 %v7088, 0.0
        %v7195 = vmax.f32 %v7090, 0.0
        %v7196 = vmax.f32 %v7093, 0.0
        %v7197 = vmax.f32 %v7095, 0.0
        %v7198 = vmax.f32 %v7098, 0.0
        %v7199 = vmax.f32 %v7100, 0.0
        %v7200 = vmax.f32 %v7103, 0.0
        %v7201 = vmax.f32 %v7105, 0.0
        %v7202 = vmax.f32 %v7108, 0.0
        %v7203 = vmax.f32 %v7110, 0.0
        %v7204 = vmax.f32 %v7113, 0.0
        %v7205 = vpack.c.bf16 %v7116, %v7116
        %v7206 = vpack.c.bf16 %v7117, %v7117
        %v7207 = vpack.c.bf16 %v7118, %v7118
        %v7208 = vpack.c.bf16 %v7119, %v7119
        %v7209 = vpack.c.bf16 %v7120, %v7120
        %v7210 = vpack.c.bf16 %v7121, %v7121
        %v7211 = vpack.c.bf16 %v7122, %v7122
        %v7212 = vpack.c.bf16 %v7123, %v7123
        %v7213 = vpack.c.bf16 %v7124, %v7124
        %v7214 = vpack.c.bf16 %v7125, %v7125
        %v7215 = vpack.c.bf16 %v7126, %v7126
        %v7216 = vpack.c.bf16 %v7127, %v7127
        %v7217 = vpack.c.bf16 %v7128, %v7128
        %v7218 = vpack.c.bf16 %v7129, %v7129
        %v7219 = vpack.c.bf16 %v7130, %v7130
        %v7220 = vpack.c.bf16 %v7131, %v7131
        %v7221 = vpack.c.bf16 %v7132, %v7132
        %v7222 = vpack.c.bf16 %v7133, %v7133
        %v7223 = vpack.c.bf16 %v7134, %v7134
        %v7224 = vpack.c.bf16 %v7135, %v7135
        %v7225 = vpack.c.bf16 %v7136, %v7136
        %v7226 = vpack.c.bf16 %v7137, %v7137
        %v7227 = vpack.c.bf16 %v7138, %v7138
        %v7228 = vpack.c.bf16 %v7139, %v7139
        %v7229 = vpack.c.bf16 %v7140, %v7140
        %v7230 = vpack.c.bf16 %v7141, %v7141
        %v7231 = vpack.c.bf16 %v7142, %v7142
        %v7232 = vpack.c.bf16 %v7143, %v7143
        %v7233 = vpack.c.bf16 %v7144, %v7144
        %v7234 = vpack.c.bf16 %v7145, %v7145
        %v7235 = vpack.c.bf16 %v7146, %v7146
        %v7236 = vpack.c.bf16 %v7147, %v7147
        %v7237 = vpack.c.bf16 %v7148, %v7148
        %v7238 = vpack.c.bf16 %v7149, %v7149
        %v7239 = vpack.c.bf16 %v7150, %v7150
        %v7240 = vpack.c.bf16 %v7151, %v7151
        %v7241 = vpack.c.bf16 %v7152, %v7152
        %v7242 = vpack.c.bf16 %v7153, %v7153
        %v7243 = vpack.c.bf16 %v7154, %v7154
        %v7244 = vpack.c.bf16 %v7155, %v7155
        %v7245 = vpack.c.bf16 %v7156, %v7156
        %v7246 = vpack.c.bf16 %v7157, %v7157
        %v7247 = vpack.c.bf16 %v7158, %v7158
        %v7248 = vpack.c.bf16 %v7159, %v7159
        %v7249 = vpack.c.bf16 %v7160, %v7160
        %v7250 = vpack.c.bf16 %v7161, %v7161
        %v7251 = vpack.c.bf16 %v7162, %v7162
        %v7252 = vpack.c.bf16 %v7163, %v7163
        %v7253 = vpack.c.bf16 %v7164, %v7164
        %v7254 = vpack.c.bf16 %v7165, %v7165
        %v7255 = vpack.c.bf16 %v7166, %v7166
        %v7256 = vpack.c.bf16 %v7167, %v7167
        %v7257 = vpack.c.bf16 %v7168, %v7168
        %v7258 = vpack.c.bf16 %v7169, %v7169
        %v7259 = vpack.c.bf16 %v7170, %v7170
        %v7260 = vpack.c.bf16 %v7171, %v7171
        %v7261 = vpack.c.bf16 %v7172, %v7172
        %v7262 = vpack.c.bf16 %v7173, %v7173
        %v7263 = vpack.c.bf16 %v7174, %v7174
        %v7264 = vpack.c.bf16 %v7175, %v7175
        %v7265 = vpack.c.bf16 %v7176, %v7176
        %v7266 = vpack.c.bf16 %v7177, %v7177
        %v7267 = vpack.c.bf16 %v7178, %v7178
        %v7268 = vpack.c.bf16 %v7179, %v7179
        %v7269 = vpack.c.bf16 %v7180, %v7180
        %v7270 = vpack.c.bf16 %v7181, %v7181
        %v7271 = vpack.c.bf16 %v7182, %v7182
        %v7272 = vpack.c.bf16 %v7183, %v7183
        %v7273 = vpack.c.bf16 %v7184, %v7184
        %v7274 = vpack.c.bf16 %v7185, %v7185
        %v7275 = vpack.c.bf16 %v7186, %v7186
        %v7276 = vpack.c.bf16 %v7187, %v7187
        %v7277 = vpack.c.bf16 %v7188, %v7188
        %v7278 = vpack.c.bf16 %v7189, %v7189
        %v7279 = vpack.c.bf16 %v7190, %v7190
        %v7280 = vpack.c.bf16 %v7191, %v7191
        %v7281 = vpack.c.bf16 %v7192, %v7192
        %v7282 = vpack.c.bf16 %v7193, %v7193
        %v7283 = vpack.c.bf16 %v7194, %v7194
        %v7284 = vpack.c.bf16 %v7195, %v7195
        %v7285 = vpack.c.bf16 %v7196, %v7196
        %v7286 = vpack.c.bf16 %v7197, %v7197
        %v7287 = vpack.c.bf16 %v7198, %v7198
        %v7288 = vpack.c.bf16 %v7199, %v7199
        %v7289 = vpack.c.bf16 %v7200, %v7200
        %v7290 = vpack.c.bf16 %v7201, %v7201
        %v7291 = vpack.c.bf16 %v7202, %v7202
        %v7292 = vpack.c.bf16 %v7203, %v7203
        %v7293 = vpack.c.bf16 %v7204, %v7204
        %v7361 = vunpack.c.l.b16 %v7205
        %v7362 = vunpack.c.l.b16 %v7206
        %v7363 = vunpack.c.l.b16 %v7207
        %v7364 = vunpack.c.l.b16 %v7208
        %v7365 = vunpack.c.l.b16 %v7209
        %v7366 = vunpack.c.l.b16 %v7210
        %v7367 = vunpack.c.l.b16 %v7211
        %v7368 = vunpack.c.l.b16 %v7212
        %v7369 = vunpack.c.l.b16 %v7213
        %v7370 = vunpack.c.l.b16 %v7214
        %v7371 = vunpack.c.l.b16 %v7215
        %v7372 = vunpack.c.l.b16 %v7216
        %v7373 = vunpack.c.l.b16 %v7217
        %v7374 = vunpack.c.l.b16 %v7218
        %v7375 = vunpack.c.l.b16 %v7219
        %v7376 = vunpack.c.l.b16 %v7220
        %v7377 = vunpack.c.l.b16 %v7221
        %v7378 = vunpack.c.l.b16 %v7222
        %v7379 = vunpack.c.l.b16 %v7223
        %v7380 = vunpack.c.l.b16 %v7224
        %v7381 = vunpack.c.l.b16 %v7225
        %v7382 = vunpack.c.l.b16 %v7226
        %v7383 = vunpack.c.l.b16 %v7227
        %v7384 = vunpack.c.l.b16 %v7228
        %v7385 = vunpack.c.l.b16 %v7229
        %v7386 = vunpack.c.l.b16 %v7230
        %v7387 = vunpack.c.l.b16 %v7231
        %v7388 = vunpack.c.l.b16 %v7232
        %v7389 = vunpack.c.l.b16 %v7233
        %v7390 = vunpack.c.l.b16 %v7234
        %v7391 = vunpack.c.l.b16 %v7235
        %v7392 = vunpack.c.l.b16 %v7236
        %v7393 = vunpack.c.l.b16 %v7237
        %v7394 = vunpack.c.l.b16 %v7238
        %v7395 = vunpack.c.l.b16 %v7239
        %v7396 = vunpack.c.l.b16 %v7240
        %v7397 = vunpack.c.l.b16 %v7241
        %v7398 = vunpack.c.l.b16 %v7242
        %v7399 = vunpack.c.l.b16 %v7243
        %v7400 = vunpack.c.l.b16 %v7244
        %v7401 = vunpack.c.l.b16 %v7245
        %v7402 = vunpack.c.l.b16 %v7246
        %v7403 = vunpack.c.l.b16 %v7247
        %v7404 = vunpack.c.l.b16 %v7248
        %v7405 = vunpack.c.l.b16 %v7249
        %v7406 = vunpack.c.l.b16 %v7250
        %v7407 = vunpack.c.l.b16 %v7251
        %v7408 = vunpack.c.l.b16 %v7252
        %v7409 = vunpack.c.l.b16 %v7253
        %v7410 = vunpack.c.l.b16 %v7254
        %v7411 = vunpack.c.l.b16 %v7255
        %v7412 = vunpack.c.l.b16 %v7256
        %v7413 = vunpack.c.l.b16 %v7257
        %v7414 = vunpack.c.l.b16 %v7258
        %v7415 = vunpack.c.l.b16 %v7259
        %v7416 = vunpack.c.l.b16 %v7260
        %v7417 = vunpack.c.l.b16 %v7261
        %v7418 = vunpack.c.l.b16 %v7262
        %v7419 = vunpack.c.l.b16 %v7263
        %v7420 = vunpack.c.l.b16 %v7264
        %v7421 = vunpack.c.l.b16 %v7265
        %v7422 = vunpack.c.l.b16 %v7266
        %v7423 = vunpack.c.l.b16 %v7267
        %v7424 = vunpack.c.l.b16 %v7268
        %v7425 = vunpack.c.l.b16 %v7269
        %v7426 = vunpack.c.l.b16 %v7270
        %v7427 = vunpack.c.l.b16 %v7271
        %v7428 = vpack.c.b16 %v7362, %v7361
        %v7429 = vpack.c.b16 %v7364, %v7363
        %v7430 = vpack.c.b16 %v7366, %v7365
        %v7431 = vpack.c.b16 %v7368, %v7367
        %v7432 = vpack.c.b16 %v7370, %v7369
        %v7433 = vpack.c.b16 %v7372, %v7371
        %v7434 = vpack.c.b16 %v7374, %v7373
        %v7435 = vpack.c.b16 %v7376, %v7375
        %v7436 = vpack.c.b16 %v7378, %v7377
        %v7437 = vpack.c.b16 %v7380, %v7379
        %v7438 = vpack.c.b16 %v7382, %v7381
        %v7439 = vpack.c.b16 %v7384, %v7383
        %v7440 = vpack.c.b16 %v7386, %v7385
        %v7441 = vpack.c.b16 %v7388, %v7387
        %v7442 = vpack.c.b16 %v7390, %v7389
        %v7443 = vpack.c.b16 %v7392, %v7391
        %v7444 = vpack.c.b16 %v7394, %v7393
        %v7445 = vpack.c.b16 %v7396, %v7395
        %v7446 = vpack.c.b16 %v7398, %v7397
        %v7447 = vpack.c.b16 %v7400, %v7399
        %v7448 = vpack.c.b16 %v7402, %v7401
        %v7449 = vpack.c.b16 %v7404, %v7403
        %v7450 = vpack.c.b16 %v7406, %v7405
        %v7451 = vpack.c.b16 %v7408, %v7407
        %v7452 = vpack.c.b16 %v7410, %v7409
        %v7453 = vpack.c.b16 %v7412, %v7411
        %v7454 = vpack.c.b16 %v7414, %v7413
        %v7455 = vpack.c.b16 %v7416, %v7415
        %v7456 = vpack.c.b16 %v7418, %v7417
        %v7457 = vpack.c.b16 %v7420, %v7419
        %v7458 = vpack.c.b16 %v7422, %v7421
        %v7459 = vpack.c.b16 %v7424, %v7423
        %v7460 = vpack.c.b16 %v7426, %v7425
        %v7461 = vpack.c.b16 %v7427, %v7427
        %v7463 = vunpack.c.l.b16 %v7272
        %v7464 = vpack.c.b16 %v7363, %v7362
        %v7465 = vpack.c.b16 %v7365, %v7364
        %v7466 = vpack.c.b16 %v7367, %v7366
        %v7467 = vpack.c.b16 %v7369, %v7368
        %v7468 = vpack.c.b16 %v7371, %v7370
        %v7469 = vpack.c.b16 %v7373, %v7372
        %v7470 = vpack.c.b16 %v7375, %v7374
        %v7471 = vpack.c.b16 %v7377, %v7376
        %v7472 = vpack.c.b16 %v7379, %v7378
        %v7473 = vpack.c.b16 %v7381, %v7380
        %v7474 = vpack.c.b16 %v7383, %v7382
        %v7475 = vpack.c.b16 %v7385, %v7384
        %v7476 = vpack.c.b16 %v7387, %v7386
        %v7477 = vpack.c.b16 %v7389, %v7388
        %v7478 = vpack.c.b16 %v7391, %v7390
        %v7479 = vpack.c.b16 %v7393, %v7392
        %v7480 = vpack.c.b16 %v7395, %v7394
        %v7481 = vpack.c.b16 %v7397, %v7396
        %v7482 = vpack.c.b16 %v7399, %v7398
        %v7483 = vpack.c.b16 %v7401, %v7400
        %v7484 = vpack.c.b16 %v7403, %v7402
        %v7485 = vpack.c.b16 %v7405, %v7404
        %v7486 = vpack.c.b16 %v7407, %v7406
        %v7487 = vpack.c.b16 %v7409, %v7408
        %v7488 = vpack.c.b16 %v7411, %v7410
        %v7489 = vpack.c.b16 %v7413, %v7412
        %v7490 = vpack.c.b16 %v7415, %v7414
        %v7491 = vpack.c.b16 %v7417, %v7416
        %v7492 = vpack.c.b16 %v7419, %v7418
        %v7493 = vpack.c.b16 %v7421, %v7420
        %v7494 = vpack.c.b16 %v7423, %v7422
        %v7495 = vpack.c.b16 %v7425, %v7424
        %v7496 = vpack.c.b16 %v7427, %v7426
        %v7497 = vpack.c.b16 %v7463, %v7463
        %7498 = vrot.lane.b32.xlu0 %v7464, 64
        %v7499 = vpop.permute.xlu0 %7498
        %7500 = vrot.lane.b32.xlu0 %v7465, 64
        %v7501 = vpop.permute.xlu0 %7500
        %7502 = vrot.lane.b32.xlu0 %v7466, 64
        %v7503 = vpop.permute.xlu0 %7502
        %7504 = vrot.lane.b32.xlu0 %v7467, 64
        %v7505 = vpop.permute.xlu0 %7504
        %7506 = vrot.lane.b32.xlu0 %v7468, 64
        %v7507 = vpop.permute.xlu0 %7506
        %7508 = vrot.lane.b32.xlu0 %v7469, 64
        %v7509 = vpop.permute.xlu0 %7508
        %7510 = vrot.lane.b32.xlu0 %v7470, 64
        %v7511 = vpop.permute.xlu0 %7510
        %7512 = vrot.lane.b32.xlu0 %v7471, 64
        %v7513 = vpop.permute.xlu0 %7512
        %7514 = vrot.lane.b32.xlu0 %v7472, 64
        %v7515 = vpop.permute.xlu0 %7514
        %7516 = vrot.lane.b32.xlu0 %v7473, 64
        %v7517 = vpop.permute.xlu0 %7516
        %7518 = vrot.lane.b32.xlu0 %v7474, 64
        %v7519 = vpop.permute.xlu0 %7518
        %7520 = vrot.lane.b32.xlu0 %v7475, 64
        %v7521 = vpop.permute.xlu0 %7520
        %7522 = vrot.lane.b32.xlu0 %v7476, 64
        %v7523 = vpop.permute.xlu0 %7522
        %7524 = vrot.lane.b32.xlu0 %v7477, 64
        %v7525 = vpop.permute.xlu0 %7524
        %7526 = vrot.lane.b32.xlu0 %v7478, 64
        %v7527 = vpop.permute.xlu0 %7526
        %7528 = vrot.lane.b32.xlu0 %v7479, 64
        %v7529 = vpop.permute.xlu0 %7528
        %7530 = vrot.lane.b32.xlu0 %v7480, 64
        %v7531 = vpop.permute.xlu0 %7530
        %7532 = vrot.lane.b32.xlu0 %v7481, 64
        %v7533 = vpop.permute.xlu0 %7532
        %7534 = vrot.lane.b32.xlu0 %v7482, 64
        %v7535 = vpop.permute.xlu0 %7534
        %7536 = vrot.lane.b32.xlu0 %v7483, 64
        %v7537 = vpop.permute.xlu0 %7536
        %7538 = vrot.lane.b32.xlu0 %v7484, 64
        %v7539 = vpop.permute.xlu0 %7538
        %7540 = vrot.lane.b32.xlu0 %v7485, 64
        %v7541 = vpop.permute.xlu0 %7540
        %7542 = vrot.lane.b32.xlu0 %v7486, 64
        %v7543 = vpop.permute.xlu0 %7542
        %7544 = vrot.lane.b32.xlu0 %v7487, 64
        %v7545 = vpop.permute.xlu0 %7544
        %7546 = vrot.lane.b32.xlu0 %v7488, 64
        %v7547 = vpop.permute.xlu0 %7546
        %7548 = vrot.lane.b32.xlu0 %v7489, 64
        %v7549 = vpop.permute.xlu0 %7548
        %7550 = vrot.lane.b32.xlu0 %v7490, 64
        %v7551 = vpop.permute.xlu0 %7550
        %7552 = vrot.lane.b32.xlu0 %v7491, 64
        %v7553 = vpop.permute.xlu0 %7552
        %7554 = vrot.lane.b32.xlu0 %v7492, 64
        %v7555 = vpop.permute.xlu0 %7554
        %7556 = vrot.lane.b32.xlu0 %v7493, 64
        %v7557 = vpop.permute.xlu0 %7556
        %7558 = vrot.lane.b32.xlu0 %v7494, 64
        %v7559 = vpop.permute.xlu0 %7558
        %7560 = vrot.lane.b32.xlu0 %v7495, 64
        %v7561 = vpop.permute.xlu0 %7560
        %7562 = vrot.lane.b32.xlu0 %v7496, 64
        %v7563 = vpop.permute.xlu0 %7562
        %7564 = vrot.lane.b32.xlu0 %v7497, 64
        %v7565 = vpop.permute.xlu0 %7564
        %v7567 = vunpack.c.l.b16 %v7273
        %v7568 = vpack.c.b16 %v7463, %v7427
        %v7569 = vpack.c.b16 %v7567, %v7567
        %v7578 = vunpack.c.l.b16 %v7274
        %v7579 = vunpack.c.l.b16 %v7275
        %v7580 = vunpack.c.l.b16 %v7276
        %v7581 = vunpack.c.l.b16 %v7277
        %v7582 = vunpack.c.l.b16 %v7278
        %v7583 = vunpack.c.l.b16 %v7279
        %v7584 = vunpack.c.l.b16 %v7280
        %v7585 = vunpack.c.l.b16 %v7281
        %v7586 = vpack.c.b16 %v7578, %v7567
        %v7587 = vpack.c.b16 %v7580, %v7579
        %v7588 = vpack.c.b16 %v7582, %v7581
        %v7589 = vpack.c.b16 %v7584, %v7583
        %v7590 = vpack.c.b16 %v7585, %v7585
        %7591 = vrot.lane.b32.xlu0 %v7433, 64
        %v7592 = vpop.permute.xlu0 %7591
        %7593 = vrot.lane.b32.xlu0 %v7434, 64
        %v7594 = vpop.permute.xlu0 %7593
        %7595 = vrot.lane.b32.xlu0 %v7435, 64
        %v7596 = vpop.permute.xlu0 %7595
        %7597 = vrot.lane.b32.xlu0 %v7436, 64
        %v7598 = vpop.permute.xlu0 %7597
        %7599 = vrot.lane.b32.xlu0 %v7437, 64
        %v7600 = vpop.permute.xlu0 %7599
        %7601 = vrot.lane.b32.xlu0 %v7438, 64
        %v7602 = vpop.permute.xlu0 %7601
        %7603 = vrot.lane.b32.xlu0 %v7439, 64
        %v7604 = vpop.permute.xlu0 %7603
        %7605 = vrot.lane.b32.xlu0 %v7440, 64
        %v7606 = vpop.permute.xlu0 %7605
        %7607 = vrot.lane.b32.xlu0 %v7441, 64
        %v7608 = vpop.permute.xlu0 %7607
        %7609 = vrot.lane.b32.xlu0 %v7442, 64
        %v7610 = vpop.permute.xlu0 %7609
        %7611 = vrot.lane.b32.xlu0 %v7443, 64
        %v7612 = vpop.permute.xlu0 %7611
        %7613 = vrot.lane.b32.xlu0 %v7444, 64
        %v7614 = vpop.permute.xlu0 %7613
        %7615 = vrot.lane.b32.xlu0 %v7445, 64
        %v7616 = vpop.permute.xlu0 %7615
        %7617 = vrot.lane.b32.xlu0 %v7446, 64
        %v7618 = vpop.permute.xlu0 %7617
        %7619 = vrot.lane.b32.xlu0 %v7447, 64
        %v7620 = vpop.permute.xlu0 %7619
        %7621 = vrot.lane.b32.xlu0 %v7448, 64
        %v7622 = vpop.permute.xlu0 %7621
        %7623 = vrot.lane.b32.xlu0 %v7449, 64
        %v7624 = vpop.permute.xlu0 %7623
        %7625 = vrot.lane.b32.xlu0 %v7450, 64
        %v7626 = vpop.permute.xlu0 %7625
        %7627 = vrot.lane.b32.xlu0 %v7451, 64
        %v7628 = vpop.permute.xlu0 %7627
        %7629 = vrot.lane.b32.xlu0 %v7452, 64
        %v7630 = vpop.permute.xlu0 %7629
        %7631 = vrot.lane.b32.xlu0 %v7453, 64
        %v7632 = vpop.permute.xlu0 %7631
        %7633 = vrot.lane.b32.xlu0 %v7454, 64
        %v7634 = vpop.permute.xlu0 %7633
        %7635 = vrot.lane.b32.xlu0 %v7455, 64
        %v7636 = vpop.permute.xlu0 %7635
        %7637 = vrot.lane.b32.xlu0 %v7456, 64
        %v7638 = vpop.permute.xlu0 %7637
        %7639 = vrot.lane.b32.xlu0 %v7457, 64
        %v7640 = vpop.permute.xlu0 %7639
        %7641 = vrot.lane.b32.xlu0 %v7458, 64
        %v7642 = vpop.permute.xlu0 %7641
        %7643 = vrot.lane.b32.xlu0 %v7459, 64
        %v7644 = vpop.permute.xlu0 %7643
        %7645 = vrot.lane.b32.xlu0 %v7460, 64
        %v7646 = vpop.permute.xlu0 %7645
        %7647 = vrot.lane.b32.xlu0 %v7568, 64
        %v7648 = vpop.permute.xlu0 %7647
        %7649 = vrot.lane.b32.xlu0 %v7586, 64
        %v7650 = vpop.permute.xlu0 %7649
        %7651 = vrot.lane.b32.xlu0 %v7587, 64
        %v7652 = vpop.permute.xlu0 %7651
        %7653 = vrot.lane.b32.xlu0 %v7588, 64
        %v7654 = vpop.permute.xlu0 %7653
        %7655 = vrot.lane.b32.xlu0 %v7589, 64
        %v7656 = vpop.permute.xlu0 %7655
        %7657 = vrot.lane.b32.xlu0 %v7590, 64
        %v7658 = vpop.permute.xlu0 %7657
        %v7660 = vunpack.c.l.b16 %v7282
        %v7661 = vpack.c.b16 %v7567, %v7463
        %v7662 = vpack.c.b16 %v7579, %v7578
        %v7663 = vpack.c.b16 %v7581, %v7580
        %v7664 = vpack.c.b16 %v7583, %v7582
        %v7665 = vpack.c.b16 %v7585, %v7584
        %v7666 = vpack.c.b16 %v7660, %v7660
        %v7668 = vunpack.c.l.b16 %v7283
        %v7669 = vpack.c.b16 %v7660, %v7585
        %v7670 = vpack.c.b16 %v7668, %v7668
        %7671 = vrot.lane.b32.xlu0 %v7669, 64
        %v7672 = vpop.permute.xlu0 %7671
        %7673 = vrot.lane.b32.xlu0 %v7670, 64
        %v7674 = vpop.permute.xlu0 %7673
        %v7683 = vunpack.c.l.b16 %v7284
        %v7684 = vunpack.c.l.b16 %v7285
        %v7685 = vunpack.c.l.b16 %v7286
        %v7686 = vunpack.c.l.b16 %v7287
        %v7687 = vunpack.c.l.b16 %v7288
        %v7688 = vunpack.c.l.b16 %v7289
        %v7689 = vunpack.c.l.b16 %v7290
        %v7690 = vunpack.c.l.b16 %v7291
        %v7691 = vpack.c.b16 %v7683, %v7668
        %v7692 = vpack.c.b16 %v7685, %v7684
        %v7693 = vpack.c.b16 %v7687, %v7686
        %v7694 = vpack.c.b16 %v7689, %v7688
        %v7695 = vpack.c.b16 %v7690, %v7690
        %v7697 = vunpack.c.l.b16 %v7292
        %v7698 = vpack.c.b16 %v7668, %v7660
        %v7699 = vpack.c.b16 %v7684, %v7683
        %v7700 = vpack.c.b16 %v7686, %v7685
        %v7701 = vpack.c.b16 %v7688, %v7687
        %v7702 = vpack.c.b16 %v7690, %v7689
        %v7703 = vpack.c.b16 %v7697, %v7697
        %7704 = vrot.lane.b32.xlu0 %v7661, 64
        %v7705 = vpop.permute.xlu0 %7704
        %7706 = vrot.lane.b32.xlu0 %v7662, 64
        %v7707 = vpop.permute.xlu0 %7706
        %7708 = vrot.lane.b32.xlu0 %v7663, 64
        %v7709 = vpop.permute.xlu0 %7708
        %7710 = vrot.lane.b32.xlu0 %v7664, 64
        %v7711 = vpop.permute.xlu0 %7710
        %7712 = vrot.lane.b32.xlu0 %v7665, 64
        %v7713 = vpop.permute.xlu0 %7712
        %7714 = vrot.lane.b32.xlu0 %v7698, 64
        %v7715 = vpop.permute.xlu0 %7714
        %7716 = vrot.lane.b32.xlu0 %v7699, 64
        %v7717 = vpop.permute.xlu0 %7716
        %7718 = vrot.lane.b32.xlu0 %v7700, 64
        %v7719 = vpop.permute.xlu0 %7718
        %7720 = vrot.lane.b32.xlu0 %v7701, 64
        %v7721 = vpop.permute.xlu0 %7720
        %7722 = vrot.lane.b32.xlu0 %v7702, 64
        %v7723 = vpop.permute.xlu0 %7722
        %7724 = vrot.lane.b32.xlu0 %v7703, 64
        %v7725 = vpop.permute.xlu0 %7724
        %v7727 = vunpack.c.l.b16 %v7293
        %v7728 = vpack.c.b16 %v7697, %v7690
        %v7729 = vpack.c.b16 %v7727, %v7727
        %vm7730 = vcmask 523264
        %v7733 = vsel %vm7730, %v7428, %v7499
        %v7737 = vsel %vm7730, %v7429, %v7501
        %v7741 = vsel %vm7730, %v7430, %v7503
        %v7745 = vsel %vm7730, %v7431, %v7505
        %v7749 = vsel %vm7730, %v7432, %v7507
        %v7753 = vsel %vm7730, %v7433, %v7509
        %v7757 = vsel %vm7730, %v7434, %v7511
        %v7761 = vsel %vm7730, %v7435, %v7513
        %v7765 = vsel %vm7730, %v7436, %v7515
        %v7769 = vsel %vm7730, %v7437, %v7517
        %v7773 = vsel %vm7730, %v7438, %v7519
        %v7777 = vsel %vm7730, %v7439, %v7521
        %v7781 = vsel %vm7730, %v7440, %v7523
        %v7785 = vsel %vm7730, %v7441, %v7525
        %v7789 = vsel %vm7730, %v7442, %v7527
        %v7793 = vsel %vm7730, %v7443, %v7529
        %v7797 = vsel %vm7730, %v7444, %v7531
        %v7801 = vsel %vm7730, %v7445, %v7533
        %v7805 = vsel %vm7730, %v7446, %v7535
        %v7809 = vsel %vm7730, %v7447, %v7537
        %v7813 = vsel %vm7730, %v7448, %v7539
        %v7817 = vsel %vm7730, %v7449, %v7541
        %v7821 = vsel %vm7730, %v7450, %v7543
        %v7825 = vsel %vm7730, %v7451, %v7545
        %v7829 = vsel %vm7730, %v7452, %v7547
        %v7833 = vsel %vm7730, %v7453, %v7549
        %v7837 = vsel %vm7730, %v7454, %v7551
        %v7841 = vsel %vm7730, %v7455, %v7553
        %v7845 = vsel %vm7730, %v7456, %v7555
        %v7849 = vsel %vm7730, %v7457, %v7557
        %v7853 = vsel %vm7730, %v7458, %v7559
        %v7857 = vsel %vm7730, %v7459, %v7561
        %v7861 = vsel %vm7730, %v7460, %v7563
        %v7865 = vsel %vm7730, %v7461, %v7565
        %v7868 = vsel %vm7730, %v7429, %v7592
        %v7871 = vsel %vm7730, %v7430, %v7594
        %v7874 = vsel %vm7730, %v7431, %v7596
        %v7877 = vsel %vm7730, %v7432, %v7598
        %v7880 = vsel %vm7730, %v7433, %v7600
        %v7883 = vsel %vm7730, %v7434, %v7602
        %v7886 = vsel %vm7730, %v7435, %v7604
        %v7889 = vsel %vm7730, %v7436, %v7606
        %v7892 = vsel %vm7730, %v7437, %v7608
        %v7895 = vsel %vm7730, %v7438, %v7610
        %v7898 = vsel %vm7730, %v7439, %v7612
        %v7901 = vsel %vm7730, %v7440, %v7614
        %v7904 = vsel %vm7730, %v7441, %v7616
        %v7907 = vsel %vm7730, %v7442, %v7618
        %v7910 = vsel %vm7730, %v7443, %v7620
        %v7913 = vsel %vm7730, %v7444, %v7622
        %v7916 = vsel %vm7730, %v7445, %v7624
        %v7919 = vsel %vm7730, %v7446, %v7626
        %v7922 = vsel %vm7730, %v7447, %v7628
        %v7925 = vsel %vm7730, %v7448, %v7630
        %v7928 = vsel %vm7730, %v7449, %v7632
        %v7931 = vsel %vm7730, %v7450, %v7634
        %v7934 = vsel %vm7730, %v7451, %v7636
        %v7937 = vsel %vm7730, %v7452, %v7638
        %v7940 = vsel %vm7730, %v7453, %v7640
        %v7943 = vsel %vm7730, %v7454, %v7642
        %v7946 = vsel %vm7730, %v7455, %v7644
        %v7949 = vsel %vm7730, %v7456, %v7646
        %v7952 = vsel %vm7730, %v7457, %v7648
        %v7955 = vsel %vm7730, %v7458, %v7650
        %v7958 = vsel %vm7730, %v7459, %v7652
        %v7961 = vsel %vm7730, %v7460, %v7654
        %v7965 = vsel %vm7730, %v7568, %v7656
        %v7969 = vsel %vm7730, %v7569, %v7658
        %v7972 = vsel %vm7730, %v7469, %v7594
        %v7975 = vsel %vm7730, %v7470, %v7596
        %v7978 = vsel %vm7730, %v7471, %v7598
        %v7981 = vsel %vm7730, %v7472, %v7600
        %v7984 = vsel %vm7730, %v7473, %v7602
        %v7987 = vsel %vm7730, %v7474, %v7604
        %v7990 = vsel %vm7730, %v7475, %v7606
        %v7993 = vsel %vm7730, %v7476, %v7608
        %v7996 = vsel %vm7730, %v7477, %v7610
        %v7999 = vsel %vm7730, %v7478, %v7612
        %v8002 = vsel %vm7730, %v7479, %v7614
        %v8005 = vsel %vm7730, %v7480, %v7616
        %v8008 = vsel %vm7730, %v7481, %v7618
        %v8011 = vsel %vm7730, %v7482, %v7620
        %v8014 = vsel %vm7730, %v7483, %v7622
        %v8017 = vsel %vm7730, %v7484, %v7624
        %v8020 = vsel %vm7730, %v7485, %v7626
        %v8023 = vsel %vm7730, %v7486, %v7628
        %v8026 = vsel %vm7730, %v7487, %v7630
        %v8029 = vsel %vm7730, %v7488, %v7632
        %v8032 = vsel %vm7730, %v7489, %v7634
        %v8035 = vsel %vm7730, %v7490, %v7636
        %v8038 = vsel %vm7730, %v7491, %v7638
        %v8041 = vsel %vm7730, %v7492, %v7640
        %v8044 = vsel %vm7730, %v7493, %v7642
        %v8047 = vsel %vm7730, %v7494, %v7644
        %v8050 = vsel %vm7730, %v7495, %v7646
        %v8053 = vsel %vm7730, %v7496, %v7648
        %v8056 = vsel %vm7730, %v7661, %v7650
        %v8059 = vsel %vm7730, %v7662, %v7652
        %v8062 = vsel %vm7730, %v7663, %v7654
        %v8065 = vsel %vm7730, %v7664, %v7656
        %v8069 = vsel %vm7730, %v7665, %v7672
        %v8073 = vsel %vm7730, %v7666, %v7674
        %v8076 = vsel %vm7730, %v7568, %v7705
        %v8080 = vsel %vm7730, %v7586, %v7707
        %v8084 = vsel %vm7730, %v7587, %v7709
        %v8088 = vsel %vm7730, %v7588, %v7711
        %v8092 = vsel %vm7730, %v7589, %v7713
        %v8096 = vsel %vm7730, %v7669, %v7715
        %v8100 = vsel %vm7730, %v7691, %v7717
        %v8104 = vsel %vm7730, %v7692, %v7719
        %v8108 = vsel %vm7730, %v7693, %v7721
        %v8112 = vsel %vm7730, %v7694, %v7723
        %v8116 = vsel %vm7730, %v7695, %v7725
        %v8118 = vld [vmem:[%s5] sm:$0xf]
        %v8119 = vld [vmem:[%s5 + $0x4] sm:$0xf]
        %v8120 = vld [vmem:[%s5 + $0x8] sm:$0xf]
        %v8121 = vld [vmem:[%s5 + $0xc] sm:$0xf]
        %v8122 = vld [vmem:[%s5 + $0x10] sm:$0xf]
        %v8123 = vld [vmem:[%s5 + $0x14] sm:$0xf]
        %v8124 = vld [vmem:[%s5 + $0x18] sm:$0xf]
        %v8125 = vld [vmem:[%s5 + $0x1c] sm:$0xf]
        %v8126 = vld [vmem:[%s5 + $0x20] sm:$0xf]
        %v8127 = vld [vmem:[%s5 + $0x24] sm:$0xf]
        %v8128 = vld [vmem:[%s5 + $0x28] sm:$0xf]
        %v8129 = vld [vmem:[%s5 + $0x2c] sm:$0xf]
        %v8130 = vld [vmem:[%s5 + $0x30] sm:$0xf]
        %v8131 = vld [vmem:[%s5 + $0x34] sm:$0xf]
        %v8132 = vld [vmem:[%s5 + $0x38] sm:$0xf]
        %v8133 = vld [vmem:[%s5 + $0x3c] sm:$0xf]
        %v8134 = vld [vmem:[%s5 + $0x40] sm:$0xf]
        %v8135 = vld [vmem:[%s5 + $0x44] sm:$0xf]
        %v8136 = vld [vmem:[%s5 + $0x48] sm:$0xf]
        %v8137 = vld [vmem:[%s5 + $0x4c] sm:$0xf]
        %v8138 = vld [vmem:[%s5 + $0x50] sm:$0xf]
        %v8139 = vld [vmem:[%s5 + $0x54] sm:$0xf]
        %v8140 = vld [vmem:[%s5 + $0x58] sm:$0xf]
        %v8141 = vld [vmem:[%s5 + $0x5c] sm:$0xf]
        %v8142 = vld [vmem:[%s5 + $0x60] sm:$0xf]
        %v8143 = vld [vmem:[%s5 + $0x64] sm:$0xf]
        %v8144 = vld [vmem:[%s5 + $0x68] sm:$0xf]
        %v8145 = vld [vmem:[%s5 + $0x6c] sm:$0xf]
        %v8146 = vld [vmem:[%s5 + $0x70] sm:$0xf]
        %v8147 = vld [vmem:[%s5 + $0x74] sm:$0xf]
        %v8148 = vld [vmem:[%s5 + $0x78] sm:$0xf]
        %v8149 = vld [vmem:[%s5 + $0x7c] sm:$0xf]
        %v8150 = vld [vmem:[%s5 + $0x80] sm:$0xf]
        %v8151 = vld [vmem:[%s5 + $0x84] sm:$0xf]
        %v8152 = vld [vmem:[%s5 + $0x88] sm:$0xf]
        %v8153 = vld [vmem:[%s5 + $0x8c] sm:$0xf]
        %v8154 = vld [vmem:[%s5 + $0x90] sm:$0xf]
        %v8155 = vld [vmem:[%s5 + $0x94] sm:$0xf]
        %v8156 = vld [vmem:[%s5 + $0x98] sm:$0xf]
        %v8157 = vld [vmem:[%s5 + $0x9c] sm:$0xf]
        %v8158 = vld [vmem:[%s5 + $0xa0] sm:$0xf]
        %v8159 = vld [vmem:[%s5 + $0xa4] sm:$0xf]
        %v8160 = vld [vmem:[%s5 + $0xa8] sm:$0xf]
        %v8161 = vld [vmem:[%s5 + $0xac] sm:$0xf]
        %v8162 = vld [vmem:[%s5 + $0xb0] sm:$0xf]
        %v8163 = vld [vmem:[%s5 + $0xb4] sm:$0xf]
        %v8164 = vld [vmem:[%s5 + $0xb8] sm:$0xf]
        %v8165 = vld [vmem:[%s5 + $0xbc] sm:$0xf]
        %v8166 = vld [vmem:[%s5 + $0xc0] sm:$0xf]
        %v8167 = vld [vmem:[%s5 + $0xc4] sm:$0xf]
        %v8168 = vld [vmem:[%s5 + $0xc8] sm:$0xf]
        %v8169 = vld [vmem:[%s5 + $0xcc] sm:$0xf]
        %v8170 = vld [vmem:[%s5 + $0xd0] sm:$0xf]
        %v8171 = vld [vmem:[%s5 + $0xd4] sm:$0xf]
        %v8172 = vld [vmem:[%s5 + $0xd8] sm:$0xf]
        %v8173 = vld [vmem:[%s5 + $0xdc] sm:$0xf]
        %v8174 = vld [vmem:[%s5 + $0xe0] sm:$0xf]
        %v8175 = vld [vmem:[%s5 + $0xe4] sm:$0xf]
        %v8176 = vld [vmem:[%s5 + $0xe8] sm:$0xf]
        %v8177 = vld [vmem:[%s5 + $0xec] sm:$0xf]
        %v8178 = vld [vmem:[%s5 + $0xf0] sm:$0xf]
        %v8179 = vld [vmem:[%s5 + $0xf4] sm:$0xf]
        %v8180 = vld [vmem:[%s5 + $0xf8] sm:$0xf]
        %v8181 = vld [vmem:[%s5 + $0xfc] sm:$0xf]
        %v8182 = vld [vmem:[%s5 + $0x100] sm:$0xf]
        %v8183 = vld [vmem:[%s5 + $0x104] sm:$0xf]
        %v8184 = vld [vmem:[%s5 + $0x108] sm:$0xf]
        %v8185 = vld [vmem:[%s5 + $0x10c] sm:$0xf]
        %v8186 = vld [vmem:[%s5 + $0x110] sm:$0xf]
        %v8187 = vld [vmem:[%s5 + $0x114] sm:$0xf]
        %v8188 = vld [vmem:[%s5 + $0x118] sm:$0xf]
        %v8189 = vld [vmem:[%s5 + $0x11c] sm:$0xf]
        %v8190 = vld [vmem:[%s6] sm:$0x1]
        %v8192 = vperm.slane %v8190, 0
        %v8266 = vunpack.c.l.b16 %v8118
        %v8267 = vunpack.c.l.b16 %v8119
        %v8268 = vunpack.c.l.b16 %v8120
        %v8269 = vunpack.c.l.b16 %v8121
        %v8270 = vunpack.c.l.b16 %v8122
        %v8271 = vunpack.c.l.b16 %v8123
        %v8272 = vunpack.c.l.b16 %v8124
        %v8273 = vunpack.c.l.b16 %v8125
        %v8274 = vunpack.c.l.b16 %v8126
        %v8275 = vunpack.c.l.b16 %v8127
        %v8276 = vunpack.c.l.b16 %v8128
        %v8277 = vunpack.c.l.b16 %v8129
        %v8278 = vunpack.c.l.b16 %v8130
        %v8279 = vunpack.c.l.b16 %v8131
        %v8280 = vunpack.c.l.b16 %v8132
        %v8281 = vunpack.c.l.b16 %v8133
        %v8282 = vunpack.c.l.b16 %v8134
        %v8283 = vunpack.c.l.b16 %v8135
        %v8284 = vunpack.c.l.b16 %v8136
        %v8285 = vunpack.c.l.b16 %v8137
        %v8286 = vunpack.c.l.b16 %v8138
        %v8287 = vunpack.c.l.b16 %v8139
        %v8288 = vunpack.c.l.b16 %v8140
        %v8289 = vunpack.c.l.b16 %v8141
        %v8290 = vunpack.c.l.b16 %v8142
        %v8291 = vunpack.c.l.b16 %v8143
        %v8292 = vunpack.c.l.b16 %v8144
        %v8293 = vunpack.c.l.b16 %v8145
        %v8294 = vunpack.c.l.b16 %v8146
        %v8295 = vunpack.c.l.b16 %v8147
        %v8296 = vunpack.c.l.b16 %v8148
        %v8297 = vunpack.c.l.b16 %v8149
        %v8298 = vunpack.c.l.b16 %v8150
        %v8299 = vunpack.c.l.b16 %v8151
        %v8300 = vunpack.c.l.b16 %v8152
        %v8301 = vunpack.c.l.b16 %v8153
        %v8302 = vunpack.c.l.b16 %v8154
        %v8303 = vunpack.c.l.b16 %v8155
        %v8304 = vunpack.c.l.b16 %v8156
        %v8305 = vunpack.c.l.b16 %v8157
        %v8306 = vunpack.c.l.b16 %v8158
        %v8307 = vunpack.c.l.b16 %v8159
        %v8308 = vunpack.c.l.b16 %v8160
        %v8309 = vunpack.c.l.b16 %v8161
        %v8310 = vunpack.c.l.b16 %v8162
        %v8311 = vunpack.c.l.b16 %v8163
        %v8312 = vunpack.c.l.b16 %v8164
        %v8313 = vunpack.c.l.b16 %v8165
        %v8314 = vunpack.c.l.b16 %v8166
        %v8315 = vunpack.c.l.b16 %v8167
        %v8316 = vunpack.c.l.b16 %v8168
        %v8317 = vunpack.c.l.b16 %v8169
        %v8318 = vunpack.c.l.b16 %v8170
        %v8319 = vunpack.c.l.b16 %v8171
        %v8320 = vunpack.c.l.b16 %v8172
        %v8321 = vunpack.c.l.b16 %v8173
        %v8322 = vunpack.c.l.b16 %v8174
        %v8323 = vunpack.c.l.b16 %v8175
        %v8324 = vunpack.c.l.b16 %v8176
        %v8325 = vunpack.c.l.b16 %v8177
        %v8326 = vunpack.c.l.b16 %v8178
        %v8327 = vunpack.c.l.b16 %v8179
        %v8328 = vunpack.c.l.b16 %v8180
        %v8329 = vunpack.c.l.b16 %v8181
        %v8330 = vunpack.c.l.b16 %v8182
        %v8331 = vunpack.c.l.b16 %v8183
        %v8332 = vunpack.c.l.b16 %v8184
        %v8333 = vunpack.c.l.b16 %v8185
        %v8334 = vunpack.c.l.b16 %v8186
        %v8335 = vunpack.c.l.b16 %v8187
        %v8336 = vunpack.c.l.b16 %v8188
        %v8337 = vunpack.c.l.b16 %v8189
        %v8338 = vpack.c.b16 %v8267, %v8266
        %v8339 = vpack.c.b16 %v8269, %v8268
        %v8340 = vpack.c.b16 %v8271, %v8270
        %v8341 = vpack.c.b16 %v8273, %v8272
        %v8342 = vpack.c.b16 %v8275, %v8274
        %v8343 = vpack.c.b16 %v8277, %v8276
        %v8344 = vpack.c.b16 %v8279, %v8278
        %v8345 = vpack.c.b16 %v8281, %v8280
        %v8346 = vpack.c.b16 %v8283, %v8282
        %v8347 = vpack.c.b16 %v8285, %v8284
        %v8348 = vpack.c.b16 %v8287, %v8286
        %v8349 = vpack.c.b16 %v8289, %v8288
        %v8350 = vpack.c.b16 %v8291, %v8290
        %v8351 = vpack.c.b16 %v8293, %v8292
        %v8352 = vpack.c.b16 %v8295, %v8294
        %v8353 = vpack.c.b16 %v8297, %v8296
        %v8354 = vpack.c.b16 %v8299, %v8298
        %v8355 = vpack.c.b16 %v8301, %v8300
        %v8356 = vpack.c.b16 %v8303, %v8302
        %v8357 = vpack.c.b16 %v8305, %v8304
        %v8358 = vpack.c.b16 %v8307, %v8306
        %v8359 = vpack.c.b16 %v8309, %v8308
        %v8360 = vpack.c.b16 %v8311, %v8310
        %v8361 = vpack.c.b16 %v8313, %v8312
        %v8362 = vpack.c.b16 %v8315, %v8314
        %v8363 = vpack.c.b16 %v8317, %v8316
        %v8364 = vpack.c.b16 %v8319, %v8318
        %v8365 = vpack.c.b16 %v8321, %v8320
        %v8366 = vpack.c.b16 %v8323, %v8322
        %v8367 = vpack.c.b16 %v8325, %v8324
        %v8368 = vpack.c.b16 %v8327, %v8326
        %v8369 = vpack.c.b16 %v8329, %v8328
        %v8370 = vpack.c.b16 %v8331, %v8330
        %v8371 = vpack.c.b16 %v8333, %v8332
        %v8372 = vpack.c.b16 %v8335, %v8334
        %v8373 = vpack.c.b16 %v8337, %v8336
        %v8410 = vsel %vm7730, %v7439, 0
        %v8412 = vsel %vm7730, %v7440, 0
        %v8414 = vsel %vm7730, %v7441, 0
        %v8416 = vsel %vm7730, %v7442, 0
        %v8418 = vsel %vm7730, %v7443, 0
        %v8420 = vsel %vm7730, %v7444, 0
        %v8422 = vsel %vm7730, %v7445, 0
        %v8424 = vsel %vm7730, %v7446, 0
        %v8426 = vsel %vm7730, %v7447, 0
        %v8428 = vsel %vm7730, %v7448, 0
        %v8430 = vsel %vm7730, %v7449, 0
        %v8432 = vsel %vm7730, %v7450, 0
        %v8434 = vsel %vm7730, %v7451, 0
        %v8436 = vsel %vm7730, %v7452, 0
        %v8438 = vsel %vm7730, %v7453, 0
        %v8440 = vsel %vm7730, %v7454, 0
        %v8442 = vsel %vm7730, %v7455, 0
        %v8444 = vsel %vm7730, %v7456, 0
        %v8446 = vsel %vm7730, %v7457, 0
        %v8448 = vsel %vm7730, %v7458, 0
        %v8450 = vsel %vm7730, %v7459, 0
        %v8452 = vsel %vm7730, %v7460, 0
        %v8454 = vsel %vm7730, %v7568, 0
        %v8456 = vsel %vm7730, %v7586, 0
        %v8458 = vsel %vm7730, %v7587, 0
        %v8460 = vsel %vm7730, %v7588, 0
        %v8462 = vsel %vm7730, %v7589, 0
        %v8464 = vsel %vm7730, %v7669, 0
        %v8466 = vsel %vm7730, %v7691, 0
        %v8468 = vsel %vm7730, %v7692, 0
        %v8470 = vsel %vm7730, %v7693, 0
        %v8472 = vsel %vm7730, %v7694, 0
        %v8475 = vsel %vm7730, %v7728, 0
        %v8478 = vsel %vm7730, %v7729, 0
        %8480 = vmatpush.bf16.msra.mxu0 %v8345
        %8481 = vmatpush.bf16.msra.mxu0 %v8344
        %8482 = vmatpush.bf16.msra.mxu0 %v8343
        %8483 = vmatpush.bf16.msra.mxu0 %v8342
        %8484 = vmatpush.bf16.msra.mxu0 %v8341
        %8485 = vmatpush.bf16.msra.mxu0 %v8340
        %8486 = vmatpush.bf16.msra.mxu0 %v8339
        %8487 = vmatpush.bf16.msra.mxu0 %v8338
        %8488 = vmatmul.bf16.gmra.mxu0 %v7733
        %v8489 = vpop.f32.mrf.mxu0
        %v8490 = vadd.f32 %v8192, %v8489
        %v8491 = vpop.f32.mrf.mxu0
        %v8492 = vadd.f32 %v8192, %v8491
        %8493 = vmatmul.bf16.gmra.mxu0 %v7737
        %v8494 = vpop.f32.mrf.mxu0
        %v8495 = vadd.f32 %v8192, %v8494
        %v8496 = vpop.f32.mrf.mxu0
        %v8497 = vadd.f32 %v8192, %v8496
        %8498 = vmatmul.bf16.gmra.mxu0 %v7741
        %v8499 = vpop.f32.mrf.mxu0
        %v8500 = vadd.f32 %v8192, %v8499
        %v8501 = vpop.f32.mrf.mxu0
        %v8502 = vadd.f32 %v8192, %v8501
        %8503 = vmatmul.bf16.gmra.mxu0 %v7745
        %v8504 = vpop.f32.mrf.mxu0
        %v8505 = vadd.f32 %v8192, %v8504
        %v8506 = vpop.f32.mrf.mxu0
        %8507 = vmatmul.bf16.gmra.mxu0 %v7749
        %v8508 = vpop.f32.mrf.mxu0
        %v8509 = vpop.f32.mrf.mxu0
        %8510 = vmatmul.bf16.gmra.mxu0 %v7753
        %v8511 = vpop.f32.mrf.mxu0
        %v8512 = vadd.f32 %v8192, %v8511
        %v8513 = vpop.f32.mrf.mxu0
        %v8514 = vadd.f32 %v8192, %v8513
        %8515 = vmatmul.bf16.gmra.mxu0 %v7757
        %v8516 = vpop.f32.mrf.mxu0
        %v8517 = vadd.f32 %v8192, %v8516
        %v8518 = vpop.f32.mrf.mxu0
        %v8519 = vadd.f32 %v8192, %v8518
        %8520 = vmatmul.bf16.gmra.mxu0 %v7761
        %v8521 = vpop.f32.mrf.mxu0
        %v8522 = vadd.f32 %v8192, %v8521
        %v8523 = vpop.f32.mrf.mxu0
        %v8524 = vadd.f32 %v8192, %v8523
        %8525 = vmatmul.bf16.gmra.mxu0 %v7765
        %v8526 = vpop.f32.mrf.mxu0
        %v8527 = vadd.f32 %v8192, %v8526
        %v8528 = vpop.f32.mrf.mxu0
        %8529 = vmatmul.bf16.gmra.mxu0 %v7769
        %v8530 = vpop.f32.mrf.mxu0
        %v8531 = vpop.f32.mrf.mxu0
        %8532 = vmatmul.bf16.gmra.mxu0 %v7773
        %v8533 = vpop.f32.mrf.mxu0
        %v8534 = vadd.f32 %v8192, %v8533
        %v8535 = vpop.f32.mrf.mxu0
        %v8536 = vadd.f32 %v8192, %v8535
        %8537 = vmatmul.bf16.gmra.mxu0 %v7777
        %v8538 = vpop.f32.mrf.mxu0
        %v8539 = vadd.f32 %v8192, %v8538
        %v8540 = vpop.f32.mrf.mxu0
        %v8541 = vadd.f32 %v8192, %v8540
        %8542 = vmatmul.bf16.gmra.mxu0 %v7781
        %v8543 = vpop.f32.mrf.mxu0
        %v8544 = vadd.f32 %v8192, %v8543
        %v8545 = vpop.f32.mrf.mxu0
        %v8546 = vadd.f32 %v8192, %v8545
        %8547 = vmatmul.bf16.gmra.mxu0 %v7785
        %v8548 = vpop.f32.mrf.mxu0
        %v8549 = vadd.f32 %v8192, %v8548
        %v8550 = vpop.f32.mrf.mxu0
        %8551 = vmatmul.bf16.gmra.mxu0 %v7789
        %v8552 = vpop.f32.mrf.mxu0
        %v8553 = vpop.f32.mrf.mxu0
        %8554 = vmatmul.bf16.gmra.mxu0 %v7793
        %v8555 = vpop.f32.mrf.mxu0
        %v8556 = vadd.f32 %v8192, %v8555
        %v8557 = vpop.f32.mrf.mxu0
        %v8558 = vadd.f32 %v8192, %v8557
        %8559 = vmatmul.bf16.gmra.mxu0 %v7797
        %v8560 = vpop.f32.mrf.mxu0
        %v8561 = vadd.f32 %v8192, %v8560
        %v8562 = vpop.f32.mrf.mxu0
        %v8563 = vadd.f32 %v8192, %v8562
        %8564 = vmatmul.bf16.gmra.mxu0 %v7801
        %v8565 = vpop.f32.mrf.mxu0
        %v8566 = vadd.f32 %v8192, %v8565
        %v8567 = vpop.f32.mrf.mxu0
        %v8568 = vadd.f32 %v8192, %v8567
        %8569 = vmatmul.bf16.gmra.mxu0 %v7805
        %v8570 = vpop.f32.mrf.mxu0
        %v8571 = vadd.f32 %v8192, %v8570
        %v8572 = vpop.f32.mrf.mxu0
        %8573 = vmatmul.bf16.gmra.mxu0 %v7809
        %v8574 = vpop.f32.mrf.mxu0
        %v8575 = vpop.f32.mrf.mxu0
        %8576 = vmatmul.bf16.gmra.mxu0 %v7813
        %v8577 = vpop.f32.mrf.mxu0
        %v8578 = vadd.f32 %v8192, %v8577
        %v8579 = vpop.f32.mrf.mxu0
        %v8580 = vadd.f32 %v8192, %v8579
        %8581 = vmatmul.bf16.gmra.mxu0 %v7817
        %v8582 = vpop.f32.mrf.mxu0
        %v8583 = vadd.f32 %v8192, %v8582
        %v8584 = vpop.f32.mrf.mxu0
        %v8585 = vadd.f32 %v8192, %v8584
        %8586 = vmatmul.bf16.gmra.mxu0 %v7821
        %v8587 = vpop.f32.mrf.mxu0
        %v8588 = vadd.f32 %v8192, %v8587
        %v8589 = vpop.f32.mrf.mxu0
        %v8590 = vadd.f32 %v8192, %v8589
        %8591 = vmatmul.bf16.gmra.mxu0 %v7825
        %v8592 = vpop.f32.mrf.mxu0
        %v8593 = vadd.f32 %v8192, %v8592
        %v8594 = vpop.f32.mrf.mxu0
        %8595 = vmatmul.bf16.gmra.mxu0 %v7829
        %v8596 = vpop.f32.mrf.mxu0
        %v8597 = vpop.f32.mrf.mxu0
        %8598 = vmatmul.bf16.gmra.mxu0 %v7833
        %v8599 = vpop.f32.mrf.mxu0
        %v8600 = vadd.f32 %v8192, %v8599
        %v8601 = vpop.f32.mrf.mxu0
        %v8602 = vadd.f32 %v8192, %v8601
        %8603 = vmatmul.bf16.gmra.mxu0 %v7837
        %v8604 = vpop.f32.mrf.mxu0
        %v8605 = vadd.f32 %v8192, %v8604
        %v8606 = vpop.f32.mrf.mxu0
        %v8607 = vadd.f32 %v8192, %v8606
        %8608 = vmatmul.bf16.gmra.mxu0 %v7841
        %v8609 = vpop.f32.mrf.mxu0
        %v8610 = vadd.f32 %v8192, %v8609
        %v8611 = vpop.f32.mrf.mxu0
        %v8612 = vadd.f32 %v8192, %v8611
        %8613 = vmatmul.bf16.gmra.mxu0 %v7845
        %v8614 = vpop.f32.mrf.mxu0
        %v8615 = vadd.f32 %v8192, %v8614
        %v8616 = vpop.f32.mrf.mxu0
        %8617 = vmatmul.bf16.gmra.mxu0 %v7849
        %v8618 = vpop.f32.mrf.mxu0
        %v8619 = vpop.f32.mrf.mxu0
        %8620 = vmatmul.bf16.gmra.mxu0 %v7853
        %v8621 = vpop.f32.mrf.mxu0
        %v8622 = vadd.f32 %v8192, %v8621
        %v8623 = vpop.f32.mrf.mxu0
        %v8624 = vadd.f32 %v8192, %v8623
        %8625 = vmatmul.bf16.gmra.mxu0 %v7857
        %v8626 = vpop.f32.mrf.mxu0
        %v8627 = vadd.f32 %v8192, %v8626
        %v8628 = vpop.f32.mrf.mxu0
        %v8629 = vadd.f32 %v8192, %v8628
        %8630 = vmatmul.bf16.gmra.mxu0 %v7861
        %v8631 = vpop.f32.mrf.mxu0
        %v8632 = vadd.f32 %v8192, %v8631
        %v8633 = vpop.f32.mrf.mxu0
        %v8634 = vadd.f32 %v8192, %v8633
        %8635 = vmatmul.bf16.gmra.mxu0 %v7865
        %v8636 = vpop.f32.mrf.mxu0
        %v8637 = vadd.f32 %v8192, %v8636
        %v8638 = vpop.f32.mrf.mxu0
        %8639 = vdwg.mxu0
        %8640 = vmatpush.bf16.msra.mxu0 %v8353
        %8641 = vmatpush.bf16.msra.mxu0 %v8352
        %8642 = vmatpush.bf16.msra.mxu0 %v8351
        %8643 = vmatpush.bf16.msra.mxu0 %v8350
        %8644 = vmatpush.bf16.msra.mxu0 %v8349
        %8645 = vmatpush.bf16.msra.mxu0 %v8348
        %8646 = vmatpush.bf16.msra.mxu0 %v8347
        %8647 = vmatpush.bf16.msra.mxu0 %v8346
        %8648 = vmatmul.bf16.gmra.mxu0 %v7868
        %v8649 = vpop.f32.mrf.mxu0
        %v8650 = vadd.f32 %v8490, %v8649
        %v8651 = vpop.f32.mrf.mxu0
        %v8652 = vadd.f32 %v8492, %v8651
        %8653 = vmatmul.bf16.gmra.mxu0 %v7871
        %v8654 = vpop.f32.mrf.mxu0
        %v8655 = vadd.f32 %v8495, %v8654
        %v8656 = vpop.f32.mrf.mxu0
        %v8657 = vadd.f32 %v8497, %v8656
        %8658 = vmatmul.bf16.gmra.mxu0 %v7874
        %v8659 = vpop.f32.mrf.mxu0
        %v8660 = vadd.f32 %v8500, %v8659
        %v8661 = vpop.f32.mrf.mxu0
        %v8662 = vadd.f32 %v8502, %v8661
        %8663 = vmatmul.bf16.gmra.mxu0 %v7877
        %v8664 = vpop.f32.mrf.mxu0
        %v8665 = vadd.f32 %v8505, %v8664
        %v8666 = vpop.f32.mrf.mxu0
        %8667 = vmatmul.bf16.gmra.mxu0 %v7880
        %v8668 = vpop.f32.mrf.mxu0
        %v8669 = vpop.f32.mrf.mxu0
        %8670 = vmatmul.bf16.gmra.mxu0 %v7883
        %v8671 = vpop.f32.mrf.mxu0
        %v8672 = vadd.f32 %v8512, %v8671
        %v8673 = vpop.f32.mrf.mxu0
        %v8674 = vadd.f32 %v8514, %v8673
        %8675 = vmatmul.bf16.gmra.mxu0 %v7886
        %v8676 = vpop.f32.mrf.mxu0
        %v8677 = vadd.f32 %v8517, %v8676
        %v8678 = vpop.f32.mrf.mxu0
        %v8679 = vadd.f32 %v8519, %v8678
        %8680 = vmatmul.bf16.gmra.mxu0 %v7889
        %v8681 = vpop.f32.mrf.mxu0
        %v8682 = vadd.f32 %v8522, %v8681
        %v8683 = vpop.f32.mrf.mxu0
        %v8684 = vadd.f32 %v8524, %v8683
        %8685 = vmatmul.bf16.gmra.mxu0 %v7892
        %v8686 = vpop.f32.mrf.mxu0
        %v8687 = vadd.f32 %v8527, %v8686
        %v8688 = vpop.f32.mrf.mxu0
        %8689 = vmatmul.bf16.gmra.mxu0 %v7895
        %v8690 = vpop.f32.mrf.mxu0
        %v8691 = vpop.f32.mrf.mxu0
        %8692 = vmatmul.bf16.gmra.mxu0 %v7898
        %v8693 = vpop.f32.mrf.mxu0
        %v8694 = vadd.f32 %v8534, %v8693
        %v8695 = vpop.f32.mrf.mxu0
        %v8696 = vadd.f32 %v8536, %v8695
        %8697 = vmatmul.bf16.gmra.mxu0 %v7901
        %v8698 = vpop.f32.mrf.mxu0
        %v8699 = vadd.f32 %v8539, %v8698
        %v8700 = vpop.f32.mrf.mxu0
        %v8701 = vadd.f32 %v8541, %v8700
        %8702 = vmatmul.bf16.gmra.mxu0 %v7904
        %v8703 = vpop.f32.mrf.mxu0
        %v8704 = vadd.f32 %v8544, %v8703
        %v8705 = vpop.f32.mrf.mxu0
        %v8706 = vadd.f32 %v8546, %v8705
        %8707 = vmatmul.bf16.gmra.mxu0 %v7907
        %v8708 = vpop.f32.mrf.mxu0
        %v8709 = vadd.f32 %v8549, %v8708
        %v8710 = vpop.f32.mrf.mxu0
        %8711 = vmatmul.bf16.gmra.mxu0 %v7910
        %v8712 = vpop.f32.mrf.mxu0
        %v8713 = vpop.f32.mrf.mxu0
        %8714 = vmatmul.bf16.gmra.mxu0 %v7913
        %v8715 = vpop.f32.mrf.mxu0
        %v8716 = vadd.f32 %v8556, %v8715
        %v8717 = vpop.f32.mrf.mxu0
        %v8718 = vadd.f32 %v8558, %v8717
        %8719 = vmatmul.bf16.gmra.mxu0 %v7916
        %v8720 = vpop.f32.mrf.mxu0
        %v8721 = vadd.f32 %v8561, %v8720
        %v8722 = vpop.f32.mrf.mxu0
        %v8723 = vadd.f32 %v8563, %v8722
        %8724 = vmatmul.bf16.gmra.mxu0 %v7919
        %v8725 = vpop.f32.mrf.mxu0
        %v8726 = vadd.f32 %v8566, %v8725
        %v8727 = vpop.f32.mrf.mxu0
        %v8728 = vadd.f32 %v8568, %v8727
        %8729 = vmatmul.bf16.gmra.mxu0 %v7922
        %v8730 = vpop.f32.mrf.mxu0
        %v8731 = vadd.f32 %v8571, %v8730
        %v8732 = vpop.f32.mrf.mxu0
        %8733 = vmatmul.bf16.gmra.mxu0 %v7925
        %v8734 = vpop.f32.mrf.mxu0
        %v8735 = vpop.f32.mrf.mxu0
        %8736 = vmatmul.bf16.gmra.mxu0 %v7928
        %v8737 = vpop.f32.mrf.mxu0
        %v8738 = vadd.f32 %v8578, %v8737
        %v8739 = vpop.f32.mrf.mxu0
        %v8740 = vadd.f32 %v8580, %v8739
        %8741 = vmatmul.bf16.gmra.mxu0 %v7931
        %v8742 = vpop.f32.mrf.mxu0
        %v8743 = vadd.f32 %v8583, %v8742
        %v8744 = vpop.f32.mrf.mxu0
        %v8745 = vadd.f32 %v8585, %v8744
        %8746 = vmatmul.bf16.gmra.mxu0 %v7934
        %v8747 = vpop.f32.mrf.mxu0
        %v8748 = vadd.f32 %v8588, %v8747
        %v8749 = vpop.f32.mrf.mxu0
        %v8750 = vadd.f32 %v8590, %v8749
        %8751 = vmatmul.bf16.gmra.mxu0 %v7937
        %v8752 = vpop.f32.mrf.mxu0
        %v8753 = vadd.f32 %v8593, %v8752
        %v8754 = vpop.f32.mrf.mxu0
        %8755 = vmatmul.bf16.gmra.mxu0 %v7940
        %v8756 = vpop.f32.mrf.mxu0
        %v8757 = vpop.f32.mrf.mxu0
        %8758 = vmatmul.bf16.gmra.mxu0 %v7943
        %v8759 = vpop.f32.mrf.mxu0
        %v8760 = vadd.f32 %v8600, %v8759
        %v8761 = vpop.f32.mrf.mxu0
        %v8762 = vadd.f32 %v8602, %v8761
        %8763 = vmatmul.bf16.gmra.mxu0 %v7946
        %v8764 = vpop.f32.mrf.mxu0
        %v8765 = vadd.f32 %v8605, %v8764
        %v8766 = vpop.f32.mrf.mxu0
        %v8767 = vadd.f32 %v8607, %v8766
        %8768 = vmatmul.bf16.gmra.mxu0 %v7949
        %v8769 = vpop.f32.mrf.mxu0
        %v8770 = vadd.f32 %v8610, %v8769
        %v8771 = vpop.f32.mrf.mxu0
        %v8772 = vadd.f32 %v8612, %v8771
        %8773 = vmatmul.bf16.gmra.mxu0 %v7952
        %v8774 = vpop.f32.mrf.mxu0
        %v8775 = vadd.f32 %v8615, %v8774
        %v8776 = vpop.f32.mrf.mxu0
        %8777 = vmatmul.bf16.gmra.mxu0 %v7955
        %v8778 = vpop.f32.mrf.mxu0
        %v8779 = vpop.f32.mrf.mxu0
        %8780 = vmatmul.bf16.gmra.mxu0 %v7958
        %v8781 = vpop.f32.mrf.mxu0
        %v8782 = vadd.f32 %v8622, %v8781
        %v8783 = vpop.f32.mrf.mxu0
        %v8784 = vadd.f32 %v8624, %v8783
        %8785 = vmatmul.bf16.gmra.mxu0 %v7961
        %v8786 = vpop.f32.mrf.mxu0
        %v8787 = vadd.f32 %v8627, %v8786
        %v8788 = vpop.f32.mrf.mxu0
        %v8789 = vadd.f32 %v8629, %v8788
        %8790 = vmatmul.bf16.gmra.mxu0 %v7965
        %v8791 = vpop.f32.mrf.mxu0
        %v8792 = vadd.f32 %v8632, %v8791
        %v8793 = vpop.f32.mrf.mxu0
        %v8794 = vadd.f32 %v8634, %v8793
        %8795 = vmatmul.bf16.gmra.mxu0 %v7969
        %v8796 = vpop.f32.mrf.mxu0
        %v8797 = vadd.f32 %v8637, %v8796
        %v8798 = vpop.f32.mrf.mxu0
        %8799 = vdwg.mxu0
        %8800 = vmatpush.bf16.msra.mxu0 %v8361
        %8801 = vmatpush.bf16.msra.mxu0 %v8360
        %8802 = vmatpush.bf16.msra.mxu0 %v8359
        %8803 = vmatpush.bf16.msra.mxu0 %v8358
        %8804 = vmatpush.bf16.msra.mxu0 %v8357
        %8805 = vmatpush.bf16.msra.mxu0 %v8356
        %8806 = vmatpush.bf16.msra.mxu0 %v8355
        %8807 = vmatpush.bf16.msra.mxu0 %v8354
        %8808 = vmatmul.bf16.gmra.mxu0 %v7972
        %v8809 = vpop.f32.mrf.mxu0
        %v8810 = vadd.f32 %v8650, %v8809
        %v8811 = vpop.f32.mrf.mxu0
        %v8812 = vadd.f32 %v8652, %v8811
        %8813 = vmatmul.bf16.gmra.mxu0 %v7975
        %v8814 = vpop.f32.mrf.mxu0
        %v8815 = vadd.f32 %v8655, %v8814
        %v8816 = vpop.f32.mrf.mxu0
        %v8817 = vadd.f32 %v8657, %v8816
        %8818 = vmatmul.bf16.gmra.mxu0 %v7978
        %v8819 = vpop.f32.mrf.mxu0
        %v8820 = vadd.f32 %v8660, %v8819
        %v8821 = vpop.f32.mrf.mxu0
        %v8822 = vadd.f32 %v8662, %v8821
        %8823 = vmatmul.bf16.gmra.mxu0 %v7981
        %v8824 = vpop.f32.mrf.mxu0
        %v8825 = vadd.f32 %v8665, %v8824
        %v8826 = vpop.f32.mrf.mxu0
        %8827 = vmatmul.bf16.gmra.mxu0 %v7984
        %v8828 = vpop.f32.mrf.mxu0
        %v8829 = vpop.f32.mrf.mxu0
        %8830 = vmatmul.bf16.gmra.mxu0 %v7987
        %v8831 = vpop.f32.mrf.mxu0
        %v8832 = vadd.f32 %v8672, %v8831
        %v8833 = vpop.f32.mrf.mxu0
        %v8834 = vadd.f32 %v8674, %v8833
        %8835 = vmatmul.bf16.gmra.mxu0 %v7990
        %v8836 = vpop.f32.mrf.mxu0
        %v8837 = vadd.f32 %v8677, %v8836
        %v8838 = vpop.f32.mrf.mxu0
        %v8839 = vadd.f32 %v8679, %v8838
        %8840 = vmatmul.bf16.gmra.mxu0 %v7993
        %v8841 = vpop.f32.mrf.mxu0
        %v8842 = vadd.f32 %v8682, %v8841
        %v8843 = vpop.f32.mrf.mxu0
        %v8844 = vadd.f32 %v8684, %v8843
        %8845 = vmatmul.bf16.gmra.mxu0 %v7996
        %v8846 = vpop.f32.mrf.mxu0
        %v8847 = vadd.f32 %v8687, %v8846
        %v8848 = vpop.f32.mrf.mxu0
        %8849 = vmatmul.bf16.gmra.mxu0 %v7999
        %v8850 = vpop.f32.mrf.mxu0
        %v8851 = vpop.f32.mrf.mxu0
        %8852 = vmatmul.bf16.gmra.mxu0 %v8002
        %v8853 = vpop.f32.mrf.mxu0
        %v8854 = vadd.f32 %v8694, %v8853
        %v8855 = vpop.f32.mrf.mxu0
        %v8856 = vadd.f32 %v8696, %v8855
        %8857 = vmatmul.bf16.gmra.mxu0 %v8005
        %v8858 = vpop.f32.mrf.mxu0
        %v8859 = vadd.f32 %v8699, %v8858
        %v8860 = vpop.f32.mrf.mxu0
        %v8861 = vadd.f32 %v8701, %v8860
        %8862 = vmatmul.bf16.gmra.mxu0 %v8008
        %v8863 = vpop.f32.mrf.mxu0
        %v8864 = vadd.f32 %v8704, %v8863
        %v8865 = vpop.f32.mrf.mxu0
        %v8866 = vadd.f32 %v8706, %v8865
        %8867 = vmatmul.bf16.gmra.mxu0 %v8011
        %v8868 = vpop.f32.mrf.mxu0
        %v8869 = vadd.f32 %v8709, %v8868
        %v8870 = vpop.f32.mrf.mxu0
        %8871 = vmatmul.bf16.gmra.mxu0 %v8014
        %v8872 = vpop.f32.mrf.mxu0
        %v8873 = vpop.f32.mrf.mxu0
        %8874 = vmatmul.bf16.gmra.mxu0 %v8017
        %v8875 = vpop.f32.mrf.mxu0
        %v8876 = vadd.f32 %v8716, %v8875
        %v8877 = vpop.f32.mrf.mxu0
        %v8878 = vadd.f32 %v8718, %v8877
        %8879 = vmatmul.bf16.gmra.mxu0 %v8020
        %v8880 = vpop.f32.mrf.mxu0
        %v8881 = vadd.f32 %v8721, %v8880
        %v8882 = vpop.f32.mrf.mxu0
        %v8883 = vadd.f32 %v8723, %v8882
        %8884 = vmatmul.bf16.gmra.mxu0 %v8023
        %v8885 = vpop.f32.mrf.mxu0
        %v8886 = vadd.f32 %v8726, %v8885
        %v8887 = vpop.f32.mrf.mxu0
        %v8888 = vadd.f32 %v8728, %v8887
        %8889 = vmatmul.bf16.gmra.mxu0 %v8026
        %v8890 = vpop.f32.mrf.mxu0
        %v8891 = vadd.f32 %v8731, %v8890
        %v8892 = vpop.f32.mrf.mxu0
        %8893 = vmatmul.bf16.gmra.mxu0 %v8029
        %v8894 = vpop.f32.mrf.mxu0
        %v8895 = vpop.f32.mrf.mxu0
        %8896 = vmatmul.bf16.gmra.mxu0 %v8032
        %v8897 = vpop.f32.mrf.mxu0
        %v8898 = vadd.f32 %v8738, %v8897
        %v8899 = vpop.f32.mrf.mxu0
        %v8900 = vadd.f32 %v8740, %v8899
        %8901 = vmatmul.bf16.gmra.mxu0 %v8035
        %v8902 = vpop.f32.mrf.mxu0
        %v8903 = vadd.f32 %v8743, %v8902
        %v8904 = vpop.f32.mrf.mxu0
        %v8905 = vadd.f32 %v8745, %v8904
        %8906 = vmatmul.bf16.gmra.mxu0 %v8038
        %v8907 = vpop.f32.mrf.mxu0
        %v8908 = vadd.f32 %v8748, %v8907
        %v8909 = vpop.f32.mrf.mxu0
        %v8910 = vadd.f32 %v8750, %v8909
        %8911 = vmatmul.bf16.gmra.mxu0 %v8041
        %v8912 = vpop.f32.mrf.mxu0
        %v8913 = vadd.f32 %v8753, %v8912
        %v8914 = vpop.f32.mrf.mxu0
        %8915 = vmatmul.bf16.gmra.mxu0 %v8044
        %v8916 = vpop.f32.mrf.mxu0
        %v8917 = vpop.f32.mrf.mxu0
        %8918 = vmatmul.bf16.gmra.mxu0 %v8047
        %v8919 = vpop.f32.mrf.mxu0
        %v8920 = vadd.f32 %v8760, %v8919
        %v8921 = vpop.f32.mrf.mxu0
        %v8922 = vadd.f32 %v8762, %v8921
        %8923 = vmatmul.bf16.gmra.mxu0 %v8050
        %v8924 = vpop.f32.mrf.mxu0
        %v8925 = vadd.f32 %v8765, %v8924
        %v8926 = vpop.f32.mrf.mxu0
        %v8927 = vadd.f32 %v8767, %v8926
        %8928 = vmatmul.bf16.gmra.mxu0 %v8053
        %v8929 = vpop.f32.mrf.mxu0
        %v8930 = vadd.f32 %v8770, %v8929
        %v8931 = vpop.f32.mrf.mxu0
        %v8932 = vadd.f32 %v8772, %v8931
        %8933 = vmatmul.bf16.gmra.mxu0 %v8056
        %v8934 = vpop.f32.mrf.mxu0
        %v8935 = vadd.f32 %v8775, %v8934
        %v8936 = vpop.f32.mrf.mxu0
        %8937 = vmatmul.bf16.gmra.mxu0 %v8059
        %v8938 = vpop.f32.mrf.mxu0
        %v8939 = vpop.f32.mrf.mxu0
        %8940 = vmatmul.bf16.gmra.mxu0 %v8062
        %v8941 = vpop.f32.mrf.mxu0
        %v8942 = vadd.f32 %v8782, %v8941
        %v8943 = vpop.f32.mrf.mxu0
        %v8944 = vadd.f32 %v8784, %v8943
        %8945 = vmatmul.bf16.gmra.mxu0 %v8065
        %v8946 = vpop.f32.mrf.mxu0
        %v8947 = vadd.f32 %v8787, %v8946
        %v8948 = vpop.f32.mrf.mxu0
        %v8949 = vadd.f32 %v8789, %v8948
        %8950 = vmatmul.bf16.gmra.mxu0 %v8069
        %v8951 = vpop.f32.mrf.mxu0
        %v8952 = vadd.f32 %v8792, %v8951
        %v8953 = vpop.f32.mrf.mxu0
        %v8954 = vadd.f32 %v8794, %v8953
        %8955 = vmatmul.bf16.gmra.mxu0 %v8073
        %v8956 = vpop.f32.mrf.mxu0
        %v8957 = vadd.f32 %v8797, %v8956
        %v8958 = vpop.f32.mrf.mxu0
        %8959 = vdwg.mxu0
        %8960 = vmatpush.bf16.msra.mxu0 %v8369
        %8961 = vmatpush.bf16.msra.mxu0 %v8368
        %8962 = vmatpush.bf16.msra.mxu0 %v8367
        %8963 = vmatpush.bf16.msra.mxu0 %v8366
        %8964 = vmatpush.bf16.msra.mxu0 %v8365
        %8965 = vmatpush.bf16.msra.mxu0 %v8364
        %8966 = vmatpush.bf16.msra.mxu0 %v8363
        %8967 = vmatpush.bf16.msra.mxu0 %v8362
        %8968 = vmatmul.bf16.gmra.mxu0 %v7773
        %v8969 = vpop.f32.mrf.mxu0
        %v8970 = vadd.f32 %v8810, %v8969
        %v8971 = vpop.f32.mrf.mxu0
        %v8972 = vadd.f32 %v8812, %v8971
        %8973 = vmatmul.bf16.gmra.mxu0 %v7777
        %v8974 = vpop.f32.mrf.mxu0
        %v8975 = vadd.f32 %v8815, %v8974
        %v8976 = vpop.f32.mrf.mxu0
        %v8977 = vadd.f32 %v8817, %v8976
        %8978 = vmatmul.bf16.gmra.mxu0 %v7781
        %v8979 = vpop.f32.mrf.mxu0
        %v8980 = vadd.f32 %v8820, %v8979
        %v8981 = vpop.f32.mrf.mxu0
        %v8982 = vadd.f32 %v8822, %v8981
        %8983 = vmatmul.bf16.gmra.mxu0 %v7785
        %v8984 = vpop.f32.mrf.mxu0
        %v8985 = vadd.f32 %v8825, %v8984
        %v8986 = vpop.f32.mrf.mxu0
        %8987 = vmatmul.bf16.gmra.mxu0 %v7789
        %v8988 = vpop.f32.mrf.mxu0
        %v8989 = vpop.f32.mrf.mxu0
        %8990 = vmatmul.bf16.gmra.mxu0 %v7793
        %v8991 = vpop.f32.mrf.mxu0
        %v8992 = vadd.f32 %v8832, %v8991
        %v8993 = vpop.f32.mrf.mxu0
        %v8994 = vadd.f32 %v8834, %v8993
        %8995 = vmatmul.bf16.gmra.mxu0 %v7797
        %v8996 = vpop.f32.mrf.mxu0
        %v8997 = vadd.f32 %v8837, %v8996
        %v8998 = vpop.f32.mrf.mxu0
        %v8999 = vadd.f32 %v8839, %v8998
        %9000 = vmatmul.bf16.gmra.mxu0 %v7801
        %v9001 = vpop.f32.mrf.mxu0
        %v9002 = vadd.f32 %v8842, %v9001
        %v9003 = vpop.f32.mrf.mxu0
        %v9004 = vadd.f32 %v8844, %v9003
        %9005 = vmatmul.bf16.gmra.mxu0 %v7805
        %v9006 = vpop.f32.mrf.mxu0
        %v9007 = vadd.f32 %v8847, %v9006
        %v9008 = vpop.f32.mrf.mxu0
        %9009 = vmatmul.bf16.gmra.mxu0 %v7809
        %v9010 = vpop.f32.mrf.mxu0
        %v9011 = vpop.f32.mrf.mxu0
        %9012 = vmatmul.bf16.gmra.mxu0 %v7813
        %v9013 = vpop.f32.mrf.mxu0
        %v9014 = vadd.f32 %v8854, %v9013
        %v9015 = vpop.f32.mrf.mxu0
        %v9016 = vadd.f32 %v8856, %v9015
        %9017 = vmatmul.bf16.gmra.mxu0 %v7817
        %v9018 = vpop.f32.mrf.mxu0
        %v9019 = vadd.f32 %v8859, %v9018
        %v9020 = vpop.f32.mrf.mxu0
        %v9021 = vadd.f32 %v8861, %v9020
        %9022 = vmatmul.bf16.gmra.mxu0 %v7821
        %v9023 = vpop.f32.mrf.mxu0
        %v9024 = vadd.f32 %v8864, %v9023
        %v9025 = vpop.f32.mrf.mxu0
        %v9026 = vadd.f32 %v8866, %v9025
        %9027 = vmatmul.bf16.gmra.mxu0 %v7825
        %v9028 = vpop.f32.mrf.mxu0
        %v9029 = vadd.f32 %v8869, %v9028
        %v9030 = vpop.f32.mrf.mxu0
        %9031 = vmatmul.bf16.gmra.mxu0 %v7829
        %v9032 = vpop.f32.mrf.mxu0
        %v9033 = vpop.f32.mrf.mxu0
        %9034 = vmatmul.bf16.gmra.mxu0 %v7833
        %v9035 = vpop.f32.mrf.mxu0
        %v9036 = vadd.f32 %v8876, %v9035
        %v9037 = vpop.f32.mrf.mxu0
        %v9038 = vadd.f32 %v8878, %v9037
        %9039 = vmatmul.bf16.gmra.mxu0 %v7837
        %v9040 = vpop.f32.mrf.mxu0
        %v9041 = vadd.f32 %v8881, %v9040
        %v9042 = vpop.f32.mrf.mxu0
        %v9043 = vadd.f32 %v8883, %v9042
        %9044 = vmatmul.bf16.gmra.mxu0 %v7841
        %v9045 = vpop.f32.mrf.mxu0
        %v9046 = vadd.f32 %v8886, %v9045
        %v9047 = vpop.f32.mrf.mxu0
        %v9048 = vadd.f32 %v8888, %v9047
        %9049 = vmatmul.bf16.gmra.mxu0 %v7845
        %v9050 = vpop.f32.mrf.mxu0
        %v9051 = vadd.f32 %v8891, %v9050
        %v9052 = vpop.f32.mrf.mxu0
        %9053 = vmatmul.bf16.gmra.mxu0 %v7849
        %v9054 = vpop.f32.mrf.mxu0
        %v9055 = vpop.f32.mrf.mxu0
        %9056 = vmatmul.bf16.gmra.mxu0 %v7853
        %v9057 = vpop.f32.mrf.mxu0
        %v9058 = vadd.f32 %v8898, %v9057
        %v9059 = vpop.f32.mrf.mxu0
        %v9060 = vadd.f32 %v8900, %v9059
        %9061 = vmatmul.bf16.gmra.mxu0 %v7857
        %v9062 = vpop.f32.mrf.mxu0
        %v9063 = vadd.f32 %v8903, %v9062
        %v9064 = vpop.f32.mrf.mxu0
        %v9065 = vadd.f32 %v8905, %v9064
        %9066 = vmatmul.bf16.gmra.mxu0 %v7861
        %v9067 = vpop.f32.mrf.mxu0
        %v9068 = vadd.f32 %v8908, %v9067
        %v9069 = vpop.f32.mrf.mxu0
        %v9070 = vadd.f32 %v8910, %v9069
        %9071 = vmatmul.bf16.gmra.mxu0 %v8076
        %v9072 = vpop.f32.mrf.mxu0
        %v9073 = vadd.f32 %v8913, %v9072
        %v9074 = vpop.f32.mrf.mxu0
        %9075 = vmatmul.bf16.gmra.mxu0 %v8080
        %v9076 = vpop.f32.mrf.mxu0
        %v9077 = vpop.f32.mrf.mxu0
        %9078 = vmatmul.bf16.gmra.mxu0 %v8084
        %v9079 = vpop.f32.mrf.mxu0
        %v9080 = vadd.f32 %v8920, %v9079
        %v9081 = vpop.f32.mrf.mxu0
        %v9082 = vadd.f32 %v8922, %v9081
        %9083 = vmatmul.bf16.gmra.mxu0 %v8088
        %v9084 = vpop.f32.mrf.mxu0
        %v9085 = vadd.f32 %v8925, %v9084
        %v9086 = vpop.f32.mrf.mxu0
        %v9087 = vadd.f32 %v8927, %v9086
        %9088 = vmatmul.bf16.gmra.mxu0 %v8092
        %v9089 = vpop.f32.mrf.mxu0
        %v9090 = vadd.f32 %v8930, %v9089
        %v9091 = vpop.f32.mrf.mxu0
        %v9092 = vadd.f32 %v8932, %v9091
        %9093 = vmatmul.bf16.gmra.mxu0 %v8096
        %v9094 = vpop.f32.mrf.mxu0
        %v9095 = vadd.f32 %v8935, %v9094
        %v9096 = vpop.f32.mrf.mxu0
        %9097 = vmatmul.bf16.gmra.mxu0 %v8100
        %v9098 = vpop.f32.mrf.mxu0
        %v9099 = vpop.f32.mrf.mxu0
        %9100 = vmatmul.bf16.gmra.mxu0 %v8104
        %v9101 = vpop.f32.mrf.mxu0
        %v9102 = vadd.f32 %v8942, %v9101
        %v9103 = vpop.f32.mrf.mxu0
        %v9104 = vadd.f32 %v8944, %v9103
        %9105 = vmatmul.bf16.gmra.mxu0 %v8108
        %v9106 = vpop.f32.mrf.mxu0
        %v9107 = vadd.f32 %v8947, %v9106
        %v9108 = vpop.f32.mrf.mxu0
        %v9109 = vadd.f32 %v8949, %v9108
        %9110 = vmatmul.bf16.gmra.mxu0 %v8112
        %v9111 = vpop.f32.mrf.mxu0
        %v9112 = vadd.f32 %v8952, %v9111
        %v9113 = vpop.f32.mrf.mxu0
        %v9114 = vadd.f32 %v8954, %v9113
        %9115 = vmatmul.bf16.gmra.mxu0 %v8116
        %v9116 = vpop.f32.mrf.mxu0
        %v9117 = vadd.f32 %v8957, %v9116
        %v9118 = vpop.f32.mrf.mxu0
        %9119 = vdwg.mxu0
        %9120 = vmatpush.bf16.msra.mxu0 0
        %9121 = vmatpush.bf16.msra.mxu0 0
        %9122 = vmatpush.bf16.msra.mxu0 0
        %9123 = vmatpush.bf16.msra.mxu0 0
        %9124 = vmatpush.bf16.msra.mxu0 %v8373
        %9125 = vmatpush.bf16.msra.mxu0 %v8372
        %9126 = vmatpush.bf16.msra.mxu0 %v8371
        %9127 = vmatpush.bf16.msra.mxu0 %v8370
        %9128 = vmatmul.bf16.gmra.mxu0 %v8410
        %v9129 = vpop.f32.mrf.mxu0
        %v9130 = vadd.f32 %v8970, %v9129
        %v9131 = vpop.f32.mrf.mxu0
        %v9132 = vadd.f32 %v8972, %v9131
        %9133 = vmatmul.bf16.gmra.mxu0 %v8412
        %v9134 = vpop.f32.mrf.mxu0
        %v9135 = vadd.f32 %v8975, %v9134
        %v9136 = vpop.f32.mrf.mxu0
        %v9137 = vadd.f32 %v8977, %v9136
        %9138 = vmatmul.bf16.gmra.mxu0 %v8414
        %v9139 = vpop.f32.mrf.mxu0
        %v9140 = vadd.f32 %v8980, %v9139
        %v9141 = vpop.f32.mrf.mxu0
        %v9142 = vadd.f32 %v8982, %v9141
        %9143 = vmatmul.bf16.gmra.mxu0 %v8416
        %v9144 = vpop.f32.mrf.mxu0
        %v9145 = vadd.f32 %v8985, %v9144
        %v9146 = vpop.f32.mrf.mxu0
        %9147 = vmatmul.bf16.gmra.mxu0 %v8418
        %v9148 = vpop.f32.mrf.mxu0
        %v9149 = vpop.f32.mrf.mxu0
        %9150 = vmatmul.bf16.gmra.mxu0 %v8420
        %v9151 = vpop.f32.mrf.mxu0
        %v9152 = vadd.f32 %v8992, %v9151
        %v9153 = vpop.f32.mrf.mxu0
        %v9154 = vadd.f32 %v8994, %v9153
        %9155 = vmatmul.bf16.gmra.mxu0 %v8422
        %v9156 = vpop.f32.mrf.mxu0
        %v9157 = vadd.f32 %v8997, %v9156
        %v9158 = vpop.f32.mrf.mxu0
        %v9159 = vadd.f32 %v8999, %v9158
        %9160 = vmatmul.bf16.gmra.mxu0 %v8424
        %v9161 = vpop.f32.mrf.mxu0
        %v9162 = vadd.f32 %v9002, %v9161
        %v9163 = vpop.f32.mrf.mxu0
        %v9164 = vadd.f32 %v9004, %v9163
        %9165 = vmatmul.bf16.gmra.mxu0 %v8426
        %v9166 = vpop.f32.mrf.mxu0
        %v9167 = vadd.f32 %v9007, %v9166
        %v9168 = vpop.f32.mrf.mxu0
        %9169 = vmatmul.bf16.gmra.mxu0 %v8428
        %v9170 = vpop.f32.mrf.mxu0
        %v9171 = vpop.f32.mrf.mxu0
        %9172 = vmatmul.bf16.gmra.mxu0 %v8430
        %v9173 = vpop.f32.mrf.mxu0
        %v9174 = vadd.f32 %v9014, %v9173
        %v9175 = vpop.f32.mrf.mxu0
        %v9176 = vadd.f32 %v9016, %v9175
        %9177 = vmatmul.bf16.gmra.mxu0 %v8432
        %v9178 = vpop.f32.mrf.mxu0
        %v9179 = vadd.f32 %v9019, %v9178
        %v9180 = vpop.f32.mrf.mxu0
        %v9181 = vadd.f32 %v9021, %v9180
        %9182 = vmatmul.bf16.gmra.mxu0 %v8434
        %v9183 = vpop.f32.mrf.mxu0
        %v9184 = vadd.f32 %v9024, %v9183
        %v9185 = vpop.f32.mrf.mxu0
        %v9186 = vadd.f32 %v9026, %v9185
        %9187 = vmatmul.bf16.gmra.mxu0 %v8436
        %v9188 = vpop.f32.mrf.mxu0
        %v9189 = vadd.f32 %v9029, %v9188
        %v9190 = vpop.f32.mrf.mxu0
        %9191 = vmatmul.bf16.gmra.mxu0 %v8438
        %v9192 = vpop.f32.mrf.mxu0
        %v9193 = vpop.f32.mrf.mxu0
        %9194 = vmatmul.bf16.gmra.mxu0 %v8440
        %v9195 = vpop.f32.mrf.mxu0
        %v9196 = vadd.f32 %v9036, %v9195
        %v9197 = vpop.f32.mrf.mxu0
        %v9198 = vadd.f32 %v9038, %v9197
        %9199 = vmatmul.bf16.gmra.mxu0 %v8442
        %v9200 = vpop.f32.mrf.mxu0
        %v9201 = vadd.f32 %v9041, %v9200
        %v9202 = vpop.f32.mrf.mxu0
        %v9203 = vadd.f32 %v9043, %v9202
        %9204 = vmatmul.bf16.gmra.mxu0 %v8444
        %v9205 = vpop.f32.mrf.mxu0
        %v9206 = vadd.f32 %v9046, %v9205
        %v9207 = vpop.f32.mrf.mxu0
        %v9208 = vadd.f32 %v9048, %v9207
        %9209 = vmatmul.bf16.gmra.mxu0 %v8446
        %v9210 = vpop.f32.mrf.mxu0
        %v9211 = vadd.f32 %v9051, %v9210
        %v9212 = vpop.f32.mrf.mxu0
        %9213 = vmatmul.bf16.gmra.mxu0 %v8448
        %v9214 = vpop.f32.mrf.mxu0
        %v9215 = vpop.f32.mrf.mxu0
        %9216 = vmatmul.bf16.gmra.mxu0 %v8450
        %v9217 = vpop.f32.mrf.mxu0
        %v9218 = vadd.f32 %v9058, %v9217
        %v9219 = vpop.f32.mrf.mxu0
        %v9220 = vadd.f32 %v9060, %v9219
        %9221 = vmatmul.bf16.gmra.mxu0 %v8452
        %v9222 = vpop.f32.mrf.mxu0
        %v9223 = vadd.f32 %v9063, %v9222
        %v9224 = vpop.f32.mrf.mxu0
        %v9225 = vadd.f32 %v9065, %v9224
        %9226 = vmatmul.bf16.gmra.mxu0 %v8454
        %v9227 = vpop.f32.mrf.mxu0
        %v9228 = vadd.f32 %v9068, %v9227
        %v9229 = vpop.f32.mrf.mxu0
        %v9230 = vadd.f32 %v9070, %v9229
        %9231 = vmatmul.bf16.gmra.mxu0 %v8456
        %v9232 = vpop.f32.mrf.mxu0
        %v9233 = vadd.f32 %v9073, %v9232
        %v9234 = vpop.f32.mrf.mxu0
        %9235 = vmatmul.bf16.gmra.mxu0 %v8458
        %v9236 = vpop.f32.mrf.mxu0
        %v9237 = vpop.f32.mrf.mxu0
        %9238 = vmatmul.bf16.gmra.mxu0 %v8460
        %v9239 = vpop.f32.mrf.mxu0
        %v9240 = vadd.f32 %v9080, %v9239
        %v9241 = vpop.f32.mrf.mxu0
        %v9242 = vadd.f32 %v9082, %v9241
        %9243 = vmatmul.bf16.gmra.mxu0 %v8462
        %v9244 = vpop.f32.mrf.mxu0
        %v9245 = vadd.f32 %v9085, %v9244
        %v9246 = vpop.f32.mrf.mxu0
        %v9247 = vadd.f32 %v9087, %v9246
        %9248 = vmatmul.bf16.gmra.mxu0 %v8464
        %v9249 = vpop.f32.mrf.mxu0
        %v9250 = vadd.f32 %v9090, %v9249
        %v9251 = vpop.f32.mrf.mxu0
        %v9252 = vadd.f32 %v9092, %v9251
        %9253 = vmatmul.bf16.gmra.mxu0 %v8466
        %v9254 = vpop.f32.mrf.mxu0
        %v9255 = vadd.f32 %v9095, %v9254
        %v9256 = vpop.f32.mrf.mxu0
        %9257 = vmatmul.bf16.gmra.mxu0 %v8468
        %v9258 = vpop.f32.mrf.mxu0
        %v9259 = vpop.f32.mrf.mxu0
        %9260 = vmatmul.bf16.gmra.mxu0 %v8470
        %v9261 = vpop.f32.mrf.mxu0
        %v9262 = vadd.f32 %v9102, %v9261
        %v9263 = vpop.f32.mrf.mxu0
        %v9264 = vadd.f32 %v9104, %v9263
        %9265 = vmatmul.bf16.gmra.mxu0 %v8472
        %v9266 = vpop.f32.mrf.mxu0
        %v9267 = vadd.f32 %v9107, %v9266
        %v9268 = vpop.f32.mrf.mxu0
        %v9269 = vadd.f32 %v9109, %v9268
        %9270 = vmatmul.bf16.gmra.mxu0 %v8475
        %v9271 = vpop.f32.mrf.mxu0
        %v9272 = vadd.f32 %v9112, %v9271
        %v9273 = vpop.f32.mrf.mxu0
        %v9274 = vadd.f32 %v9114, %v9273
        %9275 = vmatmul.bf16.gmra.mxu0 %v8478
        %v9276 = vpop.f32.mrf.mxu0
        %v9277 = vadd.f32 %v9117, %v9276
        %v9278 = vpop.f32.mrf.mxu0
        %9279 = vdwg.mxu0
        %v9280 = vmax.f32 %v9130, 0.0
        %v9281 = vmax.f32 %v9132, 0.0
        %v9282 = vmax.f32 %v9135, 0.0
        %v9283 = vmax.f32 %v9137, 0.0
        %v9284 = vmax.f32 %v9140, 0.0
        %v9285 = vmax.f32 %v9142, 0.0
        %v9286 = vmax.f32 %v9145, 0.0
        %v9287 = vmax.f32 %v9152, 0.0
        %v9288 = vmax.f32 %v9154, 0.0
        %v9289 = vmax.f32 %v9157, 0.0
        %v9290 = vmax.f32 %v9159, 0.0
        %v9291 = vmax.f32 %v9162, 0.0
        %v9292 = vmax.f32 %v9164, 0.0
        %v9293 = vmax.f32 %v9167, 0.0
        %v9294 = vmax.f32 %v9174, 0.0
        %v9295 = vmax.f32 %v9176, 0.0
        %v9296 = vmax.f32 %v9179, 0.0
        %v9297 = vmax.f32 %v9181, 0.0
        %v9298 = vmax.f32 %v9184, 0.0
        %v9299 = vmax.f32 %v9186, 0.0
        %v9300 = vmax.f32 %v9189, 0.0
        %v9301 = vmax.f32 %v9196, 0.0
        %v9302 = vmax.f32 %v9198, 0.0
        %v9303 = vmax.f32 %v9201, 0.0
        %v9304 = vmax.f32 %v9203, 0.0
        %v9305 = vmax.f32 %v9206, 0.0
        %v9306 = vmax.f32 %v9208, 0.0
        %v9307 = vmax.f32 %v9211, 0.0
        %v9308 = vmax.f32 %v9218, 0.0
        %v9309 = vmax.f32 %v9220, 0.0
        %v9310 = vmax.f32 %v9223, 0.0
        %v9311 = vmax.f32 %v9225, 0.0
        %v9312 = vmax.f32 %v9228, 0.0
        %v9313 = vmax.f32 %v9230, 0.0
        %v9314 = vmax.f32 %v9233, 0.0
        %v9315 = vmax.f32 %v9240, 0.0
        %v9316 = vmax.f32 %v9242, 0.0
        %v9317 = vmax.f32 %v9245, 0.0
        %v9318 = vmax.f32 %v9247, 0.0
        %v9319 = vmax.f32 %v9250, 0.0
        %v9320 = vmax.f32 %v9252, 0.0
        %v9321 = vmax.f32 %v9255, 0.0
        %v9322 = vmax.f32 %v9262, 0.0
        %v9323 = vmax.f32 %v9264, 0.0
        %v9324 = vmax.f32 %v9267, 0.0
        %v9325 = vmax.f32 %v9269, 0.0
        %v9326 = vmax.f32 %v9272, 0.0
        %v9327 = vmax.f32 %v9274, 0.0
        %v9328 = vmax.f32 %v9277, 0.0
        %v9329 = vpack.c.bf16 %v9280, %v9280
        %v9330 = vpack.c.bf16 %v9281, %v9281
        %v9331 = vpack.c.bf16 %v9282, %v9282
        %v9332 = vpack.c.bf16 %v9283, %v9283
        %v9333 = vpack.c.bf16 %v9284, %v9284
        %v9334 = vpack.c.bf16 %v9285, %v9285
        %v9335 = vpack.c.bf16 %v9286, %v9286
        %v9336 = vpack.c.bf16 %v9287, %v9287
        %v9337 = vpack.c.bf16 %v9288, %v9288
        %v9338 = vpack.c.bf16 %v9289, %v9289
        %v9339 = vpack.c.bf16 %v9290, %v9290
        %v9340 = vpack.c.bf16 %v9291, %v9291
        %v9341 = vpack.c.bf16 %v9292, %v9292
        %v9342 = vpack.c.bf16 %v9293, %v9293
        %v9343 = vpack.c.bf16 %v9294, %v9294
        %v9344 = vpack.c.bf16 %v9295, %v9295
        %v9345 = vpack.c.bf16 %v9296, %v9296
        %v9346 = vpack.c.bf16 %v9297, %v9297
        %v9347 = vpack.c.bf16 %v9298, %v9298
        %v9348 = vpack.c.bf16 %v9299, %v9299
        %v9349 = vpack.c.bf16 %v9300, %v9300
        %v9350 = vpack.c.bf16 %v9301, %v9301
        %v9351 = vpack.c.bf16 %v9302, %v9302
        %v9352 = vpack.c.bf16 %v9303, %v9303
        %v9353 = vpack.c.bf16 %v9304, %v9304
        %v9354 = vpack.c.bf16 %v9305, %v9305
        %v9355 = vpack.c.bf16 %v9306, %v9306
        %v9356 = vpack.c.bf16 %v9307, %v9307
        %v9357 = vpack.c.bf16 %v9308, %v9308
        %v9358 = vpack.c.bf16 %v9309, %v9309
        %v9359 = vpack.c.bf16 %v9310, %v9310
        %v9360 = vpack.c.bf16 %v9311, %v9311
        %v9361 = vpack.c.bf16 %v9312, %v9312
        %v9362 = vpack.c.bf16 %v9313, %v9313
        %v9363 = vpack.c.bf16 %v9314, %v9314
        %v9364 = vpack.c.bf16 %v9315, %v9315
        %v9365 = vpack.c.bf16 %v9316, %v9316
        %v9366 = vpack.c.bf16 %v9317, %v9317
        %v9367 = vpack.c.bf16 %v9318, %v9318
        %v9368 = vpack.c.bf16 %v9319, %v9319
        %v9369 = vpack.c.bf16 %v9320, %v9320
        %v9370 = vpack.c.bf16 %v9321, %v9321
        %v9371 = vpack.c.bf16 %v9322, %v9322
        %v9372 = vpack.c.bf16 %v9323, %v9323
        %v9373 = vpack.c.bf16 %v9324, %v9324
        %v9374 = vpack.c.bf16 %v9325, %v9325
        %v9375 = vpack.c.bf16 %v9326, %v9326
        %v9376 = vpack.c.bf16 %v9327, %v9327
        %v9377 = vpack.c.bf16 %v9328, %v9328
        %v9378 = vld [vmem:[%s7] sm:$0xf]
        %v9379 = vld [vmem:[%s7 + $0x4] sm:$0xf]
        %v9380 = vld [vmem:[%s7 + $0x8] sm:$0xf]
        %v9381 = vld [vmem:[%s7 + $0xc] sm:$0xf]
        %v9382 = vld [vmem:[%s7 + $0x10] sm:$0xf]
        %v9383 = vld [vmem:[%s7 + $0x14] sm:$0xf]
        %v9384 = vld [vmem:[%s7 + $0x18] sm:$0xf]
        %v9385 = vld [vmem:[%s7 + $0x1c] sm:$0xf]
        %s9386 = scalar_lea.vmem %s7, 32
        %v9387 = vld [vmem:[%s9386] sm:$0xf]
        %v9388 = vld [vmem:[%s9386 + $0x4] sm:$0xf]
        %v9389 = vld [vmem:[%s9386 + $0x8] sm:$0xf]
        %v9390 = vld [vmem:[%s9386 + $0xc] sm:$0xf]
        %v9391 = vld [vmem:[%s9386 + $0x10] sm:$0xf]
        %v9392 = vld [vmem:[%s9386 + $0x14] sm:$0xf]
        %v9393 = vld [vmem:[%s9386 + $0x18] sm:$0xf]
        %v9394 = vld [vmem:[%s9386 + $0x1c] sm:$0xf]
        %v9403 = vunpack.c.l.b16 %v9387
        %v9404 = vunpack.c.l.b16 %v9388
        %v9405 = vunpack.c.l.b16 %v9389
        %v9406 = vunpack.c.l.b16 %v9390
        %v9407 = vunpack.c.l.b16 %v9391
        %v9408 = vunpack.c.l.b16 %v9392
        %v9409 = vunpack.c.l.b16 %v9393
        %v9410 = vunpack.c.l.b16 %v9394
        %v9411 = vpack.c.b16 %v9404, %v9403
        %v9412 = vpack.c.b16 %v9406, %v9405
        %v9413 = vpack.c.b16 %v9408, %v9407
        %v9414 = vpack.c.b16 %v9410, %v9409
        %v9420 = vsel %vm7730, %v9330, 0
        %9422 = vmatpush.bf16.msra.mxu0 0
        %9423 = vmatpush.bf16.msra.mxu0 0
        %9424 = vmatpush.bf16.msra.mxu0 0
        %9425 = vmatpush.bf16.msra.mxu0 0
        %9426 = vmatpush.bf16.msra.mxu0 %v9414
        %9427 = vmatpush.bf16.msra.mxu0 %v9413
        %9428 = vmatpush.bf16.msra.mxu0 %v9412
        %9429 = vmatpush.bf16.msra.mxu0 %v9411
        %9430 = vmatmul.bf16.gmra.mxu0 %v9420
        %v9431 = vpop.f32.mrf.mxu0
        %v9432 = vadd.f32 0.0, %v9431
        %v9433 = vpop.f32.mrf.mxu0
        %9434 = vdwg.mxu0
        %v9443 = vunpack.c.l.b16 %v9378
        %v9444 = vunpack.c.l.b16 %v9379
        %v9445 = vunpack.c.l.b16 %v9380
        %v9446 = vunpack.c.l.b16 %v9381
        %v9447 = vunpack.c.l.b16 %v9382
        %v9448 = vunpack.c.l.b16 %v9383
        %v9449 = vunpack.c.l.b16 %v9384
        %v9450 = vunpack.c.l.b16 %v9385
        %v9451 = vpack.c.b16 %v9444, %v9443
        %v9452 = vpack.c.b16 %v9446, %v9445
        %v9453 = vpack.c.b16 %v9448, %v9447
        %v9454 = vpack.c.b16 %v9450, %v9449
        %v9460 = vsel %vm7730, %v9329, 0
        %9462 = vmatpush.bf16.msra.mxu0 0
        %9463 = vmatpush.bf16.msra.mxu0 0
        %9464 = vmatpush.bf16.msra.mxu0 0
        %9465 = vmatpush.bf16.msra.mxu0 0
        %9466 = vmatpush.bf16.msra.mxu0 %v9454
        %9467 = vmatpush.bf16.msra.mxu0 %v9453
        %9468 = vmatpush.bf16.msra.mxu0 %v9452
        %9469 = vmatpush.bf16.msra.mxu0 %v9451
        %9470 = vmatmul.bf16.gmra.mxu0 %v9460
        %v9471 = vpop.f32.mrf.mxu0
        %v9472 = vadd.f32 %v9432, %v9471
        %v9473 = vpop.f32.mrf.mxu0
        %9474 = vdwg.mxu0
        %s9475 = scalar_lea.vmem %s7, 64
        %v9476 = vld [vmem:[%s9475] sm:$0xf]
        %v9477 = vld [vmem:[%s9475 + $0x4] sm:$0xf]
        %v9478 = vld [vmem:[%s9475 + $0x8] sm:$0xf]
        %v9479 = vld [vmem:[%s9475 + $0xc] sm:$0xf]
        %v9480 = vld [vmem:[%s9475 + $0x10] sm:$0xf]
        %v9481 = vld [vmem:[%s9475 + $0x14] sm:$0xf]
        %v9482 = vld [vmem:[%s9475 + $0x18] sm:$0xf]
        %v9483 = vld [vmem:[%s9475 + $0x1c] sm:$0xf]
        %v9492 = vunpack.c.l.b16 %v9476
        %v9493 = vunpack.c.l.b16 %v9477
        %v9494 = vunpack.c.l.b16 %v9478
        %v9495 = vunpack.c.l.b16 %v9479
        %v9496 = vunpack.c.l.b16 %v9480
        %v9497 = vunpack.c.l.b16 %v9481
        %v9498 = vunpack.c.l.b16 %v9482
        %v9499 = vunpack.c.l.b16 %v9483
        %v9500 = vpack.c.b16 %v9493, %v9492
        %v9501 = vpack.c.b16 %v9495, %v9494
        %v9502 = vpack.c.b16 %v9497, %v9496
        %v9503 = vpack.c.b16 %v9499, %v9498
        %v9509 = vsel %vm7730, %v9331, 0
        %9511 = vmatpush.bf16.msra.mxu0 0
        %9512 = vmatpush.bf16.msra.mxu0 0
        %9513 = vmatpush.bf16.msra.mxu0 0
        %9514 = vmatpush.bf16.msra.mxu0 0
        %9515 = vmatpush.bf16.msra.mxu0 %v9503
        %9516 = vmatpush.bf16.msra.mxu0 %v9502
        %9517 = vmatpush.bf16.msra.mxu0 %v9501
        %9518 = vmatpush.bf16.msra.mxu0 %v9500
        %9519 = vmatmul.bf16.gmra.mxu0 %v9509
        %v9520 = vpop.f32.mrf.mxu0
        %v9521 = vadd.f32 0.0, %v9520
        %v9522 = vpop.f32.mrf.mxu0
        %9523 = vdwg.mxu0
        %v9524 = vadd.f32 %v9472, %v9521
        %s9525 = scalar_lea.vmem %s7, 96
        %v9526 = vld [vmem:[%s9525] sm:$0xf]
        %v9527 = vld [vmem:[%s9525 + $0x4] sm:$0xf]
        %v9528 = vld [vmem:[%s9525 + $0x8] sm:$0xf]
        %v9529 = vld [vmem:[%s9525 + $0xc] sm:$0xf]
        %v9530 = vld [vmem:[%s9525 + $0x10] sm:$0xf]
        %v9531 = vld [vmem:[%s9525 + $0x14] sm:$0xf]
        %v9532 = vld [vmem:[%s9525 + $0x18] sm:$0xf]
        %v9533 = vld [vmem:[%s9525 + $0x1c] sm:$0xf]
        %v9542 = vunpack.c.l.b16 %v9526
        %v9543 = vunpack.c.l.b16 %v9527
        %v9544 = vunpack.c.l.b16 %v9528
        %v9545 = vunpack.c.l.b16 %v9529
        %v9546 = vunpack.c.l.b16 %v9530
        %v9547 = vunpack.c.l.b16 %v9531
        %v9548 = vunpack.c.l.b16 %v9532
        %v9549 = vunpack.c.l.b16 %v9533
        %v9550 = vpack.c.b16 %v9543, %v9542
        %v9551 = vpack.c.b16 %v9545, %v9544
        %v9552 = vpack.c.b16 %v9547, %v9546
        %v9553 = vpack.c.b16 %v9549, %v9548
        %v9559 = vsel %vm7730, %v9332, 0
        %9561 = vmatpush.bf16.msra.mxu0 0
        %9562 = vmatpush.bf16.msra.mxu0 0
        %9563 = vmatpush.bf16.msra.mxu0 0
        %9564 = vmatpush.bf16.msra.mxu0 0
        %9565 = vmatpush.bf16.msra.mxu0 %v9553
        %9566 = vmatpush.bf16.msra.mxu0 %v9552
        %9567 = vmatpush.bf16.msra.mxu0 %v9551
        %9568 = vmatpush.bf16.msra.mxu0 %v9550
        %9569 = vmatmul.bf16.gmra.mxu0 %v9559
        %v9570 = vpop.f32.mrf.mxu0
        %v9571 = vadd.f32 0.0, %v9570
        %v9572 = vpop.f32.mrf.mxu0
        %9573 = vdwg.mxu0
        %v9574 = vadd.f32 %v9524, %v9571
        %s9575 = scalar_lea.vmem %s7, 128
        %v9576 = vld [vmem:[%s9575] sm:$0xf]
        %v9577 = vld [vmem:[%s9575 + $0x4] sm:$0xf]
        %v9578 = vld [vmem:[%s9575 + $0x8] sm:$0xf]
        %v9579 = vld [vmem:[%s9575 + $0xc] sm:$0xf]
        %v9580 = vld [vmem:[%s9575 + $0x10] sm:$0xf]
        %v9581 = vld [vmem:[%s9575 + $0x14] sm:$0xf]
        %v9582 = vld [vmem:[%s9575 + $0x18] sm:$0xf]
        %v9583 = vld [vmem:[%s9575 + $0x1c] sm:$0xf]
        %v9592 = vunpack.c.l.b16 %v9576
        %v9593 = vunpack.c.l.b16 %v9577
        %v9594 = vunpack.c.l.b16 %v9578
        %v9595 = vunpack.c.l.b16 %v9579
        %v9596 = vunpack.c.l.b16 %v9580
        %v9597 = vunpack.c.l.b16 %v9581
        %v9598 = vunpack.c.l.b16 %v9582
        %v9599 = vunpack.c.l.b16 %v9583
        %v9600 = vpack.c.b16 %v9593, %v9592
        %v9601 = vpack.c.b16 %v9595, %v9594
        %v9602 = vpack.c.b16 %v9597, %v9596
        %v9603 = vpack.c.b16 %v9599, %v9598
        %v9609 = vsel %vm7730, %v9333, 0
        %9611 = vmatpush.bf16.msra.mxu0 0
        %9612 = vmatpush.bf16.msra.mxu0 0
        %9613 = vmatpush.bf16.msra.mxu0 0
        %9614 = vmatpush.bf16.msra.mxu0 0
        %9615 = vmatpush.bf16.msra.mxu0 %v9603
        %9616 = vmatpush.bf16.msra.mxu0 %v9602
        %9617 = vmatpush.bf16.msra.mxu0 %v9601
        %9618 = vmatpush.bf16.msra.mxu0 %v9600
        %9619 = vmatmul.bf16.gmra.mxu0 %v9609
        %v9620 = vpop.f32.mrf.mxu0
        %v9621 = vadd.f32 0.0, %v9620
        %v9622 = vpop.f32.mrf.mxu0
        %9623 = vdwg.mxu0
        %v9624 = vadd.f32 %v9574, %v9621
        %s9625 = scalar_lea.vmem %s7, 160
        %v9626 = vld [vmem:[%s9625] sm:$0xf]
        %v9627 = vld [vmem:[%s9625 + $0x4] sm:$0xf]
        %v9628 = vld [vmem:[%s9625 + $0x8] sm:$0xf]
        %v9629 = vld [vmem:[%s9625 + $0xc] sm:$0xf]
        %v9630 = vld [vmem:[%s9625 + $0x10] sm:$0xf]
        %v9631 = vld [vmem:[%s9625 + $0x14] sm:$0xf]
        %v9632 = vld [vmem:[%s9625 + $0x18] sm:$0xf]
        %v9633 = vld [vmem:[%s9625 + $0x1c] sm:$0xf]
        %v9642 = vunpack.c.l.b16 %v9626
        %v9643 = vunpack.c.l.b16 %v9627
        %v9644 = vunpack.c.l.b16 %v9628
        %v9645 = vunpack.c.l.b16 %v9629
        %v9646 = vunpack.c.l.b16 %v9630
        %v9647 = vunpack.c.l.b16 %v9631
        %v9648 = vunpack.c.l.b16 %v9632
        %v9649 = vunpack.c.l.b16 %v9633
        %v9650 = vpack.c.b16 %v9643, %v9642
        %v9651 = vpack.c.b16 %v9645, %v9644
        %v9652 = vpack.c.b16 %v9647, %v9646
        %v9653 = vpack.c.b16 %v9649, %v9648
        %v9659 = vsel %vm7730, %v9334, 0
        %9661 = vmatpush.bf16.msra.mxu0 0
        %9662 = vmatpush.bf16.msra.mxu0 0
        %9663 = vmatpush.bf16.msra.mxu0 0
        %9664 = vmatpush.bf16.msra.mxu0 0
        %9665 = vmatpush.bf16.msra.mxu0 %v9653
        %9666 = vmatpush.bf16.msra.mxu0 %v9652
        %9667 = vmatpush.bf16.msra.mxu0 %v9651
        %9668 = vmatpush.bf16.msra.mxu0 %v9650
        %9669 = vmatmul.bf16.gmra.mxu0 %v9659
        %v9670 = vpop.f32.mrf.mxu0
        %v9671 = vadd.f32 0.0, %v9670
        %v9672 = vpop.f32.mrf.mxu0
        %9673 = vdwg.mxu0
        %v9674 = vadd.f32 %v9624, %v9671
        %s9675 = scalar_lea.vmem %s7, 192
        %v9676 = vld [vmem:[%s9675] sm:$0xf]
        %v9677 = vld [vmem:[%s9675 + $0x4] sm:$0xf]
        %v9678 = vld [vmem:[%s9675 + $0x8] sm:$0xf]
        %v9679 = vld [vmem:[%s9675 + $0xc] sm:$0xf]
        %v9680 = vld [vmem:[%s9675 + $0x10] sm:$0xf]
        %v9681 = vld [vmem:[%s9675 + $0x14] sm:$0xf]
        %v9682 = vld [vmem:[%s9675 + $0x18] sm:$0xf]
        %v9683 = vld [vmem:[%s9675 + $0x1c] sm:$0xf]
        %v9692 = vunpack.c.l.b16 %v9676
        %v9693 = vunpack.c.l.b16 %v9677
        %v9694 = vunpack.c.l.b16 %v9678
        %v9695 = vunpack.c.l.b16 %v9679
        %v9696 = vunpack.c.l.b16 %v9680
        %v9697 = vunpack.c.l.b16 %v9681
        %v9698 = vunpack.c.l.b16 %v9682
        %v9699 = vunpack.c.l.b16 %v9683
        %v9700 = vpack.c.b16 %v9693, %v9692
        %v9701 = vpack.c.b16 %v9695, %v9694
        %v9702 = vpack.c.b16 %v9697, %v9696
        %v9703 = vpack.c.b16 %v9699, %v9698
        %v9709 = vsel %vm7730, %v9335, 0
        %9711 = vmatpush.bf16.msra.mxu0 0
        %9712 = vmatpush.bf16.msra.mxu0 0
        %9713 = vmatpush.bf16.msra.mxu0 0
        %9714 = vmatpush.bf16.msra.mxu0 0
        %9715 = vmatpush.bf16.msra.mxu0 %v9703
        %9716 = vmatpush.bf16.msra.mxu0 %v9702
        %9717 = vmatpush.bf16.msra.mxu0 %v9701
        %9718 = vmatpush.bf16.msra.mxu0 %v9700
        %9719 = vmatmul.bf16.gmra.mxu0 %v9709
        %v9720 = vpop.f32.mrf.mxu0
        %v9721 = vadd.f32 0.0, %v9720
        %v9722 = vpop.f32.mrf.mxu0
        %9723 = vdwg.mxu0
        %v9724 = vadd.f32 %v9674, %v9721
        %s9725 = scalar_lea.vmem %s7, 224
        %v9726 = vld [vmem:[%s9725] sm:$0xf]
        %v9727 = vld [vmem:[%s9725 + $0x4] sm:$0xf]
        %v9728 = vld [vmem:[%s9725 + $0x8] sm:$0xf]
        %v9729 = vld [vmem:[%s9725 + $0xc] sm:$0xf]
        %v9730 = vld [vmem:[%s9725 + $0x10] sm:$0xf]
        %v9731 = vld [vmem:[%s9725 + $0x14] sm:$0xf]
        %v9732 = vld [vmem:[%s9725 + $0x18] sm:$0xf]
        %v9733 = vld [vmem:[%s9725 + $0x1c] sm:$0xf]
        %v9742 = vunpack.c.l.b16 %v9726
        %v9743 = vunpack.c.l.b16 %v9727
        %v9744 = vunpack.c.l.b16 %v9728
        %v9745 = vunpack.c.l.b16 %v9729
        %v9746 = vunpack.c.l.b16 %v9730
        %v9747 = vunpack.c.l.b16 %v9731
        %v9748 = vunpack.c.l.b16 %v9732
        %v9749 = vunpack.c.l.b16 %v9733
        %v9750 = vpack.c.b16 %v9743, %v9742
        %v9751 = vpack.c.b16 %v9745, %v9744
        %v9752 = vpack.c.b16 %v9747, %v9746
        %v9753 = vpack.c.b16 %v9749, %v9748
        %v9759 = vsel %vm7730, %v9336, 0
        %9761 = vmatpush.bf16.msra.mxu0 0
        %9762 = vmatpush.bf16.msra.mxu0 0
        %9763 = vmatpush.bf16.msra.mxu0 0
        %9764 = vmatpush.bf16.msra.mxu0 0
        %9765 = vmatpush.bf16.msra.mxu0 %v9753
        %9766 = vmatpush.bf16.msra.mxu0 %v9752
        %9767 = vmatpush.bf16.msra.mxu0 %v9751
        %9768 = vmatpush.bf16.msra.mxu0 %v9750
        %9769 = vmatmul.bf16.gmra.mxu0 %v9759
        %v9770 = vpop.f32.mrf.mxu0
        %v9771 = vadd.f32 0.0, %v9770
        %v9772 = vpop.f32.mrf.mxu0
        %9773 = vdwg.mxu0
        %v9774 = vadd.f32 %v9724, %v9771
        %s9775 = scalar_lea.vmem %s7, 256
        %v9776 = vld [vmem:[%s9775] sm:$0xf]
        %v9777 = vld [vmem:[%s9775 + $0x4] sm:$0xf]
        %v9778 = vld [vmem:[%s9775 + $0x8] sm:$0xf]
        %v9779 = vld [vmem:[%s9775 + $0xc] sm:$0xf]
        %v9780 = vld [vmem:[%s9775 + $0x10] sm:$0xf]
        %v9781 = vld [vmem:[%s9775 + $0x14] sm:$0xf]
        %v9782 = vld [vmem:[%s9775 + $0x18] sm:$0xf]
        %v9783 = vld [vmem:[%s9775 + $0x1c] sm:$0xf]
        %v9792 = vunpack.c.l.b16 %v9776
        %v9793 = vunpack.c.l.b16 %v9777
        %v9794 = vunpack.c.l.b16 %v9778
        %v9795 = vunpack.c.l.b16 %v9779
        %v9796 = vunpack.c.l.b16 %v9780
        %v9797 = vunpack.c.l.b16 %v9781
        %v9798 = vunpack.c.l.b16 %v9782
        %v9799 = vunpack.c.l.b16 %v9783
        %v9800 = vpack.c.b16 %v9793, %v9792
        %v9801 = vpack.c.b16 %v9795, %v9794
        %v9802 = vpack.c.b16 %v9797, %v9796
        %v9803 = vpack.c.b16 %v9799, %v9798
        %v9809 = vsel %vm7730, %v9337, 0
        %9811 = vmatpush.bf16.msra.mxu0 0
        %9812 = vmatpush.bf16.msra.mxu0 0
        %9813 = vmatpush.bf16.msra.mxu0 0
        %9814 = vmatpush.bf16.msra.mxu0 0
        %9815 = vmatpush.bf16.msra.mxu0 %v9803
        %9816 = vmatpush.bf16.msra.mxu0 %v9802
        %9817 = vmatpush.bf16.msra.mxu0 %v9801
        %9818 = vmatpush.bf16.msra.mxu0 %v9800
        %9819 = vmatmul.bf16.gmra.mxu0 %v9809
        %v9820 = vpop.f32.mrf.mxu0
        %v9821 = vadd.f32 0.0, %v9820
        %v9822 = vpop.f32.mrf.mxu0
        %9823 = vdwg.mxu0
        %v9824 = vadd.f32 %v9774, %v9821
        %s9825 = scalar_lea.vmem %s7, 288
        %v9826 = vld [vmem:[%s9825] sm:$0xf]
        %v9827 = vld [vmem:[%s9825 + $0x4] sm:$0xf]
        %v9828 = vld [vmem:[%s9825 + $0x8] sm:$0xf]
        %v9829 = vld [vmem:[%s9825 + $0xc] sm:$0xf]
        %v9830 = vld [vmem:[%s9825 + $0x10] sm:$0xf]
        %v9831 = vld [vmem:[%s9825 + $0x14] sm:$0xf]
        %v9832 = vld [vmem:[%s9825 + $0x18] sm:$0xf]
        %v9833 = vld [vmem:[%s9825 + $0x1c] sm:$0xf]
        %v9842 = vunpack.c.l.b16 %v9826
        %v9843 = vunpack.c.l.b16 %v9827
        %v9844 = vunpack.c.l.b16 %v9828
        %v9845 = vunpack.c.l.b16 %v9829
        %v9846 = vunpack.c.l.b16 %v9830
        %v9847 = vunpack.c.l.b16 %v9831
        %v9848 = vunpack.c.l.b16 %v9832
        %v9849 = vunpack.c.l.b16 %v9833
        %v9850 = vpack.c.b16 %v9843, %v9842
        %v9851 = vpack.c.b16 %v9845, %v9844
        %v9852 = vpack.c.b16 %v9847, %v9846
        %v9853 = vpack.c.b16 %v9849, %v9848
        %v9859 = vsel %vm7730, %v9338, 0
        %9861 = vmatpush.bf16.msra.mxu0 0
        %9862 = vmatpush.bf16.msra.mxu0 0
        %9863 = vmatpush.bf16.msra.mxu0 0
        %9864 = vmatpush.bf16.msra.mxu0 0
        %9865 = vmatpush.bf16.msra.mxu0 %v9853
        %9866 = vmatpush.bf16.msra.mxu0 %v9852
        %9867 = vmatpush.bf16.msra.mxu0 %v9851
        %9868 = vmatpush.bf16.msra.mxu0 %v9850
        %9869 = vmatmul.bf16.gmra.mxu0 %v9859
        %v9870 = vpop.f32.mrf.mxu0
        %v9871 = vadd.f32 0.0, %v9870
        %v9872 = vpop.f32.mrf.mxu0
        %9873 = vdwg.mxu0
        %v9874 = vadd.f32 %v9824, %v9871
        %s9875 = scalar_lea.vmem %s7, 320
        %v9876 = vld [vmem:[%s9875] sm:$0xf]
        %v9877 = vld [vmem:[%s9875 + $0x4] sm:$0xf]
        %v9878 = vld [vmem:[%s9875 + $0x8] sm:$0xf]
        %v9879 = vld [vmem:[%s9875 + $0xc] sm:$0xf]
        %v9880 = vld [vmem:[%s9875 + $0x10] sm:$0xf]
        %v9881 = vld [vmem:[%s9875 + $0x14] sm:$0xf]
        %v9882 = vld [vmem:[%s9875 + $0x18] sm:$0xf]
        %v9883 = vld [vmem:[%s9875 + $0x1c] sm:$0xf]
        %v9892 = vunpack.c.l.b16 %v9876
        %v9893 = vunpack.c.l.b16 %v9877
        %v9894 = vunpack.c.l.b16 %v9878
        %v9895 = vunpack.c.l.b16 %v9879
        %v9896 = vunpack.c.l.b16 %v9880
        %v9897 = vunpack.c.l.b16 %v9881
        %v9898 = vunpack.c.l.b16 %v9882
        %v9899 = vunpack.c.l.b16 %v9883
        %v9900 = vpack.c.b16 %v9893, %v9892
        %v9901 = vpack.c.b16 %v9895, %v9894
        %v9902 = vpack.c.b16 %v9897, %v9896
        %v9903 = vpack.c.b16 %v9899, %v9898
        %v9909 = vsel %vm7730, %v9339, 0
        %9911 = vmatpush.bf16.msra.mxu0 0
        %9912 = vmatpush.bf16.msra.mxu0 0
        %9913 = vmatpush.bf16.msra.mxu0 0
        %9914 = vmatpush.bf16.msra.mxu0 0
        %9915 = vmatpush.bf16.msra.mxu0 %v9903
        %9916 = vmatpush.bf16.msra.mxu0 %v9902
        %9917 = vmatpush.bf16.msra.mxu0 %v9901
        %9918 = vmatpush.bf16.msra.mxu0 %v9900
        %9919 = vmatmul.bf16.gmra.mxu0 %v9909
        %v9920 = vpop.f32.mrf.mxu0
        %v9921 = vadd.f32 0.0, %v9920
        %v9922 = vpop.f32.mrf.mxu0
        %9923 = vdwg.mxu0
        %v9924 = vadd.f32 %v9874, %v9921
        %s9925 = scalar_lea.vmem %s7, 352
        %v9926 = vld [vmem:[%s9925] sm:$0xf]
        %v9927 = vld [vmem:[%s9925 + $0x4] sm:$0xf]
        %v9928 = vld [vmem:[%s9925 + $0x8] sm:$0xf]
        %v9929 = vld [vmem:[%s9925 + $0xc] sm:$0xf]
        %v9930 = vld [vmem:[%s9925 + $0x10] sm:$0xf]
        %v9931 = vld [vmem:[%s9925 + $0x14] sm:$0xf]
        %v9932 = vld [vmem:[%s9925 + $0x18] sm:$0xf]
        %v9933 = vld [vmem:[%s9925 + $0x1c] sm:$0xf]
        %v9942 = vunpack.c.l.b16 %v9926
        %v9943 = vunpack.c.l.b16 %v9927
        %v9944 = vunpack.c.l.b16 %v9928
        %v9945 = vunpack.c.l.b16 %v9929
        %v9946 = vunpack.c.l.b16 %v9930
        %v9947 = vunpack.c.l.b16 %v9931
        %v9948 = vunpack.c.l.b16 %v9932
        %v9949 = vunpack.c.l.b16 %v9933
        %v9950 = vpack.c.b16 %v9943, %v9942
        %v9951 = vpack.c.b16 %v9945, %v9944
        %v9952 = vpack.c.b16 %v9947, %v9946
        %v9953 = vpack.c.b16 %v9949, %v9948
        %v9959 = vsel %vm7730, %v9340, 0
        %9961 = vmatpush.bf16.msra.mxu0 0
        %9962 = vmatpush.bf16.msra.mxu0 0
        %9963 = vmatpush.bf16.msra.mxu0 0
        %9964 = vmatpush.bf16.msra.mxu0 0
        %9965 = vmatpush.bf16.msra.mxu0 %v9953
        %9966 = vmatpush.bf16.msra.mxu0 %v9952
        %9967 = vmatpush.bf16.msra.mxu0 %v9951
        %9968 = vmatpush.bf16.msra.mxu0 %v9950
        %9969 = vmatmul.bf16.gmra.mxu0 %v9959
        %v9970 = vpop.f32.mrf.mxu0
        %v9971 = vadd.f32 0.0, %v9970
        %v9972 = vpop.f32.mrf.mxu0
        %9973 = vdwg.mxu0
        %v9974 = vadd.f32 %v9924, %v9971
        %s9975 = scalar_lea.vmem %s7, 384
        %v9976 = vld [vmem:[%s9975] sm:$0xf]
        %v9977 = vld [vmem:[%s9975 + $0x4] sm:$0xf]
        %v9978 = vld [vmem:[%s9975 + $0x8] sm:$0xf]
        %v9979 = vld [vmem:[%s9975 + $0xc] sm:$0xf]
        %v9980 = vld [vmem:[%s9975 + $0x10] sm:$0xf]
        %v9981 = vld [vmem:[%s9975 + $0x14] sm:$0xf]
        %v9982 = vld [vmem:[%s9975 + $0x18] sm:$0xf]
        %v9983 = vld [vmem:[%s9975 + $0x1c] sm:$0xf]
        %v9992 = vunpack.c.l.b16 %v9976
        %v9993 = vunpack.c.l.b16 %v9977
        %v9994 = vunpack.c.l.b16 %v9978
        %v9995 = vunpack.c.l.b16 %v9979
        %v9996 = vunpack.c.l.b16 %v9980
        %v9997 = vunpack.c.l.b16 %v9981
        %v9998 = vunpack.c.l.b16 %v9982
        %v9999 = vunpack.c.l.b16 %v9983
        %v10000 = vpack.c.b16 %v9993, %v9992
        %v10001 = vpack.c.b16 %v9995, %v9994
        %v10002 = vpack.c.b16 %v9997, %v9996
        %v10003 = vpack.c.b16 %v9999, %v9998
        %v10009 = vsel %vm7730, %v9341, 0
        %10011 = vmatpush.bf16.msra.mxu0 0
        %10012 = vmatpush.bf16.msra.mxu0 0
        %10013 = vmatpush.bf16.msra.mxu0 0
        %10014 = vmatpush.bf16.msra.mxu0 0
        %10015 = vmatpush.bf16.msra.mxu0 %v10003
        %10016 = vmatpush.bf16.msra.mxu0 %v10002
        %10017 = vmatpush.bf16.msra.mxu0 %v10001
        %10018 = vmatpush.bf16.msra.mxu0 %v10000
        %10019 = vmatmul.bf16.gmra.mxu0 %v10009
        %v10020 = vpop.f32.mrf.mxu0
        %v10021 = vadd.f32 0.0, %v10020
        %v10022 = vpop.f32.mrf.mxu0
        %10023 = vdwg.mxu0
        %v10024 = vadd.f32 %v9974, %v10021
        %s10025 = scalar_lea.vmem %s7, 416
        %v10026 = vld [vmem:[%s10025] sm:$0xf]
        %v10027 = vld [vmem:[%s10025 + $0x4] sm:$0xf]
        %v10028 = vld [vmem:[%s10025 + $0x8] sm:$0xf]
        %v10029 = vld [vmem:[%s10025 + $0xc] sm:$0xf]
        %v10030 = vld [vmem:[%s10025 + $0x10] sm:$0xf]
        %v10031 = vld [vmem:[%s10025 + $0x14] sm:$0xf]
        %v10032 = vld [vmem:[%s10025 + $0x18] sm:$0xf]
        %v10033 = vld [vmem:[%s10025 + $0x1c] sm:$0xf]
        %v10042 = vunpack.c.l.b16 %v10026
        %v10043 = vunpack.c.l.b16 %v10027
        %v10044 = vunpack.c.l.b16 %v10028
        %v10045 = vunpack.c.l.b16 %v10029
        %v10046 = vunpack.c.l.b16 %v10030
        %v10047 = vunpack.c.l.b16 %v10031
        %v10048 = vunpack.c.l.b16 %v10032
        %v10049 = vunpack.c.l.b16 %v10033
        %v10050 = vpack.c.b16 %v10043, %v10042
        %v10051 = vpack.c.b16 %v10045, %v10044
        %v10052 = vpack.c.b16 %v10047, %v10046
        %v10053 = vpack.c.b16 %v10049, %v10048
        %v10059 = vsel %vm7730, %v9342, 0
        %10061 = vmatpush.bf16.msra.mxu0 0
        %10062 = vmatpush.bf16.msra.mxu0 0
        %10063 = vmatpush.bf16.msra.mxu0 0
        %10064 = vmatpush.bf16.msra.mxu0 0
        %10065 = vmatpush.bf16.msra.mxu0 %v10053
        %10066 = vmatpush.bf16.msra.mxu0 %v10052
        %10067 = vmatpush.bf16.msra.mxu0 %v10051
        %10068 = vmatpush.bf16.msra.mxu0 %v10050
        %10069 = vmatmul.bf16.gmra.mxu0 %v10059
        %v10070 = vpop.f32.mrf.mxu0
        %v10071 = vadd.f32 0.0, %v10070
        %v10072 = vpop.f32.mrf.mxu0
        %10073 = vdwg.mxu0
        %v10074 = vadd.f32 %v10024, %v10071
        %s10075 = scalar_lea.vmem %s7, 448
        %v10076 = vld [vmem:[%s10075] sm:$0xf]
        %v10077 = vld [vmem:[%s10075 + $0x4] sm:$0xf]
        %v10078 = vld [vmem:[%s10075 + $0x8] sm:$0xf]
        %v10079 = vld [vmem:[%s10075 + $0xc] sm:$0xf]
        %v10080 = vld [vmem:[%s10075 + $0x10] sm:$0xf]
        %v10081 = vld [vmem:[%s10075 + $0x14] sm:$0xf]
        %v10082 = vld [vmem:[%s10075 + $0x18] sm:$0xf]
        %v10083 = vld [vmem:[%s10075 + $0x1c] sm:$0xf]
        %v10092 = vunpack.c.l.b16 %v10076
        %v10093 = vunpack.c.l.b16 %v10077
        %v10094 = vunpack.c.l.b16 %v10078
        %v10095 = vunpack.c.l.b16 %v10079
        %v10096 = vunpack.c.l.b16 %v10080
        %v10097 = vunpack.c.l.b16 %v10081
        %v10098 = vunpack.c.l.b16 %v10082
        %v10099 = vunpack.c.l.b16 %v10083
        %v10100 = vpack.c.b16 %v10093, %v10092
        %v10101 = vpack.c.b16 %v10095, %v10094
        %v10102 = vpack.c.b16 %v10097, %v10096
        %v10103 = vpack.c.b16 %v10099, %v10098
        %v10109 = vsel %vm7730, %v9343, 0
        %10111 = vmatpush.bf16.msra.mxu0 0
        %10112 = vmatpush.bf16.msra.mxu0 0
        %10113 = vmatpush.bf16.msra.mxu0 0
        %10114 = vmatpush.bf16.msra.mxu0 0
        %10115 = vmatpush.bf16.msra.mxu0 %v10103
        %10116 = vmatpush.bf16.msra.mxu0 %v10102
        %10117 = vmatpush.bf16.msra.mxu0 %v10101
        %10118 = vmatpush.bf16.msra.mxu0 %v10100
        %10119 = vmatmul.bf16.gmra.mxu0 %v10109
        %v10120 = vpop.f32.mrf.mxu0
        %v10121 = vadd.f32 0.0, %v10120
        %v10122 = vpop.f32.mrf.mxu0
        %10123 = vdwg.mxu0
        %v10124 = vadd.f32 %v10074, %v10121
        %s10125 = scalar_lea.vmem %s7, 480
        %v10126 = vld [vmem:[%s10125] sm:$0xf]
        %v10127 = vld [vmem:[%s10125 + $0x4] sm:$0xf]
        %v10128 = vld [vmem:[%s10125 + $0x8] sm:$0xf]
        %v10129 = vld [vmem:[%s10125 + $0xc] sm:$0xf]
        %v10130 = vld [vmem:[%s10125 + $0x10] sm:$0xf]
        %v10131 = vld [vmem:[%s10125 + $0x14] sm:$0xf]
        %v10132 = vld [vmem:[%s10125 + $0x18] sm:$0xf]
        %v10133 = vld [vmem:[%s10125 + $0x1c] sm:$0xf]
        %v10142 = vunpack.c.l.b16 %v10126
        %v10143 = vunpack.c.l.b16 %v10127
        %v10144 = vunpack.c.l.b16 %v10128
        %v10145 = vunpack.c.l.b16 %v10129
        %v10146 = vunpack.c.l.b16 %v10130
        %v10147 = vunpack.c.l.b16 %v10131
        %v10148 = vunpack.c.l.b16 %v10132
        %v10149 = vunpack.c.l.b16 %v10133
        %v10150 = vpack.c.b16 %v10143, %v10142
        %v10151 = vpack.c.b16 %v10145, %v10144
        %v10152 = vpack.c.b16 %v10147, %v10146
        %v10153 = vpack.c.b16 %v10149, %v10148
        %v10159 = vsel %vm7730, %v9344, 0
        %10161 = vmatpush.bf16.msra.mxu0 0
        %10162 = vmatpush.bf16.msra.mxu0 0
        %10163 = vmatpush.bf16.msra.mxu0 0
        %10164 = vmatpush.bf16.msra.mxu0 0
        %10165 = vmatpush.bf16.msra.mxu0 %v10153
        %10166 = vmatpush.bf16.msra.mxu0 %v10152
        %10167 = vmatpush.bf16.msra.mxu0 %v10151
        %10168 = vmatpush.bf16.msra.mxu0 %v10150
        %10169 = vmatmul.bf16.gmra.mxu0 %v10159
        %v10170 = vpop.f32.mrf.mxu0
        %v10171 = vadd.f32 0.0, %v10170
        %v10172 = vpop.f32.mrf.mxu0
        %10173 = vdwg.mxu0
        %v10174 = vadd.f32 %v10124, %v10171
        %s10175 = scalar_lea.vmem %s7, 512
        %v10176 = vld [vmem:[%s10175] sm:$0xf]
        %v10177 = vld [vmem:[%s10175 + $0x4] sm:$0xf]
        %v10178 = vld [vmem:[%s10175 + $0x8] sm:$0xf]
        %v10179 = vld [vmem:[%s10175 + $0xc] sm:$0xf]
        %v10180 = vld [vmem:[%s10175 + $0x10] sm:$0xf]
        %v10181 = vld [vmem:[%s10175 + $0x14] sm:$0xf]
        %v10182 = vld [vmem:[%s10175 + $0x18] sm:$0xf]
        %v10183 = vld [vmem:[%s10175 + $0x1c] sm:$0xf]
        %v10192 = vunpack.c.l.b16 %v10176
        %v10193 = vunpack.c.l.b16 %v10177
        %v10194 = vunpack.c.l.b16 %v10178
        %v10195 = vunpack.c.l.b16 %v10179
        %v10196 = vunpack.c.l.b16 %v10180
        %v10197 = vunpack.c.l.b16 %v10181
        %v10198 = vunpack.c.l.b16 %v10182
        %v10199 = vunpack.c.l.b16 %v10183
        %v10200 = vpack.c.b16 %v10193, %v10192
        %v10201 = vpack.c.b16 %v10195, %v10194
        %v10202 = vpack.c.b16 %v10197, %v10196
        %v10203 = vpack.c.b16 %v10199, %v10198
        %v10209 = vsel %vm7730, %v9345, 0
        %10211 = vmatpush.bf16.msra.mxu0 0
        %10212 = vmatpush.bf16.msra.mxu0 0
        %10213 = vmatpush.bf16.msra.mxu0 0
        %10214 = vmatpush.bf16.msra.mxu0 0
        %10215 = vmatpush.bf16.msra.mxu0 %v10203
        %10216 = vmatpush.bf16.msra.mxu0 %v10202
        %10217 = vmatpush.bf16.msra.mxu0 %v10201
        %10218 = vmatpush.bf16.msra.mxu0 %v10200
        %10219 = vmatmul.bf16.gmra.mxu0 %v10209
        %v10220 = vpop.f32.mrf.mxu0
        %v10221 = vadd.f32 0.0, %v10220
        %v10222 = vpop.f32.mrf.mxu0
        %10223 = vdwg.mxu0
        %v10224 = vadd.f32 %v10174, %v10221
        %s10225 = scalar_lea.vmem %s7, 544
        %v10226 = vld [vmem:[%s10225] sm:$0xf]
        %v10227 = vld [vmem:[%s10225 + $0x4] sm:$0xf]
        %v10228 = vld [vmem:[%s10225 + $0x8] sm:$0xf]
        %v10229 = vld [vmem:[%s10225 + $0xc] sm:$0xf]
        %v10230 = vld [vmem:[%s10225 + $0x10] sm:$0xf]
        %v10231 = vld [vmem:[%s10225 + $0x14] sm:$0xf]
        %v10232 = vld [vmem:[%s10225 + $0x18] sm:$0xf]
        %v10233 = vld [vmem:[%s10225 + $0x1c] sm:$0xf]
        %v10242 = vunpack.c.l.b16 %v10226
        %v10243 = vunpack.c.l.b16 %v10227
        %v10244 = vunpack.c.l.b16 %v10228
        %v10245 = vunpack.c.l.b16 %v10229
        %v10246 = vunpack.c.l.b16 %v10230
        %v10247 = vunpack.c.l.b16 %v10231
        %v10248 = vunpack.c.l.b16 %v10232
        %v10249 = vunpack.c.l.b16 %v10233
        %v10250 = vpack.c.b16 %v10243, %v10242
        %v10251 = vpack.c.b16 %v10245, %v10244
        %v10252 = vpack.c.b16 %v10247, %v10246
        %v10253 = vpack.c.b16 %v10249, %v10248
        %v10259 = vsel %vm7730, %v9346, 0
        %10261 = vmatpush.bf16.msra.mxu0 0
        %10262 = vmatpush.bf16.msra.mxu0 0
        %10263 = vmatpush.bf16.msra.mxu0 0
        %10264 = vmatpush.bf16.msra.mxu0 0
        %10265 = vmatpush.bf16.msra.mxu0 %v10253
        %10266 = vmatpush.bf16.msra.mxu0 %v10252
        %10267 = vmatpush.bf16.msra.mxu0 %v10251
        %10268 = vmatpush.bf16.msra.mxu0 %v10250
        %10269 = vmatmul.bf16.gmra.mxu0 %v10259
        %v10270 = vpop.f32.mrf.mxu0
        %v10271 = vadd.f32 0.0, %v10270
        %v10272 = vpop.f32.mrf.mxu0
        %10273 = vdwg.mxu0
        %v10274 = vadd.f32 %v10224, %v10271
        %s10275 = scalar_lea.vmem %s7, 576
        %v10276 = vld [vmem:[%s10275] sm:$0xf]
        %v10277 = vld [vmem:[%s10275 + $0x4] sm:$0xf]
        %v10278 = vld [vmem:[%s10275 + $0x8] sm:$0xf]
        %v10279 = vld [vmem:[%s10275 + $0xc] sm:$0xf]
        %v10280 = vld [vmem:[%s10275 + $0x10] sm:$0xf]
        %v10281 = vld [vmem:[%s10275 + $0x14] sm:$0xf]
        %v10282 = vld [vmem:[%s10275 + $0x18] sm:$0xf]
        %v10283 = vld [vmem:[%s10275 + $0x1c] sm:$0xf]
        %v10292 = vunpack.c.l.b16 %v10276
        %v10293 = vunpack.c.l.b16 %v10277
        %v10294 = vunpack.c.l.b16 %v10278
        %v10295 = vunpack.c.l.b16 %v10279
        %v10296 = vunpack.c.l.b16 %v10280
        %v10297 = vunpack.c.l.b16 %v10281
        %v10298 = vunpack.c.l.b16 %v10282
        %v10299 = vunpack.c.l.b16 %v10283
        %v10300 = vpack.c.b16 %v10293, %v10292
        %v10301 = vpack.c.b16 %v10295, %v10294
        %v10302 = vpack.c.b16 %v10297, %v10296
        %v10303 = vpack.c.b16 %v10299, %v10298
        %v10309 = vsel %vm7730, %v9347, 0
        %10311 = vmatpush.bf16.msra.mxu0 0
        %10312 = vmatpush.bf16.msra.mxu0 0
        %10313 = vmatpush.bf16.msra.mxu0 0
        %10314 = vmatpush.bf16.msra.mxu0 0
        %10315 = vmatpush.bf16.msra.mxu0 %v10303
        %10316 = vmatpush.bf16.msra.mxu0 %v10302
        %10317 = vmatpush.bf16.msra.mxu0 %v10301
        %10318 = vmatpush.bf16.msra.mxu0 %v10300
        %10319 = vmatmul.bf16.gmra.mxu0 %v10309
        %v10320 = vpop.f32.mrf.mxu0
        %v10321 = vadd.f32 0.0, %v10320
        %v10322 = vpop.f32.mrf.mxu0
        %10323 = vdwg.mxu0
        %v10324 = vadd.f32 %v10274, %v10321
        %s10325 = scalar_lea.vmem %s7, 608
        %v10326 = vld [vmem:[%s10325] sm:$0xf]
        %v10327 = vld [vmem:[%s10325 + $0x4] sm:$0xf]
        %v10328 = vld [vmem:[%s10325 + $0x8] sm:$0xf]
        %v10329 = vld [vmem:[%s10325 + $0xc] sm:$0xf]
        %v10330 = vld [vmem:[%s10325 + $0x10] sm:$0xf]
        %v10331 = vld [vmem:[%s10325 + $0x14] sm:$0xf]
        %v10332 = vld [vmem:[%s10325 + $0x18] sm:$0xf]
        %v10333 = vld [vmem:[%s10325 + $0x1c] sm:$0xf]
        %v10342 = vunpack.c.l.b16 %v10326
        %v10343 = vunpack.c.l.b16 %v10327
        %v10344 = vunpack.c.l.b16 %v10328
        %v10345 = vunpack.c.l.b16 %v10329
        %v10346 = vunpack.c.l.b16 %v10330
        %v10347 = vunpack.c.l.b16 %v10331
        %v10348 = vunpack.c.l.b16 %v10332
        %v10349 = vunpack.c.l.b16 %v10333
        %v10350 = vpack.c.b16 %v10343, %v10342
        %v10351 = vpack.c.b16 %v10345, %v10344
        %v10352 = vpack.c.b16 %v10347, %v10346
        %v10353 = vpack.c.b16 %v10349, %v10348
        %v10359 = vsel %vm7730, %v9348, 0
        %10361 = vmatpush.bf16.msra.mxu0 0
        %10362 = vmatpush.bf16.msra.mxu0 0
        %10363 = vmatpush.bf16.msra.mxu0 0
        %10364 = vmatpush.bf16.msra.mxu0 0
        %10365 = vmatpush.bf16.msra.mxu0 %v10353
        %10366 = vmatpush.bf16.msra.mxu0 %v10352
        %10367 = vmatpush.bf16.msra.mxu0 %v10351
        %10368 = vmatpush.bf16.msra.mxu0 %v10350
        %10369 = vmatmul.bf16.gmra.mxu0 %v10359
        %v10370 = vpop.f32.mrf.mxu0
        %v10371 = vadd.f32 0.0, %v10370
        %v10372 = vpop.f32.mrf.mxu0
        %10373 = vdwg.mxu0
        %v10374 = vadd.f32 %v10324, %v10371
        %s10375 = scalar_lea.vmem %s7, 640
        %v10376 = vld [vmem:[%s10375] sm:$0xf]
        %v10377 = vld [vmem:[%s10375 + $0x4] sm:$0xf]
        %v10378 = vld [vmem:[%s10375 + $0x8] sm:$0xf]
        %v10379 = vld [vmem:[%s10375 + $0xc] sm:$0xf]
        %v10380 = vld [vmem:[%s10375 + $0x10] sm:$0xf]
        %v10381 = vld [vmem:[%s10375 + $0x14] sm:$0xf]
        %v10382 = vld [vmem:[%s10375 + $0x18] sm:$0xf]
        %v10383 = vld [vmem:[%s10375 + $0x1c] sm:$0xf]
        %v10392 = vunpack.c.l.b16 %v10376
        %v10393 = vunpack.c.l.b16 %v10377
        %v10394 = vunpack.c.l.b16 %v10378
        %v10395 = vunpack.c.l.b16 %v10379
        %v10396 = vunpack.c.l.b16 %v10380
        %v10397 = vunpack.c.l.b16 %v10381
        %v10398 = vunpack.c.l.b16 %v10382
        %v10399 = vunpack.c.l.b16 %v10383
        %v10400 = vpack.c.b16 %v10393, %v10392
        %v10401 = vpack.c.b16 %v10395, %v10394
        %v10402 = vpack.c.b16 %v10397, %v10396
        %v10403 = vpack.c.b16 %v10399, %v10398
        %v10409 = vsel %vm7730, %v9349, 0
        %10411 = vmatpush.bf16.msra.mxu0 0
        %10412 = vmatpush.bf16.msra.mxu0 0
        %10413 = vmatpush.bf16.msra.mxu0 0
        %10414 = vmatpush.bf16.msra.mxu0 0
        %10415 = vmatpush.bf16.msra.mxu0 %v10403
        %10416 = vmatpush.bf16.msra.mxu0 %v10402
        %10417 = vmatpush.bf16.msra.mxu0 %v10401
        %10418 = vmatpush.bf16.msra.mxu0 %v10400
        %10419 = vmatmul.bf16.gmra.mxu0 %v10409
        %v10420 = vpop.f32.mrf.mxu0
        %v10421 = vadd.f32 0.0, %v10420
        %v10422 = vpop.f32.mrf.mxu0
        %10423 = vdwg.mxu0
        %v10424 = vadd.f32 %v10374, %v10421
        %s10425 = scalar_lea.vmem %s7, 672
        %v10426 = vld [vmem:[%s10425] sm:$0xf]
        %v10427 = vld [vmem:[%s10425 + $0x4] sm:$0xf]
        %v10428 = vld [vmem:[%s10425 + $0x8] sm:$0xf]
        %v10429 = vld [vmem:[%s10425 + $0xc] sm:$0xf]
        %v10430 = vld [vmem:[%s10425 + $0x10] sm:$0xf]
        %v10431 = vld [vmem:[%s10425 + $0x14] sm:$0xf]
        %v10432 = vld [vmem:[%s10425 + $0x18] sm:$0xf]
        %v10433 = vld [vmem:[%s10425 + $0x1c] sm:$0xf]
        %v10442 = vunpack.c.l.b16 %v10426
        %v10443 = vunpack.c.l.b16 %v10427
        %v10444 = vunpack.c.l.b16 %v10428
        %v10445 = vunpack.c.l.b16 %v10429
        %v10446 = vunpack.c.l.b16 %v10430
        %v10447 = vunpack.c.l.b16 %v10431
        %v10448 = vunpack.c.l.b16 %v10432
        %v10449 = vunpack.c.l.b16 %v10433
        %v10450 = vpack.c.b16 %v10443, %v10442
        %v10451 = vpack.c.b16 %v10445, %v10444
        %v10452 = vpack.c.b16 %v10447, %v10446
        %v10453 = vpack.c.b16 %v10449, %v10448
        %v10459 = vsel %vm7730, %v9350, 0
        %10461 = vmatpush.bf16.msra.mxu0 0
        %10462 = vmatpush.bf16.msra.mxu0 0
        %10463 = vmatpush.bf16.msra.mxu0 0
        %10464 = vmatpush.bf16.msra.mxu0 0
        %10465 = vmatpush.bf16.msra.mxu0 %v10453
        %10466 = vmatpush.bf16.msra.mxu0 %v10452
        %10467 = vmatpush.bf16.msra.mxu0 %v10451
        %10468 = vmatpush.bf16.msra.mxu0 %v10450
        %10469 = vmatmul.bf16.gmra.mxu0 %v10459
        %v10470 = vpop.f32.mrf.mxu0
        %v10471 = vadd.f32 0.0, %v10470
        %v10472 = vpop.f32.mrf.mxu0
        %10473 = vdwg.mxu0
        %v10474 = vadd.f32 %v10424, %v10471
        %s10475 = scalar_lea.vmem %s7, 704
        %v10476 = vld [vmem:[%s10475] sm:$0xf]
        %v10477 = vld [vmem:[%s10475 + $0x4] sm:$0xf]
        %v10478 = vld [vmem:[%s10475 + $0x8] sm:$0xf]
        %v10479 = vld [vmem:[%s10475 + $0xc] sm:$0xf]
        %v10480 = vld [vmem:[%s10475 + $0x10] sm:$0xf]
        %v10481 = vld [vmem:[%s10475 + $0x14] sm:$0xf]
        %v10482 = vld [vmem:[%s10475 + $0x18] sm:$0xf]
        %v10483 = vld [vmem:[%s10475 + $0x1c] sm:$0xf]
        %v10492 = vunpack.c.l.b16 %v10476
        %v10493 = vunpack.c.l.b16 %v10477
        %v10494 = vunpack.c.l.b16 %v10478
        %v10495 = vunpack.c.l.b16 %v10479
        %v10496 = vunpack.c.l.b16 %v10480
        %v10497 = vunpack.c.l.b16 %v10481
        %v10498 = vunpack.c.l.b16 %v10482
        %v10499 = vunpack.c.l.b16 %v10483
        %v10500 = vpack.c.b16 %v10493, %v10492
        %v10501 = vpack.c.b16 %v10495, %v10494
        %v10502 = vpack.c.b16 %v10497, %v10496
        %v10503 = vpack.c.b16 %v10499, %v10498
        %v10509 = vsel %vm7730, %v9351, 0
        %10511 = vmatpush.bf16.msra.mxu0 0
        %10512 = vmatpush.bf16.msra.mxu0 0
        %10513 = vmatpush.bf16.msra.mxu0 0
        %10514 = vmatpush.bf16.msra.mxu0 0
        %10515 = vmatpush.bf16.msra.mxu0 %v10503
        %10516 = vmatpush.bf16.msra.mxu0 %v10502
        %10517 = vmatpush.bf16.msra.mxu0 %v10501
        %10518 = vmatpush.bf16.msra.mxu0 %v10500
        %10519 = vmatmul.bf16.gmra.mxu0 %v10509
        %v10520 = vpop.f32.mrf.mxu0
        %v10521 = vadd.f32 0.0, %v10520
        %v10522 = vpop.f32.mrf.mxu0
        %10523 = vdwg.mxu0
        %v10524 = vadd.f32 %v10474, %v10521
        %s10525 = scalar_lea.vmem %s7, 736
        %v10526 = vld [vmem:[%s10525] sm:$0xf]
        %v10527 = vld [vmem:[%s10525 + $0x4] sm:$0xf]
        %v10528 = vld [vmem:[%s10525 + $0x8] sm:$0xf]
        %v10529 = vld [vmem:[%s10525 + $0xc] sm:$0xf]
        %v10530 = vld [vmem:[%s10525 + $0x10] sm:$0xf]
        %v10531 = vld [vmem:[%s10525 + $0x14] sm:$0xf]
        %v10532 = vld [vmem:[%s10525 + $0x18] sm:$0xf]
        %v10533 = vld [vmem:[%s10525 + $0x1c] sm:$0xf]
        %v10542 = vunpack.c.l.b16 %v10526
        %v10543 = vunpack.c.l.b16 %v10527
        %v10544 = vunpack.c.l.b16 %v10528
        %v10545 = vunpack.c.l.b16 %v10529
        %v10546 = vunpack.c.l.b16 %v10530
        %v10547 = vunpack.c.l.b16 %v10531
        %v10548 = vunpack.c.l.b16 %v10532
        %v10549 = vunpack.c.l.b16 %v10533
        %v10550 = vpack.c.b16 %v10543, %v10542
        %v10551 = vpack.c.b16 %v10545, %v10544
        %v10552 = vpack.c.b16 %v10547, %v10546
        %v10553 = vpack.c.b16 %v10549, %v10548
        %v10559 = vsel %vm7730, %v9352, 0
        %10561 = vmatpush.bf16.msra.mxu0 0
        %10562 = vmatpush.bf16.msra.mxu0 0
        %10563 = vmatpush.bf16.msra.mxu0 0
        %10564 = vmatpush.bf16.msra.mxu0 0
        %10565 = vmatpush.bf16.msra.mxu0 %v10553
        %10566 = vmatpush.bf16.msra.mxu0 %v10552
        %10567 = vmatpush.bf16.msra.mxu0 %v10551
        %10568 = vmatpush.bf16.msra.mxu0 %v10550
        %10569 = vmatmul.bf16.gmra.mxu0 %v10559
        %v10570 = vpop.f32.mrf.mxu0
        %v10571 = vadd.f32 0.0, %v10570
        %v10572 = vpop.f32.mrf.mxu0
        %10573 = vdwg.mxu0
        %v10574 = vadd.f32 %v10524, %v10571
        %s10575 = scalar_lea.vmem %s7, 768
        %v10576 = vld [vmem:[%s10575] sm:$0xf]
        %v10577 = vld [vmem:[%s10575 + $0x4] sm:$0xf]
        %v10578 = vld [vmem:[%s10575 + $0x8] sm:$0xf]
        %v10579 = vld [vmem:[%s10575 + $0xc] sm:$0xf]
        %v10580 = vld [vmem:[%s10575 + $0x10] sm:$0xf]
        %v10581 = vld [vmem:[%s10575 + $0x14] sm:$0xf]
        %v10582 = vld [vmem:[%s10575 + $0x18] sm:$0xf]
        %v10583 = vld [vmem:[%s10575 + $0x1c] sm:$0xf]
        %v10592 = vunpack.c.l.b16 %v10576
        %v10593 = vunpack.c.l.b16 %v10577
        %v10594 = vunpack.c.l.b16 %v10578
        %v10595 = vunpack.c.l.b16 %v10579
        %v10596 = vunpack.c.l.b16 %v10580
        %v10597 = vunpack.c.l.b16 %v10581
        %v10598 = vunpack.c.l.b16 %v10582
        %v10599 = vunpack.c.l.b16 %v10583
        %v10600 = vpack.c.b16 %v10593, %v10592
        %v10601 = vpack.c.b16 %v10595, %v10594
        %v10602 = vpack.c.b16 %v10597, %v10596
        %v10603 = vpack.c.b16 %v10599, %v10598
        %v10609 = vsel %vm7730, %v9353, 0
        %10611 = vmatpush.bf16.msra.mxu0 0
        %10612 = vmatpush.bf16.msra.mxu0 0
        %10613 = vmatpush.bf16.msra.mxu0 0
        %10614 = vmatpush.bf16.msra.mxu0 0
        %10615 = vmatpush.bf16.msra.mxu0 %v10603
        %10616 = vmatpush.bf16.msra.mxu0 %v10602
        %10617 = vmatpush.bf16.msra.mxu0 %v10601
        %10618 = vmatpush.bf16.msra.mxu0 %v10600
        %10619 = vmatmul.bf16.gmra.mxu0 %v10609
        %v10620 = vpop.f32.mrf.mxu0
        %v10621 = vadd.f32 0.0, %v10620
        %v10622 = vpop.f32.mrf.mxu0
        %10623 = vdwg.mxu0
        %v10624 = vadd.f32 %v10574, %v10621
        %s10625 = scalar_lea.vmem %s7, 800
        %v10626 = vld [vmem:[%s10625] sm:$0xf]
        %v10627 = vld [vmem:[%s10625 + $0x4] sm:$0xf]
        %v10628 = vld [vmem:[%s10625 + $0x8] sm:$0xf]
        %v10629 = vld [vmem:[%s10625 + $0xc] sm:$0xf]
        %v10630 = vld [vmem:[%s10625 + $0x10] sm:$0xf]
        %v10631 = vld [vmem:[%s10625 + $0x14] sm:$0xf]
        %v10632 = vld [vmem:[%s10625 + $0x18] sm:$0xf]
        %v10633 = vld [vmem:[%s10625 + $0x1c] sm:$0xf]
        %v10642 = vunpack.c.l.b16 %v10626
        %v10643 = vunpack.c.l.b16 %v10627
        %v10644 = vunpack.c.l.b16 %v10628
        %v10645 = vunpack.c.l.b16 %v10629
        %v10646 = vunpack.c.l.b16 %v10630
        %v10647 = vunpack.c.l.b16 %v10631
        %v10648 = vunpack.c.l.b16 %v10632
        %v10649 = vunpack.c.l.b16 %v10633
        %v10650 = vpack.c.b16 %v10643, %v10642
        %v10651 = vpack.c.b16 %v10645, %v10644
        %v10652 = vpack.c.b16 %v10647, %v10646
        %v10653 = vpack.c.b16 %v10649, %v10648
        %v10659 = vsel %vm7730, %v9354, 0
        %10661 = vmatpush.bf16.msra.mxu0 0
        %10662 = vmatpush.bf16.msra.mxu0 0
        %10663 = vmatpush.bf16.msra.mxu0 0
        %10664 = vmatpush.bf16.msra.mxu0 0
        %10665 = vmatpush.bf16.msra.mxu0 %v10653
        %10666 = vmatpush.bf16.msra.mxu0 %v10652
        %10667 = vmatpush.bf16.msra.mxu0 %v10651
        %10668 = vmatpush.bf16.msra.mxu0 %v10650
        %10669 = vmatmul.bf16.gmra.mxu0 %v10659
        %v10670 = vpop.f32.mrf.mxu0
        %v10671 = vadd.f32 0.0, %v10670
        %v10672 = vpop.f32.mrf.mxu0
        %10673 = vdwg.mxu0
        %v10674 = vadd.f32 %v10624, %v10671
        %s10675 = scalar_lea.vmem %s7, 832
        %v10676 = vld [vmem:[%s10675] sm:$0xf]
        %v10677 = vld [vmem:[%s10675 + $0x4] sm:$0xf]
        %v10678 = vld [vmem:[%s10675 + $0x8] sm:$0xf]
        %v10679 = vld [vmem:[%s10675 + $0xc] sm:$0xf]
        %v10680 = vld [vmem:[%s10675 + $0x10] sm:$0xf]
        %v10681 = vld [vmem:[%s10675 + $0x14] sm:$0xf]
        %v10682 = vld [vmem:[%s10675 + $0x18] sm:$0xf]
        %v10683 = vld [vmem:[%s10675 + $0x1c] sm:$0xf]
        %v10692 = vunpack.c.l.b16 %v10676
        %v10693 = vunpack.c.l.b16 %v10677
        %v10694 = vunpack.c.l.b16 %v10678
        %v10695 = vunpack.c.l.b16 %v10679
        %v10696 = vunpack.c.l.b16 %v10680
        %v10697 = vunpack.c.l.b16 %v10681
        %v10698 = vunpack.c.l.b16 %v10682
        %v10699 = vunpack.c.l.b16 %v10683
        %v10700 = vpack.c.b16 %v10693, %v10692
        %v10701 = vpack.c.b16 %v10695, %v10694
        %v10702 = vpack.c.b16 %v10697, %v10696
        %v10703 = vpack.c.b16 %v10699, %v10698
        %v10709 = vsel %vm7730, %v9355, 0
        %10711 = vmatpush.bf16.msra.mxu0 0
        %10712 = vmatpush.bf16.msra.mxu0 0
        %10713 = vmatpush.bf16.msra.mxu0 0
        %10714 = vmatpush.bf16.msra.mxu0 0
        %10715 = vmatpush.bf16.msra.mxu0 %v10703
        %10716 = vmatpush.bf16.msra.mxu0 %v10702
        %10717 = vmatpush.bf16.msra.mxu0 %v10701
        %10718 = vmatpush.bf16.msra.mxu0 %v10700
        %10719 = vmatmul.bf16.gmra.mxu0 %v10709
        %v10720 = vpop.f32.mrf.mxu0
        %v10721 = vadd.f32 0.0, %v10720
        %v10722 = vpop.f32.mrf.mxu0
        %10723 = vdwg.mxu0
        %v10724 = vadd.f32 %v10674, %v10721
        %s10725 = scalar_lea.vmem %s7, 864
        %v10726 = vld [vmem:[%s10725] sm:$0xf]
        %v10727 = vld [vmem:[%s10725 + $0x4] sm:$0xf]
        %v10728 = vld [vmem:[%s10725 + $0x8] sm:$0xf]
        %v10729 = vld [vmem:[%s10725 + $0xc] sm:$0xf]
        %v10730 = vld [vmem:[%s10725 + $0x10] sm:$0xf]
        %v10731 = vld [vmem:[%s10725 + $0x14] sm:$0xf]
        %v10732 = vld [vmem:[%s10725 + $0x18] sm:$0xf]
        %v10733 = vld [vmem:[%s10725 + $0x1c] sm:$0xf]
        %v10742 = vunpack.c.l.b16 %v10726
        %v10743 = vunpack.c.l.b16 %v10727
        %v10744 = vunpack.c.l.b16 %v10728
        %v10745 = vunpack.c.l.b16 %v10729
        %v10746 = vunpack.c.l.b16 %v10730
        %v10747 = vunpack.c.l.b16 %v10731
        %v10748 = vunpack.c.l.b16 %v10732
        %v10749 = vunpack.c.l.b16 %v10733
        %v10750 = vpack.c.b16 %v10743, %v10742
        %v10751 = vpack.c.b16 %v10745, %v10744
        %v10752 = vpack.c.b16 %v10747, %v10746
        %v10753 = vpack.c.b16 %v10749, %v10748
        %v10759 = vsel %vm7730, %v9356, 0
        %10761 = vmatpush.bf16.msra.mxu0 0
        %10762 = vmatpush.bf16.msra.mxu0 0
        %10763 = vmatpush.bf16.msra.mxu0 0
        %10764 = vmatpush.bf16.msra.mxu0 0
        %10765 = vmatpush.bf16.msra.mxu0 %v10753
        %10766 = vmatpush.bf16.msra.mxu0 %v10752
        %10767 = vmatpush.bf16.msra.mxu0 %v10751
        %10768 = vmatpush.bf16.msra.mxu0 %v10750
        %10769 = vmatmul.bf16.gmra.mxu0 %v10759
        %v10770 = vpop.f32.mrf.mxu0
        %v10771 = vadd.f32 0.0, %v10770
        %v10772 = vpop.f32.mrf.mxu0
        %10773 = vdwg.mxu0
        %v10774 = vadd.f32 %v10724, %v10771
        %s10775 = scalar_lea.vmem %s7, 896
        %v10776 = vld [vmem:[%s10775] sm:$0xf]
        %v10777 = vld [vmem:[%s10775 + $0x4] sm:$0xf]
        %v10778 = vld [vmem:[%s10775 + $0x8] sm:$0xf]
        %v10779 = vld [vmem:[%s10775 + $0xc] sm:$0xf]
        %v10780 = vld [vmem:[%s10775 + $0x10] sm:$0xf]
        %v10781 = vld [vmem:[%s10775 + $0x14] sm:$0xf]
        %v10782 = vld [vmem:[%s10775 + $0x18] sm:$0xf]
        %v10783 = vld [vmem:[%s10775 + $0x1c] sm:$0xf]
        %v10792 = vunpack.c.l.b16 %v10776
        %v10793 = vunpack.c.l.b16 %v10777
        %v10794 = vunpack.c.l.b16 %v10778
        %v10795 = vunpack.c.l.b16 %v10779
        %v10796 = vunpack.c.l.b16 %v10780
        %v10797 = vunpack.c.l.b16 %v10781
        %v10798 = vunpack.c.l.b16 %v10782
        %v10799 = vunpack.c.l.b16 %v10783
        %v10800 = vpack.c.b16 %v10793, %v10792
        %v10801 = vpack.c.b16 %v10795, %v10794
        %v10802 = vpack.c.b16 %v10797, %v10796
        %v10803 = vpack.c.b16 %v10799, %v10798
        %v10809 = vsel %vm7730, %v9357, 0
        %10811 = vmatpush.bf16.msra.mxu0 0
        %10812 = vmatpush.bf16.msra.mxu0 0
        %10813 = vmatpush.bf16.msra.mxu0 0
        %10814 = vmatpush.bf16.msra.mxu0 0
        %10815 = vmatpush.bf16.msra.mxu0 %v10803
        %10816 = vmatpush.bf16.msra.mxu0 %v10802
        %10817 = vmatpush.bf16.msra.mxu0 %v10801
        %10818 = vmatpush.bf16.msra.mxu0 %v10800
        %10819 = vmatmul.bf16.gmra.mxu0 %v10809
        %v10820 = vpop.f32.mrf.mxu0
        %v10821 = vadd.f32 0.0, %v10820
        %v10822 = vpop.f32.mrf.mxu0
        %10823 = vdwg.mxu0
        %v10824 = vadd.f32 %v10774, %v10821
        %s10825 = scalar_lea.vmem %s7, 928
        %v10826 = vld [vmem:[%s10825] sm:$0xf]
        %v10827 = vld [vmem:[%s10825 + $0x4] sm:$0xf]
        %v10828 = vld [vmem:[%s10825 + $0x8] sm:$0xf]
        %v10829 = vld [vmem:[%s10825 + $0xc] sm:$0xf]
        %v10830 = vld [vmem:[%s10825 + $0x10] sm:$0xf]
        %v10831 = vld [vmem:[%s10825 + $0x14] sm:$0xf]
        %v10832 = vld [vmem:[%s10825 + $0x18] sm:$0xf]
        %v10833 = vld [vmem:[%s10825 + $0x1c] sm:$0xf]
        %v10842 = vunpack.c.l.b16 %v10826
        %v10843 = vunpack.c.l.b16 %v10827
        %v10844 = vunpack.c.l.b16 %v10828
        %v10845 = vunpack.c.l.b16 %v10829
        %v10846 = vunpack.c.l.b16 %v10830
        %v10847 = vunpack.c.l.b16 %v10831
        %v10848 = vunpack.c.l.b16 %v10832
        %v10849 = vunpack.c.l.b16 %v10833
        %v10850 = vpack.c.b16 %v10843, %v10842
        %v10851 = vpack.c.b16 %v10845, %v10844
        %v10852 = vpack.c.b16 %v10847, %v10846
        %v10853 = vpack.c.b16 %v10849, %v10848
        %v10859 = vsel %vm7730, %v9358, 0
        %10861 = vmatpush.bf16.msra.mxu0 0
        %10862 = vmatpush.bf16.msra.mxu0 0
        %10863 = vmatpush.bf16.msra.mxu0 0
        %10864 = vmatpush.bf16.msra.mxu0 0
        %10865 = vmatpush.bf16.msra.mxu0 %v10853
        %10866 = vmatpush.bf16.msra.mxu0 %v10852
        %10867 = vmatpush.bf16.msra.mxu0 %v10851
        %10868 = vmatpush.bf16.msra.mxu0 %v10850
        %10869 = vmatmul.bf16.gmra.mxu0 %v10859
        %v10870 = vpop.f32.mrf.mxu0
        %v10871 = vadd.f32 0.0, %v10870
        %v10872 = vpop.f32.mrf.mxu0
        %10873 = vdwg.mxu0
        %v10874 = vadd.f32 %v10824, %v10871
        %s10875 = scalar_lea.vmem %s7, 960
        %v10876 = vld [vmem:[%s10875] sm:$0xf]
        %v10877 = vld [vmem:[%s10875 + $0x4] sm:$0xf]
        %v10878 = vld [vmem:[%s10875 + $0x8] sm:$0xf]
        %v10879 = vld [vmem:[%s10875 + $0xc] sm:$0xf]
        %v10880 = vld [vmem:[%s10875 + $0x10] sm:$0xf]
        %v10881 = vld [vmem:[%s10875 + $0x14] sm:$0xf]
        %v10882 = vld [vmem:[%s10875 + $0x18] sm:$0xf]
        %v10883 = vld [vmem:[%s10875 + $0x1c] sm:$0xf]
        %v10892 = vunpack.c.l.b16 %v10876
        %v10893 = vunpack.c.l.b16 %v10877
        %v10894 = vunpack.c.l.b16 %v10878
        %v10895 = vunpack.c.l.b16 %v10879
        %v10896 = vunpack.c.l.b16 %v10880
        %v10897 = vunpack.c.l.b16 %v10881
        %v10898 = vunpack.c.l.b16 %v10882
        %v10899 = vunpack.c.l.b16 %v10883
        %v10900 = vpack.c.b16 %v10893, %v10892
        %v10901 = vpack.c.b16 %v10895, %v10894
        %v10902 = vpack.c.b16 %v10897, %v10896
        %v10903 = vpack.c.b16 %v10899, %v10898
        %v10909 = vsel %vm7730, %v9359, 0
        %10911 = vmatpush.bf16.msra.mxu0 0
        %10912 = vmatpush.bf16.msra.mxu0 0
        %10913 = vmatpush.bf16.msra.mxu0 0
        %10914 = vmatpush.bf16.msra.mxu0 0
        %10915 = vmatpush.bf16.msra.mxu0 %v10903
        %10916 = vmatpush.bf16.msra.mxu0 %v10902
        %10917 = vmatpush.bf16.msra.mxu0 %v10901
        %10918 = vmatpush.bf16.msra.mxu0 %v10900
        %10919 = vmatmul.bf16.gmra.mxu0 %v10909
        %v10920 = vpop.f32.mrf.mxu0
        %v10921 = vadd.f32 0.0, %v10920
        %v10922 = vpop.f32.mrf.mxu0
        %10923 = vdwg.mxu0
        %v10924 = vadd.f32 %v10874, %v10921
        %s10925 = scalar_lea.vmem %s7, 992
        %v10926 = vld [vmem:[%s10925] sm:$0xf]
        %v10927 = vld [vmem:[%s10925 + $0x4] sm:$0xf]
        %v10928 = vld [vmem:[%s10925 + $0x8] sm:$0xf]
        %v10929 = vld [vmem:[%s10925 + $0xc] sm:$0xf]
        %v10930 = vld [vmem:[%s10925 + $0x10] sm:$0xf]
        %v10931 = vld [vmem:[%s10925 + $0x14] sm:$0xf]
        %v10932 = vld [vmem:[%s10925 + $0x18] sm:$0xf]
        %v10933 = vld [vmem:[%s10925 + $0x1c] sm:$0xf]
        %v10942 = vunpack.c.l.b16 %v10926
        %v10943 = vunpack.c.l.b16 %v10927
        %v10944 = vunpack.c.l.b16 %v10928
        %v10945 = vunpack.c.l.b16 %v10929
        %v10946 = vunpack.c.l.b16 %v10930
        %v10947 = vunpack.c.l.b16 %v10931
        %v10948 = vunpack.c.l.b16 %v10932
        %v10949 = vunpack.c.l.b16 %v10933
        %v10950 = vpack.c.b16 %v10943, %v10942
        %v10951 = vpack.c.b16 %v10945, %v10944
        %v10952 = vpack.c.b16 %v10947, %v10946
        %v10953 = vpack.c.b16 %v10949, %v10948
        %v10959 = vsel %vm7730, %v9360, 0
        %10961 = vmatpush.bf16.msra.mxu0 0
        %10962 = vmatpush.bf16.msra.mxu0 0
        %10963 = vmatpush.bf16.msra.mxu0 0
        %10964 = vmatpush.bf16.msra.mxu0 0
        %10965 = vmatpush.bf16.msra.mxu0 %v10953
        %10966 = vmatpush.bf16.msra.mxu0 %v10952
        %10967 = vmatpush.bf16.msra.mxu0 %v10951
        %10968 = vmatpush.bf16.msra.mxu0 %v10950
        %10969 = vmatmul.bf16.gmra.mxu0 %v10959
        %v10970 = vpop.f32.mrf.mxu0
        %v10971 = vadd.f32 0.0, %v10970
        %v10972 = vpop.f32.mrf.mxu0
        %10973 = vdwg.mxu0
        %v10974 = vadd.f32 %v10924, %v10971
        %s10975 = scalar_lea.vmem %s7, 1024
        %v10976 = vld [vmem:[%s10975] sm:$0xf]
        %v10977 = vld [vmem:[%s10975 + $0x4] sm:$0xf]
        %v10978 = vld [vmem:[%s10975 + $0x8] sm:$0xf]
        %v10979 = vld [vmem:[%s10975 + $0xc] sm:$0xf]
        %v10980 = vld [vmem:[%s10975 + $0x10] sm:$0xf]
        %v10981 = vld [vmem:[%s10975 + $0x14] sm:$0xf]
        %v10982 = vld [vmem:[%s10975 + $0x18] sm:$0xf]
        %v10983 = vld [vmem:[%s10975 + $0x1c] sm:$0xf]
        %v10992 = vunpack.c.l.b16 %v10976
        %v10993 = vunpack.c.l.b16 %v10977
        %v10994 = vunpack.c.l.b16 %v10978
        %v10995 = vunpack.c.l.b16 %v10979
        %v10996 = vunpack.c.l.b16 %v10980
        %v10997 = vunpack.c.l.b16 %v10981
        %v10998 = vunpack.c.l.b16 %v10982
        %v10999 = vunpack.c.l.b16 %v10983
        %v11000 = vpack.c.b16 %v10993, %v10992
        %v11001 = vpack.c.b16 %v10995, %v10994
        %v11002 = vpack.c.b16 %v10997, %v10996
        %v11003 = vpack.c.b16 %v10999, %v10998
        %v11009 = vsel %vm7730, %v9361, 0
        %11011 = vmatpush.bf16.msra.mxu0 0
        %11012 = vmatpush.bf16.msra.mxu0 0
        %11013 = vmatpush.bf16.msra.mxu0 0
        %11014 = vmatpush.bf16.msra.mxu0 0
        %11015 = vmatpush.bf16.msra.mxu0 %v11003
        %11016 = vmatpush.bf16.msra.mxu0 %v11002
        %11017 = vmatpush.bf16.msra.mxu0 %v11001
        %11018 = vmatpush.bf16.msra.mxu0 %v11000
        %11019 = vmatmul.bf16.gmra.mxu0 %v11009
        %v11020 = vpop.f32.mrf.mxu0
        %v11021 = vadd.f32 0.0, %v11020
        %v11022 = vpop.f32.mrf.mxu0
        %11023 = vdwg.mxu0
        %v11024 = vadd.f32 %v10974, %v11021
        %s11025 = scalar_lea.vmem %s7, 1056
        %v11026 = vld [vmem:[%s11025] sm:$0xf]
        %v11027 = vld [vmem:[%s11025 + $0x4] sm:$0xf]
        %v11028 = vld [vmem:[%s11025 + $0x8] sm:$0xf]
        %v11029 = vld [vmem:[%s11025 + $0xc] sm:$0xf]
        %v11030 = vld [vmem:[%s11025 + $0x10] sm:$0xf]
        %v11031 = vld [vmem:[%s11025 + $0x14] sm:$0xf]
        %v11032 = vld [vmem:[%s11025 + $0x18] sm:$0xf]
        %v11033 = vld [vmem:[%s11025 + $0x1c] sm:$0xf]
        %v11042 = vunpack.c.l.b16 %v11026
        %v11043 = vunpack.c.l.b16 %v11027
        %v11044 = vunpack.c.l.b16 %v11028
        %v11045 = vunpack.c.l.b16 %v11029
        %v11046 = vunpack.c.l.b16 %v11030
        %v11047 = vunpack.c.l.b16 %v11031
        %v11048 = vunpack.c.l.b16 %v11032
        %v11049 = vunpack.c.l.b16 %v11033
        %v11050 = vpack.c.b16 %v11043, %v11042
        %v11051 = vpack.c.b16 %v11045, %v11044
        %v11052 = vpack.c.b16 %v11047, %v11046
        %v11053 = vpack.c.b16 %v11049, %v11048
        %v11059 = vsel %vm7730, %v9362, 0
        %11061 = vmatpush.bf16.msra.mxu0 0
        %11062 = vmatpush.bf16.msra.mxu0 0
        %11063 = vmatpush.bf16.msra.mxu0 0
        %11064 = vmatpush.bf16.msra.mxu0 0
        %11065 = vmatpush.bf16.msra.mxu0 %v11053
        %11066 = vmatpush.bf16.msra.mxu0 %v11052
        %11067 = vmatpush.bf16.msra.mxu0 %v11051
        %11068 = vmatpush.bf16.msra.mxu0 %v11050
        %11069 = vmatmul.bf16.gmra.mxu0 %v11059
        %v11070 = vpop.f32.mrf.mxu0
        %v11071 = vadd.f32 0.0, %v11070
        %v11072 = vpop.f32.mrf.mxu0
        %11073 = vdwg.mxu0
        %v11074 = vadd.f32 %v11024, %v11071
        %s11075 = scalar_lea.vmem %s7, 1088
        %v11076 = vld [vmem:[%s11075] sm:$0xf]
        %v11077 = vld [vmem:[%s11075 + $0x4] sm:$0xf]
        %v11078 = vld [vmem:[%s11075 + $0x8] sm:$0xf]
        %v11079 = vld [vmem:[%s11075 + $0xc] sm:$0xf]
        %v11080 = vld [vmem:[%s11075 + $0x10] sm:$0xf]
        %v11081 = vld [vmem:[%s11075 + $0x14] sm:$0xf]
        %v11082 = vld [vmem:[%s11075 + $0x18] sm:$0xf]
        %v11083 = vld [vmem:[%s11075 + $0x1c] sm:$0xf]
        %v11092 = vunpack.c.l.b16 %v11076
        %v11093 = vunpack.c.l.b16 %v11077
        %v11094 = vunpack.c.l.b16 %v11078
        %v11095 = vunpack.c.l.b16 %v11079
        %v11096 = vunpack.c.l.b16 %v11080
        %v11097 = vunpack.c.l.b16 %v11081
        %v11098 = vunpack.c.l.b16 %v11082
        %v11099 = vunpack.c.l.b16 %v11083
        %v11100 = vpack.c.b16 %v11093, %v11092
        %v11101 = vpack.c.b16 %v11095, %v11094
        %v11102 = vpack.c.b16 %v11097, %v11096
        %v11103 = vpack.c.b16 %v11099, %v11098
        %v11109 = vsel %vm7730, %v9363, 0
        %11111 = vmatpush.bf16.msra.mxu0 0
        %11112 = vmatpush.bf16.msra.mxu0 0
        %11113 = vmatpush.bf16.msra.mxu0 0
        %11114 = vmatpush.bf16.msra.mxu0 0
        %11115 = vmatpush.bf16.msra.mxu0 %v11103
        %11116 = vmatpush.bf16.msra.mxu0 %v11102
        %11117 = vmatpush.bf16.msra.mxu0 %v11101
        %11118 = vmatpush.bf16.msra.mxu0 %v11100
        %11119 = vmatmul.bf16.gmra.mxu0 %v11109
        %v11120 = vpop.f32.mrf.mxu0
        %v11121 = vadd.f32 0.0, %v11120
        %v11122 = vpop.f32.mrf.mxu0
        %11123 = vdwg.mxu0
        %v11124 = vadd.f32 %v11074, %v11121
        %s11125 = scalar_lea.vmem %s7, 1120
        %v11126 = vld [vmem:[%s11125] sm:$0xf]
        %v11127 = vld [vmem:[%s11125 + $0x4] sm:$0xf]
        %v11128 = vld [vmem:[%s11125 + $0x8] sm:$0xf]
        %v11129 = vld [vmem:[%s11125 + $0xc] sm:$0xf]
        %v11130 = vld [vmem:[%s11125 + $0x10] sm:$0xf]
        %v11131 = vld [vmem:[%s11125 + $0x14] sm:$0xf]
        %v11132 = vld [vmem:[%s11125 + $0x18] sm:$0xf]
        %v11133 = vld [vmem:[%s11125 + $0x1c] sm:$0xf]
        %v11142 = vunpack.c.l.b16 %v11126
        %v11143 = vunpack.c.l.b16 %v11127
        %v11144 = vunpack.c.l.b16 %v11128
        %v11145 = vunpack.c.l.b16 %v11129
        %v11146 = vunpack.c.l.b16 %v11130
        %v11147 = vunpack.c.l.b16 %v11131
        %v11148 = vunpack.c.l.b16 %v11132
        %v11149 = vunpack.c.l.b16 %v11133
        %v11150 = vpack.c.b16 %v11143, %v11142
        %v11151 = vpack.c.b16 %v11145, %v11144
        %v11152 = vpack.c.b16 %v11147, %v11146
        %v11153 = vpack.c.b16 %v11149, %v11148
        %v11159 = vsel %vm7730, %v9364, 0
        %11161 = vmatpush.bf16.msra.mxu0 0
        %11162 = vmatpush.bf16.msra.mxu0 0
        %11163 = vmatpush.bf16.msra.mxu0 0
        %11164 = vmatpush.bf16.msra.mxu0 0
        %11165 = vmatpush.bf16.msra.mxu0 %v11153
        %11166 = vmatpush.bf16.msra.mxu0 %v11152
        %11167 = vmatpush.bf16.msra.mxu0 %v11151
        %11168 = vmatpush.bf16.msra.mxu0 %v11150
        %11169 = vmatmul.bf16.gmra.mxu0 %v11159
        %v11170 = vpop.f32.mrf.mxu0
        %v11171 = vadd.f32 0.0, %v11170
        %v11172 = vpop.f32.mrf.mxu0
        %11173 = vdwg.mxu0
        %v11174 = vadd.f32 %v11124, %v11171
        %s11175 = scalar_lea.vmem %s7, 1152
        %v11176 = vld [vmem:[%s11175] sm:$0xf]
        %v11177 = vld [vmem:[%s11175 + $0x4] sm:$0xf]
        %v11178 = vld [vmem:[%s11175 + $0x8] sm:$0xf]
        %v11179 = vld [vmem:[%s11175 + $0xc] sm:$0xf]
        %v11180 = vld [vmem:[%s11175 + $0x10] sm:$0xf]
        %v11181 = vld [vmem:[%s11175 + $0x14] sm:$0xf]
        %v11182 = vld [vmem:[%s11175 + $0x18] sm:$0xf]
        %v11183 = vld [vmem:[%s11175 + $0x1c] sm:$0xf]
        %v11192 = vunpack.c.l.b16 %v11176
        %v11193 = vunpack.c.l.b16 %v11177
        %v11194 = vunpack.c.l.b16 %v11178
        %v11195 = vunpack.c.l.b16 %v11179
        %v11196 = vunpack.c.l.b16 %v11180
        %v11197 = vunpack.c.l.b16 %v11181
        %v11198 = vunpack.c.l.b16 %v11182
        %v11199 = vunpack.c.l.b16 %v11183
        %v11200 = vpack.c.b16 %v11193, %v11192
        %v11201 = vpack.c.b16 %v11195, %v11194
        %v11202 = vpack.c.b16 %v11197, %v11196
        %v11203 = vpack.c.b16 %v11199, %v11198
        %v11209 = vsel %vm7730, %v9365, 0
        %11211 = vmatpush.bf16.msra.mxu0 0
        %11212 = vmatpush.bf16.msra.mxu0 0
        %11213 = vmatpush.bf16.msra.mxu0 0
        %11214 = vmatpush.bf16.msra.mxu0 0
        %11215 = vmatpush.bf16.msra.mxu0 %v11203
        %11216 = vmatpush.bf16.msra.mxu0 %v11202
        %11217 = vmatpush.bf16.msra.mxu0 %v11201
        %11218 = vmatpush.bf16.msra.mxu0 %v11200
        %11219 = vmatmul.bf16.gmra.mxu0 %v11209
        %v11220 = vpop.f32.mrf.mxu0
        %v11221 = vadd.f32 0.0, %v11220
        %v11222 = vpop.f32.mrf.mxu0
        %11223 = vdwg.mxu0
        %v11224 = vadd.f32 %v11174, %v11221
        %s11225 = scalar_lea.vmem %s7, 1184
        %v11226 = vld [vmem:[%s11225] sm:$0xf]
        %v11227 = vld [vmem:[%s11225 + $0x4] sm:$0xf]
        %v11228 = vld [vmem:[%s11225 + $0x8] sm:$0xf]
        %v11229 = vld [vmem:[%s11225 + $0xc] sm:$0xf]
        %v11230 = vld [vmem:[%s11225 + $0x10] sm:$0xf]
        %v11231 = vld [vmem:[%s11225 + $0x14] sm:$0xf]
        %v11232 = vld [vmem:[%s11225 + $0x18] sm:$0xf]
        %v11233 = vld [vmem:[%s11225 + $0x1c] sm:$0xf]
        %v11242 = vunpack.c.l.b16 %v11226
        %v11243 = vunpack.c.l.b16 %v11227
        %v11244 = vunpack.c.l.b16 %v11228
        %v11245 = vunpack.c.l.b16 %v11229
        %v11246 = vunpack.c.l.b16 %v11230
        %v11247 = vunpack.c.l.b16 %v11231
        %v11248 = vunpack.c.l.b16 %v11232
        %v11249 = vunpack.c.l.b16 %v11233
        %v11250 = vpack.c.b16 %v11243, %v11242
        %v11251 = vpack.c.b16 %v11245, %v11244
        %v11252 = vpack.c.b16 %v11247, %v11246
        %v11253 = vpack.c.b16 %v11249, %v11248
        %v11259 = vsel %vm7730, %v9366, 0
        %11261 = vmatpush.bf16.msra.mxu0 0
        %11262 = vmatpush.bf16.msra.mxu0 0
        %11263 = vmatpush.bf16.msra.mxu0 0
        %11264 = vmatpush.bf16.msra.mxu0 0
        %11265 = vmatpush.bf16.msra.mxu0 %v11253
        %11266 = vmatpush.bf16.msra.mxu0 %v11252
        %11267 = vmatpush.bf16.msra.mxu0 %v11251
        %11268 = vmatpush.bf16.msra.mxu0 %v11250
        %11269 = vmatmul.bf16.gmra.mxu0 %v11259
        %v11270 = vpop.f32.mrf.mxu0
        %v11271 = vadd.f32 0.0, %v11270
        %v11272 = vpop.f32.mrf.mxu0
        %11273 = vdwg.mxu0
        %v11274 = vadd.f32 %v11224, %v11271
        %s11275 = scalar_lea.vmem %s7, 1216
        %v11276 = vld [vmem:[%s11275] sm:$0xf]
        %v11277 = vld [vmem:[%s11275 + $0x4] sm:$0xf]
        %v11278 = vld [vmem:[%s11275 + $0x8] sm:$0xf]
        %v11279 = vld [vmem:[%s11275 + $0xc] sm:$0xf]
        %v11280 = vld [vmem:[%s11275 + $0x10] sm:$0xf]
        %v11281 = vld [vmem:[%s11275 + $0x14] sm:$0xf]
        %v11282 = vld [vmem:[%s11275 + $0x18] sm:$0xf]
        %v11283 = vld [vmem:[%s11275 + $0x1c] sm:$0xf]
        %v11292 = vunpack.c.l.b16 %v11276
        %v11293 = vunpack.c.l.b16 %v11277
        %v11294 = vunpack.c.l.b16 %v11278
        %v11295 = vunpack.c.l.b16 %v11279
        %v11296 = vunpack.c.l.b16 %v11280
        %v11297 = vunpack.c.l.b16 %v11281
        %v11298 = vunpack.c.l.b16 %v11282
        %v11299 = vunpack.c.l.b16 %v11283
        %v11300 = vpack.c.b16 %v11293, %v11292
        %v11301 = vpack.c.b16 %v11295, %v11294
        %v11302 = vpack.c.b16 %v11297, %v11296
        %v11303 = vpack.c.b16 %v11299, %v11298
        %v11309 = vsel %vm7730, %v9367, 0
        %11311 = vmatpush.bf16.msra.mxu0 0
        %11312 = vmatpush.bf16.msra.mxu0 0
        %11313 = vmatpush.bf16.msra.mxu0 0
        %11314 = vmatpush.bf16.msra.mxu0 0
        %11315 = vmatpush.bf16.msra.mxu0 %v11303
        %11316 = vmatpush.bf16.msra.mxu0 %v11302
        %11317 = vmatpush.bf16.msra.mxu0 %v11301
        %11318 = vmatpush.bf16.msra.mxu0 %v11300
        %11319 = vmatmul.bf16.gmra.mxu0 %v11309
        %v11320 = vpop.f32.mrf.mxu0
        %v11321 = vadd.f32 0.0, %v11320
        %v11322 = vpop.f32.mrf.mxu0
        %11323 = vdwg.mxu0
        %v11324 = vadd.f32 %v11274, %v11321
        %s11325 = scalar_lea.vmem %s7, 1248
        %v11326 = vld [vmem:[%s11325] sm:$0xf]
        %v11327 = vld [vmem:[%s11325 + $0x4] sm:$0xf]
        %v11328 = vld [vmem:[%s11325 + $0x8] sm:$0xf]
        %v11329 = vld [vmem:[%s11325 + $0xc] sm:$0xf]
        %v11330 = vld [vmem:[%s11325 + $0x10] sm:$0xf]
        %v11331 = vld [vmem:[%s11325 + $0x14] sm:$0xf]
        %v11332 = vld [vmem:[%s11325 + $0x18] sm:$0xf]
        %v11333 = vld [vmem:[%s11325 + $0x1c] sm:$0xf]
        %v11342 = vunpack.c.l.b16 %v11326
        %v11343 = vunpack.c.l.b16 %v11327
        %v11344 = vunpack.c.l.b16 %v11328
        %v11345 = vunpack.c.l.b16 %v11329
        %v11346 = vunpack.c.l.b16 %v11330
        %v11347 = vunpack.c.l.b16 %v11331
        %v11348 = vunpack.c.l.b16 %v11332
        %v11349 = vunpack.c.l.b16 %v11333
        %v11350 = vpack.c.b16 %v11343, %v11342
        %v11351 = vpack.c.b16 %v11345, %v11344
        %v11352 = vpack.c.b16 %v11347, %v11346
        %v11353 = vpack.c.b16 %v11349, %v11348
        %v11359 = vsel %vm7730, %v9368, 0
        %11361 = vmatpush.bf16.msra.mxu0 0
        %11362 = vmatpush.bf16.msra.mxu0 0
        %11363 = vmatpush.bf16.msra.mxu0 0
        %11364 = vmatpush.bf16.msra.mxu0 0
        %11365 = vmatpush.bf16.msra.mxu0 %v11353
        %11366 = vmatpush.bf16.msra.mxu0 %v11352
        %11367 = vmatpush.bf16.msra.mxu0 %v11351
        %11368 = vmatpush.bf16.msra.mxu0 %v11350
        %11369 = vmatmul.bf16.gmra.mxu0 %v11359
        %v11370 = vpop.f32.mrf.mxu0
        %v11371 = vadd.f32 0.0, %v11370
        %v11372 = vpop.f32.mrf.mxu0
        %11373 = vdwg.mxu0
        %v11374 = vadd.f32 %v11324, %v11371
        %s11375 = scalar_lea.vmem %s7, 1280
        %v11376 = vld [vmem:[%s11375] sm:$0xf]
        %v11377 = vld [vmem:[%s11375 + $0x4] sm:$0xf]
        %v11378 = vld [vmem:[%s11375 + $0x8] sm:$0xf]
        %v11379 = vld [vmem:[%s11375 + $0xc] sm:$0xf]
        %v11380 = vld [vmem:[%s11375 + $0x10] sm:$0xf]
        %v11381 = vld [vmem:[%s11375 + $0x14] sm:$0xf]
        %v11382 = vld [vmem:[%s11375 + $0x18] sm:$0xf]
        %v11383 = vld [vmem:[%s11375 + $0x1c] sm:$0xf]
        %v11392 = vunpack.c.l.b16 %v11376
        %v11393 = vunpack.c.l.b16 %v11377
        %v11394 = vunpack.c.l.b16 %v11378
        %v11395 = vunpack.c.l.b16 %v11379
        %v11396 = vunpack.c.l.b16 %v11380
        %v11397 = vunpack.c.l.b16 %v11381
        %v11398 = vunpack.c.l.b16 %v11382
        %v11399 = vunpack.c.l.b16 %v11383
        %v11400 = vpack.c.b16 %v11393, %v11392
        %v11401 = vpack.c.b16 %v11395, %v11394
        %v11402 = vpack.c.b16 %v11397, %v11396
        %v11403 = vpack.c.b16 %v11399, %v11398
        %v11409 = vsel %vm7730, %v9369, 0
        %11411 = vmatpush.bf16.msra.mxu0 0
        %11412 = vmatpush.bf16.msra.mxu0 0
        %11413 = vmatpush.bf16.msra.mxu0 0
        %11414 = vmatpush.bf16.msra.mxu0 0
        %11415 = vmatpush.bf16.msra.mxu0 %v11403
        %11416 = vmatpush.bf16.msra.mxu0 %v11402
        %11417 = vmatpush.bf16.msra.mxu0 %v11401
        %11418 = vmatpush.bf16.msra.mxu0 %v11400
        %11419 = vmatmul.bf16.gmra.mxu0 %v11409
        %v11420 = vpop.f32.mrf.mxu0
        %v11421 = vadd.f32 0.0, %v11420
        %v11422 = vpop.f32.mrf.mxu0
        %11423 = vdwg.mxu0
        %v11424 = vadd.f32 %v11374, %v11421
        %s11425 = scalar_lea.vmem %s7, 1312
        %v11426 = vld [vmem:[%s11425] sm:$0xf]
        %v11427 = vld [vmem:[%s11425 + $0x4] sm:$0xf]
        %v11428 = vld [vmem:[%s11425 + $0x8] sm:$0xf]
        %v11429 = vld [vmem:[%s11425 + $0xc] sm:$0xf]
        %v11430 = vld [vmem:[%s11425 + $0x10] sm:$0xf]
        %v11431 = vld [vmem:[%s11425 + $0x14] sm:$0xf]
        %v11432 = vld [vmem:[%s11425 + $0x18] sm:$0xf]
        %v11433 = vld [vmem:[%s11425 + $0x1c] sm:$0xf]
        %v11442 = vunpack.c.l.b16 %v11426
        %v11443 = vunpack.c.l.b16 %v11427
        %v11444 = vunpack.c.l.b16 %v11428
        %v11445 = vunpack.c.l.b16 %v11429
        %v11446 = vunpack.c.l.b16 %v11430
        %v11447 = vunpack.c.l.b16 %v11431
        %v11448 = vunpack.c.l.b16 %v11432
        %v11449 = vunpack.c.l.b16 %v11433
        %v11450 = vpack.c.b16 %v11443, %v11442
        %v11451 = vpack.c.b16 %v11445, %v11444
        %v11452 = vpack.c.b16 %v11447, %v11446
        %v11453 = vpack.c.b16 %v11449, %v11448
        %v11459 = vsel %vm7730, %v9370, 0
        %11461 = vmatpush.bf16.msra.mxu0 0
        %11462 = vmatpush.bf16.msra.mxu0 0
        %11463 = vmatpush.bf16.msra.mxu0 0
        %11464 = vmatpush.bf16.msra.mxu0 0
        %11465 = vmatpush.bf16.msra.mxu0 %v11453
        %11466 = vmatpush.bf16.msra.mxu0 %v11452
        %11467 = vmatpush.bf16.msra.mxu0 %v11451
        %11468 = vmatpush.bf16.msra.mxu0 %v11450
        %11469 = vmatmul.bf16.gmra.mxu0 %v11459
        %v11470 = vpop.f32.mrf.mxu0
        %v11471 = vadd.f32 0.0, %v11470
        %v11472 = vpop.f32.mrf.mxu0
        %11473 = vdwg.mxu0
        %v11474 = vadd.f32 %v11424, %v11471
        %s11475 = scalar_lea.vmem %s7, 1344
        %v11476 = vld [vmem:[%s11475] sm:$0xf]
        %v11477 = vld [vmem:[%s11475 + $0x4] sm:$0xf]
        %v11478 = vld [vmem:[%s11475 + $0x8] sm:$0xf]
        %v11479 = vld [vmem:[%s11475 + $0xc] sm:$0xf]
        %v11480 = vld [vmem:[%s11475 + $0x10] sm:$0xf]
        %v11481 = vld [vmem:[%s11475 + $0x14] sm:$0xf]
        %v11482 = vld [vmem:[%s11475 + $0x18] sm:$0xf]
        %v11483 = vld [vmem:[%s11475 + $0x1c] sm:$0xf]
        %v11492 = vunpack.c.l.b16 %v11476
        %v11493 = vunpack.c.l.b16 %v11477
        %v11494 = vunpack.c.l.b16 %v11478
        %v11495 = vunpack.c.l.b16 %v11479
        %v11496 = vunpack.c.l.b16 %v11480
        %v11497 = vunpack.c.l.b16 %v11481
        %v11498 = vunpack.c.l.b16 %v11482
        %v11499 = vunpack.c.l.b16 %v11483
        %v11500 = vpack.c.b16 %v11493, %v11492
        %v11501 = vpack.c.b16 %v11495, %v11494
        %v11502 = vpack.c.b16 %v11497, %v11496
        %v11503 = vpack.c.b16 %v11499, %v11498
        %v11509 = vsel %vm7730, %v9371, 0
        %11511 = vmatpush.bf16.msra.mxu0 0
        %11512 = vmatpush.bf16.msra.mxu0 0
        %11513 = vmatpush.bf16.msra.mxu0 0
        %11514 = vmatpush.bf16.msra.mxu0 0
        %11515 = vmatpush.bf16.msra.mxu0 %v11503
        %11516 = vmatpush.bf16.msra.mxu0 %v11502
        %11517 = vmatpush.bf16.msra.mxu0 %v11501
        %11518 = vmatpush.bf16.msra.mxu0 %v11500
        %11519 = vmatmul.bf16.gmra.mxu0 %v11509
        %v11520 = vpop.f32.mrf.mxu0
        %v11521 = vadd.f32 0.0, %v11520
        %v11522 = vpop.f32.mrf.mxu0
        %11523 = vdwg.mxu0
        %v11524 = vadd.f32 %v11474, %v11521
        %s11525 = scalar_lea.vmem %s7, 1376
        %v11526 = vld [vmem:[%s11525] sm:$0xf]
        %v11527 = vld [vmem:[%s11525 + $0x4] sm:$0xf]
        %v11528 = vld [vmem:[%s11525 + $0x8] sm:$0xf]
        %v11529 = vld [vmem:[%s11525 + $0xc] sm:$0xf]
        %v11530 = vld [vmem:[%s11525 + $0x10] sm:$0xf]
        %v11531 = vld [vmem:[%s11525 + $0x14] sm:$0xf]
        %v11532 = vld [vmem:[%s11525 + $0x18] sm:$0xf]
        %v11533 = vld [vmem:[%s11525 + $0x1c] sm:$0xf]
        %v11542 = vunpack.c.l.b16 %v11526
        %v11543 = vunpack.c.l.b16 %v11527
        %v11544 = vunpack.c.l.b16 %v11528
        %v11545 = vunpack.c.l.b16 %v11529
        %v11546 = vunpack.c.l.b16 %v11530
        %v11547 = vunpack.c.l.b16 %v11531
        %v11548 = vunpack.c.l.b16 %v11532
        %v11549 = vunpack.c.l.b16 %v11533
        %v11550 = vpack.c.b16 %v11543, %v11542
        %v11551 = vpack.c.b16 %v11545, %v11544
        %v11552 = vpack.c.b16 %v11547, %v11546
        %v11553 = vpack.c.b16 %v11549, %v11548
        %v11559 = vsel %vm7730, %v9372, 0
        %11561 = vmatpush.bf16.msra.mxu0 0
        %11562 = vmatpush.bf16.msra.mxu0 0
        %11563 = vmatpush.bf16.msra.mxu0 0
        %11564 = vmatpush.bf16.msra.mxu0 0
        %11565 = vmatpush.bf16.msra.mxu0 %v11553
        %11566 = vmatpush.bf16.msra.mxu0 %v11552
        %11567 = vmatpush.bf16.msra.mxu0 %v11551
        %11568 = vmatpush.bf16.msra.mxu0 %v11550
        %11569 = vmatmul.bf16.gmra.mxu0 %v11559
        %v11570 = vpop.f32.mrf.mxu0
        %v11571 = vadd.f32 0.0, %v11570
        %v11572 = vpop.f32.mrf.mxu0
        %11573 = vdwg.mxu0
        %v11574 = vadd.f32 %v11524, %v11571
        %s11575 = scalar_lea.vmem %s7, 1408
        %v11576 = vld [vmem:[%s11575] sm:$0xf]
        %v11577 = vld [vmem:[%s11575 + $0x4] sm:$0xf]
        %v11578 = vld [vmem:[%s11575 + $0x8] sm:$0xf]
        %v11579 = vld [vmem:[%s11575 + $0xc] sm:$0xf]
        %v11580 = vld [vmem:[%s11575 + $0x10] sm:$0xf]
        %v11581 = vld [vmem:[%s11575 + $0x14] sm:$0xf]
        %v11582 = vld [vmem:[%s11575 + $0x18] sm:$0xf]
        %v11583 = vld [vmem:[%s11575 + $0x1c] sm:$0xf]
        %v11592 = vunpack.c.l.b16 %v11576
        %v11593 = vunpack.c.l.b16 %v11577
        %v11594 = vunpack.c.l.b16 %v11578
        %v11595 = vunpack.c.l.b16 %v11579
        %v11596 = vunpack.c.l.b16 %v11580
        %v11597 = vunpack.c.l.b16 %v11581
        %v11598 = vunpack.c.l.b16 %v11582
        %v11599 = vunpack.c.l.b16 %v11583
        %v11600 = vpack.c.b16 %v11593, %v11592
        %v11601 = vpack.c.b16 %v11595, %v11594
        %v11602 = vpack.c.b16 %v11597, %v11596
        %v11603 = vpack.c.b16 %v11599, %v11598
        %v11609 = vsel %vm7730, %v9373, 0
        %11611 = vmatpush.bf16.msra.mxu0 0
        %11612 = vmatpush.bf16.msra.mxu0 0
        %11613 = vmatpush.bf16.msra.mxu0 0
        %11614 = vmatpush.bf16.msra.mxu0 0
        %11615 = vmatpush.bf16.msra.mxu0 %v11603
        %11616 = vmatpush.bf16.msra.mxu0 %v11602
        %11617 = vmatpush.bf16.msra.mxu0 %v11601
        %11618 = vmatpush.bf16.msra.mxu0 %v11600
        %11619 = vmatmul.bf16.gmra.mxu0 %v11609
        %v11620 = vpop.f32.mrf.mxu0
        %v11621 = vadd.f32 0.0, %v11620
        %v11622 = vpop.f32.mrf.mxu0
        %11623 = vdwg.mxu0
        %v11624 = vadd.f32 %v11574, %v11621
        %s11625 = scalar_lea.vmem %s7, 1440
        %v11626 = vld [vmem:[%s11625] sm:$0xf]
        %v11627 = vld [vmem:[%s11625 + $0x4] sm:$0xf]
        %v11628 = vld [vmem:[%s11625 + $0x8] sm:$0xf]
        %v11629 = vld [vmem:[%s11625 + $0xc] sm:$0xf]
        %v11630 = vld [vmem:[%s11625 + $0x10] sm:$0xf]
        %v11631 = vld [vmem:[%s11625 + $0x14] sm:$0xf]
        %v11632 = vld [vmem:[%s11625 + $0x18] sm:$0xf]
        %v11633 = vld [vmem:[%s11625 + $0x1c] sm:$0xf]
        %v11642 = vunpack.c.l.b16 %v11626
        %v11643 = vunpack.c.l.b16 %v11627
        %v11644 = vunpack.c.l.b16 %v11628
        %v11645 = vunpack.c.l.b16 %v11629
        %v11646 = vunpack.c.l.b16 %v11630
        %v11647 = vunpack.c.l.b16 %v11631
        %v11648 = vunpack.c.l.b16 %v11632
        %v11649 = vunpack.c.l.b16 %v11633
        %v11650 = vpack.c.b16 %v11643, %v11642
        %v11651 = vpack.c.b16 %v11645, %v11644
        %v11652 = vpack.c.b16 %v11647, %v11646
        %v11653 = vpack.c.b16 %v11649, %v11648
        %v11659 = vsel %vm7730, %v9374, 0
        %11661 = vmatpush.bf16.msra.mxu0 0
        %11662 = vmatpush.bf16.msra.mxu0 0
        %11663 = vmatpush.bf16.msra.mxu0 0
        %11664 = vmatpush.bf16.msra.mxu0 0
        %11665 = vmatpush.bf16.msra.mxu0 %v11653
        %11666 = vmatpush.bf16.msra.mxu0 %v11652
        %11667 = vmatpush.bf16.msra.mxu0 %v11651
        %11668 = vmatpush.bf16.msra.mxu0 %v11650
        %11669 = vmatmul.bf16.gmra.mxu0 %v11659
        %v11670 = vpop.f32.mrf.mxu0
        %v11671 = vadd.f32 0.0, %v11670
        %v11672 = vpop.f32.mrf.mxu0
        %11673 = vdwg.mxu0
        %v11674 = vadd.f32 %v11624, %v11671
        %s11675 = scalar_lea.vmem %s7, 1472
        %v11676 = vld [vmem:[%s11675] sm:$0xf]
        %v11677 = vld [vmem:[%s11675 + $0x4] sm:$0xf]
        %v11678 = vld [vmem:[%s11675 + $0x8] sm:$0xf]
        %v11679 = vld [vmem:[%s11675 + $0xc] sm:$0xf]
        %v11680 = vld [vmem:[%s11675 + $0x10] sm:$0xf]
        %v11681 = vld [vmem:[%s11675 + $0x14] sm:$0xf]
        %v11682 = vld [vmem:[%s11675 + $0x18] sm:$0xf]
        %v11683 = vld [vmem:[%s11675 + $0x1c] sm:$0xf]
        %v11692 = vunpack.c.l.b16 %v11676
        %v11693 = vunpack.c.l.b16 %v11677
        %v11694 = vunpack.c.l.b16 %v11678
        %v11695 = vunpack.c.l.b16 %v11679
        %v11696 = vunpack.c.l.b16 %v11680
        %v11697 = vunpack.c.l.b16 %v11681
        %v11698 = vunpack.c.l.b16 %v11682
        %v11699 = vunpack.c.l.b16 %v11683
        %v11700 = vpack.c.b16 %v11693, %v11692
        %v11701 = vpack.c.b16 %v11695, %v11694
        %v11702 = vpack.c.b16 %v11697, %v11696
        %v11703 = vpack.c.b16 %v11699, %v11698
        %v11709 = vsel %vm7730, %v9375, 0
        %11711 = vmatpush.bf16.msra.mxu0 0
        %11712 = vmatpush.bf16.msra.mxu0 0
        %11713 = vmatpush.bf16.msra.mxu0 0
        %11714 = vmatpush.bf16.msra.mxu0 0
        %11715 = vmatpush.bf16.msra.mxu0 %v11703
        %11716 = vmatpush.bf16.msra.mxu0 %v11702
        %11717 = vmatpush.bf16.msra.mxu0 %v11701
        %11718 = vmatpush.bf16.msra.mxu0 %v11700
        %11719 = vmatmul.bf16.gmra.mxu0 %v11709
        %v11720 = vpop.f32.mrf.mxu0
        %v11721 = vadd.f32 0.0, %v11720
        %v11722 = vpop.f32.mrf.mxu0
        %11723 = vdwg.mxu0
        %v11724 = vadd.f32 %v11674, %v11721
        %s11725 = scalar_lea.vmem %s7, 1504
        %v11726 = vld [vmem:[%s11725] sm:$0xf]
        %v11727 = vld [vmem:[%s11725 + $0x4] sm:$0xf]
        %v11728 = vld [vmem:[%s11725 + $0x8] sm:$0xf]
        %v11729 = vld [vmem:[%s11725 + $0xc] sm:$0xf]
        %v11730 = vld [vmem:[%s11725 + $0x10] sm:$0xf]
        %v11731 = vld [vmem:[%s11725 + $0x14] sm:$0xf]
        %v11732 = vld [vmem:[%s11725 + $0x18] sm:$0xf]
        %v11733 = vld [vmem:[%s11725 + $0x1c] sm:$0xf]
        %v11742 = vunpack.c.l.b16 %v11726
        %v11743 = vunpack.c.l.b16 %v11727
        %v11744 = vunpack.c.l.b16 %v11728
        %v11745 = vunpack.c.l.b16 %v11729
        %v11746 = vunpack.c.l.b16 %v11730
        %v11747 = vunpack.c.l.b16 %v11731
        %v11748 = vunpack.c.l.b16 %v11732
        %v11749 = vunpack.c.l.b16 %v11733
        %v11750 = vpack.c.b16 %v11743, %v11742
        %v11751 = vpack.c.b16 %v11745, %v11744
        %v11752 = vpack.c.b16 %v11747, %v11746
        %v11753 = vpack.c.b16 %v11749, %v11748
        %v11759 = vsel %vm7730, %v9376, 0
        %11761 = vmatpush.bf16.msra.mxu0 0
        %11762 = vmatpush.bf16.msra.mxu0 0
        %11763 = vmatpush.bf16.msra.mxu0 0
        %11764 = vmatpush.bf16.msra.mxu0 0
        %11765 = vmatpush.bf16.msra.mxu0 %v11753
        %11766 = vmatpush.bf16.msra.mxu0 %v11752
        %11767 = vmatpush.bf16.msra.mxu0 %v11751
        %11768 = vmatpush.bf16.msra.mxu0 %v11750
        %11769 = vmatmul.bf16.gmra.mxu0 %v11759
        %v11770 = vpop.f32.mrf.mxu0
        %v11771 = vadd.f32 0.0, %v11770
        %v11772 = vpop.f32.mrf.mxu0
        %11773 = vdwg.mxu0
        %v11774 = vadd.f32 %v11724, %v11771
        %s11775 = scalar_lea.vmem %s7, 1536
        %v11776 = vld [vmem:[%s11775] sm:$0xf]
        %v11777 = vld [vmem:[%s11775 + $0x4] sm:$0xf]
        %v11778 = vld [vmem:[%s11775 + $0x8] sm:$0xf]
        %v11779 = vld [vmem:[%s11775 + $0xc] sm:$0xf]
        %v11780 = vld [vmem:[%s11775 + $0x10] sm:$0xf]
        %v11781 = vld [vmem:[%s11775 + $0x14] sm:$0xf]
        %v11782 = vld [vmem:[%s11775 + $0x18] sm:$0xf]
        %v11783 = vld [vmem:[%s11775 + $0x1c] sm:$0xf]
        %v11792 = vunpack.c.l.b16 %v11776
        %v11793 = vunpack.c.l.b16 %v11777
        %v11794 = vunpack.c.l.b16 %v11778
        %v11795 = vunpack.c.l.b16 %v11779
        %v11796 = vunpack.c.l.b16 %v11780
        %v11797 = vunpack.c.l.b16 %v11781
        %v11798 = vunpack.c.l.b16 %v11782
        %v11799 = vunpack.c.l.b16 %v11783
        %v11800 = vpack.c.b16 %v11793, %v11792
        %v11801 = vpack.c.b16 %v11795, %v11794
        %v11802 = vpack.c.b16 %v11797, %v11796
        %v11803 = vpack.c.b16 %v11799, %v11798
        %v11809 = vsel %vm7730, %v9377, 0
        %11811 = vmatpush.bf16.msra.mxu0 0
        %11812 = vmatpush.bf16.msra.mxu0 0
        %11813 = vmatpush.bf16.msra.mxu0 0
        %11814 = vmatpush.bf16.msra.mxu0 0
        %11815 = vmatpush.bf16.msra.mxu0 %v11803
        %11816 = vmatpush.bf16.msra.mxu0 %v11802
        %11817 = vmatpush.bf16.msra.mxu0 %v11801
        %11818 = vmatpush.bf16.msra.mxu0 %v11800
        %11819 = vmatmul.bf16.gmra.mxu0 %v11809
        %v11820 = vpop.f32.mrf.mxu0
        %v11821 = vadd.f32 0.0, %v11820
        %v11822 = vpop.f32.mrf.mxu0
        %11823 = vdwg.mxu0
        %v11824 = vadd.f32 %v11774, %v11821
        %v11825 = vld [vmem:[%s8] sm:$0x1]
        %v11827 = vperm.slane %v11825, 0
        %v11829 = vadd.f32 %v11824, %v11827
        %vm11830 = vcmask 261120
        %11831 = vst.msk [vmem:[%s325] sm:$0xff] %vm11830, %v11829
        %s11832 = sand.u32 %s225, 1
        %s11833 = scalar_lea.sflag [#allocation3], %s11832
        %s11834 = sand.u32 %s225, 1
        %s11835 = smul.addr %s11834, 8
        %s11836 = scalar_lea.vmem [#allocation2], %s11835
        // Predicated region
        $region57: #{_forward.1} parent=55 // pred_check
          %p11837 = pneg %p235
        $region58: #{_forward.1} parent=55 // pred_check_branch
          %11839 = sbr.rel (%p11837) target = $region60
        $region59: #{_forward.1} parent=55 // pred_region
          %11841 = vsyncadd %s11833, 0
          %s11842 = smul.addr %s23, 8
          %s11843 = scalar_lea.hbm %s9, %s11842
          %s11845 = sshll.u32 %s11836, 4
          %s11846 = int_to_ptr.vmem [resolvable:$true] %s11845
          %s11847 = sshll.u32 %s11843, 4
          %s11848 = int_to_ptr.hbm [resolvable:$true] %s11847
          %11850 = dma.vmem_to_hbm [thread:$0]  %s11846, 128, %s11848, %s11833
        $region60: #{_forward.1} parent=55 // pred_fallthru
          _
      $region56: #{_forward.1} parent=5 // pred_fallthru
        _
      %p11851 = scmp.le.s32.totalorder 2, %s18
      // Predicated region
      $region61: #{_forward.1} parent=5 // pred_check
        %p11852 = pneg %p11851
      $region62: #{_forward.1} parent=5 // pred_check_branch
        %11854 = sbr.rel (%p11852) target = $region64
      $region63: #{_forward.1} parent=5 // pred_region
        %s11855 = ssub.s32 %s18, 2
        // Predicated region
        $region65: #{_forward.1} parent=63 // pred_check
          %p11856 = pneg %p241
        $region66: #{_forward.1} parent=63 // pred_check_branch
          %11858 = sbr.rel (%p11856) target = $region68
        $region67: #{_forward.1} parent=63 // pred_region
          %s11859 = sand.u32 %s226, 1
          %s11860 = scalar_lea.sflag [#allocation3], %s11859
          %s11861 = sand.u32 %s226, 1
          %s11862 = smul.addr %s11861, 8
          %s11863 = scalar_lea.vmem [#allocation2], %s11862
          %11865 = dma.done %s11860, 128
        $region68: #{_forward.1} parent=63 // pred_fallthru
          _
      $region64: #{_forward.1} parent=5 // pred_fallthru
        _
    $region6: #{_forward.1} parent=1 // loop_footer
      %s22 = sadd.s32 1, %s18
    $region7: #{_forward.1} parent=1 // loop_footer_branch
      %17 = sbr.rel target = $region3
    $region8: #{_forward.1} parent=1 // loop_exit
      _
    %11866 = vsyncpa [#allocation3], 1
    %s11867 = scalar_lea.sflag [#allocation3], 1
    %11868 = vsyncpa %s11867, 1

</llo_original>
